<compile_context>
chip_gen: v7x
topology: tpu7x:2x2x1
jax: 0.10.0
libtpu: 0.0.40
codegen_flags: <defaults>
</compile_context>

<pallas_src>
import functools

import jax
import jax.numpy as jnp
from jax import lax
from jax.experimental import pallas as pl
from jax.experimental.pallas import tpu as pltpu


# ---------------------------------------------------------------------------
# in-kernel helpers
# ---------------------------------------------------------------------------

def _group_norm_relu(s, gamma, beta, bsel, bsel_t, gmat2, gmat_t, inv_cnt, eps):
    """relu(GroupNorm(s)) over a (R=B*N, C) token-major slab.

    Per-batch / per-group statistics via one-hot matmuls (stays on the MXU):
    sum & sum-of-squares share one push, mean & mean-square share one push, and
    the channel affine (gamma/beta) is folded into the per-row broadcast matmul
    so the per-element work is a single fused multiply-add + relu.
    """
    C = s.shape[1]
    G = gmat_t.shape[0]
    moments = jnp.dot(bsel_t, jnp.concatenate([s, s * s], axis=1),
                      preferred_element_type=jnp.float32)                    # (B, 2C)
    mom_g = jnp.dot(moments, gmat2, preferred_element_type=jnp.float32) * inv_cnt  # (B, 2G)
    mu_g, ms_g = mom_g[:, :G], mom_g[:, G:]
    inv_g = lax.rsqrt(ms_g - mu_g * mu_g + eps)        # biased variance (matches torch)
    mu_c = jnp.dot(mu_g, gmat_t, preferred_element_type=jnp.float32)         # (B, C)
    inv_c = jnp.dot(inv_g, gmat_t, preferred_element_type=jnp.float32)        # (B, C)
    a_c = inv_c * gamma                                # per-batch per-channel scale
    b_c = beta - mu_c * a_c                            # per-batch per-channel shift
    ab = jnp.dot(bsel, jnp.concatenate([a_c, b_c], axis=1),
                 preferred_element_type=jnp.float32)                          # (R, 2C)
    return jnp.maximum(s * ab[:, :C] + ab[:, C:], 0.0)                        # act = relu


def _encoder_block_kernel(
        scale_ref, x_ref, wid_row_ref, wid_col_ref, hscale_ref,
        hmat2_ref, hmat2_t_ref, bsel_ref, bsel_t_ref, gmat2_ref, gmat_t_ref,
        w_qkv_ref, b_qkv_ref, w_proj_ref, b_proj_ref,
        gn1_g_ref, gn1_b_ref, w_fc1_ref, b_fc1_ref, w_fc2_ref, b_fc2_ref,
        gn2_g_ref, gn2_b_ref, o_ref, *, num_heads, num_groups, eps):
    """Fully fused EncoderBlock forward on a (R, C) token-major slab."""
    R, C = x_ref.shape
    D = C // num_heads
    n_batch = bsel_ref.shape[1]
    inv_cnt = 1.0 / float((R // n_batch) * (C // num_groups))

    x = x_ref[...]                                                   # (R, C) f32

    # 0/1 window mask: tokens stay in raster order, windows expressed as a mask
    mask = jnp.where(wid_col_ref[...] == wid_row_ref[...],
                     jnp.float32(1.0), jnp.float32(0.0))             # (R, R)

    # ---- fused QKV projection (bf16 MXU, f32 accumulation) ----
    qkv = jnp.dot(x.astype(jnp.bfloat16), w_qkv_ref[...],
                  preferred_element_type=jnp.float32) + b_qkv_ref[...]
    q, k, v = qkv[:, :C], qkv[:, C:2 * C], qkv[:, 2 * C:]

    # ---- per-head cosine norms for q AND k in one stacked one-hot matmul pair ----
    sq = jnp.concatenate([q * q, k * k], axis=1)                      # (R, 2C)
    inv = jnp.dot(
        lax.rsqrt(jnp.dot(sq, hmat2_ref[...], preferred_element_type=jnp.float32)
                  + 1e-12),
        hmat2_t_ref[...], preferred_element_type=jnp.float32)          # (R, 2C)
    qn = (q * inv[:, :C] * hscale_ref[...]).astype(jnp.bfloat16)       # logit scale folded in
    kn = (k * inv[:, C:]).astype(jnp.bfloat16)
    vb = v.astype(jnp.bfloat16)

    # ---- windowed attention over all B*H*W tokens at once (window = mask) ----
    outs = []
    for h in range(num_heads):                                        # static unroll
        sl = slice(h * D, (h + 1) * D)
        s = lax.dot_general(qn[:, sl], kn[:, sl], (((1,), (1,)), ((), ())),
                            preferred_element_type=jnp.float32)        # (R, R)
        # cosine logits are bounded by the per-head scale -> shift by that scalar
        # (softmax is shift-invariant) instead of an XLU row-max reduce.
        p = jnp.exp(s - scale_ref[h]) * mask
        r = pl.reciprocal(jnp.sum(p, axis=-1, keepdims=True), approx=True)  # (R, 1)
        outs.append(jnp.dot(p.astype(jnp.bfloat16), vb[:, sl],
                            preferred_element_type=jnp.float32) * r)         # (R, D)
    attn = jnp.concatenate(outs, axis=-1)                                    # (R, C)
    attn = jnp.dot(attn.astype(jnp.bfloat16), w_proj_ref[...],
                   preferred_element_type=jnp.float32) + b_proj_ref[...]

    bsel, bsel_t = bsel_ref[...], bsel_t_ref[...]
    gmat2, gmat_t = gmat2_ref[...], gmat_t_ref[...]

    # ---- h1 = relu(GroupNorm1(x + attn))   (drop_path = Identity) ----
    h1 = _group_norm_relu(x + attn, gn1_g_ref[...], gn1_b_ref[...],
                          bsel, bsel_t, gmat2, gmat_t, inv_cnt, eps)

    # ---- ConvMLP: 1x1 conv -> relu -> 1x1 conv, fused in VMEM ----
    m = jnp.dot(h1.astype(jnp.bfloat16), w_fc1_ref[...],
                preferred_element_type=jnp.float32) + b_fc1_ref[...]
    m = jnp.maximum(m, 0.0)
    m = jnp.dot(m.astype(jnp.bfloat16), w_fc2_ref[...],
                preferred_element_type=jnp.float32) + b_fc2_ref[...]

    # ---- out = relu(GroupNorm2(h1 + mlp))  (shortcut = Identity) ----
    h2 = _group_norm_relu(h1 + m, gn2_g_ref[...], gn2_b_ref[...],
                          bsel, bsel_t, gmat2, gmat_t, inv_cnt, eps)
    o_ref[...] = h2.astype(o_ref.dtype)


# ---------------------------------------------------------------------------
# wrapper
# ---------------------------------------------------------------------------

def _block_diag2(m):
    z = jnp.zeros_like(m)
    return jnp.concatenate([jnp.concatenate([m, z], axis=1),
                            jnp.concatenate([z, m], axis=1)], axis=0)


def init_params(key, C, num_heads, num_groups, mlp_ratio=4.0):
    E = int(C * mlp_ratio)
    ks = jax.random.split(key, 4)
    wdt = jnp.bfloat16                    # weights stored bf16; biases/affine f32
    # Swin-v2 cosine-attention logit scale: exp(clamp(log 10, max=log 100)) = 10
    logit_scale = jnp.exp(jnp.minimum(jnp.full((num_heads,), jnp.log(10.0)),
                                      jnp.log(100.0))).astype(jnp.float32)
    return {
        "logit_scale": logit_scale,
        "w_qkv": (jax.random.normal(ks[0], (C, 3 * C), jnp.float32) * 0.05).astype(wdt),
        "b_qkv": jnp.zeros((1, 3 * C), jnp.float32),
        "w_proj": (jax.random.normal(ks[1], (C, C), jnp.float32) * 0.05).astype(wdt),
        "b_proj": jnp.zeros((1, C), jnp.float32),
        "gn1_gamma": jnp.ones((1, C), jnp.float32),
        "gn1_beta": jnp.zeros((1, C), jnp.float32),
        "gn2_gamma": jnp.ones((1, C), jnp.float32),
        "gn2_beta": jnp.zeros((1, C), jnp.float32),
        "w_fc1": (jax.random.normal(ks[2], (C, E), jnp.float32) * 0.05).astype(wdt),
        "b_fc1": jnp.zeros((1, E), jnp.float32),
        "w_fc2": (jax.random.normal(ks[3], (E, C), jnp.float32) * 0.05).astype(wdt),
        "b_fc2": jnp.zeros((1, C), jnp.float32),
    }


def encoder_block_forward(x_nchw, params, *, window_size, num_heads, num_groups,
                          eps=1e-5):
    B, C, H, W = x_nchw.shape
    N = H * W
    R = B * N
    D = C // num_heads
    Cg = C // num_groups
    ws = window_size

    # NCHW -> (tokens, channels).  Window handling is an in-kernel mask, so no
    # window_partition / window_reverse 6-D transposes are needed.
    x_tok = jnp.transpose(x_nchw, (0, 2, 3, 1)).reshape(R, C)

    # structural constants (shape-only => constant-folded under jit)
    idx = jnp.arange(R, dtype=jnp.int32)
    b_id = idx // N
    y_id = (idx % N) // W
    x_id = idx % W
    wid = ((b_id * (H // ws) + y_id // ws) * (W // ws) + x_id // ws).astype(jnp.float32)
    wid_row = wid.reshape(1, R)
    wid_col = wid.reshape(R, 1)
    hmat = (jnp.arange(C)[:, None] // D == jnp.arange(num_heads)[None, :]).astype(jnp.float32)
    gmat = (jnp.arange(C)[:, None] // Cg == jnp.arange(num_groups)[None, :]).astype(jnp.float32)
    bsel = (jnp.arange(R)[:, None] // N == jnp.arange(B)[None, :]).astype(jnp.float32)
    hmat2 = _block_diag2(hmat)            # (2C, 2H) stacked q/k head one-hot
    gmat2 = _block_diag2(gmat)            # (2C, 2G) stacked sum / sum-sq one-hot
    head_scale_c = jnp.repeat(params["logit_scale"], D).reshape(1, C)

    operands = (params["logit_scale"],                       # SMEM scalar per head
                x_tok, wid_row, wid_col, head_scale_c,
                hmat2, hmat2.T, bsel, bsel.T, gmat2, gmat.T,
                params["w_qkv"], params["b_qkv"], params["w_proj"], params["b_proj"],
                params["gn1_gamma"], params["gn1_beta"],
                params["w_fc1"], params["b_fc1"], params["w_fc2"], params["b_fc2"],
                params["gn2_gamma"], params["gn2_beta"])

    smem_spec = pl.BlockSpec(memory_space=pltpu.MemorySpace.SMEM)
    vmem_spec = pl.BlockSpec(memory_space=pltpu.MemorySpace.VMEM)

    out_tok = pl.pallas_call(
        functools.partial(_encoder_block_kernel, num_heads=num_heads,
                          num_groups=num_groups, eps=eps),
        out_shape=jax.ShapeDtypeStruct((R, C), x_nchw.dtype),
        in_specs=[smem_spec] + [vmem_spec] * (len(operands) - 1),
        out_specs=vmem_spec,
        # no grid: single invocation, every operand whole-array resident on chip
    )(*operands)

    return jnp.transpose(out_tok.reshape(B, H, W, C), (0, 3, 1, 2))   # back to NCHW


# ---------------------------------------------------------------------------

if __name__ == "__main__":
    B, C, H, W = 2, 128, 8, 8          # in_channels = out_channels = 128, in_res = 8
    window_size = 4
    num_heads = 8
    num_groups = 16

    key = jax.random.PRNGKey(0)
    k_param, k_x = jax.random.split(key)
    params = init_params(k_param, C, num_heads, num_groups)
    x = jax.random.normal(k_x, (B, C, H, W), jnp.float32)

    fwd = jax.jit(functools.partial(encoder_block_forward,
                                    window_size=window_size,
                                    num_heads=num_heads,
                                    num_groups=num_groups))
    out = fwd(x, params)
    jax.block_until_ready(out)
    assert out.shape == (B, C, H, W)
    assert bool(jnp.all(jnp.isfinite(out)))
    print("KERNEL_OK")
</pallas_src>

<mosaic_0001>
module attributes {stable_mosaic.version = 11 : i64} {
  func.func @_encoder_block_kernel(%arg0: memref<8xf32, #tpu.memory_space<smem>>, %arg1: memref<128x128xf32, #tpu.memory_space<vmem>>, %arg2: memref<1x128xf32, #tpu.memory_space<vmem>>, %arg3: memref<128x1xf32, #tpu.memory_space<vmem>>, %arg4: memref<1x128xf32, #tpu.memory_space<vmem>>, %arg5: memref<256x16xf32, #tpu.memory_space<vmem>>, %arg6: memref<16x256xf32, #tpu.memory_space<vmem>>, %arg7: memref<128x2xf32, #tpu.memory_space<vmem>>, %arg8: memref<2x128xf32, #tpu.memory_space<vmem>>, %arg9: memref<256x32xf32, #tpu.memory_space<vmem>>, %arg10: memref<16x128xf32, #tpu.memory_space<vmem>>, %arg11: memref<128x384xbf16, #tpu.memory_space<vmem>>, %arg12: memref<1x384xf32, #tpu.memory_space<vmem>>, %arg13: memref<128x128xbf16, #tpu.memory_space<vmem>>, %arg14: memref<1x128xf32, #tpu.memory_space<vmem>>, %arg15: memref<1x128xf32, #tpu.memory_space<vmem>>, %arg16: memref<1x128xf32, #tpu.memory_space<vmem>>, %arg17: memref<128x512xbf16, #tpu.memory_space<vmem>>, %arg18: memref<1x512xf32, #tpu.memory_space<vmem>>, %arg19: memref<512x128xbf16, #tpu.memory_space<vmem>>, %arg20: memref<1x128xf32, #tpu.memory_space<vmem>>, %arg21: memref<1x128xf32, #tpu.memory_space<vmem>>, %arg22: memref<1x128xf32, #tpu.memory_space<vmem>>, %arg23: memref<128x128xf32, #tpu.memory_space<vmem>>) attributes {dimension_semantics = [], scalar_prefetch = 0 : i64, scratch_operands = 0 : i64, tpu.core_type = #tpu.core_type<tc>} {
    %c0 = arith.constant 0 : index
    %c0_0 = arith.constant 0 : index
    %0 = vector.load %arg1[%c0, %c0_0] : memref<128x128xf32, #tpu.memory_space<vmem>>, vector<128x128xf32>
    %c0_1 = arith.constant 0 : index
    %c0_2 = arith.constant 0 : index
    %1 = vector.load %arg3[%c0_1, %c0_2] : memref<128x1xf32, #tpu.memory_space<vmem>>, vector<128x1xf32>
    %c0_3 = arith.constant 0 : index
    %c0_4 = arith.constant 0 : index
    %2 = vector.load %arg2[%c0_3, %c0_4] : memref<1x128xf32, #tpu.memory_space<vmem>>, vector<1x128xf32>
    %3 = vector.broadcast %1 : vector<128x1xf32> to vector<128x128xf32>
    %4 = vector.broadcast %2 : vector<1x128xf32> to vector<128x128xf32>
    %5 = arith.cmpf oeq, %3, %4 : vector<128x128xf32>
    %cst = arith.constant 1.000000e+00 : f32
    %cst_5 = arith.constant 0.000000e+00 : f32
    %6 = vector.broadcast %cst : f32 to vector<128x128xf32>
    %7 = vector.broadcast %cst_5 : f32 to vector<128x128xf32>
    %8 = arith.select %5, %6, %7 : vector<128x128xi1>, vector<128x128xf32>
    %9 = arith.truncf %0 : vector<128x128xf32> to vector<128x128xbf16>
    %c0_6 = arith.constant 0 : index
    %c0_7 = arith.constant 0 : index
    %10 = vector.load %arg11[%c0_6, %c0_7] : memref<128x384xbf16, #tpu.memory_space<vmem>>, vector<128x384xbf16>
    %cst_8 = arith.constant dense<0.000000e+00> : vector<128x384xf32>
    %11 = tpu.matmul %9, %10, %cst_8 {dimension_numbers = #tpu.dot_dimension_numbers<[1], [0], [0], [1], [0, 0, 1, 1], [], []>} : vector<128x128xbf16>, vector<128x384xbf16>, vector<128x384xf32> -> vector<128x384xf32>
    %c0_9 = arith.constant 0 : index
    %c0_10 = arith.constant 0 : index
    %12 = vector.load %arg12[%c0_9, %c0_10] : memref<1x384xf32, #tpu.memory_space<vmem>>, vector<1x384xf32>
    %13 = vector.broadcast %12 : vector<1x384xf32> to vector<128x384xf32>
    %14 = arith.addf %11, %13 : vector<128x384xf32>
    %15 = vector.extract_strided_slice %14 {offsets = [0, 0], sizes = [128, 128], strides = [1, 1]} : vector<128x384xf32> to vector<128x128xf32>
    %16 = vector.extract_strided_slice %14 {offsets = [0, 128], sizes = [128, 128], strides = [1, 1]} : vector<128x384xf32> to vector<128x128xf32>
    %17 = vector.extract_strided_slice %14 {offsets = [0, 256], sizes = [128, 128], strides = [1, 1]} : vector<128x384xf32> to vector<128x128xf32>
    %18 = arith.mulf %15, %15 : vector<128x128xf32>
    %19 = arith.mulf %16, %16 : vector<128x128xf32>
    %20 = tpu.concatenate %18, %19 in 1 : vector<128x128xf32>, vector<128x128xf32> -> vector<128x256xf32>
    %c0_11 = arith.constant 0 : index
    %c0_12 = arith.constant 0 : index
    %21 = vector.load %arg5[%c0_11, %c0_12] : memref<256x16xf32, #tpu.memory_space<vmem>>, vector<256x16xf32>
    %cst_13 = arith.constant dense<0.000000e+00> : vector<128x16xf32>
    %22 = tpu.matmul %20, %21, %cst_13 {dimension_numbers = #tpu.dot_dimension_numbers<[1], [0], [0], [1], [0, 0, 1, 1], [], []>} : vector<128x256xf32>, vector<256x16xf32>, vector<128x16xf32> -> vector<128x16xf32>
    %cst_14 = arith.constant 9.99999996E-13 : f32
    %23 = vector.broadcast %cst_14 : f32 to vector<128x16xf32>
    %24 = arith.addf %22, %23 : vector<128x16xf32>
    %25 = math.rsqrt %24 : vector<128x16xf32>
    %c0_15 = arith.constant 0 : index
    %c0_16 = arith.constant 0 : index
    %26 = vector.load %arg6[%c0_15, %c0_16] : memref<16x256xf32, #tpu.memory_space<vmem>>, vector<16x256xf32>
    %cst_17 = arith.constant dense<0.000000e+00> : vector<128x256xf32>
    %27 = tpu.matmul %25, %26, %cst_17 {dimension_numbers = #tpu.dot_dimension_numbers<[1], [0], [0], [1], [0, 0, 1, 1], [], []>} : vector<128x16xf32>, vector<16x256xf32>, vector<128x256xf32> -> vector<128x256xf32>
    %28 = vector.extract_strided_slice %27 {offsets = [0, 0], sizes = [128, 128], strides = [1, 1]} : vector<128x256xf32> to vector<128x128xf32>
    %29 = arith.mulf %15, %28 : vector<128x128xf32>
    %c0_18 = arith.constant 0 : index
    %c0_19 = arith.constant 0 : index
    %30 = vector.load %arg4[%c0_18, %c0_19] : memref<1x128xf32, #tpu.memory_space<vmem>>, vector<1x128xf32>
    %31 = vector.broadcast %30 : vector<1x128xf32> to vector<128x128xf32>
    %32 = arith.mulf %29, %31 : vector<128x128xf32>
    %33 = arith.truncf %32 : vector<128x128xf32> to vector<128x128xbf16>
    %34 = vector.extract_strided_slice %27 {offsets = [0, 128], sizes = [128, 128], strides = [1, 1]} : vector<128x256xf32> to vector<128x128xf32>
    %35 = arith.mulf %16, %34 : vector<128x128xf32>
    %36 = arith.truncf %35 : vector<128x128xf32> to vector<128x128xbf16>
    %37 = arith.truncf %17 : vector<128x128xf32> to vector<128x128xbf16>
    %38 = vector.extract_strided_slice %33 {offsets = [0, 0], sizes = [128, 16], strides = [1, 1]} : vector<128x128xbf16> to vector<128x16xbf16>
    %39 = vector.extract_strided_slice %36 {offsets = [0, 0], sizes = [128, 16], strides = [1, 1]} : vector<128x128xbf16> to vector<128x16xbf16>
    %cst_20 = arith.constant dense<0.000000e+00> : vector<128x128xf32>
    %40 = tpu.matmul %38, %39, %cst_20 {dimension_numbers = #tpu.dot_dimension_numbers<[1], [1], [0], [0], [0, 0, 1, 0], [], []>} : vector<128x16xbf16>, vector<128x16xbf16>, vector<128x128xf32> -> vector<128x128xf32>
    %c0_21 = arith.constant 0 : index
    %41 = memref.load %arg0[%c0_21] : memref<8xf32, #tpu.memory_space<smem>>
    %42 = vector.broadcast %41 : f32 to vector<128x128xf32>
    %43 = arith.subf %40, %42 : vector<128x128xf32>
    %44 = math.exp %43 : vector<128x128xf32>
    %45 = arith.mulf %44, %8 : vector<128x128xf32>
    %cst_22 = arith.constant dense<0.000000e+00> : vector<128xf32>
    %46 = vector.multi_reduction <add>, %45, %cst_22 [1] : vector<128x128xf32> to vector<128xf32>
    %47 = vector.shape_cast %46 : vector<128xf32> to vector<128x1xf32>
    %48 = tpu.reciprocal %47 {approx = true} : vector<128x1xf32> -> vector<128x1xf32>
    %49 = arith.truncf %45 : vector<128x128xf32> to vector<128x128xbf16>
    %50 = vector.extract_strided_slice %37 {offsets = [0, 0], sizes = [128, 16], strides = [1, 1]} : vector<128x128xbf16> to vector<128x16xbf16>
    %cst_23 = arith.constant dense<0.000000e+00> : vector<128x16xf32>
    %51 = tpu.matmul %49, %50, %cst_23 {dimension_numbers = #tpu.dot_dimension_numbers<[1], [0], [0], [1], [0, 0, 1, 1], [], []>} : vector<128x128xbf16>, vector<128x16xbf16>, vector<128x16xf32> -> vector<128x16xf32>
    %52 = vector.broadcast %48 : vector<128x1xf32> to vector<128x16xf32>
    %53 = arith.mulf %51, %52 : vector<128x16xf32>
    %54 = vector.extract_strided_slice %33 {offsets = [0, 16], sizes = [128, 16], strides = [1, 1]} : vector<128x128xbf16> to vector<128x16xbf16>
    %55 = vector.extract_strided_slice %36 {offsets = [0, 16], sizes = [128, 16], strides = [1, 1]} : vector<128x128xbf16> to vector<128x16xbf16>
    %cst_24 = arith.constant dense<0.000000e+00> : vector<128x128xf32>
    %56 = tpu.matmul %54, %55, %cst_24 {dimension_numbers = #tpu.dot_dimension_numbers<[1], [1], [0], [0], [0, 0, 1, 0], [], []>} : vector<128x16xbf16>, vector<128x16xbf16>, vector<128x128xf32> -> vector<128x128xf32>
    %c1 = arith.constant 1 : index
    %57 = memref.load %arg0[%c1] : memref<8xf32, #tpu.memory_space<smem>>
    %58 = vector.broadcast %57 : f32 to vector<128x128xf32>
    %59 = arith.subf %56, %58 : vector<128x128xf32>
    %60 = math.exp %59 : vector<128x128xf32>
    %61 = arith.mulf %60, %8 : vector<128x128xf32>
    %cst_25 = arith.constant dense<0.000000e+00> : vector<128xf32>
    %62 = vector.multi_reduction <add>, %61, %cst_25 [1] : vector<128x128xf32> to vector<128xf32>
    %63 = vector.shape_cast %62 : vector<128xf32> to vector<128x1xf32>
    %64 = tpu.reciprocal %63 {approx = true} : vector<128x1xf32> -> vector<128x1xf32>
    %65 = arith.truncf %61 : vector<128x128xf32> to vector<128x128xbf16>
    %66 = vector.extract_strided_slice %37 {offsets = [0, 16], sizes = [128, 16], strides = [1, 1]} : vector<128x128xbf16> to vector<128x16xbf16>
    %cst_26 = arith.constant dense<0.000000e+00> : vector<128x16xf32>
    %67 = tpu.matmul %65, %66, %cst_26 {dimension_numbers = #tpu.dot_dimension_numbers<[1], [0], [0], [1], [0, 0, 1, 1], [], []>} : vector<128x128xbf16>, vector<128x16xbf16>, vector<128x16xf32> -> vector<128x16xf32>
    %68 = vector.broadcast %64 : vector<128x1xf32> to vector<128x16xf32>
    %69 = arith.mulf %67, %68 : vector<128x16xf32>
    %70 = vector.extract_strided_slice %33 {offsets = [0, 32], sizes = [128, 16], strides = [1, 1]} : vector<128x128xbf16> to vector<128x16xbf16>
    %71 = vector.extract_strided_slice %36 {offsets = [0, 32], sizes = [128, 16], strides = [1, 1]} : vector<128x128xbf16> to vector<128x16xbf16>
    %cst_27 = arith.constant dense<0.000000e+00> : vector<128x128xf32>
    %72 = tpu.matmul %70, %71, %cst_27 {dimension_numbers = #tpu.dot_dimension_numbers<[1], [1], [0], [0], [0, 0, 1, 0], [], []>} : vector<128x16xbf16>, vector<128x16xbf16>, vector<128x128xf32> -> vector<128x128xf32>
    %c2 = arith.constant 2 : index
    %73 = memref.load %arg0[%c2] : memref<8xf32, #tpu.memory_space<smem>>
    %74 = vector.broadcast %73 : f32 to vector<128x128xf32>
    %75 = arith.subf %72, %74 : vector<128x128xf32>
    %76 = math.exp %75 : vector<128x128xf32>
    %77 = arith.mulf %76, %8 : vector<128x128xf32>
    %cst_28 = arith.constant dense<0.000000e+00> : vector<128xf32>
    %78 = vector.multi_reduction <add>, %77, %cst_28 [1] : vector<128x128xf32> to vector<128xf32>
    %79 = vector.shape_cast %78 : vector<128xf32> to vector<128x1xf32>
    %80 = tpu.reciprocal %79 {approx = true} : vector<128x1xf32> -> vector<128x1xf32>
    %81 = arith.truncf %77 : vector<128x128xf32> to vector<128x128xbf16>
    %82 = vector.extract_strided_slice %37 {offsets = [0, 32], sizes = [128, 16], strides = [1, 1]} : vector<128x128xbf16> to vector<128x16xbf16>
    %cst_29 = arith.constant dense<0.000000e+00> : vector<128x16xf32>
    %83 = tpu.matmul %81, %82, %cst_29 {dimension_numbers = #tpu.dot_dimension_numbers<[1], [0], [0], [1], [0, 0, 1, 1], [], []>} : vector<128x128xbf16>, vector<128x16xbf16>, vector<128x16xf32> -> vector<128x16xf32>
    %84 = vector.broadcast %80 : vector<128x1xf32> to vector<128x16xf32>
    %85 = arith.mulf %83, %84 : vector<128x16xf32>
    %86 = vector.extract_strided_slice %33 {offsets = [0, 48], sizes = [128, 16], strides = [1, 1]} : vector<128x128xbf16> to vector<128x16xbf16>
    %87 = vector.extract_strided_slice %36 {offsets = [0, 48], sizes = [128, 16], strides = [1, 1]} : vector<128x128xbf16> to vector<128x16xbf16>
    %cst_30 = arith.constant dense<0.000000e+00> : vector<128x128xf32>
    %88 = tpu.matmul %86, %87, %cst_30 {dimension_numbers = #tpu.dot_dimension_numbers<[1], [1], [0], [0], [0, 0, 1, 0], [], []>} : vector<128x16xbf16>, vector<128x16xbf16>, vector<128x128xf32> -> vector<128x128xf32>
    %c3 = arith.constant 3 : index
    %89 = memref.load %arg0[%c3] : memref<8xf32, #tpu.memory_space<smem>>
    %90 = vector.broadcast %89 : f32 to vector<128x128xf32>
    %91 = arith.subf %88, %90 : vector<128x128xf32>
    %92 = math.exp %91 : vector<128x128xf32>
    %93 = arith.mulf %92, %8 : vector<128x128xf32>
    %cst_31 = arith.constant dense<0.000000e+00> : vector<128xf32>
    %94 = vector.multi_reduction <add>, %93, %cst_31 [1] : vector<128x128xf32> to vector<128xf32>
    %95 = vector.shape_cast %94 : vector<128xf32> to vector<128x1xf32>
    %96 = tpu.reciprocal %95 {approx = true} : vector<128x1xf32> -> vector<128x1xf32>
    %97 = arith.truncf %93 : vector<128x128xf32> to vector<128x128xbf16>
    %98 = vector.extract_strided_slice %37 {offsets = [0, 48], sizes = [128, 16], strides = [1, 1]} : vector<128x128xbf16> to vector<128x16xbf16>
    %cst_32 = arith.constant dense<0.000000e+00> : vector<128x16xf32>
    %99 = tpu.matmul %97, %98, %cst_32 {dimension_numbers = #tpu.dot_dimension_numbers<[1], [0], [0], [1], [0, 0, 1, 1], [], []>} : vector<128x128xbf16>, vector<128x16xbf16>, vector<128x16xf32> -> vector<128x16xf32>
    %100 = vector.broadcast %96 : vector<128x1xf32> to vector<128x16xf32>
    %101 = arith.mulf %99, %100 : vector<128x16xf32>
    %102 = vector.extract_strided_slice %33 {offsets = [0, 64], sizes = [128, 16], strides = [1, 1]} : vector<128x128xbf16> to vector<128x16xbf16>
    %103 = vector.extract_strided_slice %36 {offsets = [0, 64], sizes = [128, 16], strides = [1, 1]} : vector<128x128xbf16> to vector<128x16xbf16>
    %cst_33 = arith.constant dense<0.000000e+00> : vector<128x128xf32>
    %104 = tpu.matmul %102, %103, %cst_33 {dimension_numbers = #tpu.dot_dimension_numbers<[1], [1], [0], [0], [0, 0, 1, 0], [], []>} : vector<128x16xbf16>, vector<128x16xbf16>, vector<128x128xf32> -> vector<128x128xf32>
    %c4 = arith.constant 4 : index
    %105 = memref.load %arg0[%c4] : memref<8xf32, #tpu.memory_space<smem>>
    %106 = vector.broadcast %105 : f32 to vector<128x128xf32>
    %107 = arith.subf %104, %106 : vector<128x128xf32>
    %108 = math.exp %107 : vector<128x128xf32>
    %109 = arith.mulf %108, %8 : vector<128x128xf32>
    %cst_34 = arith.constant dense<0.000000e+00> : vector<128xf32>
    %110 = vector.multi_reduction <add>, %109, %cst_34 [1] : vector<128x128xf32> to vector<128xf32>
    %111 = vector.shape_cast %110 : vector<128xf32> to vector<128x1xf32>
    %112 = tpu.reciprocal %111 {approx = true} : vector<128x1xf32> -> vector<128x1xf32>
    %113 = arith.truncf %109 : vector<128x128xf32> to vector<128x128xbf16>
    %114 = vector.extract_strided_slice %37 {offsets = [0, 64], sizes = [128, 16], strides = [1, 1]} : vector<128x128xbf16> to vector<128x16xbf16>
    %cst_35 = arith.constant dense<0.000000e+00> : vector<128x16xf32>
    %115 = tpu.matmul %113, %114, %cst_35 {dimension_numbers = #tpu.dot_dimension_numbers<[1], [0], [0], [1], [0, 0, 1, 1], [], []>} : vector<128x128xbf16>, vector<128x16xbf16>, vector<128x16xf32> -> vector<128x16xf32>
    %116 = vector.broadcast %112 : vector<128x1xf32> to vector<128x16xf32>
    %117 = arith.mulf %115, %116 : vector<128x16xf32>
    %118 = vector.extract_strided_slice %33 {offsets = [0, 80], sizes = [128, 16], strides = [1, 1]} : vector<128x128xbf16> to vector<128x16xbf16>
    %119 = vector.extract_strided_slice %36 {offsets = [0, 80], sizes = [128, 16], strides = [1, 1]} : vector<128x128xbf16> to vector<128x16xbf16>
    %cst_36 = arith.constant dense<0.000000e+00> : vector<128x128xf32>
    %120 = tpu.matmul %118, %119, %cst_36 {dimension_numbers = #tpu.dot_dimension_numbers<[1], [1], [0], [0], [0, 0, 1, 0], [], []>} : vector<128x16xbf16>, vector<128x16xbf16>, vector<128x128xf32> -> vector<128x128xf32>
    %c5 = arith.constant 5 : index
    %121 = memref.load %arg0[%c5] : memref<8xf32, #tpu.memory_space<smem>>
    %122 = vector.broadcast %121 : f32 to vector<128x128xf32>
    %123 = arith.subf %120, %122 : vector<128x128xf32>
    %124 = math.exp %123 : vector<128x128xf32>
    %125 = arith.mulf %124, %8 : vector<128x128xf32>
    %cst_37 = arith.constant dense<0.000000e+00> : vector<128xf32>
    %126 = vector.multi_reduction <add>, %125, %cst_37 [1] : vector<128x128xf32> to vector<128xf32>
    %127 = vector.shape_cast %126 : vector<128xf32> to vector<128x1xf32>
    %128 = tpu.reciprocal %127 {approx = true} : vector<128x1xf32> -> vector<128x1xf32>
    %129 = arith.truncf %125 : vector<128x128xf32> to vector<128x128xbf16>
    %130 = vector.extract_strided_slice %37 {offsets = [0, 80], sizes = [128, 16], strides = [1, 1]} : vector<128x128xbf16> to vector<128x16xbf16>
    %cst_38 = arith.constant dense<0.000000e+00> : vector<128x16xf32>
    %131 = tpu.matmul %129, %130, %cst_38 {dimension_numbers = #tpu.dot_dimension_numbers<[1], [0], [0], [1], [0, 0, 1, 1], [], []>} : vector<128x128xbf16>, vector<128x16xbf16>, vector<128x16xf32> -> vector<128x16xf32>
    %132 = vector.broadcast %128 : vector<128x1xf32> to vector<128x16xf32>
    %133 = arith.mulf %131, %132 : vector<128x16xf32>
    %134 = vector.extract_strided_slice %33 {offsets = [0, 96], sizes = [128, 16], strides = [1, 1]} : vector<128x128xbf16> to vector<128x16xbf16>
    %135 = vector.extract_strided_slice %36 {offsets = [0, 96], sizes = [128, 16], strides = [1, 1]} : vector<128x128xbf16> to vector<128x16xbf16>
    %cst_39 = arith.constant dense<0.000000e+00> : vector<128x128xf32>
    %136 = tpu.matmul %134, %135, %cst_39 {dimension_numbers = #tpu.dot_dimension_numbers<[1], [1], [0], [0], [0, 0, 1, 0], [], []>} : vector<128x16xbf16>, vector<128x16xbf16>, vector<128x128xf32> -> vector<128x128xf32>
    %c6 = arith.constant 6 : index
    %137 = memref.load %arg0[%c6] : memref<8xf32, #tpu.memory_space<smem>>
    %138 = vector.broadcast %137 : f32 to vector<128x128xf32>
    %139 = arith.subf %136, %138 : vector<128x128xf32>
    %140 = math.exp %139 : vector<128x128xf32>
    %141 = arith.mulf %140, %8 : vector<128x128xf32>
    %cst_40 = arith.constant dense<0.000000e+00> : vector<128xf32>
    %142 = vector.multi_reduction <add>, %141, %cst_40 [1] : vector<128x128xf32> to vector<128xf32>
    %143 = vector.shape_cast %142 : vector<128xf32> to vector<128x1xf32>
    %144 = tpu.reciprocal %143 {approx = true} : vector<128x1xf32> -> vector<128x1xf32>
    %145 = arith.truncf %141 : vector<128x128xf32> to vector<128x128xbf16>
    %146 = vector.extract_strided_slice %37 {offsets = [0, 96], sizes = [128, 16], strides = [1, 1]} : vector<128x128xbf16> to vector<128x16xbf16>
    %cst_41 = arith.constant dense<0.000000e+00> : vector<128x16xf32>
    %147 = tpu.matmul %145, %146, %cst_41 {dimension_numbers = #tpu.dot_dimension_numbers<[1], [0], [0], [1], [0, 0, 1, 1], [], []>} : vector<128x128xbf16>, vector<128x16xbf16>, vector<128x16xf32> -> vector<128x16xf32>
    %148 = vector.broadcast %144 : vector<128x1xf32> to vector<128x16xf32>
    %149 = arith.mulf %147, %148 : vector<128x16xf32>
    %150 = vector.extract_strided_slice %33 {offsets = [0, 112], sizes = [128, 16], strides = [1, 1]} : vector<128x128xbf16> to vector<128x16xbf16>
    %151 = vector.extract_strided_slice %36 {offsets = [0, 112], sizes = [128, 16], strides = [1, 1]} : vector<128x128xbf16> to vector<128x16xbf16>
    %cst_42 = arith.constant dense<0.000000e+00> : vector<128x128xf32>
    %152 = tpu.matmul %150, %151, %cst_42 {dimension_numbers = #tpu.dot_dimension_numbers<[1], [1], [0], [0], [0, 0, 1, 0], [], []>} : vector<128x16xbf16>, vector<128x16xbf16>, vector<128x128xf32> -> vector<128x128xf32>
    %c7 = arith.constant 7 : index
    %153 = memref.load %arg0[%c7] : memref<8xf32, #tpu.memory_space<smem>>
    %154 = vector.broadcast %153 : f32 to vector<128x128xf32>
    %155 = arith.subf %152, %154 : vector<128x128xf32>
    %156 = math.exp %155 : vector<128x128xf32>
    %157 = arith.mulf %156, %8 : vector<128x128xf32>
    %cst_43 = arith.constant dense<0.000000e+00> : vector<128xf32>
    %158 = vector.multi_reduction <add>, %157, %cst_43 [1] : vector<128x128xf32> to vector<128xf32>
    %159 = vector.shape_cast %158 : vector<128xf32> to vector<128x1xf32>
    %160 = tpu.reciprocal %159 {approx = true} : vector<128x1xf32> -> vector<128x1xf32>
    %161 = arith.truncf %157 : vector<128x128xf32> to vector<128x128xbf16>
    %162 = vector.extract_strided_slice %37 {offsets = [0, 112], sizes = [128, 16], strides = [1, 1]} : vector<128x128xbf16> to vector<128x16xbf16>
    %cst_44 = arith.constant dense<0.000000e+00> : vector<128x16xf32>
    %163 = tpu.matmul %161, %162, %cst_44 {dimension_numbers = #tpu.dot_dimension_numbers<[1], [0], [0], [1], [0, 0, 1, 1], [], []>} : vector<128x128xbf16>, vector<128x16xbf16>, vector<128x16xf32> -> vector<128x16xf32>
    %164 = vector.broadcast %160 : vector<128x1xf32> to vector<128x16xf32>
    %165 = arith.mulf %163, %164 : vector<128x16xf32>
    %166 = tpu.concatenate %53, %69, %85, %101, %117, %133, %149, %165 in 1 : vector<128x16xf32>, vector<128x16xf32>, vector<128x16xf32>, vector<128x16xf32>, vector<128x16xf32>, vector<128x16xf32>, vector<128x16xf32>, vector<128x16xf32> -> vector<128x128xf32>
    %167 = arith.truncf %166 : vector<128x128xf32> to vector<128x128xbf16>
    %c0_45 = arith.constant 0 : index
    %c0_46 = arith.constant 0 : index
    %168 = vector.load %arg13[%c0_45, %c0_46] : memref<128x128xbf16, #tpu.memory_space<vmem>>, vector<128x128xbf16>
    %cst_47 = arith.constant dense<0.000000e+00> : vector<128x128xf32>
    %169 = tpu.matmul %167, %168, %cst_47 {dimension_numbers = #tpu.dot_dimension_numbers<[1], [0], [0], [1], [0, 0, 1, 1], [], []>} : vector<128x128xbf16>, vector<128x128xbf16>, vector<128x128xf32> -> vector<128x128xf32>
    %c0_48 = arith.constant 0 : index
    %c0_49 = arith.constant 0 : index
    %170 = vector.load %arg14[%c0_48, %c0_49] : memref<1x128xf32, #tpu.memory_space<vmem>>, vector<1x128xf32>
    %171 = vector.broadcast %170 : vector<1x128xf32> to vector<128x128xf32>
    %172 = arith.addf %169, %171 : vector<128x128xf32>
    %c0_50 = arith.constant 0 : index
    %c0_51 = arith.constant 0 : index
    %173 = vector.load %arg7[%c0_50, %c0_51] : memref<128x2xf32, #tpu.memory_space<vmem>>, vector<128x2xf32>
    %c0_52 = arith.constant 0 : index
    %c0_53 = arith.constant 0 : index
    %174 = vector.load %arg8[%c0_52, %c0_53] : memref<2x128xf32, #tpu.memory_space<vmem>>, vector<2x128xf32>
    %c0_54 = arith.constant 0 : index
    %c0_55 = arith.constant 0 : index
    %175 = vector.load %arg9[%c0_54, %c0_55] : memref<256x32xf32, #tpu.memory_space<vmem>>, vector<256x32xf32>
    %c0_56 = arith.constant 0 : index
    %c0_57 = arith.constant 0 : index
    %176 = vector.load %arg10[%c0_56, %c0_57] : memref<16x128xf32, #tpu.memory_space<vmem>>, vector<16x128xf32>
    %177 = arith.addf %0, %172 : vector<128x128xf32>
    %c0_58 = arith.constant 0 : index
    %c0_59 = arith.constant 0 : index
    %178 = vector.load %arg15[%c0_58, %c0_59] : memref<1x128xf32, #tpu.memory_space<vmem>>, vector<1x128xf32>
    %c0_60 = arith.constant 0 : index
    %c0_61 = arith.constant 0 : index
    %179 = vector.load %arg16[%c0_60, %c0_61] : memref<1x128xf32, #tpu.memory_space<vmem>>, vector<1x128xf32>
    %180 = arith.mulf %177, %177 : vector<128x128xf32>
    %181 = tpu.concatenate %177, %180 in 1 : vector<128x128xf32>, vector<128x128xf32> -> vector<128x256xf32>
    %cst_62 = arith.constant dense<0.000000e+00> : vector<2x256xf32>
    %182 = tpu.matmul %174, %181, %cst_62 {dimension_numbers = #tpu.dot_dimension_numbers<[1], [0], [0], [1], [0, 0, 1, 1], [], []>} : vector<2x128xf32>, vector<128x256xf32>, vector<2x256xf32> -> vector<2x256xf32>
    %cst_63 = arith.constant dense<0.000000e+00> : vector<2x32xf32>
    %183 = tpu.matmul %182, %175, %cst_63 {dimension_numbers = #tpu.dot_dimension_numbers<[1], [0], [0], [1], [0, 0, 1, 1], [], []>} : vector<2x256xf32>, vector<256x32xf32>, vector<2x32xf32> -> vector<2x32xf32>
    %cst_64 = arith.constant 0.001953125 : f32
    %184 = vector.broadcast %cst_64 : f32 to vector<2x32xf32>
    %185 = arith.mulf %183, %184 : vector<2x32xf32>
    %186 = vector.extract_strided_slice %185 {offsets = [0, 0], sizes = [2, 16], strides = [1, 1]} : vector<2x32xf32> to vector<2x16xf32>
    %187 = vector.extract_strided_slice %185 {offsets = [0, 16], sizes = [2, 16], strides = [1, 1]} : vector<2x32xf32> to vector<2x16xf32>
    %188 = arith.mulf %186, %186 : vector<2x16xf32>
    %189 = arith.subf %187, %188 : vector<2x16xf32>
    %cst_65 = arith.constant 9.99999974E-6 : f32
    %190 = vector.broadcast %cst_65 : f32 to vector<2x16xf32>
    %191 = arith.addf %189, %190 : vector<2x16xf32>
    %192 = math.rsqrt %191 : vector<2x16xf32>
    %cst_66 = arith.constant dense<0.000000e+00> : vector<2x128xf32>
    %193 = tpu.matmul %186, %176, %cst_66 {dimension_numbers = #tpu.dot_dimension_numbers<[1], [0], [0], [1], [0, 0, 1, 1], [], []>} : vector<2x16xf32>, vector<16x128xf32>, vector<2x128xf32> -> vector<2x128xf32>
    %cst_67 = arith.constant dense<0.000000e+00> : vector<2x128xf32>
    %194 = tpu.matmul %192, %176, %cst_67 {dimension_numbers = #tpu.dot_dimension_numbers<[1], [0], [0], [1], [0, 0, 1, 1], [], []>} : vector<2x16xf32>, vector<16x128xf32>, vector<2x128xf32> -> vector<2x128xf32>
    %195 = vector.broadcast %178 : vector<1x128xf32> to vector<2x128xf32>
    %196 = arith.mulf %194, %195 : vector<2x128xf32>
    %197 = arith.mulf %193, %196 : vector<2x128xf32>
    %198 = vector.broadcast %179 : vector<1x128xf32> to vector<2x128xf32>
    %199 = arith.subf %198, %197 : vector<2x128xf32>
    %200 = tpu.concatenate %196, %199 in 1 : vector<2x128xf32>, vector<2x128xf32> -> vector<2x256xf32>
    %cst_68 = arith.constant dense<0.000000e+00> : vector<128x256xf32>
    %201 = tpu.matmul %173, %200, %cst_68 {dimension_numbers = #tpu.dot_dimension_numbers<[1], [0], [0], [1], [0, 0, 1, 1], [], []>} : vector<128x2xf32>, vector<2x256xf32>, vector<128x256xf32> -> vector<128x256xf32>
    %202 = vector.extract_strided_slice %201 {offsets = [0, 0], sizes = [128, 128], strides = [1, 1]} : vector<128x256xf32> to vector<128x128xf32>
    %203 = arith.mulf %177, %202 : vector<128x128xf32>
    %204 = vector.extract_strided_slice %201 {offsets = [0, 128], sizes = [128, 128], strides = [1, 1]} : vector<128x256xf32> to vector<128x128xf32>
    %205 = arith.addf %203, %204 : vector<128x128xf32>
    %cst_69 = arith.constant 0.000000e+00 : f32
    %206 = vector.broadcast %cst_69 : f32 to vector<128x128xf32>
    %207 = arith.maximumf %205, %206 : vector<128x128xf32>
    %208 = arith.truncf %207 : vector<128x128xf32> to vector<128x128xbf16>
    %c0_70 = arith.constant 0 : index
    %c0_71 = arith.constant 0 : index
    %209 = vector.load %arg17[%c0_70, %c0_71] : memref<128x512xbf16, #tpu.memory_space<vmem>>, vector<128x512xbf16>
    %cst_72 = arith.constant dense<0.000000e+00> : vector<128x512xf32>
    %210 = tpu.matmul %208, %209, %cst_72 {dimension_numbers = #tpu.dot_dimension_numbers<[1], [0], [0], [1], [0, 0, 1, 1], [], []>} : vector<128x128xbf16>, vector<128x512xbf16>, vector<128x512xf32> -> vector<128x512xf32>
    %c0_73 = arith.constant 0 : index
    %c0_74 = arith.constant 0 : index
    %211 = vector.load %arg18[%c0_73, %c0_74] : memref<1x512xf32, #tpu.memory_space<vmem>>, vector<1x512xf32>
    %212 = vector.broadcast %211 : vector<1x512xf32> to vector<128x512xf32>
    %213 = arith.addf %210, %212 : vector<128x512xf32>
    %cst_75 = arith.constant 0.000000e+00 : f32
    %214 = vector.broadcast %cst_75 : f32 to vector<128x512xf32>
    %215 = arith.maximumf %213, %214 : vector<128x512xf32>
    %216 = arith.truncf %215 : vector<128x512xf32> to vector<128x512xbf16>
    %c0_76 = arith.constant 0 : index
    %c0_77 = arith.constant 0 : index
    %217 = vector.load %arg19[%c0_76, %c0_77] : memref<512x128xbf16, #tpu.memory_space<vmem>>, vector<512x128xbf16>
    %cst_78 = arith.constant dense<0.000000e+00> : vector<128x128xf32>
    %218 = tpu.matmul %216, %217, %cst_78 {dimension_numbers = #tpu.dot_dimension_numbers<[1], [0], [0], [1], [0, 0, 1, 1], [], []>} : vector<128x512xbf16>, vector<512x128xbf16>, vector<128x128xf32> -> vector<128x128xf32>
    %c0_79 = arith.constant 0 : index
    %c0_80 = arith.constant 0 : index
    %219 = vector.load %arg20[%c0_79, %c0_80] : memref<1x128xf32, #tpu.memory_space<vmem>>, vector<1x128xf32>
    %220 = vector.broadcast %219 : vector<1x128xf32> to vector<128x128xf32>
    %221 = arith.addf %218, %220 : vector<128x128xf32>
    %222 = arith.addf %207, %221 : vector<128x128xf32>
    %c0_81 = arith.constant 0 : index
    %c0_82 = arith.constant 0 : index
    %223 = vector.load %arg21[%c0_81, %c0_82] : memref<1x128xf32, #tpu.memory_space<vmem>>, vector<1x128xf32>
    %c0_83 = arith.constant 0 : index
    %c0_84 = arith.constant 0 : index
    %224 = vector.load %arg22[%c0_83, %c0_84] : memref<1x128xf32, #tpu.memory_space<vmem>>, vector<1x128xf32>
    %225 = arith.mulf %222, %222 : vector<128x128xf32>
    %226 = tpu.concatenate %222, %225 in 1 : vector<128x128xf32>, vector<128x128xf32> -> vector<128x256xf32>
    %cst_85 = arith.constant dense<0.000000e+00> : vector<2x256xf32>
    %227 = tpu.matmul %174, %226, %cst_85 {dimension_numbers = #tpu.dot_dimension_numbers<[1], [0], [0], [1], [0, 0, 1, 1], [], []>} : vector<2x128xf32>, vector<128x256xf32>, vector<2x256xf32> -> vector<2x256xf32>
    %cst_86 = arith.constant dense<0.000000e+00> : vector<2x32xf32>
    %228 = tpu.matmul %227, %175, %cst_86 {dimension_numbers = #tpu.dot_dimension_numbers<[1], [0], [0], [1], [0, 0, 1, 1], [], []>} : vector<2x256xf32>, vector<256x32xf32>, vector<2x32xf32> -> vector<2x32xf32>
    %cst_87 = arith.constant 0.001953125 : f32
    %229 = vector.broadcast %cst_87 : f32 to vector<2x32xf32>
    %230 = arith.mulf %228, %229 : vector<2x32xf32>
    %231 = vector.extract_strided_slice %230 {offsets = [0, 0], sizes = [2, 16], strides = [1, 1]} : vector<2x32xf32> to vector<2x16xf32>
    %232 = vector.extract_strided_slice %230 {offsets = [0, 16], sizes = [2, 16], strides = [1, 1]} : vector<2x32xf32> to vector<2x16xf32>
    %233 = arith.mulf %231, %231 : vector<2x16xf32>
    %234 = arith.subf %232, %233 : vector<2x16xf32>
    %cst_88 = arith.constant 9.99999974E-6 : f32
    %235 = vector.broadcast %cst_88 : f32 to vector<2x16xf32>
    %236 = arith.addf %234, %235 : vector<2x16xf32>
    %237 = math.rsqrt %236 : vector<2x16xf32>
    %cst_89 = arith.constant dense<0.000000e+00> : vector<2x128xf32>
    %238 = tpu.matmul %231, %176, %cst_89 {dimension_numbers = #tpu.dot_dimension_numbers<[1], [0], [0], [1], [0, 0, 1, 1], [], []>} : vector<2x16xf32>, vector<16x128xf32>, vector<2x128xf32> -> vector<2x128xf32>
    %cst_90 = arith.constant dense<0.000000e+00> : vector<2x128xf32>
    %239 = tpu.matmul %237, %176, %cst_90 {dimension_numbers = #tpu.dot_dimension_numbers<[1], [0], [0], [1], [0, 0, 1, 1], [], []>} : vector<2x16xf32>, vector<16x128xf32>, vector<2x128xf32> -> vector<2x128xf32>
    %240 = vector.broadcast %223 : vector<1x128xf32> to vector<2x128xf32>
    %241 = arith.mulf %239, %240 : vector<2x128xf32>
    %242 = arith.mulf %238, %241 : vector<2x128xf32>
    %243 = vector.broadcast %224 : vector<1x128xf32> to vector<2x128xf32>
    %244 = arith.subf %243, %242 : vector<2x128xf32>
    %245 = tpu.concatenate %241, %244 in 1 : vector<2x128xf32>, vector<2x128xf32> -> vector<2x256xf32>
    %cst_91 = arith.constant dense<0.000000e+00> : vector<128x256xf32>
    %246 = tpu.matmul %173, %245, %cst_91 {dimension_numbers = #tpu.dot_dimension_numbers<[1], [0], [0], [1], [0, 0, 1, 1], [], []>} : vector<128x2xf32>, vector<2x256xf32>, vector<128x256xf32> -> vector<128x256xf32>
    %247 = vector.extract_strided_slice %246 {offsets = [0, 0], sizes = [128, 128], strides = [1, 1]} : vector<128x256xf32> to vector<128x128xf32>
    %248 = arith.mulf %222, %247 : vector<128x128xf32>
    %249 = vector.extract_strided_slice %246 {offsets = [0, 128], sizes = [128, 128], strides = [1, 1]} : vector<128x256xf32> to vector<128x128xf32>
    %250 = arith.addf %248, %249 : vector<128x128xf32>
    %cst_92 = arith.constant 0.000000e+00 : f32
    %251 = vector.broadcast %cst_92 : f32 to vector<128x128xf32>
    %252 = arith.maximumf %250, %251 : vector<128x128xf32>
    %c0_93 = arith.constant 0 : index
    %c0_94 = arith.constant 0 : index
    %253 = vector.load %arg23[%c0_93, %c0_94] : memref<128x128xf32, #tpu.memory_space<vmem>>, vector<128x128xf32>
    tpu.vector_store %arg23[%c0_93, %c0_94], %252 {strides = array<i32>} : memref<128x128xf32, #tpu.memory_space<vmem>>, vector<128x128xf32>,
    return
  }
}

</mosaic_0001>

<llo_original>
// kernel: encoder_block_forward.1
$region0: #{encoder_block_forward.1}
  #allocation0 [shape = 'u32[]', space=smem, size = 0x4, offset = 0x4, fixed_abs, tag = 'smem constant byte address 0x4 - core index']
  #allocation1 [shape = 'u32[144,128]{1,0:T(1,128)}', space=vmem, size = 0x12000, scoped, tag = 'internal scratch']
  %s0 = inlined_call_operand.vmem [shape: f32[8], index: 0, kind: input, shape index: {}]
  %s1 = inlined_call_operand.vmem [shape: f32[128,128], index: 1, kind: input, shape index: {}]
  %s2 = inlined_call_operand.vmem [shape: f32[1,128], index: 2, kind: input, shape index: {}]
  %s3 = inlined_call_operand.vmem [shape: f32[128,1], index: 3, kind: input, shape index: {}]
  %s4 = inlined_call_operand.vmem [shape: f32[1,128], index: 4, kind: input, shape index: {}]
  %s5 = inlined_call_operand.vmem [shape: f32[256,16], index: 5, kind: input, shape index: {}]
  %s6 = inlined_call_operand.vmem [shape: f32[16,256], index: 6, kind: input, shape index: {}]
  %s7 = inlined_call_operand.vmem [shape: f32[128,2], index: 7, kind: input, shape index: {}]
  %s8 = inlined_call_operand.vmem [shape: f32[2,128], index: 8, kind: input, shape index: {}]
  %s9 = inlined_call_operand.vmem [shape: f32[256,32], index: 9, kind: input, shape index: {}]
  %s10 = inlined_call_operand.vmem [shape: f32[16,128], index: 10, kind: input, shape index: {}]
  %s11 = inlined_call_operand.vmem [shape: bf16[128,384], index: 11, kind: input, shape index: {}]
  %s12 = inlined_call_operand.vmem [shape: f32[1,384], index: 12, kind: input, shape index: {}]
  %s13 = inlined_call_operand.vmem [shape: bf16[128,128], index: 13, kind: input, shape index: {}]
  %s14 = inlined_call_operand.vmem [shape: f32[1,128], index: 14, kind: input, shape index: {}]
  %s15 = inlined_call_operand.vmem [shape: f32[1,128], index: 15, kind: input, shape index: {}]
  %s16 = inlined_call_operand.vmem [shape: f32[1,128], index: 16, kind: input, shape index: {}]
  %s17 = inlined_call_operand.vmem [shape: bf16[128,512], index: 17, kind: input, shape index: {}]
  %s18 = inlined_call_operand.vmem [shape: f32[1,512], index: 18, kind: input, shape index: {}]
  %s19 = inlined_call_operand.vmem [shape: bf16[512,128], index: 19, kind: input, shape index: {}]
  %s20 = inlined_call_operand.vmem [shape: f32[1,128], index: 20, kind: input, shape index: {}]
  %s21 = inlined_call_operand.vmem [shape: f32[1,128], index: 21, kind: input, shape index: {}]
  %s22 = inlined_call_operand.vmem [shape: f32[1,128], index: 22, kind: input, shape index: {}]
  %s23 = inlined_call_operand.hbm [shape: f32[128,128], index: 23, kind: output, shape index: {}]
  %s24 = sld [smem:[#allocation0]]
  $region106: #{encoder_block_forward.1} parent=0
    _
  %s26 = ssub.s32 1, %s24
  %s27 = scalar_select 0, %s26, %s24
  $region1: #{encoder_block_forward.1} parent=0
    #allocation2 [shape = 'u8[512]{0}', space=smem, size = 0x200, scoped, tag = 'input window, operand 0, single buffered']
    #allocation3 [shape = 's32[1]{0}', space=sflag, size = 0x4, scoped, tag = 'scoped memory for encoder_block_forward.1']
    #allocation4 [shape = 's32[1]{0}', space=sflag, size = 0x4, scoped, tag = 'scoped memory for encoder_block_forward.1']
    #allocation5 [shape = 'u8[65536]{0}', space=vmem, size = 0x10000, scoped, tag = 'output window, operand 0, single buffered']
    %28 = vsyncpa [#allocation4], 0
    %29 = vsyncpa [#allocation3], 0
    // Predicated region
    $region2: #{encoder_block_forward.1} parent=1 // pred_check
      _
    $region3: #{encoder_block_forward.1} parent=1 // pred_check_branch
      %31 = sbr.rel (0) target = $region5
    $region4: #{encoder_block_forward.1} parent=1 // pred_region
      %s33 = ssub.s32 16, 16
      %34 = vsyncadd [#allocation4], %s33
      %s36 = sshll.u32 %s0, 4
      %s37 = int_to_ptr.vmem [resolvable:$true] %s36
      %39 = dma.vmem_to_smem %s37, 16, [#allocation2], [#allocation4]
    $region5: #{encoder_block_forward.1} parent=1 // pred_fallthru
      _
    // Predicated region
    $region6: #{encoder_block_forward.1} parent=1 // pred_check
      _
    $region7: #{encoder_block_forward.1} parent=1 // pred_check_branch
      %41 = sbr.rel (0) target = $region9
    $region8: #{encoder_block_forward.1} parent=1 // pred_region
      _
    $region9: #{encoder_block_forward.1} parent=1 // pred_fallthru
      _
    // Predicated region
    $region10: #{encoder_block_forward.1} parent=1 // pred_check
      _
    $region11: #{encoder_block_forward.1} parent=1 // pred_check_branch
      %43 = sbr.rel (0) target = $region13
    $region12: #{encoder_block_forward.1} parent=1 // pred_region
      _
    $region13: #{encoder_block_forward.1} parent=1 // pred_fallthru
      _
    // Predicated region
    $region14: #{encoder_block_forward.1} parent=1 // pred_check
      _
    $region15: #{encoder_block_forward.1} parent=1 // pred_check_branch
      %45 = sbr.rel (0) target = $region17
    $region16: #{encoder_block_forward.1} parent=1 // pred_region
      _
    $region17: #{encoder_block_forward.1} parent=1 // pred_fallthru
      _
    // Predicated region
    $region18: #{encoder_block_forward.1} parent=1 // pred_check
      _
    $region19: #{encoder_block_forward.1} parent=1 // pred_check_branch
      %47 = sbr.rel (0) target = $region21
    $region20: #{encoder_block_forward.1} parent=1 // pred_region
      _
    $region21: #{encoder_block_forward.1} parent=1 // pred_fallthru
      _
    // Predicated region
    $region22: #{encoder_block_forward.1} parent=1 // pred_check
      _
    $region23: #{encoder_block_forward.1} parent=1 // pred_check_branch
      %49 = sbr.rel (0) target = $region25
    $region24: #{encoder_block_forward.1} parent=1 // pred_region
      _
    $region25: #{encoder_block_forward.1} parent=1 // pred_fallthru
      _
    // Predicated region
    $region26: #{encoder_block_forward.1} parent=1 // pred_check
      _
    $region27: #{encoder_block_forward.1} parent=1 // pred_check_branch
      %51 = sbr.rel (0) target = $region29
    $region28: #{encoder_block_forward.1} parent=1 // pred_region
      _
    $region29: #{encoder_block_forward.1} parent=1 // pred_fallthru
      _
    // Predicated region
    $region30: #{encoder_block_forward.1} parent=1 // pred_check
      _
    $region31: #{encoder_block_forward.1} parent=1 // pred_check_branch
      %53 = sbr.rel (0) target = $region33
    $region32: #{encoder_block_forward.1} parent=1 // pred_region
      _
    $region33: #{encoder_block_forward.1} parent=1 // pred_fallthru
      _
    // Predicated region
    $region34: #{encoder_block_forward.1} parent=1 // pred_check
      _
    $region35: #{encoder_block_forward.1} parent=1 // pred_check_branch
      %55 = sbr.rel (0) target = $region37
    $region36: #{encoder_block_forward.1} parent=1 // pred_region
      _
    $region37: #{encoder_block_forward.1} parent=1 // pred_fallthru
      _
    // Predicated region
    $region38: #{encoder_block_forward.1} parent=1 // pred_check
      _
    $region39: #{encoder_block_forward.1} parent=1 // pred_check_branch
      %57 = sbr.rel (0) target = $region41
    $region40: #{encoder_block_forward.1} parent=1 // pred_region
      _
    $region41: #{encoder_block_forward.1} parent=1 // pred_fallthru
      _
    // Predicated region
    $region42: #{encoder_block_forward.1} parent=1 // pred_check
      _
    $region43: #{encoder_block_forward.1} parent=1 // pred_check_branch
      %59 = sbr.rel (0) target = $region45
    $region44: #{encoder_block_forward.1} parent=1 // pred_region
      _
    $region45: #{encoder_block_forward.1} parent=1 // pred_fallthru
      _
    // Predicated region
    $region46: #{encoder_block_forward.1} parent=1 // pred_check
      _
    $region47: #{encoder_block_forward.1} parent=1 // pred_check_branch
      %61 = sbr.rel (0) target = $region49
    $region48: #{encoder_block_forward.1} parent=1 // pred_region
      _
    $region49: #{encoder_block_forward.1} parent=1 // pred_fallthru
      _
    // Predicated region
    $region50: #{encoder_block_forward.1} parent=1 // pred_check
      _
    $region51: #{encoder_block_forward.1} parent=1 // pred_check_branch
      %63 = sbr.rel (0) target = $region53
    $region52: #{encoder_block_forward.1} parent=1 // pred_region
      _
    $region53: #{encoder_block_forward.1} parent=1 // pred_fallthru
      _
    // Predicated region
    $region54: #{encoder_block_forward.1} parent=1 // pred_check
      _
    $region55: #{encoder_block_forward.1} parent=1 // pred_check_branch
      %65 = sbr.rel (0) target = $region57
    $region56: #{encoder_block_forward.1} parent=1 // pred_region
      _
    $region57: #{encoder_block_forward.1} parent=1 // pred_fallthru
      _
    // Predicated region
    $region58: #{encoder_block_forward.1} parent=1 // pred_check
      _
    $region59: #{encoder_block_forward.1} parent=1 // pred_check_branch
      %67 = sbr.rel (0) target = $region61
    $region60: #{encoder_block_forward.1} parent=1 // pred_region
      _
    $region61: #{encoder_block_forward.1} parent=1 // pred_fallthru
      _
    // Predicated region
    $region62: #{encoder_block_forward.1} parent=1 // pred_check
      _
    $region63: #{encoder_block_forward.1} parent=1 // pred_check_branch
      %69 = sbr.rel (0) target = $region65
    $region64: #{encoder_block_forward.1} parent=1 // pred_region
      _
    $region65: #{encoder_block_forward.1} parent=1 // pred_fallthru
      _
    // Predicated region
    $region66: #{encoder_block_forward.1} parent=1 // pred_check
      _
    $region67: #{encoder_block_forward.1} parent=1 // pred_check_branch
      %71 = sbr.rel (0) target = $region69
    $region68: #{encoder_block_forward.1} parent=1 // pred_region
      _
    $region69: #{encoder_block_forward.1} parent=1 // pred_fallthru
      _
    // Predicated region
    $region70: #{encoder_block_forward.1} parent=1 // pred_check
      _
    $region71: #{encoder_block_forward.1} parent=1 // pred_check_branch
      %73 = sbr.rel (0) target = $region73
    $region72: #{encoder_block_forward.1} parent=1 // pred_region
      _
    $region73: #{encoder_block_forward.1} parent=1 // pred_fallthru
      _
    // Predicated region
    $region74: #{encoder_block_forward.1} parent=1 // pred_check
      _
    $region75: #{encoder_block_forward.1} parent=1 // pred_check_branch
      %75 = sbr.rel (0) target = $region77
    $region76: #{encoder_block_forward.1} parent=1 // pred_region
      _
    $region77: #{encoder_block_forward.1} parent=1 // pred_fallthru
      _
    // Predicated region
    $region78: #{encoder_block_forward.1} parent=1 // pred_check
      _
    $region79: #{encoder_block_forward.1} parent=1 // pred_check_branch
      %77 = sbr.rel (0) target = $region81
    $region80: #{encoder_block_forward.1} parent=1 // pred_region
      _
    $region81: #{encoder_block_forward.1} parent=1 // pred_fallthru
      _
    // Predicated region
    $region82: #{encoder_block_forward.1} parent=1 // pred_check
      _
    $region83: #{encoder_block_forward.1} parent=1 // pred_check_branch
      %79 = sbr.rel (0) target = $region85
    $region84: #{encoder_block_forward.1} parent=1 // pred_region
      _
    $region85: #{encoder_block_forward.1} parent=1 // pred_fallthru
      _
    // Predicated region
    $region86: #{encoder_block_forward.1} parent=1 // pred_check
      _
    $region87: #{encoder_block_forward.1} parent=1 // pred_check_branch
      %81 = sbr.rel (0) target = $region89
    $region88: #{encoder_block_forward.1} parent=1 // pred_region
      _
    $region89: #{encoder_block_forward.1} parent=1 // pred_fallthru
      _
    // Predicated region
    $region90: #{encoder_block_forward.1} parent=1 // pred_check
      _
    $region91: #{encoder_block_forward.1} parent=1 // pred_check_branch
      %83 = sbr.rel (0) target = $region93
    $region92: #{encoder_block_forward.1} parent=1 // pred_region
      _
    $region93: #{encoder_block_forward.1} parent=1 // pred_fallthru
      _
    // Predicated region
    $region94: #{encoder_block_forward.1} parent=1 // pred_check
      _
    $region95: #{encoder_block_forward.1} parent=1 // pred_check_branch
      %85 = sbr.rel (0) target = $region97
    $region96: #{encoder_block_forward.1} parent=1 // pred_region
      %86 = dma.done [#allocation4], 16
    $region97: #{encoder_block_forward.1} parent=1 // pred_fallthru
      _
    %87 = sfence
    %v89 = vld [vmem:[%s1] sm:$0xff]
    %v90 = vld [vmem:[%s1 + $0x8] sm:$0xff]
    %v91 = vld [vmem:[%s1 + $0x10] sm:$0xff]
    %v92 = vld [vmem:[%s1 + $0x18] sm:$0xff]
    %v93 = vld [vmem:[%s1 + $0x20] sm:$0xff]
    %v94 = vld [vmem:[%s1 + $0x28] sm:$0xff]
    %v95 = vld [vmem:[%s1 + $0x30] sm:$0xff]
    %v96 = vld [vmem:[%s1 + $0x38] sm:$0xff]
    %v97 = vld [vmem:[%s1 + $0x40] sm:$0xff]
    %v98 = vld [vmem:[%s1 + $0x48] sm:$0xff]
    %v99 = vld [vmem:[%s1 + $0x50] sm:$0xff]
    %v100 = vld [vmem:[%s1 + $0x58] sm:$0xff]
    %v101 = vld [vmem:[%s1 + $0x60] sm:$0xff]
    %v102 = vld [vmem:[%s1 + $0x68] sm:$0xff]
    %v103 = vld [vmem:[%s1 + $0x70] sm:$0xff]
    %v104 = vld [vmem:[%s1 + $0x78] sm:$0xff]
    %v105 = vld [vmem:[%s3] sm:$0xff]
    %v106 = vld [vmem:[%s3 + $0x8] sm:$0xff]
    %v107 = vld [vmem:[%s3 + $0x10] sm:$0xff]
    %v108 = vld [vmem:[%s3 + $0x18] sm:$0xff]
    %v109 = vld [vmem:[%s3 + $0x20] sm:$0xff]
    %v110 = vld [vmem:[%s3 + $0x28] sm:$0xff]
    %v111 = vld [vmem:[%s3 + $0x30] sm:$0xff]
    %v112 = vld [vmem:[%s3 + $0x38] sm:$0xff]
    %v113 = vld [vmem:[%s3 + $0x40] sm:$0xff]
    %v114 = vld [vmem:[%s3 + $0x48] sm:$0xff]
    %v115 = vld [vmem:[%s3 + $0x50] sm:$0xff]
    %v116 = vld [vmem:[%s3 + $0x58] sm:$0xff]
    %v117 = vld [vmem:[%s3 + $0x60] sm:$0xff]
    %v118 = vld [vmem:[%s3 + $0x68] sm:$0xff]
    %v119 = vld [vmem:[%s3 + $0x70] sm:$0xff]
    %v120 = vld [vmem:[%s3 + $0x78] sm:$0xff]
    %v121 = vld [vmem:[%s2] sm:$0x1]
    %123 = vset.pattern.permute.xlu0 0
    %124 = vperm.xlu0 %123, %v105
    %v125 = vpop.permute.xlu0 %124
    %128 = vset.pattern.permute.xlu0 0
    %129 = vperm.xlu0 %128, %v106
    %v130 = vpop.permute.xlu0 %129
    %133 = vset.pattern.permute.xlu0 0
    %134 = vperm.xlu0 %133, %v107
    %v135 = vpop.permute.xlu0 %134
    %138 = vset.pattern.permute.xlu0 0
    %139 = vperm.xlu0 %138, %v108
    %v140 = vpop.permute.xlu0 %139
    %143 = vset.pattern.permute.xlu0 0
    %144 = vperm.xlu0 %143, %v109
    %v145 = vpop.permute.xlu0 %144
    %148 = vset.pattern.permute.xlu0 0
    %149 = vperm.xlu0 %148, %v110
    %v150 = vpop.permute.xlu0 %149
    %153 = vset.pattern.permute.xlu0 0
    %154 = vperm.xlu0 %153, %v111
    %v155 = vpop.permute.xlu0 %154
    %158 = vset.pattern.permute.xlu0 0
    %159 = vperm.xlu0 %158, %v112
    %v160 = vpop.permute.xlu0 %159
    %163 = vset.pattern.permute.xlu0 0
    %164 = vperm.xlu0 %163, %v113
    %v165 = vpop.permute.xlu0 %164
    %168 = vset.pattern.permute.xlu0 0
    %169 = vperm.xlu0 %168, %v114
    %v170 = vpop.permute.xlu0 %169
    %173 = vset.pattern.permute.xlu0 0
    %174 = vperm.xlu0 %173, %v115
    %v175 = vpop.permute.xlu0 %174
    %178 = vset.pattern.permute.xlu0 0
    %179 = vperm.xlu0 %178, %v116
    %v180 = vpop.permute.xlu0 %179
    %183 = vset.pattern.permute.xlu0 0
    %184 = vperm.xlu0 %183, %v117
    %v185 = vpop.permute.xlu0 %184
    %188 = vset.pattern.permute.xlu0 0
    %189 = vperm.xlu0 %188, %v118
    %v190 = vpop.permute.xlu0 %189
    %193 = vset.pattern.permute.xlu0 0
    %194 = vperm.xlu0 %193, %v119
    %v195 = vpop.permute.xlu0 %194
    %198 = vset.pattern.permute.xlu0 0
    %199 = vperm.xlu0 %198, %v120
    %v200 = vpop.permute.xlu0 %199
    %v203 = vlaneseq
    %v204 = vshrl.u32 %v203, 7
    %v205 = vsub.s32 0, %v204
    %v206 = vrot.slane %v121, %v205
    %vm208 = vcmp.eq.f32.partialorder %v125, %v206
    %vm209 = vcmp.eq.f32.partialorder %v130, %v206
    %vm210 = vcmp.eq.f32.partialorder %v135, %v206
    %vm211 = vcmp.eq.f32.partialorder %v140, %v206
    %vm212 = vcmp.eq.f32.partialorder %v145, %v206
    %vm213 = vcmp.eq.f32.partialorder %v150, %v206
    %vm214 = vcmp.eq.f32.partialorder %v155, %v206
    %vm215 = vcmp.eq.f32.partialorder %v160, %v206
    %vm216 = vcmp.eq.f32.partialorder %v165, %v206
    %vm217 = vcmp.eq.f32.partialorder %v170, %v206
    %vm218 = vcmp.eq.f32.partialorder %v175, %v206
    %vm219 = vcmp.eq.f32.partialorder %v180, %v206
    %vm220 = vcmp.eq.f32.partialorder %v185, %v206
    %vm221 = vcmp.eq.f32.partialorder %v190, %v206
    %vm222 = vcmp.eq.f32.partialorder %v195, %v206
    %vm223 = vcmp.eq.f32.partialorder %v200, %v206
    %v224 = vsel %vm208, 1.0, 0.0
    %v225 = vsel %vm209, 1.0, 0.0
    %v226 = vsel %vm210, 1.0, 0.0
    %v227 = vsel %vm211, 1.0, 0.0
    %v228 = vsel %vm212, 1.0, 0.0
    %v229 = vsel %vm213, 1.0, 0.0
    %v230 = vsel %vm214, 1.0, 0.0
    %v231 = vsel %vm215, 1.0, 0.0
    %v232 = vsel %vm216, 1.0, 0.0
    %v233 = vsel %vm217, 1.0, 0.0
    %v234 = vsel %vm218, 1.0, 0.0
    %v235 = vsel %vm219, 1.0, 0.0
    %v236 = vsel %vm220, 1.0, 0.0
    %v237 = vsel %vm221, 1.0, 0.0
    %v238 = vsel %vm222, 1.0, 0.0
    %v239 = vsel %vm223, 1.0, 0.0
    %v240 = vpack.c.bf16 %v90, %v89
    %v241 = vpack.c.bf16 %v92, %v91
    %v242 = vpack.c.bf16 %v94, %v93
    %v243 = vpack.c.bf16 %v96, %v95
    %v244 = vpack.c.bf16 %v98, %v97
    %v245 = vpack.c.bf16 %v100, %v99
    %v246 = vpack.c.bf16 %v102, %v101
    %v247 = vpack.c.bf16 %v104, %v103
    %v248 = vld [vmem:[%s11] sm:$0xff]
    %v249 = vld [vmem:[%s11 + $0x8] sm:$0xf]
    %v250 = vld [vmem:[%s11 + $0xc] sm:$0xff]
    %v251 = vld [vmem:[%s11 + $0x14] sm:$0xf]
    %v252 = vld [vmem:[%s11 + $0x18] sm:$0xff]
    %v253 = vld [vmem:[%s11 + $0x20] sm:$0xf]
    %v254 = vld [vmem:[%s11 + $0x24] sm:$0xff]
    %v255 = vld [vmem:[%s11 + $0x2c] sm:$0xf]
    %v256 = vld [vmem:[%s11 + $0x30] sm:$0xff]
    %v257 = vld [vmem:[%s11 + $0x38] sm:$0xf]
    %v258 = vld [vmem:[%s11 + $0x3c] sm:$0xff]
    %v259 = vld [vmem:[%s11 + $0x44] sm:$0xf]
    %v260 = vld [vmem:[%s11 + $0x48] sm:$0xff]
    %v261 = vld [vmem:[%s11 + $0x50] sm:$0xf]
    %v262 = vld [vmem:[%s11 + $0x54] sm:$0xff]
    %v263 = vld [vmem:[%s11 + $0x5c] sm:$0xf]
    %v264 = vld [vmem:[%s11 + $0x60] sm:$0xff]
    %v265 = vld [vmem:[%s11 + $0x68] sm:$0xf]
    %v266 = vld [vmem:[%s11 + $0x6c] sm:$0xff]
    %v267 = vld [vmem:[%s11 + $0x74] sm:$0xf]
    %v268 = vld [vmem:[%s11 + $0x78] sm:$0xff]
    %v269 = vld [vmem:[%s11 + $0x80] sm:$0xf]
    %v270 = vld [vmem:[%s11 + $0x84] sm:$0xff]
    %v271 = vld [vmem:[%s11 + $0x8c] sm:$0xf]
    %v272 = vld [vmem:[%s11 + $0x90] sm:$0xff]
    %v273 = vld [vmem:[%s11 + $0x98] sm:$0xf]
    %v274 = vld [vmem:[%s11 + $0x9c] sm:$0xff]
    %v275 = vld [vmem:[%s11 + $0xa4] sm:$0xf]
    %v276 = vld [vmem:[%s11 + $0xa8] sm:$0xff]
    %v277 = vld [vmem:[%s11 + $0xb0] sm:$0xf]
    %v278 = vld [vmem:[%s11 + $0xb4] sm:$0xff]
    %v279 = vld [vmem:[%s11 + $0xbc] sm:$0xf]
    %v280 = vld [vmem:[%s12] sm:$0x7]
    %v282 = vlaneseq
    %v283 = vshrl.u32 %v282, 7
    %v284 = vsub.s32 0, %v283
    %v285 = vrot.slane %v280, %v284
    %v286 = vlaneseq
    %v287 = vshrl.u32 %v286, 7
    %v288 = vsub.s32 1, %v287
    %v289 = vrot.slane %v280, %v288
    %v290 = vlaneseq
    %v291 = vshrl.u32 %v290, 7
    %v292 = vsub.s32 2, %v291
    %v293 = vrot.slane %v280, %v292
    %v329 = vunpack.c.l.b16 %v248
    %v330 = vunpack.c.h.b16 %v248
    %v331 = vunpack.c.l.b16 %v249
    %v332 = vunpack.c.l.b16 %v250
    %v333 = vunpack.c.h.b16 %v250
    %v334 = vunpack.c.l.b16 %v251
    %v335 = vunpack.c.l.b16 %v252
    %v336 = vunpack.c.h.b16 %v252
    %v337 = vunpack.c.l.b16 %v253
    %v338 = vunpack.c.l.b16 %v254
    %v339 = vunpack.c.h.b16 %v254
    %v340 = vunpack.c.l.b16 %v255
    %v341 = vunpack.c.l.b16 %v256
    %v342 = vunpack.c.h.b16 %v256
    %v343 = vunpack.c.l.b16 %v257
    %v344 = vunpack.c.l.b16 %v258
    %v345 = vunpack.c.h.b16 %v258
    %v346 = vunpack.c.l.b16 %v259
    %v347 = vunpack.c.l.b16 %v260
    %v348 = vunpack.c.h.b16 %v260
    %v349 = vunpack.c.l.b16 %v261
    %v350 = vunpack.c.l.b16 %v262
    %v351 = vunpack.c.h.b16 %v262
    %v352 = vunpack.c.l.b16 %v263
    %v353 = vunpack.c.l.b16 %v264
    %v354 = vunpack.c.h.b16 %v264
    %v355 = vunpack.c.l.b16 %v265
    %v356 = vunpack.c.l.b16 %v266
    %v357 = vunpack.c.h.b16 %v266
    %v358 = vunpack.c.l.b16 %v267
    %v359 = vunpack.c.l.b16 %v268
    %v360 = vunpack.c.h.b16 %v268
    %v361 = vunpack.c.l.b16 %v269
    %v362 = vunpack.c.l.b16 %v270
    %v363 = vunpack.c.h.b16 %v270
    %v364 = vunpack.c.l.b16 %v271
    %v365 = vunpack.c.l.b16 %v272
    %v366 = vunpack.c.h.b16 %v272
    %v367 = vunpack.c.l.b16 %v273
    %v368 = vunpack.c.l.b16 %v274
    %v369 = vunpack.c.h.b16 %v274
    %v370 = vunpack.c.l.b16 %v275
    %v371 = vunpack.c.l.b16 %v276
    %v372 = vunpack.c.h.b16 %v276
    %v373 = vunpack.c.l.b16 %v277
    %v374 = vunpack.c.l.b16 %v278
    %v375 = vunpack.c.h.b16 %v278
    %v376 = vunpack.c.l.b16 %v279
    %v377 = vpack.c.b16 %v332, %v329
    %v378 = vpack.c.b16 %v333, %v330
    %v379 = vpack.c.b16 %v334, %v331
    %v380 = vpack.c.b16 %v338, %v335
    %v381 = vpack.c.b16 %v339, %v336
    %v382 = vpack.c.b16 %v340, %v337
    %v383 = vpack.c.b16 %v344, %v341
    %v384 = vpack.c.b16 %v345, %v342
    %v385 = vpack.c.b16 %v346, %v343
    %v386 = vpack.c.b16 %v350, %v347
    %v387 = vpack.c.b16 %v351, %v348
    %v388 = vpack.c.b16 %v352, %v349
    %v389 = vpack.c.b16 %v356, %v353
    %v390 = vpack.c.b16 %v357, %v354
    %v391 = vpack.c.b16 %v358, %v355
    %v392 = vpack.c.b16 %v362, %v359
    %v393 = vpack.c.b16 %v363, %v360
    %v394 = vpack.c.b16 %v364, %v361
    %v395 = vpack.c.b16 %v368, %v365
    %v396 = vpack.c.b16 %v369, %v366
    %v397 = vpack.c.b16 %v370, %v367
    %v398 = vpack.c.b16 %v374, %v371
    %v399 = vpack.c.b16 %v375, %v372
    %v400 = vpack.c.b16 %v376, %v373
    %425 = vmatprep.subr.bf16.mxu0 %v378
    %426 = vmatpush1.bf16.msra.mxu0 %v377
    %427 = vmatprep.subr.bf16.mxu0 %v381
    %428 = vmatpush1.bf16.msra.mxu0 %v380
    %429 = vmatprep.subr.bf16.mxu0 %v384
    %430 = vmatpush1.bf16.msra.mxu0 %v383
    %431 = vmatprep.subr.bf16.mxu0 %v387
    %432 = vmatpush1.bf16.msra.mxu0 %v386
    %433 = vmatprep.subr.bf16.mxu0 %v390
    %434 = vmatpush1.bf16.msra.mxu0 %v389
    %435 = vmatprep.subr.bf16.mxu0 %v393
    %436 = vmatpush1.bf16.msra.mxu0 %v392
    %437 = vmatprep.subr.bf16.mxu0 %v396
    %438 = vmatpush1.bf16.msra.mxu0 %v395
    %439 = vmatprep.subr.bf16.mxu0 %v399
    %440 = vmatpush1.bf16.msra.mxu0 %v398
    %441 = vmatprep.subr.bf16.mxu0 0
    %442 = vmatpush1.bf16.msra.mxu0 0
    %443 = vmatprep.subr.bf16.mxu0 0
    %444 = vmatpush1.bf16.msra.mxu0 0
    %445 = vmatprep.subr.bf16.mxu0 0
    %446 = vmatpush1.bf16.msra.mxu0 0
    %447 = vmatprep.subr.bf16.mxu0 0
    %448 = vmatpush1.bf16.msra.mxu0 0
    %449 = vmatprep.subr.bf16.mxu0 0
    %450 = vmatpush1.bf16.msra.mxu0 0
    %451 = vmatprep.subr.bf16.mxu0 0
    %452 = vmatpush1.bf16.msra.mxu0 0
    %453 = vmatprep.subr.bf16.mxu0 0
    %454 = vmatpush1.bf16.msra.mxu0 0
    %455 = vmatprep.subr.bf16.mxu0 0
    %456 = vmatpush1.bf16.msra.mxu0 0
    %457 = vmatprep.mubr.bf16.mxu0 0
    %458 = vmatmul.mubr.bf16.gmra.mrb[0].mxu0 %v240
    %v459 = vpop.f32.mrb[0].mxu0
    %v460 = vadd.f32 %v285, %v459
    %v461 = vpop.f32.mrb[0].mxu0
    %v462 = vadd.f32 %v289, %v461
    %v463 = vpop.f32.mrb[0].mxu0
    %v464 = vadd.f32 %v285, %v463
    %v465 = vpop.f32.mrb[0].mxu0
    %v466 = vadd.f32 %v289, %v465
    %467 = vmatprep.mubr.bf16.mxu0 0
    %468 = vmatmul.mubr.bf16.gmra.mrb[0].mxu0 %v241
    %v469 = vpop.f32.mrb[0].mxu0
    %v470 = vadd.f32 %v285, %v469
    %v471 = vpop.f32.mrb[0].mxu0
    %v472 = vadd.f32 %v289, %v471
    %v473 = vpop.f32.mrb[0].mxu0
    %v474 = vadd.f32 %v285, %v473
    %v475 = vpop.f32.mrb[0].mxu0
    %v476 = vadd.f32 %v289, %v475
    %477 = vmatprep.mubr.bf16.mxu0 0
    %478 = vmatmul.mubr.bf16.gmra.mrb[0].mxu0 %v242
    %v479 = vpop.f32.mrb[0].mxu0
    %v480 = vadd.f32 %v285, %v479
    %v481 = vpop.f32.mrb[0].mxu0
    %v482 = vadd.f32 %v289, %v481
    %v483 = vpop.f32.mrb[0].mxu0
    %v484 = vadd.f32 %v285, %v483
    %v485 = vpop.f32.mrb[0].mxu0
    %v486 = vadd.f32 %v289, %v485
    %487 = vmatprep.mubr.bf16.mxu0 0
    %488 = vmatmul.mubr.bf16.gmra.mrb[0].mxu0 %v243
    %v489 = vpop.f32.mrb[0].mxu0
    %v490 = vadd.f32 %v285, %v489
    %v491 = vpop.f32.mrb[0].mxu0
    %v492 = vadd.f32 %v289, %v491
    %v493 = vpop.f32.mrb[0].mxu0
    %v494 = vadd.f32 %v285, %v493
    %v495 = vpop.f32.mrb[0].mxu0
    %v496 = vadd.f32 %v289, %v495
    %497 = vmatprep.mubr.bf16.mxu0 0
    %498 = vmatmul.mubr.bf16.gmra.mrb[0].mxu0 %v244
    %v499 = vpop.f32.mrb[0].mxu0
    %v500 = vadd.f32 %v285, %v499
    %v501 = vpop.f32.mrb[0].mxu0
    %v502 = vadd.f32 %v289, %v501
    %v503 = vpop.f32.mrb[0].mxu0
    %v504 = vadd.f32 %v285, %v503
    %v505 = vpop.f32.mrb[0].mxu0
    %v506 = vadd.f32 %v289, %v505
    %507 = vmatprep.mubr.bf16.mxu0 0
    %508 = vmatmul.mubr.bf16.gmra.mrb[0].mxu0 %v245
    %v509 = vpop.f32.mrb[0].mxu0
    %v510 = vadd.f32 %v285, %v509
    %v511 = vpop.f32.mrb[0].mxu0
    %v512 = vadd.f32 %v289, %v511
    %v513 = vpop.f32.mrb[0].mxu0
    %v514 = vadd.f32 %v285, %v513
    %v515 = vpop.f32.mrb[0].mxu0
    %v516 = vadd.f32 %v289, %v515
    %517 = vmatprep.mubr.bf16.mxu0 0
    %518 = vmatmul.mubr.bf16.gmra.mrb[0].mxu0 %v246
    %v519 = vpop.f32.mrb[0].mxu0
    %v520 = vadd.f32 %v285, %v519
    %v521 = vpop.f32.mrb[0].mxu0
    %v522 = vadd.f32 %v289, %v521
    %v523 = vpop.f32.mrb[0].mxu0
    %v524 = vadd.f32 %v285, %v523
    %v525 = vpop.f32.mrb[0].mxu0
    %v526 = vadd.f32 %v289, %v525
    %527 = vmatprep.mubr.bf16.mxu0 0
    %528 = vmatmul.mubr.bf16.gmra.mrb[0].mxu0 %v247
    %v529 = vpop.f32.mrb[0].mxu0
    %v530 = vadd.f32 %v285, %v529
    %v531 = vpop.f32.mrb[0].mxu0
    %v532 = vadd.f32 %v289, %v531
    %v533 = vpop.f32.mrb[0].mxu0
    %v534 = vadd.f32 %v285, %v533
    %v535 = vpop.f32.mrb[0].mxu0
    %v536 = vadd.f32 %v289, %v535
    %537 = vdwg.mxu0
    %538 = vmatprep.subr.bf16.mxu0 0
    %539 = vmatpush1.bf16.msra.mxu0 %v379
    %540 = vmatprep.subr.bf16.mxu0 0
    %541 = vmatpush1.bf16.msra.mxu0 %v382
    %542 = vmatprep.subr.bf16.mxu0 0
    %543 = vmatpush1.bf16.msra.mxu0 %v385
    %544 = vmatprep.subr.bf16.mxu0 0
    %545 = vmatpush1.bf16.msra.mxu0 %v388
    %546 = vmatprep.subr.bf16.mxu0 0
    %547 = vmatpush1.bf16.msra.mxu0 %v391
    %548 = vmatprep.subr.bf16.mxu0 0
    %549 = vmatpush1.bf16.msra.mxu0 %v394
    %550 = vmatprep.subr.bf16.mxu0 0
    %551 = vmatpush1.bf16.msra.mxu0 %v397
    %552 = vmatprep.subr.bf16.mxu0 0
    %553 = vmatpush1.bf16.msra.mxu0 %v400
    %554 = vmatprep.subr.bf16.mxu0 0
    %555 = vmatpush1.bf16.msra.mxu0 0
    %556 = vmatprep.subr.bf16.mxu0 0
    %557 = vmatpush1.bf16.msra.mxu0 0
    %558 = vmatprep.subr.bf16.mxu0 0
    %559 = vmatpush1.bf16.msra.mxu0 0
    %560 = vmatprep.subr.bf16.mxu0 0
    %561 = vmatpush1.bf16.msra.mxu0 0
    %562 = vmatprep.subr.bf16.mxu0 0
    %563 = vmatpush1.bf16.msra.mxu0 0
    %564 = vmatprep.subr.bf16.mxu0 0
    %565 = vmatpush1.bf16.msra.mxu0 0
    %566 = vmatprep.subr.bf16.mxu0 0
    %567 = vmatpush1.bf16.msra.mxu0 0
    %568 = vmatprep.subr.bf16.mxu0 0
    %569 = vmatpush1.bf16.msra.mxu0 0
    %570 = vmatprep.mubr.bf16.mxu0 0
    %571 = vmatmul.mubr.bf16.gmra.mrb[0].mxu0 %v240
    %v572 = vpop.f32.mrb[0].mxu0
    %v573 = vadd.f32 %v293, %v572
    %v574 = vpop.f32.mrb[0].mxu0
    %v575 = vpop.f32.mrb[0].mxu0
    %v576 = vadd.f32 %v293, %v575
    %v577 = vpop.f32.mrb[0].mxu0
    %578 = vmatprep.mubr.bf16.mxu0 0
    %579 = vmatmul.mubr.bf16.gmra.mrb[0].mxu0 %v241
    %v580 = vpop.f32.mrb[0].mxu0
    %v581 = vadd.f32 %v293, %v580
    %v582 = vpop.f32.mrb[0].mxu0
    %v583 = vpop.f32.mrb[0].mxu0
    %v584 = vadd.f32 %v293, %v583
    %v585 = vpop.f32.mrb[0].mxu0
    %586 = vmatprep.mubr.bf16.mxu0 0
    %587 = vmatmul.mubr.bf16.gmra.mrb[0].mxu0 %v242
    %v588 = vpop.f32.mrb[0].mxu0
    %v589 = vadd.f32 %v293, %v588
    %v590 = vpop.f32.mrb[0].mxu0
    %v591 = vpop.f32.mrb[0].mxu0
    %v592 = vadd.f32 %v293, %v591
    %v593 = vpop.f32.mrb[0].mxu0
    %594 = vmatprep.mubr.bf16.mxu0 0
    %595 = vmatmul.mubr.bf16.gmra.mrb[0].mxu0 %v243
    %v596 = vpop.f32.mrb[0].mxu0
    %v597 = vadd.f32 %v293, %v596
    %v598 = vpop.f32.mrb[0].mxu0
    %v599 = vpop.f32.mrb[0].mxu0
    %v600 = vadd.f32 %v293, %v599
    %v601 = vpop.f32.mrb[0].mxu0
    %602 = vmatprep.mubr.bf16.mxu0 0
    %603 = vmatmul.mubr.bf16.gmra.mrb[0].mxu0 %v244
    %v604 = vpop.f32.mrb[0].mxu0
    %v605 = vadd.f32 %v293, %v604
    %v606 = vpop.f32.mrb[0].mxu0
    %v607 = vpop.f32.mrb[0].mxu0
    %v608 = vadd.f32 %v293, %v607
    %v609 = vpop.f32.mrb[0].mxu0
    %610 = vmatprep.mubr.bf16.mxu0 0
    %611 = vmatmul.mubr.bf16.gmra.mrb[0].mxu0 %v245
    %v612 = vpop.f32.mrb[0].mxu0
    %v613 = vadd.f32 %v293, %v612
    %v614 = vpop.f32.mrb[0].mxu0
    %v615 = vpop.f32.mrb[0].mxu0
    %v616 = vadd.f32 %v293, %v615
    %v617 = vpop.f32.mrb[0].mxu0
    %618 = vmatprep.mubr.bf16.mxu0 0
    %619 = vmatmul.mubr.bf16.gmra.mrb[0].mxu0 %v246
    %v620 = vpop.f32.mrb[0].mxu0
    %v621 = vadd.f32 %v293, %v620
    %v622 = vpop.f32.mrb[0].mxu0
    %v623 = vpop.f32.mrb[0].mxu0
    %v624 = vadd.f32 %v293, %v623
    %v625 = vpop.f32.mrb[0].mxu0
    %626 = vmatprep.mubr.bf16.mxu0 0
    %627 = vmatmul.mubr.bf16.gmra.mrb[0].mxu0 %v247
    %v628 = vpop.f32.mrb[0].mxu0
    %v629 = vadd.f32 %v293, %v628
    %v630 = vpop.f32.mrb[0].mxu0
    %v631 = vpop.f32.mrb[0].mxu0
    %v632 = vadd.f32 %v293, %v631
    %v633 = vpop.f32.mrb[0].mxu0
    %634 = vdwg.mxu0
    %v635 = vmul.f32 %v460, %v460
    %v636 = vmul.f32 %v464, %v464
    %v637 = vmul.f32 %v470, %v470
    %v638 = vmul.f32 %v474, %v474
    %v639 = vmul.f32 %v480, %v480
    %v640 = vmul.f32 %v484, %v484
    %v641 = vmul.f32 %v490, %v490
    %v642 = vmul.f32 %v494, %v494
    %v643 = vmul.f32 %v500, %v500
    %v644 = vmul.f32 %v504, %v504
    %v645 = vmul.f32 %v510, %v510
    %v646 = vmul.f32 %v514, %v514
    %v647 = vmul.f32 %v520, %v520
    %v648 = vmul.f32 %v524, %v524
    %v649 = vmul.f32 %v530, %v530
    %v650 = vmul.f32 %v534, %v534
    %v651 = vmul.f32 %v462, %v462
    %v652 = vmul.f32 %v466, %v466
    %v653 = vmul.f32 %v472, %v472
    %v654 = vmul.f32 %v476, %v476
    %v655 = vmul.f32 %v482, %v482
    %v656 = vmul.f32 %v486, %v486
    %v657 = vmul.f32 %v492, %v492
    %v658 = vmul.f32 %v496, %v496
    %v659 = vmul.f32 %v502, %v502
    %v660 = vmul.f32 %v506, %v506
    %v661 = vmul.f32 %v512, %v512
    %v662 = vmul.f32 %v516, %v516
    %v663 = vmul.f32 %v522, %v522
    %v664 = vmul.f32 %v526, %v526
    %v665 = vmul.f32 %v532, %v532
    %v666 = vmul.f32 %v536, %v536
    %v667 = vld [vmem:[%s5] sm:$0xff]
    %v668 = vld [vmem:[%s5 + $0x8] sm:$0xff]
    %v669 = vld [vmem:[%s5 + $0x10] sm:$0xff]
    %v670 = vld [vmem:[%s5 + $0x18] sm:$0xff]
    %v671 = vld [vmem:[%s5 + $0x20] sm:$0xff]
    %v672 = vld [vmem:[%s5 + $0x28] sm:$0xff]
    %v673 = vld [vmem:[%s5 + $0x30] sm:$0xff]
    %v674 = vld [vmem:[%s5 + $0x38] sm:$0xff]
    %v675 = vld [vmem:[%s5 + $0x40] sm:$0xff]
    %v676 = vld [vmem:[%s5 + $0x48] sm:$0xff]
    %v677 = vld [vmem:[%s5 + $0x50] sm:$0xff]
    %v678 = vld [vmem:[%s5 + $0x58] sm:$0xff]
    %v679 = vld [vmem:[%s5 + $0x60] sm:$0xff]
    %v680 = vld [vmem:[%s5 + $0x68] sm:$0xff]
    %v681 = vld [vmem:[%s5 + $0x70] sm:$0xff]
    %v682 = vld [vmem:[%s5 + $0x78] sm:$0xff]
    %v683 = vld [vmem:[%s5 + $0x80] sm:$0xff]
    %v684 = vld [vmem:[%s5 + $0x88] sm:$0xff]
    %v685 = vld [vmem:[%s5 + $0x90] sm:$0xff]
    %v686 = vld [vmem:[%s5 + $0x98] sm:$0xff]
    %v687 = vld [vmem:[%s5 + $0xa0] sm:$0xff]
    %v688 = vld [vmem:[%s5 + $0xa8] sm:$0xff]
    %v689 = vld [vmem:[%s5 + $0xb0] sm:$0xff]
    %v690 = vld [vmem:[%s5 + $0xb8] sm:$0xff]
    %v691 = vld [vmem:[%s5 + $0xc0] sm:$0xff]
    %v692 = vld [vmem:[%s5 + $0xc8] sm:$0xff]
    %v693 = vld [vmem:[%s5 + $0xd0] sm:$0xff]
    %v694 = vld [vmem:[%s5 + $0xd8] sm:$0xff]
    %v695 = vld [vmem:[%s5 + $0xe0] sm:$0xff]
    %v696 = vld [vmem:[%s5 + $0xe8] sm:$0xff]
    %v697 = vld [vmem:[%s5 + $0xf0] sm:$0xff]
    %v698 = vld [vmem:[%s5 + $0xf8] sm:$0xff]
    %699 = vmatprep.subr.mxu0 0.0
    %700 = vmatpush1.msra.mxu0 %v667
    %701 = vmatprep.subr.mxu0 0.0
    %702 = vmatpush1.msra.mxu0 %v668
    %703 = vmatprep.subr.mxu0 0.0
    %704 = vmatpush1.msra.mxu0 %v669
    %705 = vmatprep.subr.mxu0 0.0
    %706 = vmatpush1.msra.mxu0 %v670
    %707 = vmatprep.subr.mxu0 0.0
    %708 = vmatpush1.msra.mxu0 %v671
    %709 = vmatprep.subr.mxu0 0.0
    %710 = vmatpush1.msra.mxu0 %v672
    %711 = vmatprep.subr.mxu0 0.0
    %712 = vmatpush1.msra.mxu0 %v673
    %713 = vmatprep.subr.mxu0 0.0
    %714 = vmatpush1.msra.mxu0 %v674
    %715 = vmatprep.subr.mxu0 0.0
    %716 = vmatpush1.msra.mxu0 %v675
    %717 = vmatprep.subr.mxu0 0.0
    %718 = vmatpush1.msra.mxu0 %v676
    %719 = vmatprep.subr.mxu0 0.0
    %720 = vmatpush1.msra.mxu0 %v677
    %721 = vmatprep.subr.mxu0 0.0
    %722 = vmatpush1.msra.mxu0 %v678
    %723 = vmatprep.subr.mxu0 0.0
    %724 = vmatpush1.msra.mxu0 %v679
    %725 = vmatprep.subr.mxu0 0.0
    %726 = vmatpush1.msra.mxu0 %v680
    %727 = vmatprep.subr.mxu0 0.0
    %728 = vmatpush1.msra.mxu0 %v681
    %729 = vmatprep.subr.mxu0 0.0
    %730 = vmatpush1.msra.mxu0 %v682
    %731 = vmatprep.subr.mxu0 0.0
    %732 = vmatpush1.msra.mxu0 %v683
    %733 = vmatprep.subr.mxu0 0.0
    %734 = vmatpush1.msra.mxu0 %v684
    %735 = vmatprep.subr.mxu0 0.0
    %736 = vmatpush1.msra.mxu0 %v685
    %737 = vmatprep.subr.mxu0 0.0
    %738 = vmatpush1.msra.mxu0 %v686
    %739 = vmatprep.subr.mxu0 0.0
    %740 = vmatpush1.msra.mxu0 %v687
    %741 = vmatprep.subr.mxu0 0.0
    %742 = vmatpush1.msra.mxu0 %v688
    %743 = vmatprep.subr.mxu0 0.0
    %744 = vmatpush1.msra.mxu0 %v689
    %745 = vmatprep.subr.mxu0 0.0
    %746 = vmatpush1.msra.mxu0 %v690
    %747 = vmatprep.subr.mxu0 0.0
    %748 = vmatpush1.msra.mxu0 %v691
    %749 = vmatprep.subr.mxu0 0.0
    %750 = vmatpush1.msra.mxu0 %v692
    %751 = vmatprep.subr.mxu0 0.0
    %752 = vmatpush1.msra.mxu0 %v693
    %753 = vmatprep.subr.mxu0 0.0
    %754 = vmatpush1.msra.mxu0 %v694
    %755 = vmatprep.subr.mxu0 0.0
    %756 = vmatpush1.msra.mxu0 %v695
    %757 = vmatprep.subr.mxu0 0.0
    %758 = vmatpush1.msra.mxu0 %v696
    %759 = vmatprep.subr.mxu0 0.0
    %760 = vmatpush1.msra.mxu0 %v697
    %761 = vmatprep.subr.mxu0 0.0
    %762 = vmatpush1.msra.mxu0 %v698
    %763 = vmatprep.mubr.f32.mxu0 %v651
    %764 = vmatmul.mubr.f32.gmra.mrb[0].mxu0 %v635
    %v765 = vpop.f32.mrb[0].mxu0
    %v766 = vadd.f32 1e-12, %v765
    %v767 = vpop.f32.mrb[0].mxu0
    %768 = vmatprep.mubr.f32.mxu0 %v652
    %769 = vmatmul.mubr.f32.gmra.mrb[0].mxu0 %v636
    %v770 = vpop.f32.mrb[0].mxu0
    %v771 = vadd.f32 1e-12, %v770
    %v772 = vpop.f32.mrb[0].mxu0
    %773 = vmatprep.mubr.f32.mxu0 %v653
    %774 = vmatmul.mubr.f32.gmra.mrb[0].mxu0 %v637
    %v775 = vpop.f32.mrb[0].mxu0
    %v776 = vadd.f32 1e-12, %v775
    %v777 = vpop.f32.mrb[0].mxu0
    %778 = vmatprep.mubr.f32.mxu0 %v654
    %779 = vmatmul.mubr.f32.gmra.mrb[0].mxu0 %v638
    %v780 = vpop.f32.mrb[0].mxu0
    %v781 = vadd.f32 1e-12, %v780
    %v782 = vpop.f32.mrb[0].mxu0
    %783 = vmatprep.mubr.f32.mxu0 %v655
    %784 = vmatmul.mubr.f32.gmra.mrb[0].mxu0 %v639
    %v785 = vpop.f32.mrb[0].mxu0
    %v786 = vadd.f32 1e-12, %v785
    %v787 = vpop.f32.mrb[0].mxu0
    %788 = vmatprep.mubr.f32.mxu0 %v656
    %789 = vmatmul.mubr.f32.gmra.mrb[0].mxu0 %v640
    %v790 = vpop.f32.mrb[0].mxu0
    %v791 = vadd.f32 1e-12, %v790
    %v792 = vpop.f32.mrb[0].mxu0
    %793 = vmatprep.mubr.f32.mxu0 %v657
    %794 = vmatmul.mubr.f32.gmra.mrb[0].mxu0 %v641
    %v795 = vpop.f32.mrb[0].mxu0
    %v796 = vadd.f32 1e-12, %v795
    %v797 = vpop.f32.mrb[0].mxu0
    %798 = vmatprep.mubr.f32.mxu0 %v658
    %799 = vmatmul.mubr.f32.gmra.mrb[0].mxu0 %v642
    %v800 = vpop.f32.mrb[0].mxu0
    %v801 = vadd.f32 1e-12, %v800
    %v802 = vpop.f32.mrb[0].mxu0
    %803 = vmatprep.mubr.f32.mxu0 %v659
    %804 = vmatmul.mubr.f32.gmra.mrb[0].mxu0 %v643
    %v805 = vpop.f32.mrb[0].mxu0
    %v806 = vadd.f32 1e-12, %v805
    %v807 = vpop.f32.mrb[0].mxu0
    %808 = vmatprep.mubr.f32.mxu0 %v660
    %809 = vmatmul.mubr.f32.gmra.mrb[0].mxu0 %v644
    %v810 = vpop.f32.mrb[0].mxu0
    %v811 = vadd.f32 1e-12, %v810
    %v812 = vpop.f32.mrb[0].mxu0
    %813 = vmatprep.mubr.f32.mxu0 %v661
    %814 = vmatmul.mubr.f32.gmra.mrb[0].mxu0 %v645
    %v815 = vpop.f32.mrb[0].mxu0
    %v816 = vadd.f32 1e-12, %v815
    %v817 = vpop.f32.mrb[0].mxu0
    %818 = vmatprep.mubr.f32.mxu0 %v662
    %819 = vmatmul.mubr.f32.gmra.mrb[0].mxu0 %v646
    %v820 = vpop.f32.mrb[0].mxu0
    %v821 = vadd.f32 1e-12, %v820
    %v822 = vpop.f32.mrb[0].mxu0
    %823 = vmatprep.mubr.f32.mxu0 %v663
    %824 = vmatmul.mubr.f32.gmra.mrb[0].mxu0 %v647
    %v825 = vpop.f32.mrb[0].mxu0
    %v826 = vadd.f32 1e-12, %v825
    %v827 = vpop.f32.mrb[0].mxu0
    %828 = vmatprep.mubr.f32.mxu0 %v664
    %829 = vmatmul.mubr.f32.gmra.mrb[0].mxu0 %v648
    %v830 = vpop.f32.mrb[0].mxu0
    %v831 = vadd.f32 1e-12, %v830
    %v832 = vpop.f32.mrb[0].mxu0
    %833 = vmatprep.mubr.f32.mxu0 %v665
    %834 = vmatmul.mubr.f32.gmra.mrb[0].mxu0 %v649
    %v835 = vpop.f32.mrb[0].mxu0
    %v836 = vadd.f32 1e-12, %v835
    %v837 = vpop.f32.mrb[0].mxu0
    %838 = vmatprep.mubr.f32.mxu0 %v666
    %839 = vmatmul.mubr.f32.gmra.mrb[0].mxu0 %v650
    %v840 = vpop.f32.mrb[0].mxu0
    %v841 = vadd.f32 1e-12, %v840
    %v842 = vpop.f32.mrb[0].mxu0
    %843 = vdwg.mxu0
    %v844 = vrsqrt.pop %v766
    %v845 = vrsqrt.pop %v771
    %v846 = vrsqrt.pop %v776
    %v847 = vrsqrt.pop %v781
    %v848 = vrsqrt.pop %v786
    %v849 = vrsqrt.pop %v791
    %v850 = vrsqrt.pop %v796
    %v851 = vrsqrt.pop %v801
    %v852 = vrsqrt.pop %v806
    %v853 = vrsqrt.pop %v811
    %v854 = vrsqrt.pop %v816
    %v855 = vrsqrt.pop %v821
    %v856 = vrsqrt.pop %v826
    %v857 = vrsqrt.pop %v831
    %v858 = vrsqrt.pop %v836
    %v859 = vrsqrt.pop %v841
    %v860 = vld [vmem:[%s6] sm:$0xff]
    %v861 = vld [vmem:[%s6 + $0x8] sm:$0xff]
    %v862 = vld [vmem:[%s6 + $0x10] sm:$0xff]
    %v863 = vld [vmem:[%s6 + $0x18] sm:$0xff]
    %vm864 = vcmask 130048
    %v866 = vsel %vm864, %v844, 0
    %v869 = vsel %vm864, %v845, 0
    %v872 = vsel %vm864, %v846, 0
    %v875 = vsel %vm864, %v847, 0
    %v878 = vsel %vm864, %v848, 0
    %v881 = vsel %vm864, %v849, 0
    %v884 = vsel %vm864, %v850, 0
    %v887 = vsel %vm864, %v851, 0
    %v890 = vsel %vm864, %v852, 0
    %v893 = vsel %vm864, %v853, 0
    %v896 = vsel %vm864, %v854, 0
    %v899 = vsel %vm864, %v855, 0
    %v902 = vsel %vm864, %v856, 0
    %v905 = vsel %vm864, %v857, 0
    %v908 = vsel %vm864, %v858, 0
    %v911 = vsel %vm864, %v859, 0
    %913 = vmatprep.subr.mxu0 %v861
    %914 = vmatpush1.msra.mxu0 %v860
    %915 = vmatprep.subr.mxu0 %v863
    %916 = vmatpush1.msra.mxu0 %v862
    %917 = vmatprep.subr.mxu0 0.0
    %918 = vmatpush1.msra.mxu0 0.0
    %919 = vmatprep.subr.mxu0 0.0
    %920 = vmatpush1.msra.mxu0 0.0
    %921 = vmatprep.subr.mxu0 0.0
    %922 = vmatpush1.msra.mxu0 0.0
    %923 = vmatprep.subr.mxu0 0.0
    %924 = vmatpush1.msra.mxu0 0.0
    %925 = vmatprep.subr.mxu0 0.0
    %926 = vmatpush1.msra.mxu0 0.0
    %927 = vmatprep.subr.mxu0 0.0
    %928 = vmatpush1.msra.mxu0 0.0
    %929 = vmatprep.subr.mxu0 0.0
    %930 = vmatpush1.msra.mxu0 0.0
    %931 = vmatprep.subr.mxu0 0.0
    %932 = vmatpush1.msra.mxu0 0.0
    %933 = vmatprep.subr.mxu0 0.0
    %934 = vmatpush1.msra.mxu0 0.0
    %935 = vmatprep.subr.mxu0 0.0
    %936 = vmatpush1.msra.mxu0 0.0
    %937 = vmatprep.subr.mxu0 0.0
    %938 = vmatpush1.msra.mxu0 0.0
    %939 = vmatprep.subr.mxu0 0.0
    %940 = vmatpush1.msra.mxu0 0.0
    %941 = vmatprep.subr.mxu0 0.0
    %942 = vmatpush1.msra.mxu0 0.0
    %943 = vmatprep.subr.mxu0 0.0
    %944 = vmatpush1.msra.mxu0 0.0
    %945 = vmatprep.subr.mxu0 0.0
    %946 = vmatpush1.msra.mxu0 0.0
    %947 = vmatprep.subr.mxu0 0.0
    %948 = vmatpush1.msra.mxu0 0.0
    %949 = vmatprep.subr.mxu0 0.0
    %950 = vmatpush1.msra.mxu0 0.0
    %951 = vmatprep.subr.mxu0 0.0
    %952 = vmatpush1.msra.mxu0 0.0
    %953 = vmatprep.subr.mxu0 0.0
    %954 = vmatpush1.msra.mxu0 0.0
    %955 = vmatprep.subr.mxu0 0.0
    %956 = vmatpush1.msra.mxu0 0.0
    %957 = vmatprep.subr.mxu0 0.0
    %958 = vmatpush1.msra.mxu0 0.0
    %959 = vmatprep.subr.mxu0 0.0
    %960 = vmatpush1.msra.mxu0 0.0
    %961 = vmatprep.subr.mxu0 0.0
    %962 = vmatpush1.msra.mxu0 0.0
    %963 = vmatprep.subr.mxu0 0.0
    %964 = vmatpush1.msra.mxu0 0.0
    %965 = vmatprep.subr.mxu0 0.0
    %966 = vmatpush1.msra.mxu0 0.0
    %967 = vmatprep.subr.mxu0 0.0
    %968 = vmatpush1.msra.mxu0 0.0
    %969 = vmatprep.subr.mxu0 0.0
    %970 = vmatpush1.msra.mxu0 0.0
    %971 = vmatprep.subr.mxu0 0.0
    %972 = vmatpush1.msra.mxu0 0.0
    %973 = vmatprep.subr.mxu0 0.0
    %974 = vmatpush1.msra.mxu0 0.0
    %975 = vmatprep.subr.mxu0 0.0
    %976 = vmatpush1.msra.mxu0 0.0
    %977 = vmatprep.mubr.f32.mxu0 0.0
    %978 = vmatmul.mubr.f32.gmra.mrb[0].mxu0 %v866
    %v979 = vpop.f32.mrb[0].mxu0
    %v980 = vadd.f32 0.0, %v979
    %v981 = vpop.f32.mrb[0].mxu0
    %v982 = vadd.f32 0.0, %v981
    %983 = vmatprep.mubr.f32.mxu0 0.0
    %984 = vmatmul.mubr.f32.gmra.mrb[0].mxu0 %v869
    %v985 = vpop.f32.mrb[0].mxu0
    %v986 = vadd.f32 0.0, %v985
    %v987 = vpop.f32.mrb[0].mxu0
    %v988 = vadd.f32 0.0, %v987
    %989 = vmatprep.mubr.f32.mxu0 0.0
    %990 = vmatmul.mubr.f32.gmra.mrb[0].mxu0 %v872
    %v991 = vpop.f32.mrb[0].mxu0
    %v992 = vadd.f32 0.0, %v991
    %v993 = vpop.f32.mrb[0].mxu0
    %v994 = vadd.f32 0.0, %v993
    %995 = vmatprep.mubr.f32.mxu0 0.0
    %996 = vmatmul.mubr.f32.gmra.mrb[0].mxu0 %v875
    %v997 = vpop.f32.mrb[0].mxu0
    %v998 = vadd.f32 0.0, %v997
    %v999 = vpop.f32.mrb[0].mxu0
    %v1000 = vadd.f32 0.0, %v999
    %1001 = vmatprep.mubr.f32.mxu0 0.0
    %1002 = vmatmul.mubr.f32.gmra.mrb[0].mxu0 %v878
    %v1003 = vpop.f32.mrb[0].mxu0
    %v1004 = vadd.f32 0.0, %v1003
    %v1005 = vpop.f32.mrb[0].mxu0
    %v1006 = vadd.f32 0.0, %v1005
    %1007 = vmatprep.mubr.f32.mxu0 0.0
    %1008 = vmatmul.mubr.f32.gmra.mrb[0].mxu0 %v881
    %v1009 = vpop.f32.mrb[0].mxu0
    %v1010 = vadd.f32 0.0, %v1009
    %v1011 = vpop.f32.mrb[0].mxu0
    %v1012 = vadd.f32 0.0, %v1011
    %1013 = vmatprep.mubr.f32.mxu0 0.0
    %1014 = vmatmul.mubr.f32.gmra.mrb[0].mxu0 %v884
    %v1015 = vpop.f32.mrb[0].mxu0
    %v1016 = vadd.f32 0.0, %v1015
    %v1017 = vpop.f32.mrb[0].mxu0
    %v1018 = vadd.f32 0.0, %v1017
    %1019 = vmatprep.mubr.f32.mxu0 0.0
    %1020 = vmatmul.mubr.f32.gmra.mrb[0].mxu0 %v887
    %v1021 = vpop.f32.mrb[0].mxu0
    %v1022 = vadd.f32 0.0, %v1021
    %v1023 = vpop.f32.mrb[0].mxu0
    %v1024 = vadd.f32 0.0, %v1023
    %1025 = vmatprep.mubr.f32.mxu0 0.0
    %1026 = vmatmul.mubr.f32.gmra.mrb[0].mxu0 %v890
    %v1027 = vpop.f32.mrb[0].mxu0
    %v1028 = vadd.f32 0.0, %v1027
    %v1029 = vpop.f32.mrb[0].mxu0
    %v1030 = vadd.f32 0.0, %v1029
    %1031 = vmatprep.mubr.f32.mxu0 0.0
    %1032 = vmatmul.mubr.f32.gmra.mrb[0].mxu0 %v893
    %v1033 = vpop.f32.mrb[0].mxu0
    %v1034 = vadd.f32 0.0, %v1033
    %v1035 = vpop.f32.mrb[0].mxu0
    %v1036 = vadd.f32 0.0, %v1035
    %1037 = vmatprep.mubr.f32.mxu0 0.0
    %1038 = vmatmul.mubr.f32.gmra.mrb[0].mxu0 %v896
    %v1039 = vpop.f32.mrb[0].mxu0
    %v1040 = vadd.f32 0.0, %v1039
    %v1041 = vpop.f32.mrb[0].mxu0
    %v1042 = vadd.f32 0.0, %v1041
    %1043 = vmatprep.mubr.f32.mxu0 0.0
    %1044 = vmatmul.mubr.f32.gmra.mrb[0].mxu0 %v899
    %v1045 = vpop.f32.mrb[0].mxu0
    %v1046 = vadd.f32 0.0, %v1045
    %v1047 = vpop.f32.mrb[0].mxu0
    %v1048 = vadd.f32 0.0, %v1047
    %1049 = vmatprep.mubr.f32.mxu0 0.0
    %1050 = vmatmul.mubr.f32.gmra.mrb[0].mxu0 %v902
    %v1051 = vpop.f32.mrb[0].mxu0
    %v1052 = vadd.f32 0.0, %v1051
    %v1053 = vpop.f32.mrb[0].mxu0
    %v1054 = vadd.f32 0.0, %v1053
    %1055 = vmatprep.mubr.f32.mxu0 0.0
    %1056 = vmatmul.mubr.f32.gmra.mrb[0].mxu0 %v905
    %v1057 = vpop.f32.mrb[0].mxu0
    %v1058 = vadd.f32 0.0, %v1057
    %v1059 = vpop.f32.mrb[0].mxu0
    %v1060 = vadd.f32 0.0, %v1059
    %1061 = vmatprep.mubr.f32.mxu0 0.0
    %1062 = vmatmul.mubr.f32.gmra.mrb[0].mxu0 %v908
    %v1063 = vpop.f32.mrb[0].mxu0
    %v1064 = vadd.f32 0.0, %v1063
    %v1065 = vpop.f32.mrb[0].mxu0
    %v1066 = vadd.f32 0.0, %v1065
    %1067 = vmatprep.mubr.f32.mxu0 0.0
    %1068 = vmatmul.mubr.f32.gmra.mrb[0].mxu0 %v911
    %v1069 = vpop.f32.mrb[0].mxu0
    %v1070 = vadd.f32 0.0, %v1069
    %v1071 = vpop.f32.mrb[0].mxu0
    %v1072 = vadd.f32 0.0, %v1071
    %1073 = vdwg.mxu0
    %v1074 = vmul.f32 %v460, %v980
    %v1075 = vmul.f32 %v464, %v986
    %v1076 = vmul.f32 %v470, %v992
    %v1077 = vmul.f32 %v474, %v998
    %v1078 = vmul.f32 %v480, %v1004
    %v1079 = vmul.f32 %v484, %v1010
    %v1080 = vmul.f32 %v490, %v1016
    %v1081 = vmul.f32 %v494, %v1022
    %v1082 = vmul.f32 %v500, %v1028
    %v1083 = vmul.f32 %v504, %v1034
    %v1084 = vmul.f32 %v510, %v1040
    %v1085 = vmul.f32 %v514, %v1046
    %v1086 = vmul.f32 %v520, %v1052
    %v1087 = vmul.f32 %v524, %v1058
    %v1088 = vmul.f32 %v530, %v1064
    %v1089 = vmul.f32 %v534, %v1070
    %v1090 = vld [vmem:[%s4] sm:$0x1]
    %v1092 = vlaneseq
    %v1093 = vshrl.u32 %v1092, 7
    %v1094 = vsub.s32 0, %v1093
    %v1095 = vrot.slane %v1090, %v1094
    %v1097 = vmul.f32 %v1074, %v1095
    %v1098 = vmul.f32 %v1075, %v1095
    %v1099 = vmul.f32 %v1076, %v1095
    %v1100 = vmul.f32 %v1077, %v1095
    %v1101 = vmul.f32 %v1078, %v1095
    %v1102 = vmul.f32 %v1079, %v1095
    %v1103 = vmul.f32 %v1080, %v1095
    %v1104 = vmul.f32 %v1081, %v1095
    %v1105 = vmul.f32 %v1082, %v1095
    %v1106 = vmul.f32 %v1083, %v1095
    %v1107 = vmul.f32 %v1084, %v1095
    %v1108 = vmul.f32 %v1085, %v1095
    %v1109 = vmul.f32 %v1086, %v1095
    %v1110 = vmul.f32 %v1087, %v1095
    %v1111 = vmul.f32 %v1088, %v1095
    %v1112 = vmul.f32 %v1089, %v1095
    %v1113 = vpack.c.bf16 %v1098, %v1097
    %v1114 = vpack.c.bf16 %v1100, %v1099
    %v1115 = vpack.c.bf16 %v1102, %v1101
    %v1116 = vpack.c.bf16 %v1104, %v1103
    %v1117 = vpack.c.bf16 %v1106, %v1105
    %v1118 = vpack.c.bf16 %v1108, %v1107
    %v1119 = vpack.c.bf16 %v1110, %v1109
    %v1120 = vpack.c.bf16 %v1112, %v1111
    %v1121 = vmul.f32 %v462, %v982
    %v1122 = vmul.f32 %v466, %v988
    %v1123 = vmul.f32 %v472, %v994
    %v1124 = vmul.f32 %v476, %v1000
    %v1125 = vmul.f32 %v482, %v1006
    %v1126 = vmul.f32 %v486, %v1012
    %v1127 = vmul.f32 %v492, %v1018
    %v1128 = vmul.f32 %v496, %v1024
    %v1129 = vmul.f32 %v502, %v1030
    %v1130 = vmul.f32 %v506, %v1036
    %v1131 = vmul.f32 %v512, %v1042
    %v1132 = vmul.f32 %v516, %v1048
    %v1133 = vmul.f32 %v522, %v1054
    %v1134 = vmul.f32 %v526, %v1060
    %v1135 = vmul.f32 %v532, %v1066
    %v1136 = vmul.f32 %v536, %v1072
    %v1137 = vpack.c.bf16 %v1122, %v1121
    %v1138 = vpack.c.bf16 %v1124, %v1123
    %v1139 = vpack.c.bf16 %v1126, %v1125
    %v1140 = vpack.c.bf16 %v1128, %v1127
    %v1141 = vpack.c.bf16 %v1130, %v1129
    %v1142 = vpack.c.bf16 %v1132, %v1131
    %v1143 = vpack.c.bf16 %v1134, %v1133
    %v1144 = vpack.c.bf16 %v1136, %v1135
    %v1145 = vpack.c.bf16 %v576, %v573
    %v1146 = vpack.c.bf16 %v584, %v581
    %v1147 = vpack.c.bf16 %v592, %v589
    %v1148 = vpack.c.bf16 %v600, %v597
    %v1149 = vpack.c.bf16 %v608, %v605
    %v1150 = vpack.c.bf16 %v616, %v613
    %v1151 = vpack.c.bf16 %v624, %v621
    %v1152 = vpack.c.bf16 %v632, %v629
    %v1154 = vsel %vm864, %v1113, 0
    %v1157 = vsel %vm864, %v1114, 0
    %v1160 = vsel %vm864, %v1115, 0
    %v1163 = vsel %vm864, %v1116, 0
    %v1166 = vsel %vm864, %v1117, 0
    %v1169 = vsel %vm864, %v1118, 0
    %v1172 = vsel %vm864, %v1119, 0
    %v1175 = vsel %vm864, %v1120, 0
    %v1178 = vsel %vm864, %v1137, 0
    %v1181 = vsel %vm864, %v1138, 0
    %v1184 = vsel %vm864, %v1139, 0
    %v1187 = vsel %vm864, %v1140, 0
    %v1190 = vsel %vm864, %v1141, 0
    %v1193 = vsel %vm864, %v1142, 0
    %v1196 = vsel %vm864, %v1143, 0
    %v1199 = vsel %vm864, %v1144, 0
    %1201 = vmatprep.subr.bf16.mxu0 0
    %1202 = vmatpush1.bf16.xpose.msra.mxu0 %v1178
    %1203 = vmatprep.subr.bf16.mxu0 0
    %1204 = vmatpush1.bf16.xpose.msra.mxu0 %v1181
    %1205 = vmatprep.subr.bf16.mxu0 0
    %1206 = vmatpush1.bf16.xpose.msra.mxu0 %v1184
    %1207 = vmatprep.subr.bf16.mxu0 0
    %1208 = vmatpush1.bf16.xpose.msra.mxu0 %v1187
    %1209 = vmatprep.subr.bf16.mxu0 0
    %1210 = vmatpush1.bf16.xpose.msra.mxu0 %v1190
    %1211 = vmatprep.subr.bf16.mxu0 0
    %1212 = vmatpush1.bf16.xpose.msra.mxu0 %v1193
    %1213 = vmatprep.subr.bf16.mxu0 0
    %1214 = vmatpush1.bf16.xpose.msra.mxu0 %v1196
    %1215 = vmatprep.subr.bf16.mxu0 0
    %1216 = vmatpush1.bf16.xpose.msra.mxu0 %v1199
    %1217 = vmatprep.subr.bf16.mxu0 0
    %1218 = vmatpush1.bf16.xpose.msra.mxu0 0
    %1219 = vmatprep.subr.bf16.mxu0 0
    %1220 = vmatpush1.bf16.xpose.msra.mxu0 0
    %1221 = vmatprep.subr.bf16.mxu0 0
    %1222 = vmatpush1.bf16.xpose.msra.mxu0 0
    %1223 = vmatprep.subr.bf16.mxu0 0
    %1224 = vmatpush1.bf16.xpose.msra.mxu0 0
    %1225 = vmatprep.subr.bf16.mxu0 0
    %1226 = vmatpush1.bf16.xpose.msra.mxu0 0
    %1227 = vmatprep.subr.bf16.mxu0 0
    %1228 = vmatpush1.bf16.xpose.msra.mxu0 0
    %1229 = vmatprep.subr.bf16.mxu0 0
    %1230 = vmatpush1.bf16.xpose.msra.mxu0 0
    %1231 = vmatprep.subr.bf16.mxu0 0
    %1232 = vmatpush1.bf16.xpose.msra.mxu0 0
    %1233 = vmatprep.mubr.bf16.mxu0 0
    %1234 = vmatmul.mubr.bf16.gmra.mrb[0].mxu0 %v1154
    %v1235 = vpop.f32.mrb[0].mxu0
    %v1236 = vadd.f32 0.0, %v1235
    %v1237 = vpop.f32.mrb[0].mxu0
    %v1238 = vpop.f32.mrb[0].mxu0
    %v1239 = vadd.f32 0.0, %v1238
    %v1240 = vpop.f32.mrb[0].mxu0
    %1241 = vmatprep.mubr.bf16.mxu0 0
    %1242 = vmatmul.mubr.bf16.gmra.mrb[0].mxu0 %v1157
    %v1243 = vpop.f32.mrb[0].mxu0
    %v1244 = vadd.f32 0.0, %v1243
    %v1245 = vpop.f32.mrb[0].mxu0
    %v1246 = vpop.f32.mrb[0].mxu0
    %v1247 = vadd.f32 0.0, %v1246
    %v1248 = vpop.f32.mrb[0].mxu0
    %1249 = vmatprep.mubr.bf16.mxu0 0
    %1250 = vmatmul.mubr.bf16.gmra.mrb[0].mxu0 %v1160
    %v1251 = vpop.f32.mrb[0].mxu0
    %v1252 = vadd.f32 0.0, %v1251
    %v1253 = vpop.f32.mrb[0].mxu0
    %v1254 = vpop.f32.mrb[0].mxu0
    %v1255 = vadd.f32 0.0, %v1254
    %v1256 = vpop.f32.mrb[0].mxu0
    %1257 = vmatprep.mubr.bf16.mxu0 0
    %1258 = vmatmul.mubr.bf16.gmra.mrb[0].mxu0 %v1163
    %v1259 = vpop.f32.mrb[0].mxu0
    %v1260 = vadd.f32 0.0, %v1259
    %v1261 = vpop.f32.mrb[0].mxu0
    %v1262 = vpop.f32.mrb[0].mxu0
    %v1263 = vadd.f32 0.0, %v1262
    %v1264 = vpop.f32.mrb[0].mxu0
    %1265 = vmatprep.mubr.bf16.mxu0 0
    %1266 = vmatmul.mubr.bf16.gmra.mrb[0].mxu0 %v1166
    %v1267 = vpop.f32.mrb[0].mxu0
    %v1268 = vadd.f32 0.0, %v1267
    %v1269 = vpop.f32.mrb[0].mxu0
    %v1270 = vpop.f32.mrb[0].mxu0
    %v1271 = vadd.f32 0.0, %v1270
    %v1272 = vpop.f32.mrb[0].mxu0
    %1273 = vmatprep.mubr.bf16.mxu0 0
    %1274 = vmatmul.mubr.bf16.gmra.mrb[0].mxu0 %v1169
    %v1275 = vpop.f32.mrb[0].mxu0
    %v1276 = vadd.f32 0.0, %v1275
    %v1277 = vpop.f32.mrb[0].mxu0
    %v1278 = vpop.f32.mrb[0].mxu0
    %v1279 = vadd.f32 0.0, %v1278
    %v1280 = vpop.f32.mrb[0].mxu0
    %1281 = vmatprep.mubr.bf16.mxu0 0
    %1282 = vmatmul.mubr.bf16.gmra.mrb[0].mxu0 %v1172
    %v1283 = vpop.f32.mrb[0].mxu0
    %v1284 = vadd.f32 0.0, %v1283
    %v1285 = vpop.f32.mrb[0].mxu0
    %v1286 = vpop.f32.mrb[0].mxu0
    %v1287 = vadd.f32 0.0, %v1286
    %v1288 = vpop.f32.mrb[0].mxu0
    %1289 = vmatprep.mubr.bf16.mxu0 0
    %1290 = vmatmul.mubr.bf16.gmra.mrb[0].mxu0 %v1175
    %v1291 = vpop.f32.mrb[0].mxu0
    %v1292 = vadd.f32 0.0, %v1291
    %v1293 = vpop.f32.mrb[0].mxu0
    %v1294 = vpop.f32.mrb[0].mxu0
    %v1295 = vadd.f32 0.0, %v1294
    %v1296 = vpop.f32.mrb[0].mxu0
    %1297 = vdwg.mxu0
    %s1298 = sld [smem:[#allocation2]]
    %v1299 = vstv %s1298
    %v1300 = vsub.f32 %v1236, %v1299
    %v1301 = vsub.f32 %v1239, %v1299
    %v1302 = vsub.f32 %v1244, %v1299
    %v1303 = vsub.f32 %v1247, %v1299
    %v1304 = vsub.f32 %v1252, %v1299
    %v1305 = vsub.f32 %v1255, %v1299
    %v1306 = vsub.f32 %v1260, %v1299
    %v1307 = vsub.f32 %v1263, %v1299
    %v1308 = vsub.f32 %v1268, %v1299
    %v1309 = vsub.f32 %v1271, %v1299
    %v1310 = vsub.f32 %v1276, %v1299
    %v1311 = vsub.f32 %v1279, %v1299
    %v1312 = vsub.f32 %v1284, %v1299
    %v1313 = vsub.f32 %v1287, %v1299
    %v1314 = vsub.f32 %v1292, %v1299
    %v1315 = vsub.f32 %v1295, %v1299
    %v1316 = vmul.f32 %v1300, 1.442695
    %v1317 = vpow.pop %v1316
    %v1318 = vmul.f32 %v1301, 1.442695
    %v1319 = vpow.pop %v1318
    %v1320 = vmul.f32 %v1302, 1.442695
    %v1321 = vpow.pop %v1320
    %v1322 = vmul.f32 %v1303, 1.442695
    %v1323 = vpow.pop %v1322
    %v1324 = vmul.f32 %v1304, 1.442695
    %v1325 = vpow.pop %v1324
    %v1326 = vmul.f32 %v1305, 1.442695
    %v1327 = vpow.pop %v1326
    %v1328 = vmul.f32 %v1306, 1.442695
    %v1329 = vpow.pop %v1328
    %v1330 = vmul.f32 %v1307, 1.442695
    %v1331 = vpow.pop %v1330
    %v1332 = vmul.f32 %v1308, 1.442695
    %v1333 = vpow.pop %v1332
    %v1334 = vmul.f32 %v1309, 1.442695
    %v1335 = vpow.pop %v1334
    %v1336 = vmul.f32 %v1310, 1.442695
    %v1337 = vpow.pop %v1336
    %v1338 = vmul.f32 %v1311, 1.442695
    %v1339 = vpow.pop %v1338
    %v1340 = vmul.f32 %v1312, 1.442695
    %v1341 = vpow.pop %v1340
    %v1342 = vmul.f32 %v1313, 1.442695
    %v1343 = vpow.pop %v1342
    %v1344 = vmul.f32 %v1314, 1.442695
    %v1345 = vpow.pop %v1344
    %v1346 = vmul.f32 %v1315, 1.442695
    %v1347 = vpow.pop %v1346
    %v1348 = vmul.f32 %v1317, %v224
    %v1349 = vmul.f32 %v1319, %v225
    %v1350 = vmul.f32 %v1321, %v226
    %v1351 = vmul.f32 %v1323, %v227
    %v1352 = vmul.f32 %v1325, %v228
    %v1353 = vmul.f32 %v1327, %v229
    %v1354 = vmul.f32 %v1329, %v230
    %v1355 = vmul.f32 %v1331, %v231
    %v1356 = vmul.f32 %v1333, %v232
    %v1357 = vmul.f32 %v1335, %v233
    %v1358 = vmul.f32 %v1337, %v234
    %v1359 = vmul.f32 %v1339, %v235
    %v1360 = vmul.f32 %v1341, %v236
    %v1361 = vmul.f32 %v1343, %v237
    %v1362 = vmul.f32 %v1345, %v238
    %v1363 = vmul.f32 %v1347, %v239
    %1364 = vadd.xlane.f32.xlu0 %v1348
    %v1365 = vpop.xlane.xlu0 %1364
    %1366 = vadd.xlane.f32.xlu0 %v1349
    %v1367 = vpop.xlane.xlu0 %1366
    %1368 = vadd.xlane.f32.xlu0 %v1350
    %v1369 = vpop.xlane.xlu0 %1368
    %1370 = vadd.xlane.f32.xlu0 %v1351
    %v1371 = vpop.xlane.xlu0 %1370
    %1372 = vadd.xlane.f32.xlu0 %v1352
    %v1373 = vpop.xlane.xlu0 %1372
    %1374 = vadd.xlane.f32.xlu0 %v1353
    %v1375 = vpop.xlane.xlu0 %1374
    %1376 = vadd.xlane.f32.xlu0 %v1354
    %v1377 = vpop.xlane.xlu0 %1376
    %1378 = vadd.xlane.f32.xlu0 %v1355
    %v1379 = vpop.xlane.xlu0 %1378
    %1380 = vadd.xlane.f32.xlu0 %v1356
    %v1381 = vpop.xlane.xlu0 %1380
    %1382 = vadd.xlane.f32.xlu0 %v1357
    %v1383 = vpop.xlane.xlu0 %1382
    %1384 = vadd.xlane.f32.xlu0 %v1358
    %v1385 = vpop.xlane.xlu0 %1384
    %1386 = vadd.xlane.f32.xlu0 %v1359
    %v1387 = vpop.xlane.xlu0 %1386
    %1388 = vadd.xlane.f32.xlu0 %v1360
    %v1389 = vpop.xlane.xlu0 %1388
    %1390 = vadd.xlane.f32.xlu0 %v1361
    %v1391 = vpop.xlane.xlu0 %1390
    %1392 = vadd.xlane.f32.xlu0 %v1362
    %v1393 = vpop.xlane.xlu0 %1392
    %1394 = vadd.xlane.f32.xlu0 %v1363
    %v1395 = vpop.xlane.xlu0 %1394
    %v1396 = vrcp.pop %v1365
    %v1397 = vrcp.pop %v1367
    %v1398 = vrcp.pop %v1369
    %v1399 = vrcp.pop %v1371
    %v1400 = vrcp.pop %v1373
    %v1401 = vrcp.pop %v1375
    %v1402 = vrcp.pop %v1377
    %v1403 = vrcp.pop %v1379
    %v1404 = vrcp.pop %v1381
    %v1405 = vrcp.pop %v1383
    %v1406 = vrcp.pop %v1385
    %v1407 = vrcp.pop %v1387
    %v1408 = vrcp.pop %v1389
    %v1409 = vrcp.pop %v1391
    %v1410 = vrcp.pop %v1393
    %v1411 = vrcp.pop %v1395
    %v1412 = vpack.c.bf16 %v1349, %v1348
    %v1413 = vpack.c.bf16 %v1351, %v1350
    %v1414 = vpack.c.bf16 %v1353, %v1352
    %v1415 = vpack.c.bf16 %v1355, %v1354
    %v1416 = vpack.c.bf16 %v1357, %v1356
    %v1417 = vpack.c.bf16 %v1359, %v1358
    %v1418 = vpack.c.bf16 %v1361, %v1360
    %v1419 = vpack.c.bf16 %v1363, %v1362
    %1420 = vmatprep.subr.bf16.mxu0 0
    %1421 = vmatpush1.bf16.msra.mxu0 %v1145
    %1422 = vmatprep.subr.bf16.mxu0 0
    %1423 = vmatpush1.bf16.msra.mxu0 %v1146
    %1424 = vmatprep.subr.bf16.mxu0 0
    %1425 = vmatpush1.bf16.msra.mxu0 %v1147
    %1426 = vmatprep.subr.bf16.mxu0 0
    %1427 = vmatpush1.bf16.msra.mxu0 %v1148
    %1428 = vmatprep.subr.bf16.mxu0 0
    %1429 = vmatpush1.bf16.msra.mxu0 %v1149
    %1430 = vmatprep.subr.bf16.mxu0 0
    %1431 = vmatpush1.bf16.msra.mxu0 %v1150
    %1432 = vmatprep.subr.bf16.mxu0 0
    %1433 = vmatpush1.bf16.msra.mxu0 %v1151
    %1434 = vmatprep.subr.bf16.mxu0 0
    %1435 = vmatpush1.bf16.msra.mxu0 %v1152
    %1436 = vmatprep.subr.bf16.mxu0 0
    %1437 = vmatpush1.bf16.msra.mxu0 0
    %1438 = vmatprep.subr.bf16.mxu0 0
    %1439 = vmatpush1.bf16.msra.mxu0 0
    %1440 = vmatprep.subr.bf16.mxu0 0
    %1441 = vmatpush1.bf16.msra.mxu0 0
    %1442 = vmatprep.subr.bf16.mxu0 0
    %1443 = vmatpush1.bf16.msra.mxu0 0
    %1444 = vmatprep.subr.bf16.mxu0 0
    %1445 = vmatpush1.bf16.msra.mxu0 0
    %1446 = vmatprep.subr.bf16.mxu0 0
    %1447 = vmatpush1.bf16.msra.mxu0 0
    %1448 = vmatprep.subr.bf16.mxu0 0
    %1449 = vmatpush1.bf16.msra.mxu0 0
    %1450 = vmatprep.subr.bf16.mxu0 0
    %1451 = vmatpush1.bf16.msra.mxu0 0
    %1452 = vmatprep.mubr.bf16.mxu0 0
    %1453 = vmatmul.mubr.bf16.gmra.mrb[0].mxu0 %v1412
    %v1454 = vpop.f32.mrb[0].mxu0
    %v1455 = vadd.f32 0.0, %v1454
    %v1456 = vpop.f32.mrb[0].mxu0
    %v1457 = vpop.f32.mrb[0].mxu0
    %v1458 = vadd.f32 0.0, %v1457
    %v1459 = vpop.f32.mrb[0].mxu0
    %1460 = vmatprep.mubr.bf16.mxu0 0
    %1461 = vmatmul.mubr.bf16.gmra.mrb[0].mxu0 %v1413
    %v1462 = vpop.f32.mrb[0].mxu0
    %v1463 = vadd.f32 0.0, %v1462
    %v1464 = vpop.f32.mrb[0].mxu0
    %v1465 = vpop.f32.mrb[0].mxu0
    %v1466 = vadd.f32 0.0, %v1465
    %v1467 = vpop.f32.mrb[0].mxu0
    %1468 = vmatprep.mubr.bf16.mxu0 0
    %1469 = vmatmul.mubr.bf16.gmra.mrb[0].mxu0 %v1414
    %v1470 = vpop.f32.mrb[0].mxu0
    %v1471 = vadd.f32 0.0, %v1470
    %v1472 = vpop.f32.mrb[0].mxu0
    %v1473 = vpop.f32.mrb[0].mxu0
    %v1474 = vadd.f32 0.0, %v1473
    %v1475 = vpop.f32.mrb[0].mxu0
    %1476 = vmatprep.mubr.bf16.mxu0 0
    %1477 = vmatmul.mubr.bf16.gmra.mrb[0].mxu0 %v1415
    %v1478 = vpop.f32.mrb[0].mxu0
    %v1479 = vadd.f32 0.0, %v1478
    %v1480 = vpop.f32.mrb[0].mxu0
    %v1481 = vpop.f32.mrb[0].mxu0
    %v1482 = vadd.f32 0.0, %v1481
    %v1483 = vpop.f32.mrb[0].mxu0
    %1484 = vmatprep.mubr.bf16.mxu0 0
    %1485 = vmatmul.mubr.bf16.gmra.mrb[0].mxu0 %v1416
    %v1486 = vpop.f32.mrb[0].mxu0
    %v1487 = vadd.f32 0.0, %v1486
    %v1488 = vpop.f32.mrb[0].mxu0
    %v1489 = vpop.f32.mrb[0].mxu0
    %v1490 = vadd.f32 0.0, %v1489
    %v1491 = vpop.f32.mrb[0].mxu0
    %1492 = vmatprep.mubr.bf16.mxu0 0
    %1493 = vmatmul.mubr.bf16.gmra.mrb[0].mxu0 %v1417
    %v1494 = vpop.f32.mrb[0].mxu0
    %v1495 = vadd.f32 0.0, %v1494
    %v1496 = vpop.f32.mrb[0].mxu0
    %v1497 = vpop.f32.mrb[0].mxu0
    %v1498 = vadd.f32 0.0, %v1497
    %v1499 = vpop.f32.mrb[0].mxu0
    %1500 = vmatprep.mubr.bf16.mxu0 0
    %1501 = vmatmul.mubr.bf16.gmra.mrb[0].mxu0 %v1418
    %v1502 = vpop.f32.mrb[0].mxu0
    %v1503 = vadd.f32 0.0, %v1502
    %v1504 = vpop.f32.mrb[0].mxu0
    %v1505 = vpop.f32.mrb[0].mxu0
    %v1506 = vadd.f32 0.0, %v1505
    %v1507 = vpop.f32.mrb[0].mxu0
    %1508 = vmatprep.mubr.bf16.mxu0 0
    %1509 = vmatmul.mubr.bf16.gmra.mrb[0].mxu0 %v1419
    %v1510 = vpop.f32.mrb[0].mxu0
    %v1511 = vadd.f32 0.0, %v1510
    %v1512 = vpop.f32.mrb[0].mxu0
    %v1513 = vpop.f32.mrb[0].mxu0
    %v1514 = vadd.f32 0.0, %v1513
    %v1515 = vpop.f32.mrb[0].mxu0
    %1516 = vdwg.mxu0
    %v1517 = vmul.f32 %v1455, %v1396
    %v1518 = vmul.f32 %v1458, %v1397
    %v1519 = vmul.f32 %v1463, %v1398
    %v1520 = vmul.f32 %v1466, %v1399
    %v1521 = vmul.f32 %v1471, %v1400
    %v1522 = vmul.f32 %v1474, %v1401
    %v1523 = vmul.f32 %v1479, %v1402
    %v1524 = vmul.f32 %v1482, %v1403
    %v1525 = vmul.f32 %v1487, %v1404
    %v1526 = vmul.f32 %v1490, %v1405
    %v1527 = vmul.f32 %v1495, %v1406
    %v1528 = vmul.f32 %v1498, %v1407
    %v1529 = vmul.f32 %v1503, %v1408
    %v1530 = vmul.f32 %v1506, %v1409
    %v1531 = vmul.f32 %v1511, %v1410
    %v1532 = vmul.f32 %v1514, %v1411
    %1541 = vrot.lane.b32.xlu0 %v1113, 112
    %v1542 = vpop.permute.xlu0 %1541
    %1543 = vrot.lane.b32.xlu0 %v1114, 112
    %v1544 = vpop.permute.xlu0 %1543
    %1545 = vrot.lane.b32.xlu0 %v1115, 112
    %v1546 = vpop.permute.xlu0 %1545
    %1547 = vrot.lane.b32.xlu0 %v1116, 112
    %v1548 = vpop.permute.xlu0 %1547
    %1549 = vrot.lane.b32.xlu0 %v1117, 112
    %v1550 = vpop.permute.xlu0 %1549
    %1551 = vrot.lane.b32.xlu0 %v1118, 112
    %v1552 = vpop.permute.xlu0 %1551
    %1553 = vrot.lane.b32.xlu0 %v1119, 112
    %v1554 = vpop.permute.xlu0 %1553
    %1555 = vrot.lane.b32.xlu0 %v1120, 112
    %v1556 = vpop.permute.xlu0 %1555
    %1565 = vrot.lane.b32.xlu0 %v1137, 112
    %v1566 = vpop.permute.xlu0 %1565
    %1567 = vrot.lane.b32.xlu0 %v1138, 112
    %v1568 = vpop.permute.xlu0 %1567
    %1569 = vrot.lane.b32.xlu0 %v1139, 112
    %v1570 = vpop.permute.xlu0 %1569
    %1571 = vrot.lane.b32.xlu0 %v1140, 112
    %v1572 = vpop.permute.xlu0 %1571
    %1573 = vrot.lane.b32.xlu0 %v1141, 112
    %v1574 = vpop.permute.xlu0 %1573
    %1575 = vrot.lane.b32.xlu0 %v1142, 112
    %v1576 = vpop.permute.xlu0 %1575
    %1577 = vrot.lane.b32.xlu0 %v1143, 112
    %v1578 = vpop.permute.xlu0 %1577
    %1579 = vrot.lane.b32.xlu0 %v1144, 112
    %v1580 = vpop.permute.xlu0 %1579
    %v1582 = vsel %vm864, %v1542, 0
    %v1585 = vsel %vm864, %v1544, 0
    %v1588 = vsel %vm864, %v1546, 0
    %v1591 = vsel %vm864, %v1548, 0
    %v1594 = vsel %vm864, %v1550, 0
    %v1597 = vsel %vm864, %v1552, 0
    %v1600 = vsel %vm864, %v1554, 0
    %v1603 = vsel %vm864, %v1556, 0
    %v1606 = vsel %vm864, %v1566, 0
    %v1609 = vsel %vm864, %v1568, 0
    %v1612 = vsel %vm864, %v1570, 0
    %v1615 = vsel %vm864, %v1572, 0
    %v1618 = vsel %vm864, %v1574, 0
    %v1621 = vsel %vm864, %v1576, 0
    %v1624 = vsel %vm864, %v1578, 0
    %v1627 = vsel %vm864, %v1580, 0
    %1629 = vmatprep.subr.bf16.mxu0 0
    %1630 = vmatpush1.bf16.xpose.msra.mxu0 %v1606
    %1631 = vmatprep.subr.bf16.mxu0 0
    %1632 = vmatpush1.bf16.xpose.msra.mxu0 %v1609
    %1633 = vmatprep.subr.bf16.mxu0 0
    %1634 = vmatpush1.bf16.xpose.msra.mxu0 %v1612
    %1635 = vmatprep.subr.bf16.mxu0 0
    %1636 = vmatpush1.bf16.xpose.msra.mxu0 %v1615
    %1637 = vmatprep.subr.bf16.mxu0 0
    %1638 = vmatpush1.bf16.xpose.msra.mxu0 %v1618
    %1639 = vmatprep.subr.bf16.mxu0 0
    %1640 = vmatpush1.bf16.xpose.msra.mxu0 %v1621
    %1641 = vmatprep.subr.bf16.mxu0 0
    %1642 = vmatpush1.bf16.xpose.msra.mxu0 %v1624
    %1643 = vmatprep.subr.bf16.mxu0 0
    %1644 = vmatpush1.bf16.xpose.msra.mxu0 %v1627
    %1645 = vmatprep.subr.bf16.mxu0 0
    %1646 = vmatpush1.bf16.xpose.msra.mxu0 0
    %1647 = vmatprep.subr.bf16.mxu0 0
    %1648 = vmatpush1.bf16.xpose.msra.mxu0 0
    %1649 = vmatprep.subr.bf16.mxu0 0
    %1650 = vmatpush1.bf16.xpose.msra.mxu0 0
    %1651 = vmatprep.subr.bf16.mxu0 0
    %1652 = vmatpush1.bf16.xpose.msra.mxu0 0
    %1653 = vmatprep.subr.bf16.mxu0 0
    %1654 = vmatpush1.bf16.xpose.msra.mxu0 0
    %1655 = vmatprep.subr.bf16.mxu0 0
    %1656 = vmatpush1.bf16.xpose.msra.mxu0 0
    %1657 = vmatprep.subr.bf16.mxu0 0
    %1658 = vmatpush1.bf16.xpose.msra.mxu0 0
    %1659 = vmatprep.subr.bf16.mxu0 0
    %1660 = vmatpush1.bf16.xpose.msra.mxu0 0
    %1661 = vmatprep.mubr.bf16.mxu0 0
    %1662 = vmatmul.mubr.bf16.gmra.mrb[0].mxu0 %v1582
    %v1663 = vpop.f32.mrb[0].mxu0
    %v1664 = vadd.f32 0.0, %v1663
    %v1665 = vpop.f32.mrb[0].mxu0
    %v1666 = vpop.f32.mrb[0].mxu0
    %v1667 = vadd.f32 0.0, %v1666
    %v1668 = vpop.f32.mrb[0].mxu0
    %1669 = vmatprep.mubr.bf16.mxu0 0
    %1670 = vmatmul.mubr.bf16.gmra.mrb[0].mxu0 %v1585
    %v1671 = vpop.f32.mrb[0].mxu0
    %v1672 = vadd.f32 0.0, %v1671
    %v1673 = vpop.f32.mrb[0].mxu0
    %v1674 = vpop.f32.mrb[0].mxu0
    %v1675 = vadd.f32 0.0, %v1674
    %v1676 = vpop.f32.mrb[0].mxu0
    %1677 = vmatprep.mubr.bf16.mxu0 0
    %1678 = vmatmul.mubr.bf16.gmra.mrb[0].mxu0 %v1588
    %v1679 = vpop.f32.mrb[0].mxu0
    %v1680 = vadd.f32 0.0, %v1679
    %v1681 = vpop.f32.mrb[0].mxu0
    %v1682 = vpop.f32.mrb[0].mxu0
    %v1683 = vadd.f32 0.0, %v1682
    %v1684 = vpop.f32.mrb[0].mxu0
    %1685 = vmatprep.mubr.bf16.mxu0 0
    %1686 = vmatmul.mubr.bf16.gmra.mrb[0].mxu0 %v1591
    %v1687 = vpop.f32.mrb[0].mxu0
    %v1688 = vadd.f32 0.0, %v1687
    %v1689 = vpop.f32.mrb[0].mxu0
    %v1690 = vpop.f32.mrb[0].mxu0
    %v1691 = vadd.f32 0.0, %v1690
    %v1692 = vpop.f32.mrb[0].mxu0
    %1693 = vmatprep.mubr.bf16.mxu0 0
    %1694 = vmatmul.mubr.bf16.gmra.mrb[0].mxu0 %v1594
    %v1695 = vpop.f32.mrb[0].mxu0
    %v1696 = vadd.f32 0.0, %v1695
    %v1697 = vpop.f32.mrb[0].mxu0
    %v1698 = vpop.f32.mrb[0].mxu0
    %v1699 = vadd.f32 0.0, %v1698
    %v1700 = vpop.f32.mrb[0].mxu0
    %1701 = vmatprep.mubr.bf16.mxu0 0
    %1702 = vmatmul.mubr.bf16.gmra.mrb[0].mxu0 %v1597
    %v1703 = vpop.f32.mrb[0].mxu0
    %v1704 = vadd.f32 0.0, %v1703
    %v1705 = vpop.f32.mrb[0].mxu0
    %v1706 = vpop.f32.mrb[0].mxu0
    %v1707 = vadd.f32 0.0, %v1706
    %v1708 = vpop.f32.mrb[0].mxu0
    %1709 = vmatprep.mubr.bf16.mxu0 0
    %1710 = vmatmul.mubr.bf16.gmra.mrb[0].mxu0 %v1600
    %v1711 = vpop.f32.mrb[0].mxu0
    %v1712 = vadd.f32 0.0, %v1711
    %v1713 = vpop.f32.mrb[0].mxu0
    %v1714 = vpop.f32.mrb[0].mxu0
    %v1715 = vadd.f32 0.0, %v1714
    %v1716 = vpop.f32.mrb[0].mxu0
    %1717 = vmatprep.mubr.bf16.mxu0 0
    %1718 = vmatmul.mubr.bf16.gmra.mrb[0].mxu0 %v1603
    %v1719 = vpop.f32.mrb[0].mxu0
    %v1720 = vadd.f32 0.0, %v1719
    %v1721 = vpop.f32.mrb[0].mxu0
    %v1722 = vpop.f32.mrb[0].mxu0
    %v1723 = vadd.f32 0.0, %v1722
    %v1724 = vpop.f32.mrb[0].mxu0
    %1725 = vdwg.mxu0
    %s1726 = sld [smem:[#allocation2 + $0x1]]
    %v1727 = vstv %s1726
    %v1728 = vsub.f32 %v1664, %v1727
    %v1729 = vsub.f32 %v1667, %v1727
    %v1730 = vsub.f32 %v1672, %v1727
    %v1731 = vsub.f32 %v1675, %v1727
    %v1732 = vsub.f32 %v1680, %v1727
    %v1733 = vsub.f32 %v1683, %v1727
    %v1734 = vsub.f32 %v1688, %v1727
    %v1735 = vsub.f32 %v1691, %v1727
    %v1736 = vsub.f32 %v1696, %v1727
    %v1737 = vsub.f32 %v1699, %v1727
    %v1738 = vsub.f32 %v1704, %v1727
    %v1739 = vsub.f32 %v1707, %v1727
    %v1740 = vsub.f32 %v1712, %v1727
    %v1741 = vsub.f32 %v1715, %v1727
    %v1742 = vsub.f32 %v1720, %v1727
    %v1743 = vsub.f32 %v1723, %v1727
    %v1744 = vmul.f32 %v1728, 1.442695
    %v1745 = vpow.pop %v1744
    %v1746 = vmul.f32 %v1729, 1.442695
    %v1747 = vpow.pop %v1746
    %v1748 = vmul.f32 %v1730, 1.442695
    %v1749 = vpow.pop %v1748
    %v1750 = vmul.f32 %v1731, 1.442695
    %v1751 = vpow.pop %v1750
    %v1752 = vmul.f32 %v1732, 1.442695
    %v1753 = vpow.pop %v1752
    %v1754 = vmul.f32 %v1733, 1.442695
    %v1755 = vpow.pop %v1754
    %v1756 = vmul.f32 %v1734, 1.442695
    %v1757 = vpow.pop %v1756
    %v1758 = vmul.f32 %v1735, 1.442695
    %v1759 = vpow.pop %v1758
    %v1760 = vmul.f32 %v1736, 1.442695
    %v1761 = vpow.pop %v1760
    %v1762 = vmul.f32 %v1737, 1.442695
    %v1763 = vpow.pop %v1762
    %v1764 = vmul.f32 %v1738, 1.442695
    %v1765 = vpow.pop %v1764
    %v1766 = vmul.f32 %v1739, 1.442695
    %v1767 = vpow.pop %v1766
    %v1768 = vmul.f32 %v1740, 1.442695
    %v1769 = vpow.pop %v1768
    %v1770 = vmul.f32 %v1741, 1.442695
    %v1771 = vpow.pop %v1770
    %v1772 = vmul.f32 %v1742, 1.442695
    %v1773 = vpow.pop %v1772
    %v1774 = vmul.f32 %v1743, 1.442695
    %v1775 = vpow.pop %v1774
    %v1776 = vmul.f32 %v1745, %v224
    %v1777 = vmul.f32 %v1747, %v225
    %v1778 = vmul.f32 %v1749, %v226
    %v1779 = vmul.f32 %v1751, %v227
    %v1780 = vmul.f32 %v1753, %v228
    %v1781 = vmul.f32 %v1755, %v229
    %v1782 = vmul.f32 %v1757, %v230
    %v1783 = vmul.f32 %v1759, %v231
    %v1784 = vmul.f32 %v1761, %v232
    %v1785 = vmul.f32 %v1763, %v233
    %v1786 = vmul.f32 %v1765, %v234
    %v1787 = vmul.f32 %v1767, %v235
    %v1788 = vmul.f32 %v1769, %v236
    %v1789 = vmul.f32 %v1771, %v237
    %v1790 = vmul.f32 %v1773, %v238
    %v1791 = vmul.f32 %v1775, %v239
    %1792 = vadd.xlane.f32.xlu0 %v1776
    %v1793 = vpop.xlane.xlu0 %1792
    %1794 = vadd.xlane.f32.xlu0 %v1777
    %v1795 = vpop.xlane.xlu0 %1794
    %1796 = vadd.xlane.f32.xlu0 %v1778
    %v1797 = vpop.xlane.xlu0 %1796
    %1798 = vadd.xlane.f32.xlu0 %v1779
    %v1799 = vpop.xlane.xlu0 %1798
    %1800 = vadd.xlane.f32.xlu0 %v1780
    %v1801 = vpop.xlane.xlu0 %1800
    %1802 = vadd.xlane.f32.xlu0 %v1781
    %v1803 = vpop.xlane.xlu0 %1802
    %1804 = vadd.xlane.f32.xlu0 %v1782
    %v1805 = vpop.xlane.xlu0 %1804
    %1806 = vadd.xlane.f32.xlu0 %v1783
    %v1807 = vpop.xlane.xlu0 %1806
    %1808 = vadd.xlane.f32.xlu0 %v1784
    %v1809 = vpop.xlane.xlu0 %1808
    %1810 = vadd.xlane.f32.xlu0 %v1785
    %v1811 = vpop.xlane.xlu0 %1810
    %1812 = vadd.xlane.f32.xlu0 %v1786
    %v1813 = vpop.xlane.xlu0 %1812
    %1814 = vadd.xlane.f32.xlu0 %v1787
    %v1815 = vpop.xlane.xlu0 %1814
    %1816 = vadd.xlane.f32.xlu0 %v1788
    %v1817 = vpop.xlane.xlu0 %1816
    %1818 = vadd.xlane.f32.xlu0 %v1789
    %v1819 = vpop.xlane.xlu0 %1818
    %1820 = vadd.xlane.f32.xlu0 %v1790
    %v1821 = vpop.xlane.xlu0 %1820
    %1822 = vadd.xlane.f32.xlu0 %v1791
    %v1823 = vpop.xlane.xlu0 %1822
    %v1824 = vrcp.pop %v1793
    %v1825 = vrcp.pop %v1795
    %v1826 = vrcp.pop %v1797
    %v1827 = vrcp.pop %v1799
    %v1828 = vrcp.pop %v1801
    %v1829 = vrcp.pop %v1803
    %v1830 = vrcp.pop %v1805
    %v1831 = vrcp.pop %v1807
    %v1832 = vrcp.pop %v1809
    %v1833 = vrcp.pop %v1811
    %v1834 = vrcp.pop %v1813
    %v1835 = vrcp.pop %v1815
    %v1836 = vrcp.pop %v1817
    %v1837 = vrcp.pop %v1819
    %v1838 = vrcp.pop %v1821
    %v1839 = vrcp.pop %v1823
    %v1840 = vpack.c.bf16 %v1777, %v1776
    %v1841 = vpack.c.bf16 %v1779, %v1778
    %v1842 = vpack.c.bf16 %v1781, %v1780
    %v1843 = vpack.c.bf16 %v1783, %v1782
    %v1844 = vpack.c.bf16 %v1785, %v1784
    %v1845 = vpack.c.bf16 %v1787, %v1786
    %v1846 = vpack.c.bf16 %v1789, %v1788
    %v1847 = vpack.c.bf16 %v1791, %v1790
    %1856 = vrot.lane.b32.xlu0 %v1145, 112
    %v1857 = vpop.permute.xlu0 %1856
    %1858 = vrot.lane.b32.xlu0 %v1146, 112
    %v1859 = vpop.permute.xlu0 %1858
    %1860 = vrot.lane.b32.xlu0 %v1147, 112
    %v1861 = vpop.permute.xlu0 %1860
    %1862 = vrot.lane.b32.xlu0 %v1148, 112
    %v1863 = vpop.permute.xlu0 %1862
    %1864 = vrot.lane.b32.xlu0 %v1149, 112
    %v1865 = vpop.permute.xlu0 %1864
    %1866 = vrot.lane.b32.xlu0 %v1150, 112
    %v1867 = vpop.permute.xlu0 %1866
    %1868 = vrot.lane.b32.xlu0 %v1151, 112
    %v1869 = vpop.permute.xlu0 %1868
    %1870 = vrot.lane.b32.xlu0 %v1152, 112
    %v1871 = vpop.permute.xlu0 %1870
    %1880 = vmatprep.subr.bf16.mxu0 0
    %1881 = vmatpush1.bf16.msra.mxu0 %v1857
    %1882 = vmatprep.subr.bf16.mxu0 0
    %1883 = vmatpush1.bf16.msra.mxu0 %v1859
    %1884 = vmatprep.subr.bf16.mxu0 0
    %1885 = vmatpush1.bf16.msra.mxu0 %v1861
    %1886 = vmatprep.subr.bf16.mxu0 0
    %1887 = vmatpush1.bf16.msra.mxu0 %v1863
    %1888 = vmatprep.subr.bf16.mxu0 0
    %1889 = vmatpush1.bf16.msra.mxu0 %v1865
    %1890 = vmatprep.subr.bf16.mxu0 0
    %1891 = vmatpush1.bf16.msra.mxu0 %v1867
    %1892 = vmatprep.subr.bf16.mxu0 0
    %1893 = vmatpush1.bf16.msra.mxu0 %v1869
    %1894 = vmatprep.subr.bf16.mxu0 0
    %1895 = vmatpush1.bf16.msra.mxu0 %v1871
    %1896 = vmatprep.subr.bf16.mxu0 0
    %1897 = vmatpush1.bf16.msra.mxu0 0
    %1898 = vmatprep.subr.bf16.mxu0 0
    %1899 = vmatpush1.bf16.msra.mxu0 0
    %1900 = vmatprep.subr.bf16.mxu0 0
    %1901 = vmatpush1.bf16.msra.mxu0 0
    %1902 = vmatprep.subr.bf16.mxu0 0
    %1903 = vmatpush1.bf16.msra.mxu0 0
    %1904 = vmatprep.subr.bf16.mxu0 0
    %1905 = vmatpush1.bf16.msra.mxu0 0
    %1906 = vmatprep.subr.bf16.mxu0 0
    %1907 = vmatpush1.bf16.msra.mxu0 0
    %1908 = vmatprep.subr.bf16.mxu0 0
    %1909 = vmatpush1.bf16.msra.mxu0 0
    %1910 = vmatprep.subr.bf16.mxu0 0
    %1911 = vmatpush1.bf16.msra.mxu0 0
    %1912 = vmatprep.mubr.bf16.mxu0 0
    %1913 = vmatmul.mubr.bf16.gmra.mrb[0].mxu0 %v1840
    %v1914 = vpop.f32.mrb[0].mxu0
    %v1915 = vadd.f32 0.0, %v1914
    %v1916 = vpop.f32.mrb[0].mxu0
    %v1917 = vpop.f32.mrb[0].mxu0
    %v1918 = vadd.f32 0.0, %v1917
    %v1919 = vpop.f32.mrb[0].mxu0
    %1920 = vmatprep.mubr.bf16.mxu0 0
    %1921 = vmatmul.mubr.bf16.gmra.mrb[0].mxu0 %v1841
    %v1922 = vpop.f32.mrb[0].mxu0
    %v1923 = vadd.f32 0.0, %v1922
    %v1924 = vpop.f32.mrb[0].mxu0
    %v1925 = vpop.f32.mrb[0].mxu0
    %v1926 = vadd.f32 0.0, %v1925
    %v1927 = vpop.f32.mrb[0].mxu0
    %1928 = vmatprep.mubr.bf16.mxu0 0
    %1929 = vmatmul.mubr.bf16.gmra.mrb[0].mxu0 %v1842
    %v1930 = vpop.f32.mrb[0].mxu0
    %v1931 = vadd.f32 0.0, %v1930
    %v1932 = vpop.f32.mrb[0].mxu0
    %v1933 = vpop.f32.mrb[0].mxu0
    %v1934 = vadd.f32 0.0, %v1933
    %v1935 = vpop.f32.mrb[0].mxu0
    %1936 = vmatprep.mubr.bf16.mxu0 0
    %1937 = vmatmul.mubr.bf16.gmra.mrb[0].mxu0 %v1843
    %v1938 = vpop.f32.mrb[0].mxu0
    %v1939 = vadd.f32 0.0, %v1938
    %v1940 = vpop.f32.mrb[0].mxu0
    %v1941 = vpop.f32.mrb[0].mxu0
    %v1942 = vadd.f32 0.0, %v1941
    %v1943 = vpop.f32.mrb[0].mxu0
    %1944 = vmatprep.mubr.bf16.mxu0 0
    %1945 = vmatmul.mubr.bf16.gmra.mrb[0].mxu0 %v1844
    %v1946 = vpop.f32.mrb[0].mxu0
    %v1947 = vadd.f32 0.0, %v1946
    %v1948 = vpop.f32.mrb[0].mxu0
    %v1949 = vpop.f32.mrb[0].mxu0
    %v1950 = vadd.f32 0.0, %v1949
    %v1951 = vpop.f32.mrb[0].mxu0
    %1952 = vmatprep.mubr.bf16.mxu0 0
    %1953 = vmatmul.mubr.bf16.gmra.mrb[0].mxu0 %v1845
    %v1954 = vpop.f32.mrb[0].mxu0
    %v1955 = vadd.f32 0.0, %v1954
    %v1956 = vpop.f32.mrb[0].mxu0
    %v1957 = vpop.f32.mrb[0].mxu0
    %v1958 = vadd.f32 0.0, %v1957
    %v1959 = vpop.f32.mrb[0].mxu0
    %1960 = vmatprep.mubr.bf16.mxu0 0
    %1961 = vmatmul.mubr.bf16.gmra.mrb[0].mxu0 %v1846
    %v1962 = vpop.f32.mrb[0].mxu0
    %v1963 = vadd.f32 0.0, %v1962
    %v1964 = vpop.f32.mrb[0].mxu0
    %v1965 = vpop.f32.mrb[0].mxu0
    %v1966 = vadd.f32 0.0, %v1965
    %v1967 = vpop.f32.mrb[0].mxu0
    %1968 = vmatprep.mubr.bf16.mxu0 0
    %1969 = vmatmul.mubr.bf16.gmra.mrb[0].mxu0 %v1847
    %v1970 = vpop.f32.mrb[0].mxu0
    %v1971 = vadd.f32 0.0, %v1970
    %v1972 = vpop.f32.mrb[0].mxu0
    %v1973 = vpop.f32.mrb[0].mxu0
    %v1974 = vadd.f32 0.0, %v1973
    %v1975 = vpop.f32.mrb[0].mxu0
    %1976 = vdwg.mxu0
    %v1977 = vmul.f32 %v1915, %v1824
    %v1978 = vmul.f32 %v1918, %v1825
    %v1979 = vmul.f32 %v1923, %v1826
    %v1980 = vmul.f32 %v1926, %v1827
    %v1981 = vmul.f32 %v1931, %v1828
    %v1982 = vmul.f32 %v1934, %v1829
    %v1983 = vmul.f32 %v1939, %v1830
    %v1984 = vmul.f32 %v1942, %v1831
    %v1985 = vmul.f32 %v1947, %v1832
    %v1986 = vmul.f32 %v1950, %v1833
    %v1987 = vmul.f32 %v1955, %v1834
    %v1988 = vmul.f32 %v1958, %v1835
    %v1989 = vmul.f32 %v1963, %v1836
    %v1990 = vmul.f32 %v1966, %v1837
    %v1991 = vmul.f32 %v1971, %v1838
    %v1992 = vmul.f32 %v1974, %v1839
    %1993 = vrot.lane.b32.xlu0 %v1113, 96
    %v1994 = vpop.permute.xlu0 %1993
    %1995 = vrot.lane.b32.xlu0 %v1114, 96
    %v1996 = vpop.permute.xlu0 %1995
    %1997 = vrot.lane.b32.xlu0 %v1115, 96
    %v1998 = vpop.permute.xlu0 %1997
    %1999 = vrot.lane.b32.xlu0 %v1116, 96
    %v2000 = vpop.permute.xlu0 %1999
    %2001 = vrot.lane.b32.xlu0 %v1117, 96
    %v2002 = vpop.permute.xlu0 %2001
    %2003 = vrot.lane.b32.xlu0 %v1118, 96
    %v2004 = vpop.permute.xlu0 %2003
    %2005 = vrot.lane.b32.xlu0 %v1119, 96
    %v2006 = vpop.permute.xlu0 %2005
    %2007 = vrot.lane.b32.xlu0 %v1120, 96
    %v2008 = vpop.permute.xlu0 %2007
    %2009 = vrot.lane.b32.xlu0 %v1137, 96
    %v2010 = vpop.permute.xlu0 %2009
    %2011 = vrot.lane.b32.xlu0 %v1138, 96
    %v2012 = vpop.permute.xlu0 %2011
    %2013 = vrot.lane.b32.xlu0 %v1139, 96
    %v2014 = vpop.permute.xlu0 %2013
    %2015 = vrot.lane.b32.xlu0 %v1140, 96
    %v2016 = vpop.permute.xlu0 %2015
    %2017 = vrot.lane.b32.xlu0 %v1141, 96
    %v2018 = vpop.permute.xlu0 %2017
    %2019 = vrot.lane.b32.xlu0 %v1142, 96
    %v2020 = vpop.permute.xlu0 %2019
    %2021 = vrot.lane.b32.xlu0 %v1143, 96
    %v2022 = vpop.permute.xlu0 %2021
    %2023 = vrot.lane.b32.xlu0 %v1144, 96
    %v2024 = vpop.permute.xlu0 %2023
    %v2026 = vsel %vm864, %v1994, 0
    %v2029 = vsel %vm864, %v1996, 0
    %v2032 = vsel %vm864, %v1998, 0
    %v2035 = vsel %vm864, %v2000, 0
    %v2038 = vsel %vm864, %v2002, 0
    %v2041 = vsel %vm864, %v2004, 0
    %v2044 = vsel %vm864, %v2006, 0
    %v2047 = vsel %vm864, %v2008, 0
    %v2050 = vsel %vm864, %v2010, 0
    %v2053 = vsel %vm864, %v2012, 0
    %v2056 = vsel %vm864, %v2014, 0
    %v2059 = vsel %vm864, %v2016, 0
    %v2062 = vsel %vm864, %v2018, 0
    %v2065 = vsel %vm864, %v2020, 0
    %v2068 = vsel %vm864, %v2022, 0
    %v2071 = vsel %vm864, %v2024, 0
    %2073 = vmatprep.subr.bf16.mxu0 0
    %2074 = vmatpush1.bf16.xpose.msra.mxu0 %v2050
    %2075 = vmatprep.subr.bf16.mxu0 0
    %2076 = vmatpush1.bf16.xpose.msra.mxu0 %v2053
    %2077 = vmatprep.subr.bf16.mxu0 0
    %2078 = vmatpush1.bf16.xpose.msra.mxu0 %v2056
    %2079 = vmatprep.subr.bf16.mxu0 0
    %2080 = vmatpush1.bf16.xpose.msra.mxu0 %v2059
    %2081 = vmatprep.subr.bf16.mxu0 0
    %2082 = vmatpush1.bf16.xpose.msra.mxu0 %v2062
    %2083 = vmatprep.subr.bf16.mxu0 0
    %2084 = vmatpush1.bf16.xpose.msra.mxu0 %v2065
    %2085 = vmatprep.subr.bf16.mxu0 0
    %2086 = vmatpush1.bf16.xpose.msra.mxu0 %v2068
    %2087 = vmatprep.subr.bf16.mxu0 0
    %2088 = vmatpush1.bf16.xpose.msra.mxu0 %v2071
    %2089 = vmatprep.subr.bf16.mxu0 0
    %2090 = vmatpush1.bf16.xpose.msra.mxu0 0
    %2091 = vmatprep.subr.bf16.mxu0 0
    %2092 = vmatpush1.bf16.xpose.msra.mxu0 0
    %2093 = vmatprep.subr.bf16.mxu0 0
    %2094 = vmatpush1.bf16.xpose.msra.mxu0 0
    %2095 = vmatprep.subr.bf16.mxu0 0
    %2096 = vmatpush1.bf16.xpose.msra.mxu0 0
    %2097 = vmatprep.subr.bf16.mxu0 0
    %2098 = vmatpush1.bf16.xpose.msra.mxu0 0
    %2099 = vmatprep.subr.bf16.mxu0 0
    %2100 = vmatpush1.bf16.xpose.msra.mxu0 0
    %2101 = vmatprep.subr.bf16.mxu0 0
    %2102 = vmatpush1.bf16.xpose.msra.mxu0 0
    %2103 = vmatprep.subr.bf16.mxu0 0
    %2104 = vmatpush1.bf16.xpose.msra.mxu0 0
    %2105 = vmatprep.mubr.bf16.mxu0 0
    %2106 = vmatmul.mubr.bf16.gmra.mrb[0].mxu0 %v2026
    %v2107 = vpop.f32.mrb[0].mxu0
    %v2108 = vadd.f32 0.0, %v2107
    %v2109 = vpop.f32.mrb[0].mxu0
    %v2110 = vpop.f32.mrb[0].mxu0
    %v2111 = vadd.f32 0.0, %v2110
    %v2112 = vpop.f32.mrb[0].mxu0
    %2113 = vmatprep.mubr.bf16.mxu0 0
    %2114 = vmatmul.mubr.bf16.gmra.mrb[0].mxu0 %v2029
    %v2115 = vpop.f32.mrb[0].mxu0
    %v2116 = vadd.f32 0.0, %v2115
    %v2117 = vpop.f32.mrb[0].mxu0
    %v2118 = vpop.f32.mrb[0].mxu0
    %v2119 = vadd.f32 0.0, %v2118
    %v2120 = vpop.f32.mrb[0].mxu0
    %2121 = vmatprep.mubr.bf16.mxu0 0
    %2122 = vmatmul.mubr.bf16.gmra.mrb[0].mxu0 %v2032
    %v2123 = vpop.f32.mrb[0].mxu0
    %v2124 = vadd.f32 0.0, %v2123
    %v2125 = vpop.f32.mrb[0].mxu0
    %v2126 = vpop.f32.mrb[0].mxu0
    %v2127 = vadd.f32 0.0, %v2126
    %v2128 = vpop.f32.mrb[0].mxu0
    %2129 = vmatprep.mubr.bf16.mxu0 0
    %2130 = vmatmul.mubr.bf16.gmra.mrb[0].mxu0 %v2035
    %v2131 = vpop.f32.mrb[0].mxu0
    %v2132 = vadd.f32 0.0, %v2131
    %v2133 = vpop.f32.mrb[0].mxu0
    %v2134 = vpop.f32.mrb[0].mxu0
    %v2135 = vadd.f32 0.0, %v2134
    %v2136 = vpop.f32.mrb[0].mxu0
    %2137 = vmatprep.mubr.bf16.mxu0 0
    %2138 = vmatmul.mubr.bf16.gmra.mrb[0].mxu0 %v2038
    %v2139 = vpop.f32.mrb[0].mxu0
    %v2140 = vadd.f32 0.0, %v2139
    %v2141 = vpop.f32.mrb[0].mxu0
    %v2142 = vpop.f32.mrb[0].mxu0
    %v2143 = vadd.f32 0.0, %v2142
    %v2144 = vpop.f32.mrb[0].mxu0
    %2145 = vmatprep.mubr.bf16.mxu0 0
    %2146 = vmatmul.mubr.bf16.gmra.mrb[0].mxu0 %v2041
    %v2147 = vpop.f32.mrb[0].mxu0
    %v2148 = vadd.f32 0.0, %v2147
    %v2149 = vpop.f32.mrb[0].mxu0
    %v2150 = vpop.f32.mrb[0].mxu0
    %v2151 = vadd.f32 0.0, %v2150
    %v2152 = vpop.f32.mrb[0].mxu0
    %2153 = vmatprep.mubr.bf16.mxu0 0
    %2154 = vmatmul.mubr.bf16.gmra.mrb[0].mxu0 %v2044
    %v2155 = vpop.f32.mrb[0].mxu0
    %v2156 = vadd.f32 0.0, %v2155
    %v2157 = vpop.f32.mrb[0].mxu0
    %v2158 = vpop.f32.mrb[0].mxu0
    %v2159 = vadd.f32 0.0, %v2158
    %v2160 = vpop.f32.mrb[0].mxu0
    %2161 = vmatprep.mubr.bf16.mxu0 0
    %2162 = vmatmul.mubr.bf16.gmra.mrb[0].mxu0 %v2047
    %v2163 = vpop.f32.mrb[0].mxu0
    %v2164 = vadd.f32 0.0, %v2163
    %v2165 = vpop.f32.mrb[0].mxu0
    %v2166 = vpop.f32.mrb[0].mxu0
    %v2167 = vadd.f32 0.0, %v2166
    %v2168 = vpop.f32.mrb[0].mxu0
    %2169 = vdwg.mxu0
    %s2170 = sld [smem:[#allocation2 + $0x2]]
    %v2171 = vstv %s2170
    %v2172 = vsub.f32 %v2108, %v2171
    %v2173 = vsub.f32 %v2111, %v2171
    %v2174 = vsub.f32 %v2116, %v2171
    %v2175 = vsub.f32 %v2119, %v2171
    %v2176 = vsub.f32 %v2124, %v2171
    %v2177 = vsub.f32 %v2127, %v2171
    %v2178 = vsub.f32 %v2132, %v2171
    %v2179 = vsub.f32 %v2135, %v2171
    %v2180 = vsub.f32 %v2140, %v2171
    %v2181 = vsub.f32 %v2143, %v2171
    %v2182 = vsub.f32 %v2148, %v2171
    %v2183 = vsub.f32 %v2151, %v2171
    %v2184 = vsub.f32 %v2156, %v2171
    %v2185 = vsub.f32 %v2159, %v2171
    %v2186 = vsub.f32 %v2164, %v2171
    %v2187 = vsub.f32 %v2167, %v2171
    %v2188 = vmul.f32 %v2172, 1.442695
    %v2189 = vpow.pop %v2188
    %v2190 = vmul.f32 %v2173, 1.442695
    %v2191 = vpow.pop %v2190
    %v2192 = vmul.f32 %v2174, 1.442695
    %v2193 = vpow.pop %v2192
    %v2194 = vmul.f32 %v2175, 1.442695
    %v2195 = vpow.pop %v2194
    %v2196 = vmul.f32 %v2176, 1.442695
    %v2197 = vpow.pop %v2196
    %v2198 = vmul.f32 %v2177, 1.442695
    %v2199 = vpow.pop %v2198
    %v2200 = vmul.f32 %v2178, 1.442695
    %v2201 = vpow.pop %v2200
    %v2202 = vmul.f32 %v2179, 1.442695
    %v2203 = vpow.pop %v2202
    %v2204 = vmul.f32 %v2180, 1.442695
    %v2205 = vpow.pop %v2204
    %v2206 = vmul.f32 %v2181, 1.442695
    %v2207 = vpow.pop %v2206
    %v2208 = vmul.f32 %v2182, 1.442695
    %v2209 = vpow.pop %v2208
    %v2210 = vmul.f32 %v2183, 1.442695
    %v2211 = vpow.pop %v2210
    %v2212 = vmul.f32 %v2184, 1.442695
    %v2213 = vpow.pop %v2212
    %v2214 = vmul.f32 %v2185, 1.442695
    %v2215 = vpow.pop %v2214
    %v2216 = vmul.f32 %v2186, 1.442695
    %v2217 = vpow.pop %v2216
    %v2218 = vmul.f32 %v2187, 1.442695
    %v2219 = vpow.pop %v2218
    %v2220 = vmul.f32 %v2189, %v224
    %v2221 = vmul.f32 %v2191, %v225
    %v2222 = vmul.f32 %v2193, %v226
    %v2223 = vmul.f32 %v2195, %v227
    %v2224 = vmul.f32 %v2197, %v228
    %v2225 = vmul.f32 %v2199, %v229
    %v2226 = vmul.f32 %v2201, %v230
    %v2227 = vmul.f32 %v2203, %v231
    %v2228 = vmul.f32 %v2205, %v232
    %v2229 = vmul.f32 %v2207, %v233
    %v2230 = vmul.f32 %v2209, %v234
    %v2231 = vmul.f32 %v2211, %v235
    %v2232 = vmul.f32 %v2213, %v236
    %v2233 = vmul.f32 %v2215, %v237
    %v2234 = vmul.f32 %v2217, %v238
    %v2235 = vmul.f32 %v2219, %v239
    %2236 = vadd.xlane.f32.xlu0 %v2220
    %v2237 = vpop.xlane.xlu0 %2236
    %2238 = vadd.xlane.f32.xlu0 %v2221
    %v2239 = vpop.xlane.xlu0 %2238
    %2240 = vadd.xlane.f32.xlu0 %v2222
    %v2241 = vpop.xlane.xlu0 %2240
    %2242 = vadd.xlane.f32.xlu0 %v2223
    %v2243 = vpop.xlane.xlu0 %2242
    %2244 = vadd.xlane.f32.xlu0 %v2224
    %v2245 = vpop.xlane.xlu0 %2244
    %2246 = vadd.xlane.f32.xlu0 %v2225
    %v2247 = vpop.xlane.xlu0 %2246
    %2248 = vadd.xlane.f32.xlu0 %v2226
    %v2249 = vpop.xlane.xlu0 %2248
    %2250 = vadd.xlane.f32.xlu0 %v2227
    %v2251 = vpop.xlane.xlu0 %2250
    %2252 = vadd.xlane.f32.xlu0 %v2228
    %v2253 = vpop.xlane.xlu0 %2252
    %2254 = vadd.xlane.f32.xlu0 %v2229
    %v2255 = vpop.xlane.xlu0 %2254
    %2256 = vadd.xlane.f32.xlu0 %v2230
    %v2257 = vpop.xlane.xlu0 %2256
    %2258 = vadd.xlane.f32.xlu0 %v2231
    %v2259 = vpop.xlane.xlu0 %2258
    %2260 = vadd.xlane.f32.xlu0 %v2232
    %v2261 = vpop.xlane.xlu0 %2260
    %2262 = vadd.xlane.f32.xlu0 %v2233
    %v2263 = vpop.xlane.xlu0 %2262
    %2264 = vadd.xlane.f32.xlu0 %v2234
    %v2265 = vpop.xlane.xlu0 %2264
    %2266 = vadd.xlane.f32.xlu0 %v2235
    %v2267 = vpop.xlane.xlu0 %2266
    %v2268 = vrcp.pop %v2237
    %v2269 = vrcp.pop %v2239
    %v2270 = vrcp.pop %v2241
    %v2271 = vrcp.pop %v2243
    %v2272 = vrcp.pop %v2245
    %v2273 = vrcp.pop %v2247
    %v2274 = vrcp.pop %v2249
    %v2275 = vrcp.pop %v2251
    %v2276 = vrcp.pop %v2253
    %v2277 = vrcp.pop %v2255
    %v2278 = vrcp.pop %v2257
    %v2279 = vrcp.pop %v2259
    %v2280 = vrcp.pop %v2261
    %v2281 = vrcp.pop %v2263
    %v2282 = vrcp.pop %v2265
    %v2283 = vrcp.pop %v2267
    %v2284 = vpack.c.bf16 %v2221, %v2220
    %v2285 = vpack.c.bf16 %v2223, %v2222
    %v2286 = vpack.c.bf16 %v2225, %v2224
    %v2287 = vpack.c.bf16 %v2227, %v2226
    %v2288 = vpack.c.bf16 %v2229, %v2228
    %v2289 = vpack.c.bf16 %v2231, %v2230
    %v2290 = vpack.c.bf16 %v2233, %v2232
    %v2291 = vpack.c.bf16 %v2235, %v2234
    %2292 = vrot.lane.b32.xlu0 %v1145, 96
    %v2293 = vpop.permute.xlu0 %2292
    %2294 = vrot.lane.b32.xlu0 %v1146, 96
    %v2295 = vpop.permute.xlu0 %2294
    %2296 = vrot.lane.b32.xlu0 %v1147, 96
    %v2297 = vpop.permute.xlu0 %2296
    %2298 = vrot.lane.b32.xlu0 %v1148, 96
    %v2299 = vpop.permute.xlu0 %2298
    %2300 = vrot.lane.b32.xlu0 %v1149, 96
    %v2301 = vpop.permute.xlu0 %2300
    %2302 = vrot.lane.b32.xlu0 %v1150, 96
    %v2303 = vpop.permute.xlu0 %2302
    %2304 = vrot.lane.b32.xlu0 %v1151, 96
    %v2305 = vpop.permute.xlu0 %2304
    %2306 = vrot.lane.b32.xlu0 %v1152, 96
    %v2307 = vpop.permute.xlu0 %2306
    %2316 = vmatprep.subr.bf16.mxu0 0
    %2317 = vmatpush1.bf16.msra.mxu0 %v2293
    %2318 = vmatprep.subr.bf16.mxu0 0
    %2319 = vmatpush1.bf16.msra.mxu0 %v2295
    %2320 = vmatprep.subr.bf16.mxu0 0
    %2321 = vmatpush1.bf16.msra.mxu0 %v2297
    %2322 = vmatprep.subr.bf16.mxu0 0
    %2323 = vmatpush1.bf16.msra.mxu0 %v2299
    %2324 = vmatprep.subr.bf16.mxu0 0
    %2325 = vmatpush1.bf16.msra.mxu0 %v2301
    %2326 = vmatprep.subr.bf16.mxu0 0
    %2327 = vmatpush1.bf16.msra.mxu0 %v2303
    %2328 = vmatprep.subr.bf16.mxu0 0
    %2329 = vmatpush1.bf16.msra.mxu0 %v2305
    %2330 = vmatprep.subr.bf16.mxu0 0
    %2331 = vmatpush1.bf16.msra.mxu0 %v2307
    %2332 = vmatprep.subr.bf16.mxu0 0
    %2333 = vmatpush1.bf16.msra.mxu0 0
    %2334 = vmatprep.subr.bf16.mxu0 0
    %2335 = vmatpush1.bf16.msra.mxu0 0
    %2336 = vmatprep.subr.bf16.mxu0 0
    %2337 = vmatpush1.bf16.msra.mxu0 0
    %2338 = vmatprep.subr.bf16.mxu0 0
    %2339 = vmatpush1.bf16.msra.mxu0 0
    %2340 = vmatprep.subr.bf16.mxu0 0
    %2341 = vmatpush1.bf16.msra.mxu0 0
    %2342 = vmatprep.subr.bf16.mxu0 0
    %2343 = vmatpush1.bf16.msra.mxu0 0
    %2344 = vmatprep.subr.bf16.mxu0 0
    %2345 = vmatpush1.bf16.msra.mxu0 0
    %2346 = vmatprep.subr.bf16.mxu0 0
    %2347 = vmatpush1.bf16.msra.mxu0 0
    %2348 = vmatprep.mubr.bf16.mxu0 0
    %2349 = vmatmul.mubr.bf16.gmra.mrb[0].mxu0 %v2284
    %v2350 = vpop.f32.mrb[0].mxu0
    %v2351 = vadd.f32 0.0, %v2350
    %v2352 = vpop.f32.mrb[0].mxu0
    %v2353 = vpop.f32.mrb[0].mxu0
    %v2354 = vadd.f32 0.0, %v2353
    %v2355 = vpop.f32.mrb[0].mxu0
    %2356 = vmatprep.mubr.bf16.mxu0 0
    %2357 = vmatmul.mubr.bf16.gmra.mrb[0].mxu0 %v2285
    %v2358 = vpop.f32.mrb[0].mxu0
    %v2359 = vadd.f32 0.0, %v2358
    %v2360 = vpop.f32.mrb[0].mxu0
    %v2361 = vpop.f32.mrb[0].mxu0
    %v2362 = vadd.f32 0.0, %v2361
    %v2363 = vpop.f32.mrb[0].mxu0
    %2364 = vmatprep.mubr.bf16.mxu0 0
    %2365 = vmatmul.mubr.bf16.gmra.mrb[0].mxu0 %v2286
    %v2366 = vpop.f32.mrb[0].mxu0
    %v2367 = vadd.f32 0.0, %v2366
    %v2368 = vpop.f32.mrb[0].mxu0
    %v2369 = vpop.f32.mrb[0].mxu0
    %v2370 = vadd.f32 0.0, %v2369
    %v2371 = vpop.f32.mrb[0].mxu0
    %2372 = vmatprep.mubr.bf16.mxu0 0
    %2373 = vmatmul.mubr.bf16.gmra.mrb[0].mxu0 %v2287
    %v2374 = vpop.f32.mrb[0].mxu0
    %v2375 = vadd.f32 0.0, %v2374
    %v2376 = vpop.f32.mrb[0].mxu0
    %v2377 = vpop.f32.mrb[0].mxu0
    %v2378 = vadd.f32 0.0, %v2377
    %v2379 = vpop.f32.mrb[0].mxu0
    %2380 = vmatprep.mubr.bf16.mxu0 0
    %2381 = vmatmul.mubr.bf16.gmra.mrb[0].mxu0 %v2288
    %v2382 = vpop.f32.mrb[0].mxu0
    %v2383 = vadd.f32 0.0, %v2382
    %v2384 = vpop.f32.mrb[0].mxu0
    %v2385 = vpop.f32.mrb[0].mxu0
    %v2386 = vadd.f32 0.0, %v2385
    %v2387 = vpop.f32.mrb[0].mxu0
    %2388 = vmatprep.mubr.bf16.mxu0 0
    %2389 = vmatmul.mubr.bf16.gmra.mrb[0].mxu0 %v2289
    %v2390 = vpop.f32.mrb[0].mxu0
    %v2391 = vadd.f32 0.0, %v2390
    %v2392 = vpop.f32.mrb[0].mxu0
    %v2393 = vpop.f32.mrb[0].mxu0
    %v2394 = vadd.f32 0.0, %v2393
    %v2395 = vpop.f32.mrb[0].mxu0
    %2396 = vmatprep.mubr.bf16.mxu0 0
    %2397 = vmatmul.mubr.bf16.gmra.mrb[0].mxu0 %v2290
    %v2398 = vpop.f32.mrb[0].mxu0
    %v2399 = vadd.f32 0.0, %v2398
    %v2400 = vpop.f32.mrb[0].mxu0
    %v2401 = vpop.f32.mrb[0].mxu0
    %v2402 = vadd.f32 0.0, %v2401
    %v2403 = vpop.f32.mrb[0].mxu0
    %2404 = vmatprep.mubr.bf16.mxu0 0
    %2405 = vmatmul.mubr.bf16.gmra.mrb[0].mxu0 %v2291
    %v2406 = vpop.f32.mrb[0].mxu0
    %v2407 = vadd.f32 0.0, %v2406
    %v2408 = vpop.f32.mrb[0].mxu0
    %v2409 = vpop.f32.mrb[0].mxu0
    %v2410 = vadd.f32 0.0, %v2409
    %v2411 = vpop.f32.mrb[0].mxu0
    %2412 = vdwg.mxu0
    %v2413 = vmul.f32 %v2351, %v2268
    %v2414 = vmul.f32 %v2354, %v2269
    %v2415 = vmul.f32 %v2359, %v2270
    %v2416 = vmul.f32 %v2362, %v2271
    %v2417 = vmul.f32 %v2367, %v2272
    %v2418 = vmul.f32 %v2370, %v2273
    %v2419 = vmul.f32 %v2375, %v2274
    %v2420 = vmul.f32 %v2378, %v2275
    %v2421 = vmul.f32 %v2383, %v2276
    %v2422 = vmul.f32 %v2386, %v2277
    %v2423 = vmul.f32 %v2391, %v2278
    %v2424 = vmul.f32 %v2394, %v2279
    %v2425 = vmul.f32 %v2399, %v2280
    %v2426 = vmul.f32 %v2402, %v2281
    %v2427 = vmul.f32 %v2407, %v2282
    %v2428 = vmul.f32 %v2410, %v2283
    %2429 = vrot.lane.b32.xlu0 %v1113, 80
    %v2430 = vpop.permute.xlu0 %2429
    %2431 = vrot.lane.b32.xlu0 %v1114, 80
    %v2432 = vpop.permute.xlu0 %2431
    %2433 = vrot.lane.b32.xlu0 %v1115, 80
    %v2434 = vpop.permute.xlu0 %2433
    %2435 = vrot.lane.b32.xlu0 %v1116, 80
    %v2436 = vpop.permute.xlu0 %2435
    %2437 = vrot.lane.b32.xlu0 %v1117, 80
    %v2438 = vpop.permute.xlu0 %2437
    %2439 = vrot.lane.b32.xlu0 %v1118, 80
    %v2440 = vpop.permute.xlu0 %2439
    %2441 = vrot.lane.b32.xlu0 %v1119, 80
    %v2442 = vpop.permute.xlu0 %2441
    %2443 = vrot.lane.b32.xlu0 %v1120, 80
    %v2444 = vpop.permute.xlu0 %2443
    %2445 = vrot.lane.b32.xlu0 %v1137, 80
    %v2446 = vpop.permute.xlu0 %2445
    %2447 = vrot.lane.b32.xlu0 %v1138, 80
    %v2448 = vpop.permute.xlu0 %2447
    %2449 = vrot.lane.b32.xlu0 %v1139, 80
    %v2450 = vpop.permute.xlu0 %2449
    %2451 = vrot.lane.b32.xlu0 %v1140, 80
    %v2452 = vpop.permute.xlu0 %2451
    %2453 = vrot.lane.b32.xlu0 %v1141, 80
    %v2454 = vpop.permute.xlu0 %2453
    %2455 = vrot.lane.b32.xlu0 %v1142, 80
    %v2456 = vpop.permute.xlu0 %2455
    %2457 = vrot.lane.b32.xlu0 %v1143, 80
    %v2458 = vpop.permute.xlu0 %2457
    %2459 = vrot.lane.b32.xlu0 %v1144, 80
    %v2460 = vpop.permute.xlu0 %2459
    %v2462 = vsel %vm864, %v2430, 0
    %v2465 = vsel %vm864, %v2432, 0
    %v2468 = vsel %vm864, %v2434, 0
    %v2471 = vsel %vm864, %v2436, 0
    %v2474 = vsel %vm864, %v2438, 0
    %v2477 = vsel %vm864, %v2440, 0
    %v2480 = vsel %vm864, %v2442, 0
    %v2483 = vsel %vm864, %v2444, 0
    %v2486 = vsel %vm864, %v2446, 0
    %v2489 = vsel %vm864, %v2448, 0
    %v2492 = vsel %vm864, %v2450, 0
    %v2495 = vsel %vm864, %v2452, 0
    %v2498 = vsel %vm864, %v2454, 0
    %v2501 = vsel %vm864, %v2456, 0
    %v2504 = vsel %vm864, %v2458, 0
    %v2507 = vsel %vm864, %v2460, 0
    %2509 = vmatprep.subr.bf16.mxu0 0
    %2510 = vmatpush1.bf16.xpose.msra.mxu0 %v2486
    %2511 = vmatprep.subr.bf16.mxu0 0
    %2512 = vmatpush1.bf16.xpose.msra.mxu0 %v2489
    %2513 = vmatprep.subr.bf16.mxu0 0
    %2514 = vmatpush1.bf16.xpose.msra.mxu0 %v2492
    %2515 = vmatprep.subr.bf16.mxu0 0
    %2516 = vmatpush1.bf16.xpose.msra.mxu0 %v2495
    %2517 = vmatprep.subr.bf16.mxu0 0
    %2518 = vmatpush1.bf16.xpose.msra.mxu0 %v2498
    %2519 = vmatprep.subr.bf16.mxu0 0
    %2520 = vmatpush1.bf16.xpose.msra.mxu0 %v2501
    %2521 = vmatprep.subr.bf16.mxu0 0
    %2522 = vmatpush1.bf16.xpose.msra.mxu0 %v2504
    %2523 = vmatprep.subr.bf16.mxu0 0
    %2524 = vmatpush1.bf16.xpose.msra.mxu0 %v2507
    %2525 = vmatprep.subr.bf16.mxu0 0
    %2526 = vmatpush1.bf16.xpose.msra.mxu0 0
    %2527 = vmatprep.subr.bf16.mxu0 0
    %2528 = vmatpush1.bf16.xpose.msra.mxu0 0
    %2529 = vmatprep.subr.bf16.mxu0 0
    %2530 = vmatpush1.bf16.xpose.msra.mxu0 0
    %2531 = vmatprep.subr.bf16.mxu0 0
    %2532 = vmatpush1.bf16.xpose.msra.mxu0 0
    %2533 = vmatprep.subr.bf16.mxu0 0
    %2534 = vmatpush1.bf16.xpose.msra.mxu0 0
    %2535 = vmatprep.subr.bf16.mxu0 0
    %2536 = vmatpush1.bf16.xpose.msra.mxu0 0
    %2537 = vmatprep.subr.bf16.mxu0 0
    %2538 = vmatpush1.bf16.xpose.msra.mxu0 0
    %2539 = vmatprep.subr.bf16.mxu0 0
    %2540 = vmatpush1.bf16.xpose.msra.mxu0 0
    %2541 = vmatprep.mubr.bf16.mxu0 0
    %2542 = vmatmul.mubr.bf16.gmra.mrb[0].mxu0 %v2462
    %v2543 = vpop.f32.mrb[0].mxu0
    %v2544 = vadd.f32 0.0, %v2543
    %v2545 = vpop.f32.mrb[0].mxu0
    %v2546 = vpop.f32.mrb[0].mxu0
    %v2547 = vadd.f32 0.0, %v2546
    %v2548 = vpop.f32.mrb[0].mxu0
    %2549 = vmatprep.mubr.bf16.mxu0 0
    %2550 = vmatmul.mubr.bf16.gmra.mrb[0].mxu0 %v2465
    %v2551 = vpop.f32.mrb[0].mxu0
    %v2552 = vadd.f32 0.0, %v2551
    %v2553 = vpop.f32.mrb[0].mxu0
    %v2554 = vpop.f32.mrb[0].mxu0
    %v2555 = vadd.f32 0.0, %v2554
    %v2556 = vpop.f32.mrb[0].mxu0
    %2557 = vmatprep.mubr.bf16.mxu0 0
    %2558 = vmatmul.mubr.bf16.gmra.mrb[0].mxu0 %v2468
    %v2559 = vpop.f32.mrb[0].mxu0
    %v2560 = vadd.f32 0.0, %v2559
    %v2561 = vpop.f32.mrb[0].mxu0
    %v2562 = vpop.f32.mrb[0].mxu0
    %v2563 = vadd.f32 0.0, %v2562
    %v2564 = vpop.f32.mrb[0].mxu0
    %2565 = vmatprep.mubr.bf16.mxu0 0
    %2566 = vmatmul.mubr.bf16.gmra.mrb[0].mxu0 %v2471
    %v2567 = vpop.f32.mrb[0].mxu0
    %v2568 = vadd.f32 0.0, %v2567
    %v2569 = vpop.f32.mrb[0].mxu0
    %v2570 = vpop.f32.mrb[0].mxu0
    %v2571 = vadd.f32 0.0, %v2570
    %v2572 = vpop.f32.mrb[0].mxu0
    %2573 = vmatprep.mubr.bf16.mxu0 0
    %2574 = vmatmul.mubr.bf16.gmra.mrb[0].mxu0 %v2474
    %v2575 = vpop.f32.mrb[0].mxu0
    %v2576 = vadd.f32 0.0, %v2575
    %v2577 = vpop.f32.mrb[0].mxu0
    %v2578 = vpop.f32.mrb[0].mxu0
    %v2579 = vadd.f32 0.0, %v2578
    %v2580 = vpop.f32.mrb[0].mxu0
    %2581 = vmatprep.mubr.bf16.mxu0 0
    %2582 = vmatmul.mubr.bf16.gmra.mrb[0].mxu0 %v2477
    %v2583 = vpop.f32.mrb[0].mxu0
    %v2584 = vadd.f32 0.0, %v2583
    %v2585 = vpop.f32.mrb[0].mxu0
    %v2586 = vpop.f32.mrb[0].mxu0
    %v2587 = vadd.f32 0.0, %v2586
    %v2588 = vpop.f32.mrb[0].mxu0
    %2589 = vmatprep.mubr.bf16.mxu0 0
    %2590 = vmatmul.mubr.bf16.gmra.mrb[0].mxu0 %v2480
    %v2591 = vpop.f32.mrb[0].mxu0
    %v2592 = vadd.f32 0.0, %v2591
    %v2593 = vpop.f32.mrb[0].mxu0
    %v2594 = vpop.f32.mrb[0].mxu0
    %v2595 = vadd.f32 0.0, %v2594
    %v2596 = vpop.f32.mrb[0].mxu0
    %2597 = vmatprep.mubr.bf16.mxu0 0
    %2598 = vmatmul.mubr.bf16.gmra.mrb[0].mxu0 %v2483
    %v2599 = vpop.f32.mrb[0].mxu0
    %v2600 = vadd.f32 0.0, %v2599
    %v2601 = vpop.f32.mrb[0].mxu0
    %v2602 = vpop.f32.mrb[0].mxu0
    %v2603 = vadd.f32 0.0, %v2602
    %v2604 = vpop.f32.mrb[0].mxu0
    %2605 = vdwg.mxu0
    %s2606 = sld [smem:[#allocation2 + $0x3]]
    %v2607 = vstv %s2606
    %v2608 = vsub.f32 %v2544, %v2607
    %v2609 = vsub.f32 %v2547, %v2607
    %v2610 = vsub.f32 %v2552, %v2607
    %v2611 = vsub.f32 %v2555, %v2607
    %v2612 = vsub.f32 %v2560, %v2607
    %v2613 = vsub.f32 %v2563, %v2607
    %v2614 = vsub.f32 %v2568, %v2607
    %v2615 = vsub.f32 %v2571, %v2607
    %v2616 = vsub.f32 %v2576, %v2607
    %v2617 = vsub.f32 %v2579, %v2607
    %v2618 = vsub.f32 %v2584, %v2607
    %v2619 = vsub.f32 %v2587, %v2607
    %v2620 = vsub.f32 %v2592, %v2607
    %v2621 = vsub.f32 %v2595, %v2607
    %v2622 = vsub.f32 %v2600, %v2607
    %v2623 = vsub.f32 %v2603, %v2607
    %v2624 = vmul.f32 %v2608, 1.442695
    %v2625 = vpow.pop %v2624
    %v2626 = vmul.f32 %v2609, 1.442695
    %v2627 = vpow.pop %v2626
    %v2628 = vmul.f32 %v2610, 1.442695
    %v2629 = vpow.pop %v2628
    %v2630 = vmul.f32 %v2611, 1.442695
    %v2631 = vpow.pop %v2630
    %v2632 = vmul.f32 %v2612, 1.442695
    %v2633 = vpow.pop %v2632
    %v2634 = vmul.f32 %v2613, 1.442695
    %v2635 = vpow.pop %v2634
    %v2636 = vmul.f32 %v2614, 1.442695
    %v2637 = vpow.pop %v2636
    %v2638 = vmul.f32 %v2615, 1.442695
    %v2639 = vpow.pop %v2638
    %v2640 = vmul.f32 %v2616, 1.442695
    %v2641 = vpow.pop %v2640
    %v2642 = vmul.f32 %v2617, 1.442695
    %v2643 = vpow.pop %v2642
    %v2644 = vmul.f32 %v2618, 1.442695
    %v2645 = vpow.pop %v2644
    %v2646 = vmul.f32 %v2619, 1.442695
    %v2647 = vpow.pop %v2646
    %v2648 = vmul.f32 %v2620, 1.442695
    %v2649 = vpow.pop %v2648
    %v2650 = vmul.f32 %v2621, 1.442695
    %v2651 = vpow.pop %v2650
    %v2652 = vmul.f32 %v2622, 1.442695
    %v2653 = vpow.pop %v2652
    %v2654 = vmul.f32 %v2623, 1.442695
    %v2655 = vpow.pop %v2654
    %v2656 = vmul.f32 %v2625, %v224
    %v2657 = vmul.f32 %v2627, %v225
    %v2658 = vmul.f32 %v2629, %v226
    %v2659 = vmul.f32 %v2631, %v227
    %v2660 = vmul.f32 %v2633, %v228
    %v2661 = vmul.f32 %v2635, %v229
    %v2662 = vmul.f32 %v2637, %v230
    %v2663 = vmul.f32 %v2639, %v231
    %v2664 = vmul.f32 %v2641, %v232
    %v2665 = vmul.f32 %v2643, %v233
    %v2666 = vmul.f32 %v2645, %v234
    %v2667 = vmul.f32 %v2647, %v235
    %v2668 = vmul.f32 %v2649, %v236
    %v2669 = vmul.f32 %v2651, %v237
    %v2670 = vmul.f32 %v2653, %v238
    %v2671 = vmul.f32 %v2655, %v239
    %2672 = vadd.xlane.f32.xlu0 %v2656
    %v2673 = vpop.xlane.xlu0 %2672
    %2674 = vadd.xlane.f32.xlu0 %v2657
    %v2675 = vpop.xlane.xlu0 %2674
    %2676 = vadd.xlane.f32.xlu0 %v2658
    %v2677 = vpop.xlane.xlu0 %2676
    %2678 = vadd.xlane.f32.xlu0 %v2659
    %v2679 = vpop.xlane.xlu0 %2678
    %2680 = vadd.xlane.f32.xlu0 %v2660
    %v2681 = vpop.xlane.xlu0 %2680
    %2682 = vadd.xlane.f32.xlu0 %v2661
    %v2683 = vpop.xlane.xlu0 %2682
    %2684 = vadd.xlane.f32.xlu0 %v2662
    %v2685 = vpop.xlane.xlu0 %2684
    %2686 = vadd.xlane.f32.xlu0 %v2663
    %v2687 = vpop.xlane.xlu0 %2686
    %2688 = vadd.xlane.f32.xlu0 %v2664
    %v2689 = vpop.xlane.xlu0 %2688
    %2690 = vadd.xlane.f32.xlu0 %v2665
    %v2691 = vpop.xlane.xlu0 %2690
    %2692 = vadd.xlane.f32.xlu0 %v2666
    %v2693 = vpop.xlane.xlu0 %2692
    %2694 = vadd.xlane.f32.xlu0 %v2667
    %v2695 = vpop.xlane.xlu0 %2694
    %2696 = vadd.xlane.f32.xlu0 %v2668
    %v2697 = vpop.xlane.xlu0 %2696
    %2698 = vadd.xlane.f32.xlu0 %v2669
    %v2699 = vpop.xlane.xlu0 %2698
    %2700 = vadd.xlane.f32.xlu0 %v2670
    %v2701 = vpop.xlane.xlu0 %2700
    %2702 = vadd.xlane.f32.xlu0 %v2671
    %v2703 = vpop.xlane.xlu0 %2702
    %v2704 = vrcp.pop %v2673
    %v2705 = vrcp.pop %v2675
    %v2706 = vrcp.pop %v2677
    %v2707 = vrcp.pop %v2679
    %v2708 = vrcp.pop %v2681
    %v2709 = vrcp.pop %v2683
    %v2710 = vrcp.pop %v2685
    %v2711 = vrcp.pop %v2687
    %v2712 = vrcp.pop %v2689
    %v2713 = vrcp.pop %v2691
    %v2714 = vrcp.pop %v2693
    %v2715 = vrcp.pop %v2695
    %v2716 = vrcp.pop %v2697
    %v2717 = vrcp.pop %v2699
    %v2718 = vrcp.pop %v2701
    %v2719 = vrcp.pop %v2703
    %v2720 = vpack.c.bf16 %v2657, %v2656
    %v2721 = vpack.c.bf16 %v2659, %v2658
    %v2722 = vpack.c.bf16 %v2661, %v2660
    %v2723 = vpack.c.bf16 %v2663, %v2662
    %v2724 = vpack.c.bf16 %v2665, %v2664
    %v2725 = vpack.c.bf16 %v2667, %v2666
    %v2726 = vpack.c.bf16 %v2669, %v2668
    %v2727 = vpack.c.bf16 %v2671, %v2670
    %2728 = vrot.lane.b32.xlu0 %v1145, 80
    %v2729 = vpop.permute.xlu0 %2728
    %2730 = vrot.lane.b32.xlu0 %v1146, 80
    %v2731 = vpop.permute.xlu0 %2730
    %2732 = vrot.lane.b32.xlu0 %v1147, 80
    %v2733 = vpop.permute.xlu0 %2732
    %2734 = vrot.lane.b32.xlu0 %v1148, 80
    %v2735 = vpop.permute.xlu0 %2734
    %2736 = vrot.lane.b32.xlu0 %v1149, 80
    %v2737 = vpop.permute.xlu0 %2736
    %2738 = vrot.lane.b32.xlu0 %v1150, 80
    %v2739 = vpop.permute.xlu0 %2738
    %2740 = vrot.lane.b32.xlu0 %v1151, 80
    %v2741 = vpop.permute.xlu0 %2740
    %2742 = vrot.lane.b32.xlu0 %v1152, 80
    %v2743 = vpop.permute.xlu0 %2742
    %2752 = vmatprep.subr.bf16.mxu0 0
    %2753 = vmatpush1.bf16.msra.mxu0 %v2729
    %2754 = vmatprep.subr.bf16.mxu0 0
    %2755 = vmatpush1.bf16.msra.mxu0 %v2731
    %2756 = vmatprep.subr.bf16.mxu0 0
    %2757 = vmatpush1.bf16.msra.mxu0 %v2733
    %2758 = vmatprep.subr.bf16.mxu0 0
    %2759 = vmatpush1.bf16.msra.mxu0 %v2735
    %2760 = vmatprep.subr.bf16.mxu0 0
    %2761 = vmatpush1.bf16.msra.mxu0 %v2737
    %2762 = vmatprep.subr.bf16.mxu0 0
    %2763 = vmatpush1.bf16.msra.mxu0 %v2739
    %2764 = vmatprep.subr.bf16.mxu0 0
    %2765 = vmatpush1.bf16.msra.mxu0 %v2741
    %2766 = vmatprep.subr.bf16.mxu0 0
    %2767 = vmatpush1.bf16.msra.mxu0 %v2743
    %2768 = vmatprep.subr.bf16.mxu0 0
    %2769 = vmatpush1.bf16.msra.mxu0 0
    %2770 = vmatprep.subr.bf16.mxu0 0
    %2771 = vmatpush1.bf16.msra.mxu0 0
    %2772 = vmatprep.subr.bf16.mxu0 0
    %2773 = vmatpush1.bf16.msra.mxu0 0
    %2774 = vmatprep.subr.bf16.mxu0 0
    %2775 = vmatpush1.bf16.msra.mxu0 0
    %2776 = vmatprep.subr.bf16.mxu0 0
    %2777 = vmatpush1.bf16.msra.mxu0 0
    %2778 = vmatprep.subr.bf16.mxu0 0
    %2779 = vmatpush1.bf16.msra.mxu0 0
    %2780 = vmatprep.subr.bf16.mxu0 0
    %2781 = vmatpush1.bf16.msra.mxu0 0
    %2782 = vmatprep.subr.bf16.mxu0 0
    %2783 = vmatpush1.bf16.msra.mxu0 0
    %2784 = vmatprep.mubr.bf16.mxu0 0
    %2785 = vmatmul.mubr.bf16.gmra.mrb[0].mxu0 %v2720
    %v2786 = vpop.f32.mrb[0].mxu0
    %v2787 = vadd.f32 0.0, %v2786
    %v2788 = vpop.f32.mrb[0].mxu0
    %v2789 = vpop.f32.mrb[0].mxu0
    %v2790 = vadd.f32 0.0, %v2789
    %v2791 = vpop.f32.mrb[0].mxu0
    %2792 = vmatprep.mubr.bf16.mxu0 0
    %2793 = vmatmul.mubr.bf16.gmra.mrb[0].mxu0 %v2721
    %v2794 = vpop.f32.mrb[0].mxu0
    %v2795 = vadd.f32 0.0, %v2794
    %v2796 = vpop.f32.mrb[0].mxu0
    %v2797 = vpop.f32.mrb[0].mxu0
    %v2798 = vadd.f32 0.0, %v2797
    %v2799 = vpop.f32.mrb[0].mxu0
    %2800 = vmatprep.mubr.bf16.mxu0 0
    %2801 = vmatmul.mubr.bf16.gmra.mrb[0].mxu0 %v2722
    %v2802 = vpop.f32.mrb[0].mxu0
    %v2803 = vadd.f32 0.0, %v2802
    %v2804 = vpop.f32.mrb[0].mxu0
    %v2805 = vpop.f32.mrb[0].mxu0
    %v2806 = vadd.f32 0.0, %v2805
    %v2807 = vpop.f32.mrb[0].mxu0
    %2808 = vmatprep.mubr.bf16.mxu0 0
    %2809 = vmatmul.mubr.bf16.gmra.mrb[0].mxu0 %v2723
    %v2810 = vpop.f32.mrb[0].mxu0
    %v2811 = vadd.f32 0.0, %v2810
    %v2812 = vpop.f32.mrb[0].mxu0
    %v2813 = vpop.f32.mrb[0].mxu0
    %v2814 = vadd.f32 0.0, %v2813
    %v2815 = vpop.f32.mrb[0].mxu0
    %2816 = vmatprep.mubr.bf16.mxu0 0
    %2817 = vmatmul.mubr.bf16.gmra.mrb[0].mxu0 %v2724
    %v2818 = vpop.f32.mrb[0].mxu0
    %v2819 = vadd.f32 0.0, %v2818
    %v2820 = vpop.f32.mrb[0].mxu0
    %v2821 = vpop.f32.mrb[0].mxu0
    %v2822 = vadd.f32 0.0, %v2821
    %v2823 = vpop.f32.mrb[0].mxu0
    %2824 = vmatprep.mubr.bf16.mxu0 0
    %2825 = vmatmul.mubr.bf16.gmra.mrb[0].mxu0 %v2725
    %v2826 = vpop.f32.mrb[0].mxu0
    %v2827 = vadd.f32 0.0, %v2826
    %v2828 = vpop.f32.mrb[0].mxu0
    %v2829 = vpop.f32.mrb[0].mxu0
    %v2830 = vadd.f32 0.0, %v2829
    %v2831 = vpop.f32.mrb[0].mxu0
    %2832 = vmatprep.mubr.bf16.mxu0 0
    %2833 = vmatmul.mubr.bf16.gmra.mrb[0].mxu0 %v2726
    %v2834 = vpop.f32.mrb[0].mxu0
    %v2835 = vadd.f32 0.0, %v2834
    %v2836 = vpop.f32.mrb[0].mxu0
    %v2837 = vpop.f32.mrb[0].mxu0
    %v2838 = vadd.f32 0.0, %v2837
    %v2839 = vpop.f32.mrb[0].mxu0
    %2840 = vmatprep.mubr.bf16.mxu0 0
    %2841 = vmatmul.mubr.bf16.gmra.mrb[0].mxu0 %v2727
    %v2842 = vpop.f32.mrb[0].mxu0
    %v2843 = vadd.f32 0.0, %v2842
    %v2844 = vpop.f32.mrb[0].mxu0
    %v2845 = vpop.f32.mrb[0].mxu0
    %v2846 = vadd.f32 0.0, %v2845
    %v2847 = vpop.f32.mrb[0].mxu0
    %2848 = vdwg.mxu0
    %v2849 = vmul.f32 %v2787, %v2704
    %v2850 = vmul.f32 %v2790, %v2705
    %v2851 = vmul.f32 %v2795, %v2706
    %v2852 = vmul.f32 %v2798, %v2707
    %v2853 = vmul.f32 %v2803, %v2708
    %v2854 = vmul.f32 %v2806, %v2709
    %v2855 = vmul.f32 %v2811, %v2710
    %v2856 = vmul.f32 %v2814, %v2711
    %v2857 = vmul.f32 %v2819, %v2712
    %v2858 = vmul.f32 %v2822, %v2713
    %v2859 = vmul.f32 %v2827, %v2714
    %v2860 = vmul.f32 %v2830, %v2715
    %v2861 = vmul.f32 %v2835, %v2716
    %v2862 = vmul.f32 %v2838, %v2717
    %v2863 = vmul.f32 %v2843, %v2718
    %v2864 = vmul.f32 %v2846, %v2719
    %2865 = vrot.lane.b32.xlu0 %v1113, 64
    %v2866 = vpop.permute.xlu0 %2865
    %2867 = vrot.lane.b32.xlu0 %v1114, 64
    %v2868 = vpop.permute.xlu0 %2867
    %2869 = vrot.lane.b32.xlu0 %v1115, 64
    %v2870 = vpop.permute.xlu0 %2869
    %2871 = vrot.lane.b32.xlu0 %v1116, 64
    %v2872 = vpop.permute.xlu0 %2871
    %2873 = vrot.lane.b32.xlu0 %v1117, 64
    %v2874 = vpop.permute.xlu0 %2873
    %2875 = vrot.lane.b32.xlu0 %v1118, 64
    %v2876 = vpop.permute.xlu0 %2875
    %2877 = vrot.lane.b32.xlu0 %v1119, 64
    %v2878 = vpop.permute.xlu0 %2877
    %2879 = vrot.lane.b32.xlu0 %v1120, 64
    %v2880 = vpop.permute.xlu0 %2879
    %2881 = vrot.lane.b32.xlu0 %v1137, 64
    %v2882 = vpop.permute.xlu0 %2881
    %2883 = vrot.lane.b32.xlu0 %v1138, 64
    %v2884 = vpop.permute.xlu0 %2883
    %2885 = vrot.lane.b32.xlu0 %v1139, 64
    %v2886 = vpop.permute.xlu0 %2885
    %2887 = vrot.lane.b32.xlu0 %v1140, 64
    %v2888 = vpop.permute.xlu0 %2887
    %2889 = vrot.lane.b32.xlu0 %v1141, 64
    %v2890 = vpop.permute.xlu0 %2889
    %2891 = vrot.lane.b32.xlu0 %v1142, 64
    %v2892 = vpop.permute.xlu0 %2891
    %2893 = vrot.lane.b32.xlu0 %v1143, 64
    %v2894 = vpop.permute.xlu0 %2893
    %2895 = vrot.lane.b32.xlu0 %v1144, 64
    %v2896 = vpop.permute.xlu0 %2895
    %v2898 = vsel %vm864, %v2866, 0
    %v2901 = vsel %vm864, %v2868, 0
    %v2904 = vsel %vm864, %v2870, 0
    %v2907 = vsel %vm864, %v2872, 0
    %v2910 = vsel %vm864, %v2874, 0
    %v2913 = vsel %vm864, %v2876, 0
    %v2916 = vsel %vm864, %v2878, 0
    %v2919 = vsel %vm864, %v2880, 0
    %v2922 = vsel %vm864, %v2882, 0
    %v2925 = vsel %vm864, %v2884, 0
    %v2928 = vsel %vm864, %v2886, 0
    %v2931 = vsel %vm864, %v2888, 0
    %v2934 = vsel %vm864, %v2890, 0
    %v2937 = vsel %vm864, %v2892, 0
    %v2940 = vsel %vm864, %v2894, 0
    %v2943 = vsel %vm864, %v2896, 0
    %2945 = vmatprep.subr.bf16.mxu0 0
    %2946 = vmatpush1.bf16.xpose.msra.mxu0 %v2922
    %2947 = vmatprep.subr.bf16.mxu0 0
    %2948 = vmatpush1.bf16.xpose.msra.mxu0 %v2925
    %2949 = vmatprep.subr.bf16.mxu0 0
    %2950 = vmatpush1.bf16.xpose.msra.mxu0 %v2928
    %2951 = vmatprep.subr.bf16.mxu0 0
    %2952 = vmatpush1.bf16.xpose.msra.mxu0 %v2931
    %2953 = vmatprep.subr.bf16.mxu0 0
    %2954 = vmatpush1.bf16.xpose.msra.mxu0 %v2934
    %2955 = vmatprep.subr.bf16.mxu0 0
    %2956 = vmatpush1.bf16.xpose.msra.mxu0 %v2937
    %2957 = vmatprep.subr.bf16.mxu0 0
    %2958 = vmatpush1.bf16.xpose.msra.mxu0 %v2940
    %2959 = vmatprep.subr.bf16.mxu0 0
    %2960 = vmatpush1.bf16.xpose.msra.mxu0 %v2943
    %2961 = vmatprep.subr.bf16.mxu0 0
    %2962 = vmatpush1.bf16.xpose.msra.mxu0 0
    %2963 = vmatprep.subr.bf16.mxu0 0
    %2964 = vmatpush1.bf16.xpose.msra.mxu0 0
    %2965 = vmatprep.subr.bf16.mxu0 0
    %2966 = vmatpush1.bf16.xpose.msra.mxu0 0
    %2967 = vmatprep.subr.bf16.mxu0 0
    %2968 = vmatpush1.bf16.xpose.msra.mxu0 0
    %2969 = vmatprep.subr.bf16.mxu0 0
    %2970 = vmatpush1.bf16.xpose.msra.mxu0 0
    %2971 = vmatprep.subr.bf16.mxu0 0
    %2972 = vmatpush1.bf16.xpose.msra.mxu0 0
    %2973 = vmatprep.subr.bf16.mxu0 0
    %2974 = vmatpush1.bf16.xpose.msra.mxu0 0
    %2975 = vmatprep.subr.bf16.mxu0 0
    %2976 = vmatpush1.bf16.xpose.msra.mxu0 0
    %2977 = vmatprep.mubr.bf16.mxu0 0
    %2978 = vmatmul.mubr.bf16.gmra.mrb[0].mxu0 %v2898
    %v2979 = vpop.f32.mrb[0].mxu0
    %v2980 = vadd.f32 0.0, %v2979
    %v2981 = vpop.f32.mrb[0].mxu0
    %v2982 = vpop.f32.mrb[0].mxu0
    %v2983 = vadd.f32 0.0, %v2982
    %v2984 = vpop.f32.mrb[0].mxu0
    %2985 = vmatprep.mubr.bf16.mxu0 0
    %2986 = vmatmul.mubr.bf16.gmra.mrb[0].mxu0 %v2901
    %v2987 = vpop.f32.mrb[0].mxu0
    %v2988 = vadd.f32 0.0, %v2987
    %v2989 = vpop.f32.mrb[0].mxu0
    %v2990 = vpop.f32.mrb[0].mxu0
    %v2991 = vadd.f32 0.0, %v2990
    %v2992 = vpop.f32.mrb[0].mxu0
    %2993 = vmatprep.mubr.bf16.mxu0 0
    %2994 = vmatmul.mubr.bf16.gmra.mrb[0].mxu0 %v2904
    %v2995 = vpop.f32.mrb[0].mxu0
    %v2996 = vadd.f32 0.0, %v2995
    %v2997 = vpop.f32.mrb[0].mxu0
    %v2998 = vpop.f32.mrb[0].mxu0
    %v2999 = vadd.f32 0.0, %v2998
    %v3000 = vpop.f32.mrb[0].mxu0
    %3001 = vmatprep.mubr.bf16.mxu0 0
    %3002 = vmatmul.mubr.bf16.gmra.mrb[0].mxu0 %v2907
    %v3003 = vpop.f32.mrb[0].mxu0
    %v3004 = vadd.f32 0.0, %v3003
    %v3005 = vpop.f32.mrb[0].mxu0
    %v3006 = vpop.f32.mrb[0].mxu0
    %v3007 = vadd.f32 0.0, %v3006
    %v3008 = vpop.f32.mrb[0].mxu0
    %3009 = vmatprep.mubr.bf16.mxu0 0
    %3010 = vmatmul.mubr.bf16.gmra.mrb[0].mxu0 %v2910
    %v3011 = vpop.f32.mrb[0].mxu0
    %v3012 = vadd.f32 0.0, %v3011
    %v3013 = vpop.f32.mrb[0].mxu0
    %v3014 = vpop.f32.mrb[0].mxu0
    %v3015 = vadd.f32 0.0, %v3014
    %v3016 = vpop.f32.mrb[0].mxu0
    %3017 = vmatprep.mubr.bf16.mxu0 0
    %3018 = vmatmul.mubr.bf16.gmra.mrb[0].mxu0 %v2913
    %v3019 = vpop.f32.mrb[0].mxu0
    %v3020 = vadd.f32 0.0, %v3019
    %v3021 = vpop.f32.mrb[0].mxu0
    %v3022 = vpop.f32.mrb[0].mxu0
    %v3023 = vadd.f32 0.0, %v3022
    %v3024 = vpop.f32.mrb[0].mxu0
    %3025 = vmatprep.mubr.bf16.mxu0 0
    %3026 = vmatmul.mubr.bf16.gmra.mrb[0].mxu0 %v2916
    %v3027 = vpop.f32.mrb[0].mxu0
    %v3028 = vadd.f32 0.0, %v3027
    %v3029 = vpop.f32.mrb[0].mxu0
    %v3030 = vpop.f32.mrb[0].mxu0
    %v3031 = vadd.f32 0.0, %v3030
    %v3032 = vpop.f32.mrb[0].mxu0
    %3033 = vmatprep.mubr.bf16.mxu0 0
    %3034 = vmatmul.mubr.bf16.gmra.mrb[0].mxu0 %v2919
    %v3035 = vpop.f32.mrb[0].mxu0
    %v3036 = vadd.f32 0.0, %v3035
    %v3037 = vpop.f32.mrb[0].mxu0
    %v3038 = vpop.f32.mrb[0].mxu0
    %v3039 = vadd.f32 0.0, %v3038
    %v3040 = vpop.f32.mrb[0].mxu0
    %3041 = vdwg.mxu0
    %s3042 = sld [smem:[#allocation2 + $0x4]]
    %v3043 = vstv %s3042
    %v3044 = vsub.f32 %v2980, %v3043
    %v3045 = vsub.f32 %v2983, %v3043
    %v3046 = vsub.f32 %v2988, %v3043
    %v3047 = vsub.f32 %v2991, %v3043
    %v3048 = vsub.f32 %v2996, %v3043
    %v3049 = vsub.f32 %v2999, %v3043
    %v3050 = vsub.f32 %v3004, %v3043
    %v3051 = vsub.f32 %v3007, %v3043
    %v3052 = vsub.f32 %v3012, %v3043
    %v3053 = vsub.f32 %v3015, %v3043
    %v3054 = vsub.f32 %v3020, %v3043
    %v3055 = vsub.f32 %v3023, %v3043
    %v3056 = vsub.f32 %v3028, %v3043
    %v3057 = vsub.f32 %v3031, %v3043
    %v3058 = vsub.f32 %v3036, %v3043
    %v3059 = vsub.f32 %v3039, %v3043
    %v3060 = vmul.f32 %v3044, 1.442695
    %v3061 = vpow.pop %v3060
    %v3062 = vmul.f32 %v3045, 1.442695
    %v3063 = vpow.pop %v3062
    %v3064 = vmul.f32 %v3046, 1.442695
    %v3065 = vpow.pop %v3064
    %v3066 = vmul.f32 %v3047, 1.442695
    %v3067 = vpow.pop %v3066
    %v3068 = vmul.f32 %v3048, 1.442695
    %v3069 = vpow.pop %v3068
    %v3070 = vmul.f32 %v3049, 1.442695
    %v3071 = vpow.pop %v3070
    %v3072 = vmul.f32 %v3050, 1.442695
    %v3073 = vpow.pop %v3072
    %v3074 = vmul.f32 %v3051, 1.442695
    %v3075 = vpow.pop %v3074
    %v3076 = vmul.f32 %v3052, 1.442695
    %v3077 = vpow.pop %v3076
    %v3078 = vmul.f32 %v3053, 1.442695
    %v3079 = vpow.pop %v3078
    %v3080 = vmul.f32 %v3054, 1.442695
    %v3081 = vpow.pop %v3080
    %v3082 = vmul.f32 %v3055, 1.442695
    %v3083 = vpow.pop %v3082
    %v3084 = vmul.f32 %v3056, 1.442695
    %v3085 = vpow.pop %v3084
    %v3086 = vmul.f32 %v3057, 1.442695
    %v3087 = vpow.pop %v3086
    %v3088 = vmul.f32 %v3058, 1.442695
    %v3089 = vpow.pop %v3088
    %v3090 = vmul.f32 %v3059, 1.442695
    %v3091 = vpow.pop %v3090
    %v3092 = vmul.f32 %v3061, %v224
    %v3093 = vmul.f32 %v3063, %v225
    %v3094 = vmul.f32 %v3065, %v226
    %v3095 = vmul.f32 %v3067, %v227
    %v3096 = vmul.f32 %v3069, %v228
    %v3097 = vmul.f32 %v3071, %v229
    %v3098 = vmul.f32 %v3073, %v230
    %v3099 = vmul.f32 %v3075, %v231
    %v3100 = vmul.f32 %v3077, %v232
    %v3101 = vmul.f32 %v3079, %v233
    %v3102 = vmul.f32 %v3081, %v234
    %v3103 = vmul.f32 %v3083, %v235
    %v3104 = vmul.f32 %v3085, %v236
    %v3105 = vmul.f32 %v3087, %v237
    %v3106 = vmul.f32 %v3089, %v238
    %v3107 = vmul.f32 %v3091, %v239
    %3108 = vadd.xlane.f32.xlu0 %v3092
    %v3109 = vpop.xlane.xlu0 %3108
    %3110 = vadd.xlane.f32.xlu0 %v3093
    %v3111 = vpop.xlane.xlu0 %3110
    %3112 = vadd.xlane.f32.xlu0 %v3094
    %v3113 = vpop.xlane.xlu0 %3112
    %3114 = vadd.xlane.f32.xlu0 %v3095
    %v3115 = vpop.xlane.xlu0 %3114
    %3116 = vadd.xlane.f32.xlu0 %v3096
    %v3117 = vpop.xlane.xlu0 %3116
    %3118 = vadd.xlane.f32.xlu0 %v3097
    %v3119 = vpop.xlane.xlu0 %3118
    %3120 = vadd.xlane.f32.xlu0 %v3098
    %v3121 = vpop.xlane.xlu0 %3120
    %3122 = vadd.xlane.f32.xlu0 %v3099
    %v3123 = vpop.xlane.xlu0 %3122
    %3124 = vadd.xlane.f32.xlu0 %v3100
    %v3125 = vpop.xlane.xlu0 %3124
    %3126 = vadd.xlane.f32.xlu0 %v3101
    %v3127 = vpop.xlane.xlu0 %3126
    %3128 = vadd.xlane.f32.xlu0 %v3102
    %v3129 = vpop.xlane.xlu0 %3128
    %3130 = vadd.xlane.f32.xlu0 %v3103
    %v3131 = vpop.xlane.xlu0 %3130
    %3132 = vadd.xlane.f32.xlu0 %v3104
    %v3133 = vpop.xlane.xlu0 %3132
    %3134 = vadd.xlane.f32.xlu0 %v3105
    %v3135 = vpop.xlane.xlu0 %3134
    %3136 = vadd.xlane.f32.xlu0 %v3106
    %v3137 = vpop.xlane.xlu0 %3136
    %3138 = vadd.xlane.f32.xlu0 %v3107
    %v3139 = vpop.xlane.xlu0 %3138
    %v3140 = vrcp.pop %v3109
    %v3141 = vrcp.pop %v3111
    %v3142 = vrcp.pop %v3113
    %v3143 = vrcp.pop %v3115
    %v3144 = vrcp.pop %v3117
    %v3145 = vrcp.pop %v3119
    %v3146 = vrcp.pop %v3121
    %v3147 = vrcp.pop %v3123
    %v3148 = vrcp.pop %v3125
    %v3149 = vrcp.pop %v3127
    %v3150 = vrcp.pop %v3129
    %v3151 = vrcp.pop %v3131
    %v3152 = vrcp.pop %v3133
    %v3153 = vrcp.pop %v3135
    %v3154 = vrcp.pop %v3137
    %v3155 = vrcp.pop %v3139
    %v3156 = vpack.c.bf16 %v3093, %v3092
    %v3157 = vpack.c.bf16 %v3095, %v3094
    %v3158 = vpack.c.bf16 %v3097, %v3096
    %v3159 = vpack.c.bf16 %v3099, %v3098
    %v3160 = vpack.c.bf16 %v3101, %v3100
    %v3161 = vpack.c.bf16 %v3103, %v3102
    %v3162 = vpack.c.bf16 %v3105, %v3104
    %v3163 = vpack.c.bf16 %v3107, %v3106
    %3164 = vrot.lane.b32.xlu0 %v1145, 64
    %v3165 = vpop.permute.xlu0 %3164
    %3166 = vrot.lane.b32.xlu0 %v1146, 64
    %v3167 = vpop.permute.xlu0 %3166
    %3168 = vrot.lane.b32.xlu0 %v1147, 64
    %v3169 = vpop.permute.xlu0 %3168
    %3170 = vrot.lane.b32.xlu0 %v1148, 64
    %v3171 = vpop.permute.xlu0 %3170
    %3172 = vrot.lane.b32.xlu0 %v1149, 64
    %v3173 = vpop.permute.xlu0 %3172
    %3174 = vrot.lane.b32.xlu0 %v1150, 64
    %v3175 = vpop.permute.xlu0 %3174
    %3176 = vrot.lane.b32.xlu0 %v1151, 64
    %v3177 = vpop.permute.xlu0 %3176
    %3178 = vrot.lane.b32.xlu0 %v1152, 64
    %v3179 = vpop.permute.xlu0 %3178
    %3188 = vmatprep.subr.bf16.mxu0 0
    %3189 = vmatpush1.bf16.msra.mxu0 %v3165
    %3190 = vmatprep.subr.bf16.mxu0 0
    %3191 = vmatpush1.bf16.msra.mxu0 %v3167
    %3192 = vmatprep.subr.bf16.mxu0 0
    %3193 = vmatpush1.bf16.msra.mxu0 %v3169
    %3194 = vmatprep.subr.bf16.mxu0 0
    %3195 = vmatpush1.bf16.msra.mxu0 %v3171
    %3196 = vmatprep.subr.bf16.mxu0 0
    %3197 = vmatpush1.bf16.msra.mxu0 %v3173
    %3198 = vmatprep.subr.bf16.mxu0 0
    %3199 = vmatpush1.bf16.msra.mxu0 %v3175
    %3200 = vmatprep.subr.bf16.mxu0 0
    %3201 = vmatpush1.bf16.msra.mxu0 %v3177
    %3202 = vmatprep.subr.bf16.mxu0 0
    %3203 = vmatpush1.bf16.msra.mxu0 %v3179
    %3204 = vmatprep.subr.bf16.mxu0 0
    %3205 = vmatpush1.bf16.msra.mxu0 0
    %3206 = vmatprep.subr.bf16.mxu0 0
    %3207 = vmatpush1.bf16.msra.mxu0 0
    %3208 = vmatprep.subr.bf16.mxu0 0
    %3209 = vmatpush1.bf16.msra.mxu0 0
    %3210 = vmatprep.subr.bf16.mxu0 0
    %3211 = vmatpush1.bf16.msra.mxu0 0
    %3212 = vmatprep.subr.bf16.mxu0 0
    %3213 = vmatpush1.bf16.msra.mxu0 0
    %3214 = vmatprep.subr.bf16.mxu0 0
    %3215 = vmatpush1.bf16.msra.mxu0 0
    %3216 = vmatprep.subr.bf16.mxu0 0
    %3217 = vmatpush1.bf16.msra.mxu0 0
    %3218 = vmatprep.subr.bf16.mxu0 0
    %3219 = vmatpush1.bf16.msra.mxu0 0
    %3220 = vmatprep.mubr.bf16.mxu0 0
    %3221 = vmatmul.mubr.bf16.gmra.mrb[0].mxu0 %v3156
    %v3222 = vpop.f32.mrb[0].mxu0
    %v3223 = vadd.f32 0.0, %v3222
    %v3224 = vpop.f32.mrb[0].mxu0
    %v3225 = vpop.f32.mrb[0].mxu0
    %v3226 = vadd.f32 0.0, %v3225
    %v3227 = vpop.f32.mrb[0].mxu0
    %3228 = vmatprep.mubr.bf16.mxu0 0
    %3229 = vmatmul.mubr.bf16.gmra.mrb[0].mxu0 %v3157
    %v3230 = vpop.f32.mrb[0].mxu0
    %v3231 = vadd.f32 0.0, %v3230
    %v3232 = vpop.f32.mrb[0].mxu0
    %v3233 = vpop.f32.mrb[0].mxu0
    %v3234 = vadd.f32 0.0, %v3233
    %v3235 = vpop.f32.mrb[0].mxu0
    %3236 = vmatprep.mubr.bf16.mxu0 0
    %3237 = vmatmul.mubr.bf16.gmra.mrb[0].mxu0 %v3158
    %v3238 = vpop.f32.mrb[0].mxu0
    %v3239 = vadd.f32 0.0, %v3238
    %v3240 = vpop.f32.mrb[0].mxu0
    %v3241 = vpop.f32.mrb[0].mxu0
    %v3242 = vadd.f32 0.0, %v3241
    %v3243 = vpop.f32.mrb[0].mxu0
    %3244 = vmatprep.mubr.bf16.mxu0 0
    %3245 = vmatmul.mubr.bf16.gmra.mrb[0].mxu0 %v3159
    %v3246 = vpop.f32.mrb[0].mxu0
    %v3247 = vadd.f32 0.0, %v3246
    %v3248 = vpop.f32.mrb[0].mxu0
    %v3249 = vpop.f32.mrb[0].mxu0
    %v3250 = vadd.f32 0.0, %v3249
    %v3251 = vpop.f32.mrb[0].mxu0
    %3252 = vmatprep.mubr.bf16.mxu0 0
    %3253 = vmatmul.mubr.bf16.gmra.mrb[0].mxu0 %v3160
    %v3254 = vpop.f32.mrb[0].mxu0
    %v3255 = vadd.f32 0.0, %v3254
    %v3256 = vpop.f32.mrb[0].mxu0
    %v3257 = vpop.f32.mrb[0].mxu0
    %v3258 = vadd.f32 0.0, %v3257
    %v3259 = vpop.f32.mrb[0].mxu0
    %3260 = vmatprep.mubr.bf16.mxu0 0
    %3261 = vmatmul.mubr.bf16.gmra.mrb[0].mxu0 %v3161
    %v3262 = vpop.f32.mrb[0].mxu0
    %v3263 = vadd.f32 0.0, %v3262
    %v3264 = vpop.f32.mrb[0].mxu0
    %v3265 = vpop.f32.mrb[0].mxu0
    %v3266 = vadd.f32 0.0, %v3265
    %v3267 = vpop.f32.mrb[0].mxu0
    %3268 = vmatprep.mubr.bf16.mxu0 0
    %3269 = vmatmul.mubr.bf16.gmra.mrb[0].mxu0 %v3162
    %v3270 = vpop.f32.mrb[0].mxu0
    %v3271 = vadd.f32 0.0, %v3270
    %v3272 = vpop.f32.mrb[0].mxu0
    %v3273 = vpop.f32.mrb[0].mxu0
    %v3274 = vadd.f32 0.0, %v3273
    %v3275 = vpop.f32.mrb[0].mxu0
    %3276 = vmatprep.mubr.bf16.mxu0 0
    %3277 = vmatmul.mubr.bf16.gmra.mrb[0].mxu0 %v3163
    %v3278 = vpop.f32.mrb[0].mxu0
    %v3279 = vadd.f32 0.0, %v3278
    %v3280 = vpop.f32.mrb[0].mxu0
    %v3281 = vpop.f32.mrb[0].mxu0
    %v3282 = vadd.f32 0.0, %v3281
    %v3283 = vpop.f32.mrb[0].mxu0
    %3284 = vdwg.mxu0
    %v3285 = vmul.f32 %v3223, %v3140
    %v3286 = vmul.f32 %v3226, %v3141
    %v3287 = vmul.f32 %v3231, %v3142
    %v3288 = vmul.f32 %v3234, %v3143
    %v3289 = vmul.f32 %v3239, %v3144
    %v3290 = vmul.f32 %v3242, %v3145
    %v3291 = vmul.f32 %v3247, %v3146
    %v3292 = vmul.f32 %v3250, %v3147
    %v3293 = vmul.f32 %v3255, %v3148
    %v3294 = vmul.f32 %v3258, %v3149
    %v3295 = vmul.f32 %v3263, %v3150
    %v3296 = vmul.f32 %v3266, %v3151
    %v3297 = vmul.f32 %v3271, %v3152
    %v3298 = vmul.f32 %v3274, %v3153
    %v3299 = vmul.f32 %v3279, %v3154
    %v3300 = vmul.f32 %v3282, %v3155
    %3301 = vrot.lane.b32.xlu0 %v1113, 48
    %v3302 = vpop.permute.xlu0 %3301
    %3303 = vrot.lane.b32.xlu0 %v1114, 48
    %v3304 = vpop.permute.xlu0 %3303
    %3305 = vrot.lane.b32.xlu0 %v1115, 48
    %v3306 = vpop.permute.xlu0 %3305
    %3307 = vrot.lane.b32.xlu0 %v1116, 48
    %v3308 = vpop.permute.xlu0 %3307
    %3309 = vrot.lane.b32.xlu0 %v1117, 48
    %v3310 = vpop.permute.xlu0 %3309
    %3311 = vrot.lane.b32.xlu0 %v1118, 48
    %v3312 = vpop.permute.xlu0 %3311
    %3313 = vrot.lane.b32.xlu0 %v1119, 48
    %v3314 = vpop.permute.xlu0 %3313
    %3315 = vrot.lane.b32.xlu0 %v1120, 48
    %v3316 = vpop.permute.xlu0 %3315
    %3317 = vrot.lane.b32.xlu0 %v1137, 48
    %v3318 = vpop.permute.xlu0 %3317
    %3319 = vrot.lane.b32.xlu0 %v1138, 48
    %v3320 = vpop.permute.xlu0 %3319
    %3321 = vrot.lane.b32.xlu0 %v1139, 48
    %v3322 = vpop.permute.xlu0 %3321
    %3323 = vrot.lane.b32.xlu0 %v1140, 48
    %v3324 = vpop.permute.xlu0 %3323
    %3325 = vrot.lane.b32.xlu0 %v1141, 48
    %v3326 = vpop.permute.xlu0 %3325
    %3327 = vrot.lane.b32.xlu0 %v1142, 48
    %v3328 = vpop.permute.xlu0 %3327
    %3329 = vrot.lane.b32.xlu0 %v1143, 48
    %v3330 = vpop.permute.xlu0 %3329
    %3331 = vrot.lane.b32.xlu0 %v1144, 48
    %v3332 = vpop.permute.xlu0 %3331
    %v3334 = vsel %vm864, %v3302, 0
    %v3337 = vsel %vm864, %v3304, 0
    %v3340 = vsel %vm864, %v3306, 0
    %v3343 = vsel %vm864, %v3308, 0
    %v3346 = vsel %vm864, %v3310, 0
    %v3349 = vsel %vm864, %v3312, 0
    %v3352 = vsel %vm864, %v3314, 0
    %v3355 = vsel %vm864, %v3316, 0
    %v3358 = vsel %vm864, %v3318, 0
    %v3361 = vsel %vm864, %v3320, 0
    %v3364 = vsel %vm864, %v3322, 0
    %v3367 = vsel %vm864, %v3324, 0
    %v3370 = vsel %vm864, %v3326, 0
    %v3373 = vsel %vm864, %v3328, 0
    %v3376 = vsel %vm864, %v3330, 0
    %v3379 = vsel %vm864, %v3332, 0
    %3381 = vmatprep.subr.bf16.mxu0 0
    %3382 = vmatpush1.bf16.xpose.msra.mxu0 %v3358
    %3383 = vmatprep.subr.bf16.mxu0 0
    %3384 = vmatpush1.bf16.xpose.msra.mxu0 %v3361
    %3385 = vmatprep.subr.bf16.mxu0 0
    %3386 = vmatpush1.bf16.xpose.msra.mxu0 %v3364
    %3387 = vmatprep.subr.bf16.mxu0 0
    %3388 = vmatpush1.bf16.xpose.msra.mxu0 %v3367
    %3389 = vmatprep.subr.bf16.mxu0 0
    %3390 = vmatpush1.bf16.xpose.msra.mxu0 %v3370
    %3391 = vmatprep.subr.bf16.mxu0 0
    %3392 = vmatpush1.bf16.xpose.msra.mxu0 %v3373
    %3393 = vmatprep.subr.bf16.mxu0 0
    %3394 = vmatpush1.bf16.xpose.msra.mxu0 %v3376
    %3395 = vmatprep.subr.bf16.mxu0 0
    %3396 = vmatpush1.bf16.xpose.msra.mxu0 %v3379
    %3397 = vmatprep.subr.bf16.mxu0 0
    %3398 = vmatpush1.bf16.xpose.msra.mxu0 0
    %3399 = vmatprep.subr.bf16.mxu0 0
    %3400 = vmatpush1.bf16.xpose.msra.mxu0 0
    %3401 = vmatprep.subr.bf16.mxu0 0
    %3402 = vmatpush1.bf16.xpose.msra.mxu0 0
    %3403 = vmatprep.subr.bf16.mxu0 0
    %3404 = vmatpush1.bf16.xpose.msra.mxu0 0
    %3405 = vmatprep.subr.bf16.mxu0 0
    %3406 = vmatpush1.bf16.xpose.msra.mxu0 0
    %3407 = vmatprep.subr.bf16.mxu0 0
    %3408 = vmatpush1.bf16.xpose.msra.mxu0 0
    %3409 = vmatprep.subr.bf16.mxu0 0
    %3410 = vmatpush1.bf16.xpose.msra.mxu0 0
    %3411 = vmatprep.subr.bf16.mxu0 0
    %3412 = vmatpush1.bf16.xpose.msra.mxu0 0
    %3413 = vmatprep.mubr.bf16.mxu0 0
    %3414 = vmatmul.mubr.bf16.gmra.mrb[0].mxu0 %v3334
    %v3415 = vpop.f32.mrb[0].mxu0
    %v3416 = vadd.f32 0.0, %v3415
    %v3417 = vpop.f32.mrb[0].mxu0
    %v3418 = vpop.f32.mrb[0].mxu0
    %v3419 = vadd.f32 0.0, %v3418
    %v3420 = vpop.f32.mrb[0].mxu0
    %3421 = vmatprep.mubr.bf16.mxu0 0
    %3422 = vmatmul.mubr.bf16.gmra.mrb[0].mxu0 %v3337
    %v3423 = vpop.f32.mrb[0].mxu0
    %v3424 = vadd.f32 0.0, %v3423
    %v3425 = vpop.f32.mrb[0].mxu0
    %v3426 = vpop.f32.mrb[0].mxu0
    %v3427 = vadd.f32 0.0, %v3426
    %v3428 = vpop.f32.mrb[0].mxu0
    %3429 = vmatprep.mubr.bf16.mxu0 0
    %3430 = vmatmul.mubr.bf16.gmra.mrb[0].mxu0 %v3340
    %v3431 = vpop.f32.mrb[0].mxu0
    %v3432 = vadd.f32 0.0, %v3431
    %v3433 = vpop.f32.mrb[0].mxu0
    %v3434 = vpop.f32.mrb[0].mxu0
    %v3435 = vadd.f32 0.0, %v3434
    %v3436 = vpop.f32.mrb[0].mxu0
    %3437 = vmatprep.mubr.bf16.mxu0 0
    %3438 = vmatmul.mubr.bf16.gmra.mrb[0].mxu0 %v3343
    %v3439 = vpop.f32.mrb[0].mxu0
    %v3440 = vadd.f32 0.0, %v3439
    %v3441 = vpop.f32.mrb[0].mxu0
    %v3442 = vpop.f32.mrb[0].mxu0
    %v3443 = vadd.f32 0.0, %v3442
    %v3444 = vpop.f32.mrb[0].mxu0
    %3445 = vmatprep.mubr.bf16.mxu0 0
    %3446 = vmatmul.mubr.bf16.gmra.mrb[0].mxu0 %v3346
    %v3447 = vpop.f32.mrb[0].mxu0
    %v3448 = vadd.f32 0.0, %v3447
    %v3449 = vpop.f32.mrb[0].mxu0
    %v3450 = vpop.f32.mrb[0].mxu0
    %v3451 = vadd.f32 0.0, %v3450
    %v3452 = vpop.f32.mrb[0].mxu0
    %3453 = vmatprep.mubr.bf16.mxu0 0
    %3454 = vmatmul.mubr.bf16.gmra.mrb[0].mxu0 %v3349
    %v3455 = vpop.f32.mrb[0].mxu0
    %v3456 = vadd.f32 0.0, %v3455
    %v3457 = vpop.f32.mrb[0].mxu0
    %v3458 = vpop.f32.mrb[0].mxu0
    %v3459 = vadd.f32 0.0, %v3458
    %v3460 = vpop.f32.mrb[0].mxu0
    %3461 = vmatprep.mubr.bf16.mxu0 0
    %3462 = vmatmul.mubr.bf16.gmra.mrb[0].mxu0 %v3352
    %v3463 = vpop.f32.mrb[0].mxu0
    %v3464 = vadd.f32 0.0, %v3463
    %v3465 = vpop.f32.mrb[0].mxu0
    %v3466 = vpop.f32.mrb[0].mxu0
    %v3467 = vadd.f32 0.0, %v3466
    %v3468 = vpop.f32.mrb[0].mxu0
    %3469 = vmatprep.mubr.bf16.mxu0 0
    %3470 = vmatmul.mubr.bf16.gmra.mrb[0].mxu0 %v3355
    %v3471 = vpop.f32.mrb[0].mxu0
    %v3472 = vadd.f32 0.0, %v3471
    %v3473 = vpop.f32.mrb[0].mxu0
    %v3474 = vpop.f32.mrb[0].mxu0
    %v3475 = vadd.f32 0.0, %v3474
    %v3476 = vpop.f32.mrb[0].mxu0
    %3477 = vdwg.mxu0
    %s3478 = sld [smem:[#allocation2 + $0x5]]
    %v3479 = vstv %s3478
    %v3480 = vsub.f32 %v3416, %v3479
    %v3481 = vsub.f32 %v3419, %v3479
    %v3482 = vsub.f32 %v3424, %v3479
    %v3483 = vsub.f32 %v3427, %v3479
    %v3484 = vsub.f32 %v3432, %v3479
    %v3485 = vsub.f32 %v3435, %v3479
    %v3486 = vsub.f32 %v3440, %v3479
    %v3487 = vsub.f32 %v3443, %v3479
    %v3488 = vsub.f32 %v3448, %v3479
    %v3489 = vsub.f32 %v3451, %v3479
    %v3490 = vsub.f32 %v3456, %v3479
    %v3491 = vsub.f32 %v3459, %v3479
    %v3492 = vsub.f32 %v3464, %v3479
    %v3493 = vsub.f32 %v3467, %v3479
    %v3494 = vsub.f32 %v3472, %v3479
    %v3495 = vsub.f32 %v3475, %v3479
    %v3496 = vmul.f32 %v3480, 1.442695
    %v3497 = vpow.pop %v3496
    %v3498 = vmul.f32 %v3481, 1.442695
    %v3499 = vpow.pop %v3498
    %v3500 = vmul.f32 %v3482, 1.442695
    %v3501 = vpow.pop %v3500
    %v3502 = vmul.f32 %v3483, 1.442695
    %v3503 = vpow.pop %v3502
    %v3504 = vmul.f32 %v3484, 1.442695
    %v3505 = vpow.pop %v3504
    %v3506 = vmul.f32 %v3485, 1.442695
    %v3507 = vpow.pop %v3506
    %v3508 = vmul.f32 %v3486, 1.442695
    %v3509 = vpow.pop %v3508
    %v3510 = vmul.f32 %v3487, 1.442695
    %v3511 = vpow.pop %v3510
    %v3512 = vmul.f32 %v3488, 1.442695
    %v3513 = vpow.pop %v3512
    %v3514 = vmul.f32 %v3489, 1.442695
    %v3515 = vpow.pop %v3514
    %v3516 = vmul.f32 %v3490, 1.442695
    %v3517 = vpow.pop %v3516
    %v3518 = vmul.f32 %v3491, 1.442695
    %v3519 = vpow.pop %v3518
    %v3520 = vmul.f32 %v3492, 1.442695
    %v3521 = vpow.pop %v3520
    %v3522 = vmul.f32 %v3493, 1.442695
    %v3523 = vpow.pop %v3522
    %v3524 = vmul.f32 %v3494, 1.442695
    %v3525 = vpow.pop %v3524
    %v3526 = vmul.f32 %v3495, 1.442695
    %v3527 = vpow.pop %v3526
    %v3528 = vmul.f32 %v3497, %v224
    %v3529 = vmul.f32 %v3499, %v225
    %v3530 = vmul.f32 %v3501, %v226
    %v3531 = vmul.f32 %v3503, %v227
    %v3532 = vmul.f32 %v3505, %v228
    %v3533 = vmul.f32 %v3507, %v229
    %v3534 = vmul.f32 %v3509, %v230
    %v3535 = vmul.f32 %v3511, %v231
    %v3536 = vmul.f32 %v3513, %v232
    %v3537 = vmul.f32 %v3515, %v233
    %v3538 = vmul.f32 %v3517, %v234
    %v3539 = vmul.f32 %v3519, %v235
    %v3540 = vmul.f32 %v3521, %v236
    %v3541 = vmul.f32 %v3523, %v237
    %v3542 = vmul.f32 %v3525, %v238
    %v3543 = vmul.f32 %v3527, %v239
    %3544 = vadd.xlane.f32.xlu0 %v3528
    %v3545 = vpop.xlane.xlu0 %3544
    %3546 = vadd.xlane.f32.xlu0 %v3529
    %v3547 = vpop.xlane.xlu0 %3546
    %3548 = vadd.xlane.f32.xlu0 %v3530
    %v3549 = vpop.xlane.xlu0 %3548
    %3550 = vadd.xlane.f32.xlu0 %v3531
    %v3551 = vpop.xlane.xlu0 %3550
    %3552 = vadd.xlane.f32.xlu0 %v3532
    %v3553 = vpop.xlane.xlu0 %3552
    %3554 = vadd.xlane.f32.xlu0 %v3533
    %v3555 = vpop.xlane.xlu0 %3554
    %3556 = vadd.xlane.f32.xlu0 %v3534
    %v3557 = vpop.xlane.xlu0 %3556
    %3558 = vadd.xlane.f32.xlu0 %v3535
    %v3559 = vpop.xlane.xlu0 %3558
    %3560 = vadd.xlane.f32.xlu0 %v3536
    %v3561 = vpop.xlane.xlu0 %3560
    %3562 = vadd.xlane.f32.xlu0 %v3537
    %v3563 = vpop.xlane.xlu0 %3562
    %3564 = vadd.xlane.f32.xlu0 %v3538
    %v3565 = vpop.xlane.xlu0 %3564
    %3566 = vadd.xlane.f32.xlu0 %v3539
    %v3567 = vpop.xlane.xlu0 %3566
    %3568 = vadd.xlane.f32.xlu0 %v3540
    %v3569 = vpop.xlane.xlu0 %3568
    %3570 = vadd.xlane.f32.xlu0 %v3541
    %v3571 = vpop.xlane.xlu0 %3570
    %3572 = vadd.xlane.f32.xlu0 %v3542
    %v3573 = vpop.xlane.xlu0 %3572
    %3574 = vadd.xlane.f32.xlu0 %v3543
    %v3575 = vpop.xlane.xlu0 %3574
    %v3576 = vrcp.pop %v3545
    %v3577 = vrcp.pop %v3547
    %v3578 = vrcp.pop %v3549
    %v3579 = vrcp.pop %v3551
    %v3580 = vrcp.pop %v3553
    %v3581 = vrcp.pop %v3555
    %v3582 = vrcp.pop %v3557
    %v3583 = vrcp.pop %v3559
    %v3584 = vrcp.pop %v3561
    %v3585 = vrcp.pop %v3563
    %v3586 = vrcp.pop %v3565
    %v3587 = vrcp.pop %v3567
    %v3588 = vrcp.pop %v3569
    %v3589 = vrcp.pop %v3571
    %v3590 = vrcp.pop %v3573
    %v3591 = vrcp.pop %v3575
    %v3592 = vpack.c.bf16 %v3529, %v3528
    %v3593 = vpack.c.bf16 %v3531, %v3530
    %v3594 = vpack.c.bf16 %v3533, %v3532
    %v3595 = vpack.c.bf16 %v3535, %v3534
    %v3596 = vpack.c.bf16 %v3537, %v3536
    %v3597 = vpack.c.bf16 %v3539, %v3538
    %v3598 = vpack.c.bf16 %v3541, %v3540
    %v3599 = vpack.c.bf16 %v3543, %v3542
    %3600 = vrot.lane.b32.xlu0 %v1145, 48
    %v3601 = vpop.permute.xlu0 %3600
    %3602 = vrot.lane.b32.xlu0 %v1146, 48
    %v3603 = vpop.permute.xlu0 %3602
    %3604 = vrot.lane.b32.xlu0 %v1147, 48
    %v3605 = vpop.permute.xlu0 %3604
    %3606 = vrot.lane.b32.xlu0 %v1148, 48
    %v3607 = vpop.permute.xlu0 %3606
    %3608 = vrot.lane.b32.xlu0 %v1149, 48
    %v3609 = vpop.permute.xlu0 %3608
    %3610 = vrot.lane.b32.xlu0 %v1150, 48
    %v3611 = vpop.permute.xlu0 %3610
    %3612 = vrot.lane.b32.xlu0 %v1151, 48
    %v3613 = vpop.permute.xlu0 %3612
    %3614 = vrot.lane.b32.xlu0 %v1152, 48
    %v3615 = vpop.permute.xlu0 %3614
    %3624 = vmatprep.subr.bf16.mxu0 0
    %3625 = vmatpush1.bf16.msra.mxu0 %v3601
    %3626 = vmatprep.subr.bf16.mxu0 0
    %3627 = vmatpush1.bf16.msra.mxu0 %v3603
    %3628 = vmatprep.subr.bf16.mxu0 0
    %3629 = vmatpush1.bf16.msra.mxu0 %v3605
    %3630 = vmatprep.subr.bf16.mxu0 0
    %3631 = vmatpush1.bf16.msra.mxu0 %v3607
    %3632 = vmatprep.subr.bf16.mxu0 0
    %3633 = vmatpush1.bf16.msra.mxu0 %v3609
    %3634 = vmatprep.subr.bf16.mxu0 0
    %3635 = vmatpush1.bf16.msra.mxu0 %v3611
    %3636 = vmatprep.subr.bf16.mxu0 0
    %3637 = vmatpush1.bf16.msra.mxu0 %v3613
    %3638 = vmatprep.subr.bf16.mxu0 0
    %3639 = vmatpush1.bf16.msra.mxu0 %v3615
    %3640 = vmatprep.subr.bf16.mxu0 0
    %3641 = vmatpush1.bf16.msra.mxu0 0
    %3642 = vmatprep.subr.bf16.mxu0 0
    %3643 = vmatpush1.bf16.msra.mxu0 0
    %3644 = vmatprep.subr.bf16.mxu0 0
    %3645 = vmatpush1.bf16.msra.mxu0 0
    %3646 = vmatprep.subr.bf16.mxu0 0
    %3647 = vmatpush1.bf16.msra.mxu0 0
    %3648 = vmatprep.subr.bf16.mxu0 0
    %3649 = vmatpush1.bf16.msra.mxu0 0
    %3650 = vmatprep.subr.bf16.mxu0 0
    %3651 = vmatpush1.bf16.msra.mxu0 0
    %3652 = vmatprep.subr.bf16.mxu0 0
    %3653 = vmatpush1.bf16.msra.mxu0 0
    %3654 = vmatprep.subr.bf16.mxu0 0
    %3655 = vmatpush1.bf16.msra.mxu0 0
    %3656 = vmatprep.mubr.bf16.mxu0 0
    %3657 = vmatmul.mubr.bf16.gmra.mrb[0].mxu0 %v3592
    %v3658 = vpop.f32.mrb[0].mxu0
    %v3659 = vadd.f32 0.0, %v3658
    %v3660 = vpop.f32.mrb[0].mxu0
    %v3661 = vpop.f32.mrb[0].mxu0
    %v3662 = vadd.f32 0.0, %v3661
    %v3663 = vpop.f32.mrb[0].mxu0
    %3664 = vmatprep.mubr.bf16.mxu0 0
    %3665 = vmatmul.mubr.bf16.gmra.mrb[0].mxu0 %v3593
    %v3666 = vpop.f32.mrb[0].mxu0
    %v3667 = vadd.f32 0.0, %v3666
    %v3668 = vpop.f32.mrb[0].mxu0
    %v3669 = vpop.f32.mrb[0].mxu0
    %v3670 = vadd.f32 0.0, %v3669
    %v3671 = vpop.f32.mrb[0].mxu0
    %3672 = vmatprep.mubr.bf16.mxu0 0
    %3673 = vmatmul.mubr.bf16.gmra.mrb[0].mxu0 %v3594
    %v3674 = vpop.f32.mrb[0].mxu0
    %v3675 = vadd.f32 0.0, %v3674
    %v3676 = vpop.f32.mrb[0].mxu0
    %v3677 = vpop.f32.mrb[0].mxu0
    %v3678 = vadd.f32 0.0, %v3677
    %v3679 = vpop.f32.mrb[0].mxu0
    %3680 = vmatprep.mubr.bf16.mxu0 0
    %3681 = vmatmul.mubr.bf16.gmra.mrb[0].mxu0 %v3595
    %v3682 = vpop.f32.mrb[0].mxu0
    %v3683 = vadd.f32 0.0, %v3682
    %v3684 = vpop.f32.mrb[0].mxu0
    %v3685 = vpop.f32.mrb[0].mxu0
    %v3686 = vadd.f32 0.0, %v3685
    %v3687 = vpop.f32.mrb[0].mxu0
    %3688 = vmatprep.mubr.bf16.mxu0 0
    %3689 = vmatmul.mubr.bf16.gmra.mrb[0].mxu0 %v3596
    %v3690 = vpop.f32.mrb[0].mxu0
    %v3691 = vadd.f32 0.0, %v3690
    %v3692 = vpop.f32.mrb[0].mxu0
    %v3693 = vpop.f32.mrb[0].mxu0
    %v3694 = vadd.f32 0.0, %v3693
    %v3695 = vpop.f32.mrb[0].mxu0
    %3696 = vmatprep.mubr.bf16.mxu0 0
    %3697 = vmatmul.mubr.bf16.gmra.mrb[0].mxu0 %v3597
    %v3698 = vpop.f32.mrb[0].mxu0
    %v3699 = vadd.f32 0.0, %v3698
    %v3700 = vpop.f32.mrb[0].mxu0
    %v3701 = vpop.f32.mrb[0].mxu0
    %v3702 = vadd.f32 0.0, %v3701
    %v3703 = vpop.f32.mrb[0].mxu0
    %3704 = vmatprep.mubr.bf16.mxu0 0
    %3705 = vmatmul.mubr.bf16.gmra.mrb[0].mxu0 %v3598
    %v3706 = vpop.f32.mrb[0].mxu0
    %v3707 = vadd.f32 0.0, %v3706
    %v3708 = vpop.f32.mrb[0].mxu0
    %v3709 = vpop.f32.mrb[0].mxu0
    %v3710 = vadd.f32 0.0, %v3709
    %v3711 = vpop.f32.mrb[0].mxu0
    %3712 = vmatprep.mubr.bf16.mxu0 0
    %3713 = vmatmul.mubr.bf16.gmra.mrb[0].mxu0 %v3599
    %v3714 = vpop.f32.mrb[0].mxu0
    %v3715 = vadd.f32 0.0, %v3714
    %v3716 = vpop.f32.mrb[0].mxu0
    %v3717 = vpop.f32.mrb[0].mxu0
    %v3718 = vadd.f32 0.0, %v3717
    %v3719 = vpop.f32.mrb[0].mxu0
    %3720 = vdwg.mxu0
    %v3721 = vmul.f32 %v3659, %v3576
    %v3722 = vmul.f32 %v3662, %v3577
    %v3723 = vmul.f32 %v3667, %v3578
    %v3724 = vmul.f32 %v3670, %v3579
    %v3725 = vmul.f32 %v3675, %v3580
    %v3726 = vmul.f32 %v3678, %v3581
    %v3727 = vmul.f32 %v3683, %v3582
    %v3728 = vmul.f32 %v3686, %v3583
    %v3729 = vmul.f32 %v3691, %v3584
    %v3730 = vmul.f32 %v3694, %v3585
    %v3731 = vmul.f32 %v3699, %v3586
    %v3732 = vmul.f32 %v3702, %v3587
    %v3733 = vmul.f32 %v3707, %v3588
    %v3734 = vmul.f32 %v3710, %v3589
    %v3735 = vmul.f32 %v3715, %v3590
    %v3736 = vmul.f32 %v3718, %v3591
    %3737 = vrot.lane.b32.xlu0 %v1113, 32
    %v3738 = vpop.permute.xlu0 %3737
    %3739 = vrot.lane.b32.xlu0 %v1114, 32
    %v3740 = vpop.permute.xlu0 %3739
    %3741 = vrot.lane.b32.xlu0 %v1115, 32
    %v3742 = vpop.permute.xlu0 %3741
    %3743 = vrot.lane.b32.xlu0 %v1116, 32
    %v3744 = vpop.permute.xlu0 %3743
    %3745 = vrot.lane.b32.xlu0 %v1117, 32
    %v3746 = vpop.permute.xlu0 %3745
    %3747 = vrot.lane.b32.xlu0 %v1118, 32
    %v3748 = vpop.permute.xlu0 %3747
    %3749 = vrot.lane.b32.xlu0 %v1119, 32
    %v3750 = vpop.permute.xlu0 %3749
    %3751 = vrot.lane.b32.xlu0 %v1120, 32
    %v3752 = vpop.permute.xlu0 %3751
    %3753 = vrot.lane.b32.xlu0 %v1137, 32
    %v3754 = vpop.permute.xlu0 %3753
    %3755 = vrot.lane.b32.xlu0 %v1138, 32
    %v3756 = vpop.permute.xlu0 %3755
    %3757 = vrot.lane.b32.xlu0 %v1139, 32
    %v3758 = vpop.permute.xlu0 %3757
    %3759 = vrot.lane.b32.xlu0 %v1140, 32
    %v3760 = vpop.permute.xlu0 %3759
    %3761 = vrot.lane.b32.xlu0 %v1141, 32
    %v3762 = vpop.permute.xlu0 %3761
    %3763 = vrot.lane.b32.xlu0 %v1142, 32
    %v3764 = vpop.permute.xlu0 %3763
    %3765 = vrot.lane.b32.xlu0 %v1143, 32
    %v3766 = vpop.permute.xlu0 %3765
    %3767 = vrot.lane.b32.xlu0 %v1144, 32
    %v3768 = vpop.permute.xlu0 %3767
    %v3770 = vsel %vm864, %v3738, 0
    %v3773 = vsel %vm864, %v3740, 0
    %v3776 = vsel %vm864, %v3742, 0
    %v3779 = vsel %vm864, %v3744, 0
    %v3782 = vsel %vm864, %v3746, 0
    %v3785 = vsel %vm864, %v3748, 0
    %v3788 = vsel %vm864, %v3750, 0
    %v3791 = vsel %vm864, %v3752, 0
    %v3794 = vsel %vm864, %v3754, 0
    %v3797 = vsel %vm864, %v3756, 0
    %v3800 = vsel %vm864, %v3758, 0
    %v3803 = vsel %vm864, %v3760, 0
    %v3806 = vsel %vm864, %v3762, 0
    %v3809 = vsel %vm864, %v3764, 0
    %v3812 = vsel %vm864, %v3766, 0
    %v3815 = vsel %vm864, %v3768, 0
    %3817 = vmatprep.subr.bf16.mxu0 0
    %3818 = vmatpush1.bf16.xpose.msra.mxu0 %v3794
    %3819 = vmatprep.subr.bf16.mxu0 0
    %3820 = vmatpush1.bf16.xpose.msra.mxu0 %v3797
    %3821 = vmatprep.subr.bf16.mxu0 0
    %3822 = vmatpush1.bf16.xpose.msra.mxu0 %v3800
    %3823 = vmatprep.subr.bf16.mxu0 0
    %3824 = vmatpush1.bf16.xpose.msra.mxu0 %v3803
    %3825 = vmatprep.subr.bf16.mxu0 0
    %3826 = vmatpush1.bf16.xpose.msra.mxu0 %v3806
    %3827 = vmatprep.subr.bf16.mxu0 0
    %3828 = vmatpush1.bf16.xpose.msra.mxu0 %v3809
    %3829 = vmatprep.subr.bf16.mxu0 0
    %3830 = vmatpush1.bf16.xpose.msra.mxu0 %v3812
    %3831 = vmatprep.subr.bf16.mxu0 0
    %3832 = vmatpush1.bf16.xpose.msra.mxu0 %v3815
    %3833 = vmatprep.subr.bf16.mxu0 0
    %3834 = vmatpush1.bf16.xpose.msra.mxu0 0
    %3835 = vmatprep.subr.bf16.mxu0 0
    %3836 = vmatpush1.bf16.xpose.msra.mxu0 0
    %3837 = vmatprep.subr.bf16.mxu0 0
    %3838 = vmatpush1.bf16.xpose.msra.mxu0 0
    %3839 = vmatprep.subr.bf16.mxu0 0
    %3840 = vmatpush1.bf16.xpose.msra.mxu0 0
    %3841 = vmatprep.subr.bf16.mxu0 0
    %3842 = vmatpush1.bf16.xpose.msra.mxu0 0
    %3843 = vmatprep.subr.bf16.mxu0 0
    %3844 = vmatpush1.bf16.xpose.msra.mxu0 0
    %3845 = vmatprep.subr.bf16.mxu0 0
    %3846 = vmatpush1.bf16.xpose.msra.mxu0 0
    %3847 = vmatprep.subr.bf16.mxu0 0
    %3848 = vmatpush1.bf16.xpose.msra.mxu0 0
    %3849 = vmatprep.mubr.bf16.mxu0 0
    %3850 = vmatmul.mubr.bf16.gmra.mrb[0].mxu0 %v3770
    %v3851 = vpop.f32.mrb[0].mxu0
    %v3852 = vadd.f32 0.0, %v3851
    %v3853 = vpop.f32.mrb[0].mxu0
    %v3854 = vpop.f32.mrb[0].mxu0
    %v3855 = vadd.f32 0.0, %v3854
    %v3856 = vpop.f32.mrb[0].mxu0
    %3857 = vmatprep.mubr.bf16.mxu0 0
    %3858 = vmatmul.mubr.bf16.gmra.mrb[0].mxu0 %v3773
    %v3859 = vpop.f32.mrb[0].mxu0
    %v3860 = vadd.f32 0.0, %v3859
    %v3861 = vpop.f32.mrb[0].mxu0
    %v3862 = vpop.f32.mrb[0].mxu0
    %v3863 = vadd.f32 0.0, %v3862
    %v3864 = vpop.f32.mrb[0].mxu0
    %3865 = vmatprep.mubr.bf16.mxu0 0
    %3866 = vmatmul.mubr.bf16.gmra.mrb[0].mxu0 %v3776
    %v3867 = vpop.f32.mrb[0].mxu0
    %v3868 = vadd.f32 0.0, %v3867
    %v3869 = vpop.f32.mrb[0].mxu0
    %v3870 = vpop.f32.mrb[0].mxu0
    %v3871 = vadd.f32 0.0, %v3870
    %v3872 = vpop.f32.mrb[0].mxu0
    %3873 = vmatprep.mubr.bf16.mxu0 0
    %3874 = vmatmul.mubr.bf16.gmra.mrb[0].mxu0 %v3779
    %v3875 = vpop.f32.mrb[0].mxu0
    %v3876 = vadd.f32 0.0, %v3875
    %v3877 = vpop.f32.mrb[0].mxu0
    %v3878 = vpop.f32.mrb[0].mxu0
    %v3879 = vadd.f32 0.0, %v3878
    %v3880 = vpop.f32.mrb[0].mxu0
    %3881 = vmatprep.mubr.bf16.mxu0 0
    %3882 = vmatmul.mubr.bf16.gmra.mrb[0].mxu0 %v3782
    %v3883 = vpop.f32.mrb[0].mxu0
    %v3884 = vadd.f32 0.0, %v3883
    %v3885 = vpop.f32.mrb[0].mxu0
    %v3886 = vpop.f32.mrb[0].mxu0
    %v3887 = vadd.f32 0.0, %v3886
    %v3888 = vpop.f32.mrb[0].mxu0
    %3889 = vmatprep.mubr.bf16.mxu0 0
    %3890 = vmatmul.mubr.bf16.gmra.mrb[0].mxu0 %v3785
    %v3891 = vpop.f32.mrb[0].mxu0
    %v3892 = vadd.f32 0.0, %v3891
    %v3893 = vpop.f32.mrb[0].mxu0
    %v3894 = vpop.f32.mrb[0].mxu0
    %v3895 = vadd.f32 0.0, %v3894
    %v3896 = vpop.f32.mrb[0].mxu0
    %3897 = vmatprep.mubr.bf16.mxu0 0
    %3898 = vmatmul.mubr.bf16.gmra.mrb[0].mxu0 %v3788
    %v3899 = vpop.f32.mrb[0].mxu0
    %v3900 = vadd.f32 0.0, %v3899
    %v3901 = vpop.f32.mrb[0].mxu0
    %v3902 = vpop.f32.mrb[0].mxu0
    %v3903 = vadd.f32 0.0, %v3902
    %v3904 = vpop.f32.mrb[0].mxu0
    %3905 = vmatprep.mubr.bf16.mxu0 0
    %3906 = vmatmul.mubr.bf16.gmra.mrb[0].mxu0 %v3791
    %v3907 = vpop.f32.mrb[0].mxu0
    %v3908 = vadd.f32 0.0, %v3907
    %v3909 = vpop.f32.mrb[0].mxu0
    %v3910 = vpop.f32.mrb[0].mxu0
    %v3911 = vadd.f32 0.0, %v3910
    %v3912 = vpop.f32.mrb[0].mxu0
    %3913 = vdwg.mxu0
    %s3914 = sld [smem:[#allocation2 + $0x6]]
    %v3915 = vstv %s3914
    %v3916 = vsub.f32 %v3852, %v3915
    %v3917 = vsub.f32 %v3855, %v3915
    %v3918 = vsub.f32 %v3860, %v3915
    %v3919 = vsub.f32 %v3863, %v3915
    %v3920 = vsub.f32 %v3868, %v3915
    %v3921 = vsub.f32 %v3871, %v3915
    %v3922 = vsub.f32 %v3876, %v3915
    %v3923 = vsub.f32 %v3879, %v3915
    %v3924 = vsub.f32 %v3884, %v3915
    %v3925 = vsub.f32 %v3887, %v3915
    %v3926 = vsub.f32 %v3892, %v3915
    %v3927 = vsub.f32 %v3895, %v3915
    %v3928 = vsub.f32 %v3900, %v3915
    %v3929 = vsub.f32 %v3903, %v3915
    %v3930 = vsub.f32 %v3908, %v3915
    %v3931 = vsub.f32 %v3911, %v3915
    %v3932 = vmul.f32 %v3916, 1.442695
    %v3933 = vpow.pop %v3932
    %v3934 = vmul.f32 %v3917, 1.442695
    %v3935 = vpow.pop %v3934
    %v3936 = vmul.f32 %v3918, 1.442695
    %v3937 = vpow.pop %v3936
    %v3938 = vmul.f32 %v3919, 1.442695
    %v3939 = vpow.pop %v3938
    %v3940 = vmul.f32 %v3920, 1.442695
    %v3941 = vpow.pop %v3940
    %v3942 = vmul.f32 %v3921, 1.442695
    %v3943 = vpow.pop %v3942
    %v3944 = vmul.f32 %v3922, 1.442695
    %v3945 = vpow.pop %v3944
    %v3946 = vmul.f32 %v3923, 1.442695
    %v3947 = vpow.pop %v3946
    %v3948 = vmul.f32 %v3924, 1.442695
    %v3949 = vpow.pop %v3948
    %v3950 = vmul.f32 %v3925, 1.442695
    %v3951 = vpow.pop %v3950
    %v3952 = vmul.f32 %v3926, 1.442695
    %v3953 = vpow.pop %v3952
    %v3954 = vmul.f32 %v3927, 1.442695
    %v3955 = vpow.pop %v3954
    %v3956 = vmul.f32 %v3928, 1.442695
    %v3957 = vpow.pop %v3956
    %v3958 = vmul.f32 %v3929, 1.442695
    %v3959 = vpow.pop %v3958
    %v3960 = vmul.f32 %v3930, 1.442695
    %v3961 = vpow.pop %v3960
    %v3962 = vmul.f32 %v3931, 1.442695
    %v3963 = vpow.pop %v3962
    %v3964 = vmul.f32 %v3933, %v224
    %v3965 = vmul.f32 %v3935, %v225
    %v3966 = vmul.f32 %v3937, %v226
    %v3967 = vmul.f32 %v3939, %v227
    %v3968 = vmul.f32 %v3941, %v228
    %v3969 = vmul.f32 %v3943, %v229
    %v3970 = vmul.f32 %v3945, %v230
    %v3971 = vmul.f32 %v3947, %v231
    %v3972 = vmul.f32 %v3949, %v232
    %v3973 = vmul.f32 %v3951, %v233
    %v3974 = vmul.f32 %v3953, %v234
    %v3975 = vmul.f32 %v3955, %v235
    %v3976 = vmul.f32 %v3957, %v236
    %v3977 = vmul.f32 %v3959, %v237
    %v3978 = vmul.f32 %v3961, %v238
    %v3979 = vmul.f32 %v3963, %v239
    %3980 = vadd.xlane.f32.xlu0 %v3964
    %v3981 = vpop.xlane.xlu0 %3980
    %3982 = vadd.xlane.f32.xlu0 %v3965
    %v3983 = vpop.xlane.xlu0 %3982
    %3984 = vadd.xlane.f32.xlu0 %v3966
    %v3985 = vpop.xlane.xlu0 %3984
    %3986 = vadd.xlane.f32.xlu0 %v3967
    %v3987 = vpop.xlane.xlu0 %3986
    %3988 = vadd.xlane.f32.xlu0 %v3968
    %v3989 = vpop.xlane.xlu0 %3988
    %3990 = vadd.xlane.f32.xlu0 %v3969
    %v3991 = vpop.xlane.xlu0 %3990
    %3992 = vadd.xlane.f32.xlu0 %v3970
    %v3993 = vpop.xlane.xlu0 %3992
    %3994 = vadd.xlane.f32.xlu0 %v3971
    %v3995 = vpop.xlane.xlu0 %3994
    %3996 = vadd.xlane.f32.xlu0 %v3972
    %v3997 = vpop.xlane.xlu0 %3996
    %3998 = vadd.xlane.f32.xlu0 %v3973
    %v3999 = vpop.xlane.xlu0 %3998
    %4000 = vadd.xlane.f32.xlu0 %v3974
    %v4001 = vpop.xlane.xlu0 %4000
    %4002 = vadd.xlane.f32.xlu0 %v3975
    %v4003 = vpop.xlane.xlu0 %4002
    %4004 = vadd.xlane.f32.xlu0 %v3976
    %v4005 = vpop.xlane.xlu0 %4004
    %4006 = vadd.xlane.f32.xlu0 %v3977
    %v4007 = vpop.xlane.xlu0 %4006
    %4008 = vadd.xlane.f32.xlu0 %v3978
    %v4009 = vpop.xlane.xlu0 %4008
    %4010 = vadd.xlane.f32.xlu0 %v3979
    %v4011 = vpop.xlane.xlu0 %4010
    %v4012 = vrcp.pop %v3981
    %v4013 = vrcp.pop %v3983
    %v4014 = vrcp.pop %v3985
    %v4015 = vrcp.pop %v3987
    %v4016 = vrcp.pop %v3989
    %v4017 = vrcp.pop %v3991
    %v4018 = vrcp.pop %v3993
    %v4019 = vrcp.pop %v3995
    %v4020 = vrcp.pop %v3997
    %v4021 = vrcp.pop %v3999
    %v4022 = vrcp.pop %v4001
    %v4023 = vrcp.pop %v4003
    %v4024 = vrcp.pop %v4005
    %v4025 = vrcp.pop %v4007
    %v4026 = vrcp.pop %v4009
    %v4027 = vrcp.pop %v4011
    %v4028 = vpack.c.bf16 %v3965, %v3964
    %v4029 = vpack.c.bf16 %v3967, %v3966
    %v4030 = vpack.c.bf16 %v3969, %v3968
    %v4031 = vpack.c.bf16 %v3971, %v3970
    %v4032 = vpack.c.bf16 %v3973, %v3972
    %v4033 = vpack.c.bf16 %v3975, %v3974
    %v4034 = vpack.c.bf16 %v3977, %v3976
    %v4035 = vpack.c.bf16 %v3979, %v3978
    %4036 = vrot.lane.b32.xlu0 %v1145, 32
    %v4037 = vpop.permute.xlu0 %4036
    %4038 = vrot.lane.b32.xlu0 %v1146, 32
    %v4039 = vpop.permute.xlu0 %4038
    %4040 = vrot.lane.b32.xlu0 %v1147, 32
    %v4041 = vpop.permute.xlu0 %4040
    %4042 = vrot.lane.b32.xlu0 %v1148, 32
    %v4043 = vpop.permute.xlu0 %4042
    %4044 = vrot.lane.b32.xlu0 %v1149, 32
    %v4045 = vpop.permute.xlu0 %4044
    %4046 = vrot.lane.b32.xlu0 %v1150, 32
    %v4047 = vpop.permute.xlu0 %4046
    %4048 = vrot.lane.b32.xlu0 %v1151, 32
    %v4049 = vpop.permute.xlu0 %4048
    %4050 = vrot.lane.b32.xlu0 %v1152, 32
    %v4051 = vpop.permute.xlu0 %4050
    %4060 = vmatprep.subr.bf16.mxu0 0
    %4061 = vmatpush1.bf16.msra.mxu0 %v4037
    %4062 = vmatprep.subr.bf16.mxu0 0
    %4063 = vmatpush1.bf16.msra.mxu0 %v4039
    %4064 = vmatprep.subr.bf16.mxu0 0
    %4065 = vmatpush1.bf16.msra.mxu0 %v4041
    %4066 = vmatprep.subr.bf16.mxu0 0
    %4067 = vmatpush1.bf16.msra.mxu0 %v4043
    %4068 = vmatprep.subr.bf16.mxu0 0
    %4069 = vmatpush1.bf16.msra.mxu0 %v4045
    %4070 = vmatprep.subr.bf16.mxu0 0
    %4071 = vmatpush1.bf16.msra.mxu0 %v4047
    %4072 = vmatprep.subr.bf16.mxu0 0
    %4073 = vmatpush1.bf16.msra.mxu0 %v4049
    %4074 = vmatprep.subr.bf16.mxu0 0
    %4075 = vmatpush1.bf16.msra.mxu0 %v4051
    %4076 = vmatprep.subr.bf16.mxu0 0
    %4077 = vmatpush1.bf16.msra.mxu0 0
    %4078 = vmatprep.subr.bf16.mxu0 0
    %4079 = vmatpush1.bf16.msra.mxu0 0
    %4080 = vmatprep.subr.bf16.mxu0 0
    %4081 = vmatpush1.bf16.msra.mxu0 0
    %4082 = vmatprep.subr.bf16.mxu0 0
    %4083 = vmatpush1.bf16.msra.mxu0 0
    %4084 = vmatprep.subr.bf16.mxu0 0
    %4085 = vmatpush1.bf16.msra.mxu0 0
    %4086 = vmatprep.subr.bf16.mxu0 0
    %4087 = vmatpush1.bf16.msra.mxu0 0
    %4088 = vmatprep.subr.bf16.mxu0 0
    %4089 = vmatpush1.bf16.msra.mxu0 0
    %4090 = vmatprep.subr.bf16.mxu0 0
    %4091 = vmatpush1.bf16.msra.mxu0 0
    %4092 = vmatprep.mubr.bf16.mxu0 0
    %4093 = vmatmul.mubr.bf16.gmra.mrb[0].mxu0 %v4028
    %v4094 = vpop.f32.mrb[0].mxu0
    %v4095 = vadd.f32 0.0, %v4094
    %v4096 = vpop.f32.mrb[0].mxu0
    %v4097 = vpop.f32.mrb[0].mxu0
    %v4098 = vadd.f32 0.0, %v4097
    %v4099 = vpop.f32.mrb[0].mxu0
    %4100 = vmatprep.mubr.bf16.mxu0 0
    %4101 = vmatmul.mubr.bf16.gmra.mrb[0].mxu0 %v4029
    %v4102 = vpop.f32.mrb[0].mxu0
    %v4103 = vadd.f32 0.0, %v4102
    %v4104 = vpop.f32.mrb[0].mxu0
    %v4105 = vpop.f32.mrb[0].mxu0
    %v4106 = vadd.f32 0.0, %v4105
    %v4107 = vpop.f32.mrb[0].mxu0
    %4108 = vmatprep.mubr.bf16.mxu0 0
    %4109 = vmatmul.mubr.bf16.gmra.mrb[0].mxu0 %v4030
    %v4110 = vpop.f32.mrb[0].mxu0
    %v4111 = vadd.f32 0.0, %v4110
    %v4112 = vpop.f32.mrb[0].mxu0
    %v4113 = vpop.f32.mrb[0].mxu0
    %v4114 = vadd.f32 0.0, %v4113
    %v4115 = vpop.f32.mrb[0].mxu0
    %4116 = vmatprep.mubr.bf16.mxu0 0
    %4117 = vmatmul.mubr.bf16.gmra.mrb[0].mxu0 %v4031
    %v4118 = vpop.f32.mrb[0].mxu0
    %v4119 = vadd.f32 0.0, %v4118
    %v4120 = vpop.f32.mrb[0].mxu0
    %v4121 = vpop.f32.mrb[0].mxu0
    %v4122 = vadd.f32 0.0, %v4121
    %v4123 = vpop.f32.mrb[0].mxu0
    %4124 = vmatprep.mubr.bf16.mxu0 0
    %4125 = vmatmul.mubr.bf16.gmra.mrb[0].mxu0 %v4032
    %v4126 = vpop.f32.mrb[0].mxu0
    %v4127 = vadd.f32 0.0, %v4126
    %v4128 = vpop.f32.mrb[0].mxu0
    %v4129 = vpop.f32.mrb[0].mxu0
    %v4130 = vadd.f32 0.0, %v4129
    %v4131 = vpop.f32.mrb[0].mxu0
    %4132 = vmatprep.mubr.bf16.mxu0 0
    %4133 = vmatmul.mubr.bf16.gmra.mrb[0].mxu0 %v4033
    %v4134 = vpop.f32.mrb[0].mxu0
    %v4135 = vadd.f32 0.0, %v4134
    %v4136 = vpop.f32.mrb[0].mxu0
    %v4137 = vpop.f32.mrb[0].mxu0
    %v4138 = vadd.f32 0.0, %v4137
    %v4139 = vpop.f32.mrb[0].mxu0
    %4140 = vmatprep.mubr.bf16.mxu0 0
    %4141 = vmatmul.mubr.bf16.gmra.mrb[0].mxu0 %v4034
    %v4142 = vpop.f32.mrb[0].mxu0
    %v4143 = vadd.f32 0.0, %v4142
    %v4144 = vpop.f32.mrb[0].mxu0
    %v4145 = vpop.f32.mrb[0].mxu0
    %v4146 = vadd.f32 0.0, %v4145
    %v4147 = vpop.f32.mrb[0].mxu0
    %4148 = vmatprep.mubr.bf16.mxu0 0
    %4149 = vmatmul.mubr.bf16.gmra.mrb[0].mxu0 %v4035
    %v4150 = vpop.f32.mrb[0].mxu0
    %v4151 = vadd.f32 0.0, %v4150
    %v4152 = vpop.f32.mrb[0].mxu0
    %v4153 = vpop.f32.mrb[0].mxu0
    %v4154 = vadd.f32 0.0, %v4153
    %v4155 = vpop.f32.mrb[0].mxu0
    %4156 = vdwg.mxu0
    %v4157 = vmul.f32 %v4095, %v4012
    %v4158 = vmul.f32 %v4098, %v4013
    %v4159 = vmul.f32 %v4103, %v4014
    %v4160 = vmul.f32 %v4106, %v4015
    %v4161 = vmul.f32 %v4111, %v4016
    %v4162 = vmul.f32 %v4114, %v4017
    %v4163 = vmul.f32 %v4119, %v4018
    %v4164 = vmul.f32 %v4122, %v4019
    %v4165 = vmul.f32 %v4127, %v4020
    %v4166 = vmul.f32 %v4130, %v4021
    %v4167 = vmul.f32 %v4135, %v4022
    %v4168 = vmul.f32 %v4138, %v4023
    %v4169 = vmul.f32 %v4143, %v4024
    %v4170 = vmul.f32 %v4146, %v4025
    %v4171 = vmul.f32 %v4151, %v4026
    %v4172 = vmul.f32 %v4154, %v4027
    %4173 = vrot.lane.b32.xlu0 %v1113, 16
    %v4174 = vpop.permute.xlu0 %4173
    %4175 = vrot.lane.b32.xlu0 %v1114, 16
    %v4176 = vpop.permute.xlu0 %4175
    %4177 = vrot.lane.b32.xlu0 %v1115, 16
    %v4178 = vpop.permute.xlu0 %4177
    %4179 = vrot.lane.b32.xlu0 %v1116, 16
    %v4180 = vpop.permute.xlu0 %4179
    %4181 = vrot.lane.b32.xlu0 %v1117, 16
    %v4182 = vpop.permute.xlu0 %4181
    %4183 = vrot.lane.b32.xlu0 %v1118, 16
    %v4184 = vpop.permute.xlu0 %4183
    %4185 = vrot.lane.b32.xlu0 %v1119, 16
    %v4186 = vpop.permute.xlu0 %4185
    %4187 = vrot.lane.b32.xlu0 %v1120, 16
    %v4188 = vpop.permute.xlu0 %4187
    %4189 = vrot.lane.b32.xlu0 %v1137, 16
    %v4190 = vpop.permute.xlu0 %4189
    %4191 = vrot.lane.b32.xlu0 %v1138, 16
    %v4192 = vpop.permute.xlu0 %4191
    %4193 = vrot.lane.b32.xlu0 %v1139, 16
    %v4194 = vpop.permute.xlu0 %4193
    %4195 = vrot.lane.b32.xlu0 %v1140, 16
    %v4196 = vpop.permute.xlu0 %4195
    %4197 = vrot.lane.b32.xlu0 %v1141, 16
    %v4198 = vpop.permute.xlu0 %4197
    %4199 = vrot.lane.b32.xlu0 %v1142, 16
    %v4200 = vpop.permute.xlu0 %4199
    %4201 = vrot.lane.b32.xlu0 %v1143, 16
    %v4202 = vpop.permute.xlu0 %4201
    %4203 = vrot.lane.b32.xlu0 %v1144, 16
    %v4204 = vpop.permute.xlu0 %4203
    %v4206 = vsel %vm864, %v4174, 0
    %v4209 = vsel %vm864, %v4176, 0
    %v4212 = vsel %vm864, %v4178, 0
    %v4215 = vsel %vm864, %v4180, 0
    %v4218 = vsel %vm864, %v4182, 0
    %v4221 = vsel %vm864, %v4184, 0
    %v4224 = vsel %vm864, %v4186, 0
    %v4227 = vsel %vm864, %v4188, 0
    %v4230 = vsel %vm864, %v4190, 0
    %v4233 = vsel %vm864, %v4192, 0
    %v4236 = vsel %vm864, %v4194, 0
    %v4239 = vsel %vm864, %v4196, 0
    %v4242 = vsel %vm864, %v4198, 0
    %v4245 = vsel %vm864, %v4200, 0
    %v4248 = vsel %vm864, %v4202, 0
    %v4251 = vsel %vm864, %v4204, 0
    %4253 = vmatprep.subr.bf16.mxu0 0
    %4254 = vmatpush1.bf16.xpose.msra.mxu0 %v4230
    %4255 = vmatprep.subr.bf16.mxu0 0
    %4256 = vmatpush1.bf16.xpose.msra.mxu0 %v4233
    %4257 = vmatprep.subr.bf16.mxu0 0
    %4258 = vmatpush1.bf16.xpose.msra.mxu0 %v4236
    %4259 = vmatprep.subr.bf16.mxu0 0
    %4260 = vmatpush1.bf16.xpose.msra.mxu0 %v4239
    %4261 = vmatprep.subr.bf16.mxu0 0
    %4262 = vmatpush1.bf16.xpose.msra.mxu0 %v4242
    %4263 = vmatprep.subr.bf16.mxu0 0
    %4264 = vmatpush1.bf16.xpose.msra.mxu0 %v4245
    %4265 = vmatprep.subr.bf16.mxu0 0
    %4266 = vmatpush1.bf16.xpose.msra.mxu0 %v4248
    %4267 = vmatprep.subr.bf16.mxu0 0
    %4268 = vmatpush1.bf16.xpose.msra.mxu0 %v4251
    %4269 = vmatprep.subr.bf16.mxu0 0
    %4270 = vmatpush1.bf16.xpose.msra.mxu0 0
    %4271 = vmatprep.subr.bf16.mxu0 0
    %4272 = vmatpush1.bf16.xpose.msra.mxu0 0
    %4273 = vmatprep.subr.bf16.mxu0 0
    %4274 = vmatpush1.bf16.xpose.msra.mxu0 0
    %4275 = vmatprep.subr.bf16.mxu0 0
    %4276 = vmatpush1.bf16.xpose.msra.mxu0 0
    %4277 = vmatprep.subr.bf16.mxu0 0
    %4278 = vmatpush1.bf16.xpose.msra.mxu0 0
    %4279 = vmatprep.subr.bf16.mxu0 0
    %4280 = vmatpush1.bf16.xpose.msra.mxu0 0
    %4281 = vmatprep.subr.bf16.mxu0 0
    %4282 = vmatpush1.bf16.xpose.msra.mxu0 0
    %4283 = vmatprep.subr.bf16.mxu0 0
    %4284 = vmatpush1.bf16.xpose.msra.mxu0 0
    %4285 = vmatprep.mubr.bf16.mxu0 0
    %4286 = vmatmul.mubr.bf16.gmra.mrb[0].mxu0 %v4206
    %v4287 = vpop.f32.mrb[0].mxu0
    %v4288 = vadd.f32 0.0, %v4287
    %v4289 = vpop.f32.mrb[0].mxu0
    %v4290 = vpop.f32.mrb[0].mxu0
    %v4291 = vadd.f32 0.0, %v4290
    %v4292 = vpop.f32.mrb[0].mxu0
    %4293 = vmatprep.mubr.bf16.mxu0 0
    %4294 = vmatmul.mubr.bf16.gmra.mrb[0].mxu0 %v4209
    %v4295 = vpop.f32.mrb[0].mxu0
    %v4296 = vadd.f32 0.0, %v4295
    %v4297 = vpop.f32.mrb[0].mxu0
    %v4298 = vpop.f32.mrb[0].mxu0
    %v4299 = vadd.f32 0.0, %v4298
    %v4300 = vpop.f32.mrb[0].mxu0
    %4301 = vmatprep.mubr.bf16.mxu0 0
    %4302 = vmatmul.mubr.bf16.gmra.mrb[0].mxu0 %v4212
    %v4303 = vpop.f32.mrb[0].mxu0
    %v4304 = vadd.f32 0.0, %v4303
    %v4305 = vpop.f32.mrb[0].mxu0
    %v4306 = vpop.f32.mrb[0].mxu0
    %v4307 = vadd.f32 0.0, %v4306
    %v4308 = vpop.f32.mrb[0].mxu0
    %4309 = vmatprep.mubr.bf16.mxu0 0
    %4310 = vmatmul.mubr.bf16.gmra.mrb[0].mxu0 %v4215
    %v4311 = vpop.f32.mrb[0].mxu0
    %v4312 = vadd.f32 0.0, %v4311
    %v4313 = vpop.f32.mrb[0].mxu0
    %v4314 = vpop.f32.mrb[0].mxu0
    %v4315 = vadd.f32 0.0, %v4314
    %v4316 = vpop.f32.mrb[0].mxu0
    %4317 = vmatprep.mubr.bf16.mxu0 0
    %4318 = vmatmul.mubr.bf16.gmra.mrb[0].mxu0 %v4218
    %v4319 = vpop.f32.mrb[0].mxu0
    %v4320 = vadd.f32 0.0, %v4319
    %v4321 = vpop.f32.mrb[0].mxu0
    %v4322 = vpop.f32.mrb[0].mxu0
    %v4323 = vadd.f32 0.0, %v4322
    %v4324 = vpop.f32.mrb[0].mxu0
    %4325 = vmatprep.mubr.bf16.mxu0 0
    %4326 = vmatmul.mubr.bf16.gmra.mrb[0].mxu0 %v4221
    %v4327 = vpop.f32.mrb[0].mxu0
    %v4328 = vadd.f32 0.0, %v4327
    %v4329 = vpop.f32.mrb[0].mxu0
    %v4330 = vpop.f32.mrb[0].mxu0
    %v4331 = vadd.f32 0.0, %v4330
    %v4332 = vpop.f32.mrb[0].mxu0
    %4333 = vmatprep.mubr.bf16.mxu0 0
    %4334 = vmatmul.mubr.bf16.gmra.mrb[0].mxu0 %v4224
    %v4335 = vpop.f32.mrb[0].mxu0
    %v4336 = vadd.f32 0.0, %v4335
    %v4337 = vpop.f32.mrb[0].mxu0
    %v4338 = vpop.f32.mrb[0].mxu0
    %v4339 = vadd.f32 0.0, %v4338
    %v4340 = vpop.f32.mrb[0].mxu0
    %4341 = vmatprep.mubr.bf16.mxu0 0
    %4342 = vmatmul.mubr.bf16.gmra.mrb[0].mxu0 %v4227
    %v4343 = vpop.f32.mrb[0].mxu0
    %v4344 = vadd.f32 0.0, %v4343
    %v4345 = vpop.f32.mrb[0].mxu0
    %v4346 = vpop.f32.mrb[0].mxu0
    %v4347 = vadd.f32 0.0, %v4346
    %v4348 = vpop.f32.mrb[0].mxu0
    %4349 = vdwg.mxu0
    %s4350 = sld [smem:[#allocation2 + $0x7]]
    %v4351 = vstv %s4350
    %v4352 = vsub.f32 %v4288, %v4351
    %v4353 = vsub.f32 %v4291, %v4351
    %v4354 = vsub.f32 %v4296, %v4351
    %v4355 = vsub.f32 %v4299, %v4351
    %v4356 = vsub.f32 %v4304, %v4351
    %v4357 = vsub.f32 %v4307, %v4351
    %v4358 = vsub.f32 %v4312, %v4351
    %v4359 = vsub.f32 %v4315, %v4351
    %v4360 = vsub.f32 %v4320, %v4351
    %v4361 = vsub.f32 %v4323, %v4351
    %v4362 = vsub.f32 %v4328, %v4351
    %v4363 = vsub.f32 %v4331, %v4351
    %v4364 = vsub.f32 %v4336, %v4351
    %v4365 = vsub.f32 %v4339, %v4351
    %v4366 = vsub.f32 %v4344, %v4351
    %v4367 = vsub.f32 %v4347, %v4351
    %v4368 = vmul.f32 %v4352, 1.442695
    %v4369 = vpow.pop %v4368
    %v4370 = vmul.f32 %v4353, 1.442695
    %v4371 = vpow.pop %v4370
    %v4372 = vmul.f32 %v4354, 1.442695
    %v4373 = vpow.pop %v4372
    %v4374 = vmul.f32 %v4355, 1.442695
    %v4375 = vpow.pop %v4374
    %v4376 = vmul.f32 %v4356, 1.442695
    %v4377 = vpow.pop %v4376
    %v4378 = vmul.f32 %v4357, 1.442695
    %v4379 = vpow.pop %v4378
    %v4380 = vmul.f32 %v4358, 1.442695
    %v4381 = vpow.pop %v4380
    %v4382 = vmul.f32 %v4359, 1.442695
    %v4383 = vpow.pop %v4382
    %v4384 = vmul.f32 %v4360, 1.442695
    %v4385 = vpow.pop %v4384
    %v4386 = vmul.f32 %v4361, 1.442695
    %v4387 = vpow.pop %v4386
    %v4388 = vmul.f32 %v4362, 1.442695
    %v4389 = vpow.pop %v4388
    %v4390 = vmul.f32 %v4363, 1.442695
    %v4391 = vpow.pop %v4390
    %v4392 = vmul.f32 %v4364, 1.442695
    %v4393 = vpow.pop %v4392
    %v4394 = vmul.f32 %v4365, 1.442695
    %v4395 = vpow.pop %v4394
    %v4396 = vmul.f32 %v4366, 1.442695
    %v4397 = vpow.pop %v4396
    %v4398 = vmul.f32 %v4367, 1.442695
    %v4399 = vpow.pop %v4398
    %v4400 = vmul.f32 %v4369, %v224
    %v4401 = vmul.f32 %v4371, %v225
    %v4402 = vmul.f32 %v4373, %v226
    %v4403 = vmul.f32 %v4375, %v227
    %v4404 = vmul.f32 %v4377, %v228
    %v4405 = vmul.f32 %v4379, %v229
    %v4406 = vmul.f32 %v4381, %v230
    %v4407 = vmul.f32 %v4383, %v231
    %v4408 = vmul.f32 %v4385, %v232
    %v4409 = vmul.f32 %v4387, %v233
    %v4410 = vmul.f32 %v4389, %v234
    %v4411 = vmul.f32 %v4391, %v235
    %v4412 = vmul.f32 %v4393, %v236
    %v4413 = vmul.f32 %v4395, %v237
    %v4414 = vmul.f32 %v4397, %v238
    %v4415 = vmul.f32 %v4399, %v239
    %4416 = vadd.xlane.f32.xlu0 %v4400
    %v4417 = vpop.xlane.xlu0 %4416
    %4418 = vadd.xlane.f32.xlu0 %v4401
    %v4419 = vpop.xlane.xlu0 %4418
    %4420 = vadd.xlane.f32.xlu0 %v4402
    %v4421 = vpop.xlane.xlu0 %4420
    %4422 = vadd.xlane.f32.xlu0 %v4403
    %v4423 = vpop.xlane.xlu0 %4422
    %4424 = vadd.xlane.f32.xlu0 %v4404
    %v4425 = vpop.xlane.xlu0 %4424
    %4426 = vadd.xlane.f32.xlu0 %v4405
    %v4427 = vpop.xlane.xlu0 %4426
    %4428 = vadd.xlane.f32.xlu0 %v4406
    %v4429 = vpop.xlane.xlu0 %4428
    %4430 = vadd.xlane.f32.xlu0 %v4407
    %v4431 = vpop.xlane.xlu0 %4430
    %4432 = vadd.xlane.f32.xlu0 %v4408
    %v4433 = vpop.xlane.xlu0 %4432
    %4434 = vadd.xlane.f32.xlu0 %v4409
    %v4435 = vpop.xlane.xlu0 %4434
    %4436 = vadd.xlane.f32.xlu0 %v4410
    %v4437 = vpop.xlane.xlu0 %4436
    %4438 = vadd.xlane.f32.xlu0 %v4411
    %v4439 = vpop.xlane.xlu0 %4438
    %4440 = vadd.xlane.f32.xlu0 %v4412
    %v4441 = vpop.xlane.xlu0 %4440
    %4442 = vadd.xlane.f32.xlu0 %v4413
    %v4443 = vpop.xlane.xlu0 %4442
    %4444 = vadd.xlane.f32.xlu0 %v4414
    %v4445 = vpop.xlane.xlu0 %4444
    %4446 = vadd.xlane.f32.xlu0 %v4415
    %v4447 = vpop.xlane.xlu0 %4446
    %v4448 = vrcp.pop %v4417
    %v4449 = vrcp.pop %v4419
    %v4450 = vrcp.pop %v4421
    %v4451 = vrcp.pop %v4423
    %v4452 = vrcp.pop %v4425
    %v4453 = vrcp.pop %v4427
    %v4454 = vrcp.pop %v4429
    %v4455 = vrcp.pop %v4431
    %v4456 = vrcp.pop %v4433
    %v4457 = vrcp.pop %v4435
    %v4458 = vrcp.pop %v4437
    %v4459 = vrcp.pop %v4439
    %v4460 = vrcp.pop %v4441
    %v4461 = vrcp.pop %v4443
    %v4462 = vrcp.pop %v4445
    %v4463 = vrcp.pop %v4447
    %v4464 = vpack.c.bf16 %v4401, %v4400
    %v4465 = vpack.c.bf16 %v4403, %v4402
    %v4466 = vpack.c.bf16 %v4405, %v4404
    %v4467 = vpack.c.bf16 %v4407, %v4406
    %v4468 = vpack.c.bf16 %v4409, %v4408
    %v4469 = vpack.c.bf16 %v4411, %v4410
    %v4470 = vpack.c.bf16 %v4413, %v4412
    %v4471 = vpack.c.bf16 %v4415, %v4414
    %4472 = vrot.lane.b32.xlu0 %v1145, 16
    %v4473 = vpop.permute.xlu0 %4472
    %4474 = vrot.lane.b32.xlu0 %v1146, 16
    %v4475 = vpop.permute.xlu0 %4474
    %4476 = vrot.lane.b32.xlu0 %v1147, 16
    %v4477 = vpop.permute.xlu0 %4476
    %4478 = vrot.lane.b32.xlu0 %v1148, 16
    %v4479 = vpop.permute.xlu0 %4478
    %4480 = vrot.lane.b32.xlu0 %v1149, 16
    %v4481 = vpop.permute.xlu0 %4480
    %4482 = vrot.lane.b32.xlu0 %v1150, 16
    %v4483 = vpop.permute.xlu0 %4482
    %4484 = vrot.lane.b32.xlu0 %v1151, 16
    %v4485 = vpop.permute.xlu0 %4484
    %4486 = vrot.lane.b32.xlu0 %v1152, 16
    %v4487 = vpop.permute.xlu0 %4486
    %4496 = vmatprep.subr.bf16.mxu0 0
    %4497 = vmatpush1.bf16.msra.mxu0 %v4473
    %4498 = vmatprep.subr.bf16.mxu0 0
    %4499 = vmatpush1.bf16.msra.mxu0 %v4475
    %4500 = vmatprep.subr.bf16.mxu0 0
    %4501 = vmatpush1.bf16.msra.mxu0 %v4477
    %4502 = vmatprep.subr.bf16.mxu0 0
    %4503 = vmatpush1.bf16.msra.mxu0 %v4479
    %4504 = vmatprep.subr.bf16.mxu0 0
    %4505 = vmatpush1.bf16.msra.mxu0 %v4481
    %4506 = vmatprep.subr.bf16.mxu0 0
    %4507 = vmatpush1.bf16.msra.mxu0 %v4483
    %4508 = vmatprep.subr.bf16.mxu0 0
    %4509 = vmatpush1.bf16.msra.mxu0 %v4485
    %4510 = vmatprep.subr.bf16.mxu0 0
    %4511 = vmatpush1.bf16.msra.mxu0 %v4487
    %4512 = vmatprep.subr.bf16.mxu0 0
    %4513 = vmatpush1.bf16.msra.mxu0 0
    %4514 = vmatprep.subr.bf16.mxu0 0
    %4515 = vmatpush1.bf16.msra.mxu0 0
    %4516 = vmatprep.subr.bf16.mxu0 0
    %4517 = vmatpush1.bf16.msra.mxu0 0
    %4518 = vmatprep.subr.bf16.mxu0 0
    %4519 = vmatpush1.bf16.msra.mxu0 0
    %4520 = vmatprep.subr.bf16.mxu0 0
    %4521 = vmatpush1.bf16.msra.mxu0 0
    %4522 = vmatprep.subr.bf16.mxu0 0
    %4523 = vmatpush1.bf16.msra.mxu0 0
    %4524 = vmatprep.subr.bf16.mxu0 0
    %4525 = vmatpush1.bf16.msra.mxu0 0
    %4526 = vmatprep.subr.bf16.mxu0 0
    %4527 = vmatpush1.bf16.msra.mxu0 0
    %4528 = vmatprep.mubr.bf16.mxu0 0
    %4529 = vmatmul.mubr.bf16.gmra.mrb[0].mxu0 %v4464
    %v4530 = vpop.f32.mrb[0].mxu0
    %v4531 = vadd.f32 0.0, %v4530
    %v4532 = vpop.f32.mrb[0].mxu0
    %v4533 = vpop.f32.mrb[0].mxu0
    %v4534 = vadd.f32 0.0, %v4533
    %v4535 = vpop.f32.mrb[0].mxu0
    %4536 = vmatprep.mubr.bf16.mxu0 0
    %4537 = vmatmul.mubr.bf16.gmra.mrb[0].mxu0 %v4465
    %v4538 = vpop.f32.mrb[0].mxu0
    %v4539 = vadd.f32 0.0, %v4538
    %v4540 = vpop.f32.mrb[0].mxu0
    %v4541 = vpop.f32.mrb[0].mxu0
    %v4542 = vadd.f32 0.0, %v4541
    %v4543 = vpop.f32.mrb[0].mxu0
    %4544 = vmatprep.mubr.bf16.mxu0 0
    %4545 = vmatmul.mubr.bf16.gmra.mrb[0].mxu0 %v4466
    %v4546 = vpop.f32.mrb[0].mxu0
    %v4547 = vadd.f32 0.0, %v4546
    %v4548 = vpop.f32.mrb[0].mxu0
    %v4549 = vpop.f32.mrb[0].mxu0
    %v4550 = vadd.f32 0.0, %v4549
    %v4551 = vpop.f32.mrb[0].mxu0
    %4552 = vmatprep.mubr.bf16.mxu0 0
    %4553 = vmatmul.mubr.bf16.gmra.mrb[0].mxu0 %v4467
    %v4554 = vpop.f32.mrb[0].mxu0
    %v4555 = vadd.f32 0.0, %v4554
    %v4556 = vpop.f32.mrb[0].mxu0
    %v4557 = vpop.f32.mrb[0].mxu0
    %v4558 = vadd.f32 0.0, %v4557
    %v4559 = vpop.f32.mrb[0].mxu0
    %4560 = vmatprep.mubr.bf16.mxu0 0
    %4561 = vmatmul.mubr.bf16.gmra.mrb[0].mxu0 %v4468
    %v4562 = vpop.f32.mrb[0].mxu0
    %v4563 = vadd.f32 0.0, %v4562
    %v4564 = vpop.f32.mrb[0].mxu0
    %v4565 = vpop.f32.mrb[0].mxu0
    %v4566 = vadd.f32 0.0, %v4565
    %v4567 = vpop.f32.mrb[0].mxu0
    %4568 = vmatprep.mubr.bf16.mxu0 0
    %4569 = vmatmul.mubr.bf16.gmra.mrb[0].mxu0 %v4469
    %v4570 = vpop.f32.mrb[0].mxu0
    %v4571 = vadd.f32 0.0, %v4570
    %v4572 = vpop.f32.mrb[0].mxu0
    %v4573 = vpop.f32.mrb[0].mxu0
    %v4574 = vadd.f32 0.0, %v4573
    %v4575 = vpop.f32.mrb[0].mxu0
    %4576 = vmatprep.mubr.bf16.mxu0 0
    %4577 = vmatmul.mubr.bf16.gmra.mrb[0].mxu0 %v4470
    %v4578 = vpop.f32.mrb[0].mxu0
    %v4579 = vadd.f32 0.0, %v4578
    %v4580 = vpop.f32.mrb[0].mxu0
    %v4581 = vpop.f32.mrb[0].mxu0
    %v4582 = vadd.f32 0.0, %v4581
    %v4583 = vpop.f32.mrb[0].mxu0
    %4584 = vmatprep.mubr.bf16.mxu0 0
    %4585 = vmatmul.mubr.bf16.gmra.mrb[0].mxu0 %v4471
    %v4586 = vpop.f32.mrb[0].mxu0
    %v4587 = vadd.f32 0.0, %v4586
    %v4588 = vpop.f32.mrb[0].mxu0
    %v4589 = vpop.f32.mrb[0].mxu0
    %v4590 = vadd.f32 0.0, %v4589
    %v4591 = vpop.f32.mrb[0].mxu0
    %4592 = vdwg.mxu0
    %v4593 = vmul.f32 %v4531, %v4448
    %v4594 = vmul.f32 %v4534, %v4449
    %v4595 = vmul.f32 %v4539, %v4450
    %v4596 = vmul.f32 %v4542, %v4451
    %v4597 = vmul.f32 %v4547, %v4452
    %v4598 = vmul.f32 %v4550, %v4453
    %v4599 = vmul.f32 %v4555, %v4454
    %v4600 = vmul.f32 %v4558, %v4455
    %v4601 = vmul.f32 %v4563, %v4456
    %v4602 = vmul.f32 %v4566, %v4457
    %v4603 = vmul.f32 %v4571, %v4458
    %v4604 = vmul.f32 %v4574, %v4459
    %v4605 = vmul.f32 %v4579, %v4460
    %v4606 = vmul.f32 %v4582, %v4461
    %v4607 = vmul.f32 %v4587, %v4462
    %v4608 = vmul.f32 %v4590, %v4463
    %4625 = vrot.lane.b32.xlu0 %v1977, 16
    %v4626 = vpop.permute.xlu0 %4625
    %4627 = vrot.lane.b32.xlu0 %v1978, 16
    %v4628 = vpop.permute.xlu0 %4627
    %4629 = vrot.lane.b32.xlu0 %v1979, 16
    %v4630 = vpop.permute.xlu0 %4629
    %4631 = vrot.lane.b32.xlu0 %v1980, 16
    %v4632 = vpop.permute.xlu0 %4631
    %4633 = vrot.lane.b32.xlu0 %v1981, 16
    %v4634 = vpop.permute.xlu0 %4633
    %4635 = vrot.lane.b32.xlu0 %v1982, 16
    %v4636 = vpop.permute.xlu0 %4635
    %4637 = vrot.lane.b32.xlu0 %v1983, 16
    %v4638 = vpop.permute.xlu0 %4637
    %4639 = vrot.lane.b32.xlu0 %v1984, 16
    %v4640 = vpop.permute.xlu0 %4639
    %4641 = vrot.lane.b32.xlu0 %v1985, 16
    %v4642 = vpop.permute.xlu0 %4641
    %4643 = vrot.lane.b32.xlu0 %v1986, 16
    %v4644 = vpop.permute.xlu0 %4643
    %4645 = vrot.lane.b32.xlu0 %v1987, 16
    %v4646 = vpop.permute.xlu0 %4645
    %4647 = vrot.lane.b32.xlu0 %v1988, 16
    %v4648 = vpop.permute.xlu0 %4647
    %4649 = vrot.lane.b32.xlu0 %v1989, 16
    %v4650 = vpop.permute.xlu0 %4649
    %4651 = vrot.lane.b32.xlu0 %v1990, 16
    %v4652 = vpop.permute.xlu0 %4651
    %4653 = vrot.lane.b32.xlu0 %v1991, 16
    %v4654 = vpop.permute.xlu0 %4653
    %4655 = vrot.lane.b32.xlu0 %v1992, 16
    %v4656 = vpop.permute.xlu0 %4655
    %4689 = vrot.lane.b32.xlu0 %v2413, 32
    %v4690 = vpop.permute.xlu0 %4689
    %4691 = vrot.lane.b32.xlu0 %v2414, 32
    %v4692 = vpop.permute.xlu0 %4691
    %4693 = vrot.lane.b32.xlu0 %v2415, 32
    %v4694 = vpop.permute.xlu0 %4693
    %4695 = vrot.lane.b32.xlu0 %v2416, 32
    %v4696 = vpop.permute.xlu0 %4695
    %4697 = vrot.lane.b32.xlu0 %v2417, 32
    %v4698 = vpop.permute.xlu0 %4697
    %4699 = vrot.lane.b32.xlu0 %v2418, 32
    %v4700 = vpop.permute.xlu0 %4699
    %4701 = vrot.lane.b32.xlu0 %v2419, 32
    %v4702 = vpop.permute.xlu0 %4701
    %4703 = vrot.lane.b32.xlu0 %v2420, 32
    %v4704 = vpop.permute.xlu0 %4703
    %4705 = vrot.lane.b32.xlu0 %v2421, 32
    %v4706 = vpop.permute.xlu0 %4705
    %4707 = vrot.lane.b32.xlu0 %v2422, 32
    %v4708 = vpop.permute.xlu0 %4707
    %4709 = vrot.lane.b32.xlu0 %v2423, 32
    %v4710 = vpop.permute.xlu0 %4709
    %4711 = vrot.lane.b32.xlu0 %v2424, 32
    %v4712 = vpop.permute.xlu0 %4711
    %4713 = vrot.lane.b32.xlu0 %v2425, 32
    %v4714 = vpop.permute.xlu0 %4713
    %4715 = vrot.lane.b32.xlu0 %v2426, 32
    %v4716 = vpop.permute.xlu0 %4715
    %4717 = vrot.lane.b32.xlu0 %v2427, 32
    %v4718 = vpop.permute.xlu0 %4717
    %4719 = vrot.lane.b32.xlu0 %v2428, 32
    %v4720 = vpop.permute.xlu0 %4719
    %4753 = vrot.lane.b32.xlu0 %v2849, 48
    %v4754 = vpop.permute.xlu0 %4753
    %4755 = vrot.lane.b32.xlu0 %v2850, 48
    %v4756 = vpop.permute.xlu0 %4755
    %4757 = vrot.lane.b32.xlu0 %v2851, 48
    %v4758 = vpop.permute.xlu0 %4757
    %4759 = vrot.lane.b32.xlu0 %v2852, 48
    %v4760 = vpop.permute.xlu0 %4759
    %4761 = vrot.lane.b32.xlu0 %v2853, 48
    %v4762 = vpop.permute.xlu0 %4761
    %4763 = vrot.lane.b32.xlu0 %v2854, 48
    %v4764 = vpop.permute.xlu0 %4763
    %4765 = vrot.lane.b32.xlu0 %v2855, 48
    %v4766 = vpop.permute.xlu0 %4765
    %4767 = vrot.lane.b32.xlu0 %v2856, 48
    %v4768 = vpop.permute.xlu0 %4767
    %4769 = vrot.lane.b32.xlu0 %v2857, 48
    %v4770 = vpop.permute.xlu0 %4769
    %4771 = vrot.lane.b32.xlu0 %v2858, 48
    %v4772 = vpop.permute.xlu0 %4771
    %4773 = vrot.lane.b32.xlu0 %v2859, 48
    %v4774 = vpop.permute.xlu0 %4773
    %4775 = vrot.lane.b32.xlu0 %v2860, 48
    %v4776 = vpop.permute.xlu0 %4775
    %4777 = vrot.lane.b32.xlu0 %v2861, 48
    %v4778 = vpop.permute.xlu0 %4777
    %4779 = vrot.lane.b32.xlu0 %v2862, 48
    %v4780 = vpop.permute.xlu0 %4779
    %4781 = vrot.lane.b32.xlu0 %v2863, 48
    %v4782 = vpop.permute.xlu0 %4781
    %4783 = vrot.lane.b32.xlu0 %v2864, 48
    %v4784 = vpop.permute.xlu0 %4783
    %4817 = vrot.lane.b32.xlu0 %v3285, 64
    %v4818 = vpop.permute.xlu0 %4817
    %4819 = vrot.lane.b32.xlu0 %v3286, 64
    %v4820 = vpop.permute.xlu0 %4819
    %4821 = vrot.lane.b32.xlu0 %v3287, 64
    %v4822 = vpop.permute.xlu0 %4821
    %4823 = vrot.lane.b32.xlu0 %v3288, 64
    %v4824 = vpop.permute.xlu0 %4823
    %4825 = vrot.lane.b32.xlu0 %v3289, 64
    %v4826 = vpop.permute.xlu0 %4825
    %4827 = vrot.lane.b32.xlu0 %v3290, 64
    %v4828 = vpop.permute.xlu0 %4827
    %4829 = vrot.lane.b32.xlu0 %v3291, 64
    %v4830 = vpop.permute.xlu0 %4829
    %4831 = vrot.lane.b32.xlu0 %v3292, 64
    %v4832 = vpop.permute.xlu0 %4831
    %4833 = vrot.lane.b32.xlu0 %v3293, 64
    %v4834 = vpop.permute.xlu0 %4833
    %4835 = vrot.lane.b32.xlu0 %v3294, 64
    %v4836 = vpop.permute.xlu0 %4835
    %4837 = vrot.lane.b32.xlu0 %v3295, 64
    %v4838 = vpop.permute.xlu0 %4837
    %4839 = vrot.lane.b32.xlu0 %v3296, 64
    %v4840 = vpop.permute.xlu0 %4839
    %4841 = vrot.lane.b32.xlu0 %v3297, 64
    %v4842 = vpop.permute.xlu0 %4841
    %4843 = vrot.lane.b32.xlu0 %v3298, 64
    %v4844 = vpop.permute.xlu0 %4843
    %4845 = vrot.lane.b32.xlu0 %v3299, 64
    %v4846 = vpop.permute.xlu0 %4845
    %4847 = vrot.lane.b32.xlu0 %v3300, 64
    %v4848 = vpop.permute.xlu0 %4847
    %4881 = vrot.lane.b32.xlu0 %v3721, 80
    %v4882 = vpop.permute.xlu0 %4881
    %4883 = vrot.lane.b32.xlu0 %v3722, 80
    %v4884 = vpop.permute.xlu0 %4883
    %4885 = vrot.lane.b32.xlu0 %v3723, 80
    %v4886 = vpop.permute.xlu0 %4885
    %4887 = vrot.lane.b32.xlu0 %v3724, 80
    %v4888 = vpop.permute.xlu0 %4887
    %4889 = vrot.lane.b32.xlu0 %v3725, 80
    %v4890 = vpop.permute.xlu0 %4889
    %4891 = vrot.lane.b32.xlu0 %v3726, 80
    %v4892 = vpop.permute.xlu0 %4891
    %4893 = vrot.lane.b32.xlu0 %v3727, 80
    %v4894 = vpop.permute.xlu0 %4893
    %4895 = vrot.lane.b32.xlu0 %v3728, 80
    %v4896 = vpop.permute.xlu0 %4895
    %4897 = vrot.lane.b32.xlu0 %v3729, 80
    %v4898 = vpop.permute.xlu0 %4897
    %4899 = vrot.lane.b32.xlu0 %v3730, 80
    %v4900 = vpop.permute.xlu0 %4899
    %4901 = vrot.lane.b32.xlu0 %v3731, 80
    %v4902 = vpop.permute.xlu0 %4901
    %4903 = vrot.lane.b32.xlu0 %v3732, 80
    %v4904 = vpop.permute.xlu0 %4903
    %4905 = vrot.lane.b32.xlu0 %v3733, 80
    %v4906 = vpop.permute.xlu0 %4905
    %4907 = vrot.lane.b32.xlu0 %v3734, 80
    %v4908 = vpop.permute.xlu0 %4907
    %4909 = vrot.lane.b32.xlu0 %v3735, 80
    %v4910 = vpop.permute.xlu0 %4909
    %4911 = vrot.lane.b32.xlu0 %v3736, 80
    %v4912 = vpop.permute.xlu0 %4911
    %4945 = vrot.lane.b32.xlu0 %v4157, 96
    %v4946 = vpop.permute.xlu0 %4945
    %4947 = vrot.lane.b32.xlu0 %v4158, 96
    %v4948 = vpop.permute.xlu0 %4947
    %4949 = vrot.lane.b32.xlu0 %v4159, 96
    %v4950 = vpop.permute.xlu0 %4949
    %4951 = vrot.lane.b32.xlu0 %v4160, 96
    %v4952 = vpop.permute.xlu0 %4951
    %4953 = vrot.lane.b32.xlu0 %v4161, 96
    %v4954 = vpop.permute.xlu0 %4953
    %4955 = vrot.lane.b32.xlu0 %v4162, 96
    %v4956 = vpop.permute.xlu0 %4955
    %4957 = vrot.lane.b32.xlu0 %v4163, 96
    %v4958 = vpop.permute.xlu0 %4957
    %4959 = vrot.lane.b32.xlu0 %v4164, 96
    %v4960 = vpop.permute.xlu0 %4959
    %4961 = vrot.lane.b32.xlu0 %v4165, 96
    %v4962 = vpop.permute.xlu0 %4961
    %4963 = vrot.lane.b32.xlu0 %v4166, 96
    %v4964 = vpop.permute.xlu0 %4963
    %4965 = vrot.lane.b32.xlu0 %v4167, 96
    %v4966 = vpop.permute.xlu0 %4965
    %4967 = vrot.lane.b32.xlu0 %v4168, 96
    %v4968 = vpop.permute.xlu0 %4967
    %4969 = vrot.lane.b32.xlu0 %v4169, 96
    %v4970 = vpop.permute.xlu0 %4969
    %4971 = vrot.lane.b32.xlu0 %v4170, 96
    %v4972 = vpop.permute.xlu0 %4971
    %4973 = vrot.lane.b32.xlu0 %v4171, 96
    %v4974 = vpop.permute.xlu0 %4973
    %4975 = vrot.lane.b32.xlu0 %v4172, 96
    %v4976 = vpop.permute.xlu0 %4975
    %5009 = vrot.lane.b32.xlu0 %v4593, 112
    %v5010 = vpop.permute.xlu0 %5009
    %5011 = vrot.lane.b32.xlu0 %v4594, 112
    %v5012 = vpop.permute.xlu0 %5011
    %5013 = vrot.lane.b32.xlu0 %v4595, 112
    %v5014 = vpop.permute.xlu0 %5013
    %5015 = vrot.lane.b32.xlu0 %v4596, 112
    %v5016 = vpop.permute.xlu0 %5015
    %5017 = vrot.lane.b32.xlu0 %v4597, 112
    %v5018 = vpop.permute.xlu0 %5017
    %5019 = vrot.lane.b32.xlu0 %v4598, 112
    %v5020 = vpop.permute.xlu0 %5019
    %5021 = vrot.lane.b32.xlu0 %v4599, 112
    %v5022 = vpop.permute.xlu0 %5021
    %5023 = vrot.lane.b32.xlu0 %v4600, 112
    %v5024 = vpop.permute.xlu0 %5023
    %5025 = vrot.lane.b32.xlu0 %v4601, 112
    %v5026 = vpop.permute.xlu0 %5025
    %5027 = vrot.lane.b32.xlu0 %v4602, 112
    %v5028 = vpop.permute.xlu0 %5027
    %5029 = vrot.lane.b32.xlu0 %v4603, 112
    %v5030 = vpop.permute.xlu0 %5029
    %5031 = vrot.lane.b32.xlu0 %v4604, 112
    %v5032 = vpop.permute.xlu0 %5031
    %5033 = vrot.lane.b32.xlu0 %v4605, 112
    %v5034 = vpop.permute.xlu0 %5033
    %5035 = vrot.lane.b32.xlu0 %v4606, 112
    %v5036 = vpop.permute.xlu0 %5035
    %5037 = vrot.lane.b32.xlu0 %v4607, 112
    %v5038 = vpop.permute.xlu0 %5037
    %5039 = vrot.lane.b32.xlu0 %v4608, 112
    %v5040 = vpop.permute.xlu0 %5039
    %v5057 = vsel %vm864, %v1517, %v4626
    %v5058 = vsel %vm864, %v1518, %v4628
    %v5059 = vsel %vm864, %v1519, %v4630
    %v5060 = vsel %vm864, %v1520, %v4632
    %v5061 = vsel %vm864, %v1521, %v4634
    %v5062 = vsel %vm864, %v1522, %v4636
    %v5063 = vsel %vm864, %v1523, %v4638
    %v5064 = vsel %vm864, %v1524, %v4640
    %v5065 = vsel %vm864, %v1525, %v4642
    %v5066 = vsel %vm864, %v1526, %v4644
    %v5067 = vsel %vm864, %v1527, %v4646
    %v5068 = vsel %vm864, %v1528, %v4648
    %v5069 = vsel %vm864, %v1529, %v4650
    %v5070 = vsel %vm864, %v1530, %v4652
    %v5071 = vsel %vm864, %v1531, %v4654
    %v5072 = vsel %vm864, %v1532, %v4656
    %vm5073 = vcmask 261120
    %v5074 = vsel %vm5073, %v5057, %v4690
    %v5075 = vsel %vm5073, %v5058, %v4692
    %v5076 = vsel %vm5073, %v5059, %v4694
    %v5077 = vsel %vm5073, %v5060, %v4696
    %v5078 = vsel %vm5073, %v5061, %v4698
    %v5079 = vsel %vm5073, %v5062, %v4700
    %v5080 = vsel %vm5073, %v5063, %v4702
    %v5081 = vsel %vm5073, %v5064, %v4704
    %v5082 = vsel %vm5073, %v5065, %v4706
    %v5083 = vsel %vm5073, %v5066, %v4708
    %v5084 = vsel %vm5073, %v5067, %v4710
    %v5085 = vsel %vm5073, %v5068, %v4712
    %v5086 = vsel %vm5073, %v5069, %v4714
    %v5087 = vsel %vm5073, %v5070, %v4716
    %v5088 = vsel %vm5073, %v5071, %v4718
    %v5089 = vsel %vm5073, %v5072, %v4720
    %vm5090 = vcmask 392192
    %v5091 = vsel %vm5090, %v5074, %v4754
    %v5092 = vsel %vm5090, %v5075, %v4756
    %v5093 = vsel %vm5090, %v5076, %v4758
    %v5094 = vsel %vm5090, %v5077, %v4760
    %v5095 = vsel %vm5090, %v5078, %v4762
    %v5096 = vsel %vm5090, %v5079, %v4764
    %v5097 = vsel %vm5090, %v5080, %v4766
    %v5098 = vsel %vm5090, %v5081, %v4768
    %v5099 = vsel %vm5090, %v5082, %v4770
    %v5100 = vsel %vm5090, %v5083, %v4772
    %v5101 = vsel %vm5090, %v5084, %v4774
    %v5102 = vsel %vm5090, %v5085, %v4776
    %v5103 = vsel %vm5090, %v5086, %v4778
    %v5104 = vsel %vm5090, %v5087, %v4780
    %v5105 = vsel %vm5090, %v5088, %v4782
    %v5106 = vsel %vm5090, %v5089, %v4784
    %vm5107 = vcmask 523264
    %v5108 = vsel %vm5107, %v5091, %v4818
    %v5109 = vsel %vm5107, %v5092, %v4820
    %v5110 = vsel %vm5107, %v5093, %v4822
    %v5111 = vsel %vm5107, %v5094, %v4824
    %v5112 = vsel %vm5107, %v5095, %v4826
    %v5113 = vsel %vm5107, %v5096, %v4828
    %v5114 = vsel %vm5107, %v5097, %v4830
    %v5115 = vsel %vm5107, %v5098, %v4832
    %v5116 = vsel %vm5107, %v5099, %v4834
    %v5117 = vsel %vm5107, %v5100, %v4836
    %v5118 = vsel %vm5107, %v5101, %v4838
    %v5119 = vsel %vm5107, %v5102, %v4840
    %v5120 = vsel %vm5107, %v5103, %v4842
    %v5121 = vsel %vm5107, %v5104, %v4844
    %v5122 = vsel %vm5107, %v5105, %v4846
    %v5123 = vsel %vm5107, %v5106, %v4848
    %vm5124 = vcmask 654336
    %v5125 = vsel %vm5124, %v5108, %v4882
    %v5126 = vsel %vm5124, %v5109, %v4884
    %v5127 = vsel %vm5124, %v5110, %v4886
    %v5128 = vsel %vm5124, %v5111, %v4888
    %v5129 = vsel %vm5124, %v5112, %v4890
    %v5130 = vsel %vm5124, %v5113, %v4892
    %v5131 = vsel %vm5124, %v5114, %v4894
    %v5132 = vsel %vm5124, %v5115, %v4896
    %v5133 = vsel %vm5124, %v5116, %v4898
    %v5134 = vsel %vm5124, %v5117, %v4900
    %v5135 = vsel %vm5124, %v5118, %v4902
    %v5136 = vsel %vm5124, %v5119, %v4904
    %v5137 = vsel %vm5124, %v5120, %v4906
    %v5138 = vsel %vm5124, %v5121, %v4908
    %v5139 = vsel %vm5124, %v5122, %v4910
    %v5140 = vsel %vm5124, %v5123, %v4912
    %vm5141 = vcmask 785408
    %v5142 = vsel %vm5141, %v5125, %v4946
    %v5143 = vsel %vm5141, %v5126, %v4948
    %v5144 = vsel %vm5141, %v5127, %v4950
    %v5145 = vsel %vm5141, %v5128, %v4952
    %v5146 = vsel %vm5141, %v5129, %v4954
    %v5147 = vsel %vm5141, %v5130, %v4956
    %v5148 = vsel %vm5141, %v5131, %v4958
    %v5149 = vsel %vm5141, %v5132, %v4960
    %v5150 = vsel %vm5141, %v5133, %v4962
    %v5151 = vsel %vm5141, %v5134, %v4964
    %v5152 = vsel %vm5141, %v5135, %v4966
    %v5153 = vsel %vm5141, %v5136, %v4968
    %v5154 = vsel %vm5141, %v5137, %v4970
    %v5155 = vsel %vm5141, %v5138, %v4972
    %v5156 = vsel %vm5141, %v5139, %v4974
    %v5157 = vsel %vm5141, %v5140, %v4976
    %vm5158 = vcmask 916480
    %v5159 = vsel %vm5158, %v5142, %v5010
    %v5160 = vsel %vm5158, %v5143, %v5012
    %v5161 = vsel %vm5158, %v5144, %v5014
    %v5162 = vsel %vm5158, %v5145, %v5016
    %v5163 = vsel %vm5158, %v5146, %v5018
    %v5164 = vsel %vm5158, %v5147, %v5020
    %v5165 = vsel %vm5158, %v5148, %v5022
    %v5166 = vsel %vm5158, %v5149, %v5024
    %v5167 = vsel %vm5158, %v5150, %v5026
    %v5168 = vsel %vm5158, %v5151, %v5028
    %v5169 = vsel %vm5158, %v5152, %v5030
    %v5170 = vsel %vm5158, %v5153, %v5032
    %v5171 = vsel %vm5158, %v5154, %v5034
    %v5172 = vsel %vm5158, %v5155, %v5036
    %v5173 = vsel %vm5158, %v5156, %v5038
    %v5174 = vsel %vm5158, %v5157, %v5040
    %v5175 = vpack.c.bf16 %v5160, %v5159
    %v5176 = vpack.c.bf16 %v5162, %v5161
    %v5177 = vpack.c.bf16 %v5164, %v5163
    %v5178 = vpack.c.bf16 %v5166, %v5165
    %v5179 = vpack.c.bf16 %v5168, %v5167
    %v5180 = vpack.c.bf16 %v5170, %v5169
    %v5181 = vpack.c.bf16 %v5172, %v5171
    %v5182 = vpack.c.bf16 %v5174, %v5173
    %v5183 = vld [vmem:[%s13] sm:$0xf]
    %v5184 = vld [vmem:[%s13 + $0x4] sm:$0xf]
    %v5185 = vld [vmem:[%s13 + $0x8] sm:$0xf]
    %v5186 = vld [vmem:[%s13 + $0xc] sm:$0xf]
    %v5187 = vld [vmem:[%s13 + $0x10] sm:$0xf]
    %v5188 = vld [vmem:[%s13 + $0x14] sm:$0xf]
    %v5189 = vld [vmem:[%s13 + $0x18] sm:$0xf]
    %v5190 = vld [vmem:[%s13 + $0x1c] sm:$0xf]
    %v5191 = vld [vmem:[%s13 + $0x20] sm:$0xf]
    %v5192 = vld [vmem:[%s13 + $0x24] sm:$0xf]
    %v5193 = vld [vmem:[%s13 + $0x28] sm:$0xf]
    %v5194 = vld [vmem:[%s13 + $0x2c] sm:$0xf]
    %v5195 = vld [vmem:[%s13 + $0x30] sm:$0xf]
    %v5196 = vld [vmem:[%s13 + $0x34] sm:$0xf]
    %v5197 = vld [vmem:[%s13 + $0x38] sm:$0xf]
    %v5198 = vld [vmem:[%s13 + $0x3c] sm:$0xf]
    %v5199 = vld [vmem:[%s14] sm:$0x1]
    %v5201 = vlaneseq
    %v5202 = vshrl.u32 %v5201, 7
    %v5203 = vsub.s32 0, %v5202
    %v5204 = vrot.slane %v5199, %v5203
    %v5222 = vunpack.c.l.b16 %v5183
    %v5223 = vunpack.c.l.b16 %v5184
    %v5224 = vunpack.c.l.b16 %v5185
    %v5225 = vunpack.c.l.b16 %v5186
    %v5226 = vunpack.c.l.b16 %v5187
    %v5227 = vunpack.c.l.b16 %v5188
    %v5228 = vunpack.c.l.b16 %v5189
    %v5229 = vunpack.c.l.b16 %v5190
    %v5230 = vunpack.c.l.b16 %v5191
    %v5231 = vunpack.c.l.b16 %v5192
    %v5232 = vunpack.c.l.b16 %v5193
    %v5233 = vunpack.c.l.b16 %v5194
    %v5234 = vunpack.c.l.b16 %v5195
    %v5235 = vunpack.c.l.b16 %v5196
    %v5236 = vunpack.c.l.b16 %v5197
    %v5237 = vunpack.c.l.b16 %v5198
    %v5238 = vpack.c.b16 %v5223, %v5222
    %v5239 = vpack.c.b16 %v5225, %v5224
    %v5240 = vpack.c.b16 %v5227, %v5226
    %v5241 = vpack.c.b16 %v5229, %v5228
    %v5242 = vpack.c.b16 %v5231, %v5230
    %v5243 = vpack.c.b16 %v5233, %v5232
    %v5244 = vpack.c.b16 %v5235, %v5234
    %v5245 = vpack.c.b16 %v5237, %v5236
    %5254 = vmatprep.subr.bf16.mxu0 0
    %5255 = vmatpush1.bf16.msra.mxu0 %v5238
    %5256 = vmatprep.subr.bf16.mxu0 0
    %5257 = vmatpush1.bf16.msra.mxu0 %v5239
    %5258 = vmatprep.subr.bf16.mxu0 0
    %5259 = vmatpush1.bf16.msra.mxu0 %v5240
    %5260 = vmatprep.subr.bf16.mxu0 0
    %5261 = vmatpush1.bf16.msra.mxu0 %v5241
    %5262 = vmatprep.subr.bf16.mxu0 0
    %5263 = vmatpush1.bf16.msra.mxu0 %v5242
    %5264 = vmatprep.subr.bf16.mxu0 0
    %5265 = vmatpush1.bf16.msra.mxu0 %v5243
    %5266 = vmatprep.subr.bf16.mxu0 0
    %5267 = vmatpush1.bf16.msra.mxu0 %v5244
    %5268 = vmatprep.subr.bf16.mxu0 0
    %5269 = vmatpush1.bf16.msra.mxu0 %v5245
    %5270 = vmatprep.subr.bf16.mxu0 0
    %5271 = vmatpush1.bf16.msra.mxu0 0
    %5272 = vmatprep.subr.bf16.mxu0 0
    %5273 = vmatpush1.bf16.msra.mxu0 0
    %5274 = vmatprep.subr.bf16.mxu0 0
    %5275 = vmatpush1.bf16.msra.mxu0 0
    %5276 = vmatprep.subr.bf16.mxu0 0
    %5277 = vmatpush1.bf16.msra.mxu0 0
    %5278 = vmatprep.subr.bf16.mxu0 0
    %5279 = vmatpush1.bf16.msra.mxu0 0
    %5280 = vmatprep.subr.bf16.mxu0 0
    %5281 = vmatpush1.bf16.msra.mxu0 0
    %5282 = vmatprep.subr.bf16.mxu0 0
    %5283 = vmatpush1.bf16.msra.mxu0 0
    %5284 = vmatprep.subr.bf16.mxu0 0
    %5285 = vmatpush1.bf16.msra.mxu0 0
    %5286 = vmatprep.mubr.bf16.mxu0 0
    %5287 = vmatmul.mubr.bf16.gmra.mrb[0].mxu0 %v5175
    %v5288 = vpop.f32.mrb[0].mxu0
    %v5289 = vadd.f32 %v5204, %v5288
    %v5290 = vpop.f32.mrb[0].mxu0
    %v5291 = vpop.f32.mrb[0].mxu0
    %v5292 = vadd.f32 %v5204, %v5291
    %v5293 = vpop.f32.mrb[0].mxu0
    %5294 = vmatprep.mubr.bf16.mxu0 0
    %5295 = vmatmul.mubr.bf16.gmra.mrb[0].mxu0 %v5176
    %v5296 = vpop.f32.mrb[0].mxu0
    %v5297 = vadd.f32 %v5204, %v5296
    %v5298 = vpop.f32.mrb[0].mxu0
    %v5299 = vpop.f32.mrb[0].mxu0
    %v5300 = vadd.f32 %v5204, %v5299
    %v5301 = vpop.f32.mrb[0].mxu0
    %5302 = vmatprep.mubr.bf16.mxu0 0
    %5303 = vmatmul.mubr.bf16.gmra.mrb[0].mxu0 %v5177
    %v5304 = vpop.f32.mrb[0].mxu0
    %v5305 = vadd.f32 %v5204, %v5304
    %v5306 = vpop.f32.mrb[0].mxu0
    %v5307 = vpop.f32.mrb[0].mxu0
    %v5308 = vadd.f32 %v5204, %v5307
    %v5309 = vpop.f32.mrb[0].mxu0
    %5310 = vmatprep.mubr.bf16.mxu0 0
    %5311 = vmatmul.mubr.bf16.gmra.mrb[0].mxu0 %v5178
    %v5312 = vpop.f32.mrb[0].mxu0
    %v5313 = vadd.f32 %v5204, %v5312
    %v5314 = vpop.f32.mrb[0].mxu0
    %v5315 = vpop.f32.mrb[0].mxu0
    %v5316 = vadd.f32 %v5204, %v5315
    %v5317 = vpop.f32.mrb[0].mxu0
    %5318 = vmatprep.mubr.bf16.mxu0 0
    %5319 = vmatmul.mubr.bf16.gmra.mrb[0].mxu0 %v5179
    %v5320 = vpop.f32.mrb[0].mxu0
    %v5321 = vadd.f32 %v5204, %v5320
    %v5322 = vpop.f32.mrb[0].mxu0
    %v5323 = vpop.f32.mrb[0].mxu0
    %v5324 = vadd.f32 %v5204, %v5323
    %v5325 = vpop.f32.mrb[0].mxu0
    %5326 = vmatprep.mubr.bf16.mxu0 0
    %5327 = vmatmul.mubr.bf16.gmra.mrb[0].mxu0 %v5180
    %v5328 = vpop.f32.mrb[0].mxu0
    %v5329 = vadd.f32 %v5204, %v5328
    %v5330 = vpop.f32.mrb[0].mxu0
    %v5331 = vpop.f32.mrb[0].mxu0
    %v5332 = vadd.f32 %v5204, %v5331
    %v5333 = vpop.f32.mrb[0].mxu0
    %5334 = vmatprep.mubr.bf16.mxu0 0
    %5335 = vmatmul.mubr.bf16.gmra.mrb[0].mxu0 %v5181
    %v5336 = vpop.f32.mrb[0].mxu0
    %v5337 = vadd.f32 %v5204, %v5336
    %v5338 = vpop.f32.mrb[0].mxu0
    %v5339 = vpop.f32.mrb[0].mxu0
    %v5340 = vadd.f32 %v5204, %v5339
    %v5341 = vpop.f32.mrb[0].mxu0
    %5342 = vmatprep.mubr.bf16.mxu0 0
    %5343 = vmatmul.mubr.bf16.gmra.mrb[0].mxu0 %v5182
    %v5344 = vpop.f32.mrb[0].mxu0
    %v5345 = vadd.f32 %v5204, %v5344
    %v5346 = vpop.f32.mrb[0].mxu0
    %v5347 = vpop.f32.mrb[0].mxu0
    %v5348 = vadd.f32 %v5204, %v5347
    %v5349 = vpop.f32.mrb[0].mxu0
    %5350 = vdwg.mxu0
    %v5351 = vld [vmem:[%s7] sm:$0xff]
    %v5352 = vld [vmem:[%s7 + $0x8] sm:$0xff]
    %v5353 = vld [vmem:[%s7 + $0x10] sm:$0xff]
    %v5354 = vld [vmem:[%s7 + $0x18] sm:$0xff]
    %v5355 = vld [vmem:[%s7 + $0x20] sm:$0xff]
    %v5356 = vld [vmem:[%s7 + $0x28] sm:$0xff]
    %v5357 = vld [vmem:[%s7 + $0x30] sm:$0xff]
    %v5358 = vld [vmem:[%s7 + $0x38] sm:$0xff]
    %v5359 = vld [vmem:[%s7 + $0x40] sm:$0xff]
    %v5360 = vld [vmem:[%s7 + $0x48] sm:$0xff]
    %v5361 = vld [vmem:[%s7 + $0x50] sm:$0xff]
    %v5362 = vld [vmem:[%s7 + $0x58] sm:$0xff]
    %v5363 = vld [vmem:[%s7 + $0x60] sm:$0xff]
    %v5364 = vld [vmem:[%s7 + $0x68] sm:$0xff]
    %v5365 = vld [vmem:[%s7 + $0x70] sm:$0xff]
    %v5366 = vld [vmem:[%s7 + $0x78] sm:$0xff]
    %v5367 = vld [vmem:[%s8] sm:$0x3]
    %v5368 = vld [vmem:[%s9] sm:$0xff]
    %v5369 = vld [vmem:[%s9 + $0x8] sm:$0xff]
    %v5370 = vld [vmem:[%s9 + $0x10] sm:$0xff]
    %v5371 = vld [vmem:[%s9 + $0x18] sm:$0xff]
    %v5372 = vld [vmem:[%s9 + $0x20] sm:$0xff]
    %v5373 = vld [vmem:[%s9 + $0x28] sm:$0xff]
    %v5374 = vld [vmem:[%s9 + $0x30] sm:$0xff]
    %v5375 = vld [vmem:[%s9 + $0x38] sm:$0xff]
    %v5376 = vld [vmem:[%s9 + $0x40] sm:$0xff]
    %v5377 = vld [vmem:[%s9 + $0x48] sm:$0xff]
    %v5378 = vld [vmem:[%s9 + $0x50] sm:$0xff]
    %v5379 = vld [vmem:[%s9 + $0x58] sm:$0xff]
    %v5380 = vld [vmem:[%s9 + $0x60] sm:$0xff]
    %v5381 = vld [vmem:[%s9 + $0x68] sm:$0xff]
    %v5382 = vld [vmem:[%s9 + $0x70] sm:$0xff]
    %v5383 = vld [vmem:[%s9 + $0x78] sm:$0xff]
    %v5384 = vld [vmem:[%s9 + $0x80] sm:$0xff]
    %v5385 = vld [vmem:[%s9 + $0x88] sm:$0xff]
    %v5386 = vld [vmem:[%s9 + $0x90] sm:$0xff]
    %v5387 = vld [vmem:[%s9 + $0x98] sm:$0xff]
    %v5388 = vld [vmem:[%s9 + $0xa0] sm:$0xff]
    %v5389 = vld [vmem:[%s9 + $0xa8] sm:$0xff]
    %v5390 = vld [vmem:[%s9 + $0xb0] sm:$0xff]
    %v5391 = vld [vmem:[%s9 + $0xb8] sm:$0xff]
    %v5392 = vld [vmem:[%s9 + $0xc0] sm:$0xff]
    %v5393 = vld [vmem:[%s9 + $0xc8] sm:$0xff]
    %v5394 = vld [vmem:[%s9 + $0xd0] sm:$0xff]
    %v5395 = vld [vmem:[%s9 + $0xd8] sm:$0xff]
    %v5396 = vld [vmem:[%s9 + $0xe0] sm:$0xff]
    %v5397 = vld [vmem:[%s9 + $0xe8] sm:$0xff]
    %v5398 = vld [vmem:[%s9 + $0xf0] sm:$0xff]
    %v5399 = vld [vmem:[%s9 + $0xf8] sm:$0xff]
    %v5400 = vld [vmem:[%s10] sm:$0xff]
    %v5401 = vld [vmem:[%s10 + $0x8] sm:$0xff]
    %v5402 = vadd.f32 %v89, %v5289
    %v5403 = vadd.f32 %v90, %v5292
    %v5404 = vadd.f32 %v91, %v5297
    %v5405 = vadd.f32 %v92, %v5300
    %v5406 = vadd.f32 %v93, %v5305
    %v5407 = vadd.f32 %v94, %v5308
    %v5408 = vadd.f32 %v95, %v5313
    %v5409 = vadd.f32 %v96, %v5316
    %v5410 = vadd.f32 %v97, %v5321
    %v5411 = vadd.f32 %v98, %v5324
    %v5412 = vadd.f32 %v99, %v5329
    %v5413 = vadd.f32 %v100, %v5332
    %v5414 = vadd.f32 %v101, %v5337
    %v5415 = vadd.f32 %v102, %v5340
    %v5416 = vadd.f32 %v103, %v5345
    %v5417 = vadd.f32 %v104, %v5348
    %v5418 = vld [vmem:[%s15] sm:$0x1]
    %v5419 = vld [vmem:[%s16] sm:$0x1]
    %v5420 = vmul.f32 %v5402, %v5402
    %v5421 = vmul.f32 %v5403, %v5403
    %v5422 = vmul.f32 %v5404, %v5404
    %v5423 = vmul.f32 %v5405, %v5405
    %v5424 = vmul.f32 %v5406, %v5406
    %v5425 = vmul.f32 %v5407, %v5407
    %v5426 = vmul.f32 %v5408, %v5408
    %v5427 = vmul.f32 %v5409, %v5409
    %v5428 = vmul.f32 %v5410, %v5410
    %v5429 = vmul.f32 %v5411, %v5411
    %v5430 = vmul.f32 %v5412, %v5412
    %v5431 = vmul.f32 %v5413, %v5413
    %v5432 = vmul.f32 %v5414, %v5414
    %v5433 = vmul.f32 %v5415, %v5415
    %v5434 = vmul.f32 %v5416, %v5416
    %v5435 = vmul.f32 %v5417, %v5417
    %5436 = vmatprep.subr.mxu0 %v5420
    %5437 = vmatpush1.msra.mxu0 %v5402
    %5438 = vmatprep.subr.mxu0 %v5421
    %5439 = vmatpush1.msra.mxu0 %v5403
    %5440 = vmatprep.subr.mxu0 %v5422
    %5441 = vmatpush1.msra.mxu0 %v5404
    %5442 = vmatprep.subr.mxu0 %v5423
    %5443 = vmatpush1.msra.mxu0 %v5405
    %5444 = vmatprep.subr.mxu0 %v5424
    %5445 = vmatpush1.msra.mxu0 %v5406
    %5446 = vmatprep.subr.mxu0 %v5425
    %5447 = vmatpush1.msra.mxu0 %v5407
    %5448 = vmatprep.subr.mxu0 %v5426
    %5449 = vmatpush1.msra.mxu0 %v5408
    %5450 = vmatprep.subr.mxu0 %v5427
    %5451 = vmatpush1.msra.mxu0 %v5409
    %5452 = vmatprep.subr.mxu0 %v5428
    %5453 = vmatpush1.msra.mxu0 %v5410
    %5454 = vmatprep.subr.mxu0 %v5429
    %5455 = vmatpush1.msra.mxu0 %v5411
    %5456 = vmatprep.subr.mxu0 %v5430
    %5457 = vmatpush1.msra.mxu0 %v5412
    %5458 = vmatprep.subr.mxu0 %v5431
    %5459 = vmatpush1.msra.mxu0 %v5413
    %5460 = vmatprep.subr.mxu0 %v5432
    %5461 = vmatpush1.msra.mxu0 %v5414
    %5462 = vmatprep.subr.mxu0 %v5433
    %5463 = vmatpush1.msra.mxu0 %v5415
    %5464 = vmatprep.subr.mxu0 %v5434
    %5465 = vmatpush1.msra.mxu0 %v5416
    %5466 = vmatprep.subr.mxu0 %v5435
    %5467 = vmatpush1.msra.mxu0 %v5417
    %5468 = vmatprep.subr.mxu0 0.0
    %5469 = vmatpush1.msra.mxu0 0.0
    %5470 = vmatprep.subr.mxu0 0.0
    %5471 = vmatpush1.msra.mxu0 0.0
    %5472 = vmatprep.subr.mxu0 0.0
    %5473 = vmatpush1.msra.mxu0 0.0
    %5474 = vmatprep.subr.mxu0 0.0
    %5475 = vmatpush1.msra.mxu0 0.0
    %5476 = vmatprep.subr.mxu0 0.0
    %5477 = vmatpush1.msra.mxu0 0.0
    %5478 = vmatprep.subr.mxu0 0.0
    %5479 = vmatpush1.msra.mxu0 0.0
    %5480 = vmatprep.subr.mxu0 0.0
    %5481 = vmatpush1.msra.mxu0 0.0
    %5482 = vmatprep.subr.mxu0 0.0
    %5483 = vmatpush1.msra.mxu0 0.0
    %5484 = vmatprep.subr.mxu0 0.0
    %5485 = vmatpush1.msra.mxu0 0.0
    %5486 = vmatprep.subr.mxu0 0.0
    %5487 = vmatpush1.msra.mxu0 0.0
    %5488 = vmatprep.subr.mxu0 0.0
    %5489 = vmatpush1.msra.mxu0 0.0
    %5490 = vmatprep.subr.mxu0 0.0
    %5491 = vmatpush1.msra.mxu0 0.0
    %5492 = vmatprep.subr.mxu0 0.0
    %5493 = vmatpush1.msra.mxu0 0.0
    %5494 = vmatprep.subr.mxu0 0.0
    %5495 = vmatpush1.msra.mxu0 0.0
    %5496 = vmatprep.subr.mxu0 0.0
    %5497 = vmatpush1.msra.mxu0 0.0
    %5498 = vmatprep.subr.mxu0 0.0
    %5499 = vmatpush1.msra.mxu0 0.0
    %5500 = vmatprep.mubr.f32.mxu0 0.0
    %5501 = vmatmul.mubr.f32.gmra.mrb[0].mxu0 %v5367
    %v5502 = vpop.f32.mrb[0].mxu0
    %v5503 = vadd.f32 0.0, %v5502
    %v5504 = vpop.f32.mrb[0].mxu0
    %v5505 = vadd.f32 0.0, %v5504
    %5506 = vdwg.mxu0
    %5507 = vmatprep.subr.mxu0 0.0
    %5508 = vmatpush1.msra.mxu0 %v5368
    %5509 = vmatprep.subr.mxu0 0.0
    %5510 = vmatpush1.msra.mxu0 %v5369
    %5511 = vmatprep.subr.mxu0 0.0
    %5512 = vmatpush1.msra.mxu0 %v5370
    %5513 = vmatprep.subr.mxu0 0.0
    %5514 = vmatpush1.msra.mxu0 %v5371
    %5515 = vmatprep.subr.mxu0 0.0
    %5516 = vmatpush1.msra.mxu0 %v5372
    %5517 = vmatprep.subr.mxu0 0.0
    %5518 = vmatpush1.msra.mxu0 %v5373
    %5519 = vmatprep.subr.mxu0 0.0
    %5520 = vmatpush1.msra.mxu0 %v5374
    %5521 = vmatprep.subr.mxu0 0.0
    %5522 = vmatpush1.msra.mxu0 %v5375
    %5523 = vmatprep.subr.mxu0 0.0
    %5524 = vmatpush1.msra.mxu0 %v5376
    %5525 = vmatprep.subr.mxu0 0.0
    %5526 = vmatpush1.msra.mxu0 %v5377
    %5527 = vmatprep.subr.mxu0 0.0
    %5528 = vmatpush1.msra.mxu0 %v5378
    %5529 = vmatprep.subr.mxu0 0.0
    %5530 = vmatpush1.msra.mxu0 %v5379
    %5531 = vmatprep.subr.mxu0 0.0
    %5532 = vmatpush1.msra.mxu0 %v5380
    %5533 = vmatprep.subr.mxu0 0.0
    %5534 = vmatpush1.msra.mxu0 %v5381
    %5535 = vmatprep.subr.mxu0 0.0
    %5536 = vmatpush1.msra.mxu0 %v5382
    %5537 = vmatprep.subr.mxu0 0.0
    %5538 = vmatpush1.msra.mxu0 %v5383
    %5539 = vmatprep.subr.mxu0 0.0
    %5540 = vmatpush1.msra.mxu0 %v5384
    %5541 = vmatprep.subr.mxu0 0.0
    %5542 = vmatpush1.msra.mxu0 %v5385
    %5543 = vmatprep.subr.mxu0 0.0
    %5544 = vmatpush1.msra.mxu0 %v5386
    %5545 = vmatprep.subr.mxu0 0.0
    %5546 = vmatpush1.msra.mxu0 %v5387
    %5547 = vmatprep.subr.mxu0 0.0
    %5548 = vmatpush1.msra.mxu0 %v5388
    %5549 = vmatprep.subr.mxu0 0.0
    %5550 = vmatpush1.msra.mxu0 %v5389
    %5551 = vmatprep.subr.mxu0 0.0
    %5552 = vmatpush1.msra.mxu0 %v5390
    %5553 = vmatprep.subr.mxu0 0.0
    %5554 = vmatpush1.msra.mxu0 %v5391
    %5555 = vmatprep.subr.mxu0 0.0
    %5556 = vmatpush1.msra.mxu0 %v5392
    %5557 = vmatprep.subr.mxu0 0.0
    %5558 = vmatpush1.msra.mxu0 %v5393
    %5559 = vmatprep.subr.mxu0 0.0
    %5560 = vmatpush1.msra.mxu0 %v5394
    %5561 = vmatprep.subr.mxu0 0.0
    %5562 = vmatpush1.msra.mxu0 %v5395
    %5563 = vmatprep.subr.mxu0 0.0
    %5564 = vmatpush1.msra.mxu0 %v5396
    %5565 = vmatprep.subr.mxu0 0.0
    %5566 = vmatpush1.msra.mxu0 %v5397
    %5567 = vmatprep.subr.mxu0 0.0
    %5568 = vmatpush1.msra.mxu0 %v5398
    %5569 = vmatprep.subr.mxu0 0.0
    %5570 = vmatpush1.msra.mxu0 %v5399
    %5571 = vmatprep.mubr.f32.mxu0 %v5505
    %5572 = vmatmul.mubr.f32.gmra.mrb[0].mxu0 %v5503
    %v5573 = vpop.f32.mrb[0].mxu0
    %v5574 = vadd.f32 0.0, %v5573
    %v5575 = vpop.f32.mrb[0].mxu0
    %5576 = vdwg.mxu0
    %v5577 = vmul.f32 %v5574, 0.001953125
    %v5578 = vmul.f32 %v5577, %v5577
    %5580 = vrot.lane.b32.xlu0 %v5578, 16
    %v5581 = vpop.permute.xlu0 %5580
    %v5583 = vsub.f32 %v5577, %v5581
    %v5584 = vadd.f32 %v5583, 1e-05
    %v5585 = vrsqrt.pop %v5584
    %v5587 = vsel %vm864, %v5577, 0
    %5589 = vmatprep.subr.mxu0 0.0
    %5590 = vmatpush1.msra.mxu0 %v5400
    %5591 = vmatprep.subr.mxu0 0.0
    %5592 = vmatpush1.msra.mxu0 %v5401
    %5593 = vmatprep.subr.mxu0 0.0
    %5594 = vmatpush1.msra.mxu0 0.0
    %5595 = vmatprep.subr.mxu0 0.0
    %5596 = vmatpush1.msra.mxu0 0.0
    %5597 = vmatprep.subr.mxu0 0.0
    %5598 = vmatpush1.msra.mxu0 0.0
    %5599 = vmatprep.subr.mxu0 0.0
    %5600 = vmatpush1.msra.mxu0 0.0
    %5601 = vmatprep.subr.mxu0 0.0
    %5602 = vmatpush1.msra.mxu0 0.0
    %5603 = vmatprep.subr.mxu0 0.0
    %5604 = vmatpush1.msra.mxu0 0.0
    %5605 = vmatprep.subr.mxu0 0.0
    %5606 = vmatpush1.msra.mxu0 0.0
    %5607 = vmatprep.subr.mxu0 0.0
    %5608 = vmatpush1.msra.mxu0 0.0
    %5609 = vmatprep.subr.mxu0 0.0
    %5610 = vmatpush1.msra.mxu0 0.0
    %5611 = vmatprep.subr.mxu0 0.0
    %5612 = vmatpush1.msra.mxu0 0.0
    %5613 = vmatprep.subr.mxu0 0.0
    %5614 = vmatpush1.msra.mxu0 0.0
    %5615 = vmatprep.subr.mxu0 0.0
    %5616 = vmatpush1.msra.mxu0 0.0
    %5617 = vmatprep.subr.mxu0 0.0
    %5618 = vmatpush1.msra.mxu0 0.0
    %5619 = vmatprep.subr.mxu0 0.0
    %5620 = vmatpush1.msra.mxu0 0.0
    %5621 = vmatprep.subr.mxu0 0.0
    %5622 = vmatpush1.msra.mxu0 0.0
    %5623 = vmatprep.subr.mxu0 0.0
    %5624 = vmatpush1.msra.mxu0 0.0
    %5625 = vmatprep.subr.mxu0 0.0
    %5626 = vmatpush1.msra.mxu0 0.0
    %5627 = vmatprep.subr.mxu0 0.0
    %5628 = vmatpush1.msra.mxu0 0.0
    %5629 = vmatprep.subr.mxu0 0.0
    %5630 = vmatpush1.msra.mxu0 0.0
    %5631 = vmatprep.subr.mxu0 0.0
    %5632 = vmatpush1.msra.mxu0 0.0
    %5633 = vmatprep.subr.mxu0 0.0
    %5634 = vmatpush1.msra.mxu0 0.0
    %5635 = vmatprep.subr.mxu0 0.0
    %5636 = vmatpush1.msra.mxu0 0.0
    %5637 = vmatprep.subr.mxu0 0.0
    %5638 = vmatpush1.msra.mxu0 0.0
    %5639 = vmatprep.subr.mxu0 0.0
    %5640 = vmatpush1.msra.mxu0 0.0
    %5641 = vmatprep.subr.mxu0 0.0
    %5642 = vmatpush1.msra.mxu0 0.0
    %5643 = vmatprep.subr.mxu0 0.0
    %5644 = vmatpush1.msra.mxu0 0.0
    %5645 = vmatprep.subr.mxu0 0.0
    %5646 = vmatpush1.msra.mxu0 0.0
    %5647 = vmatprep.subr.mxu0 0.0
    %5648 = vmatpush1.msra.mxu0 0.0
    %5649 = vmatprep.subr.mxu0 0.0
    %5650 = vmatpush1.msra.mxu0 0.0
    %5651 = vmatprep.subr.mxu0 0.0
    %5652 = vmatpush1.msra.mxu0 0.0
    %5653 = vmatprep.mubr.f32.mxu0 0.0
    %5654 = vmatmul.mubr.f32.gmra.mrb[0].mxu0 %v5587
    %v5655 = vpop.f32.mrb[0].mxu0
    %v5656 = vadd.f32 0.0, %v5655
    %v5657 = vpop.f32.mrb[0].mxu0
    %5658 = vdwg.mxu0
    %5660 = vrot.lane.b32.xlu0 %v5585, 112
    %v5661 = vpop.permute.xlu0 %5660
    %v5662 = vsel %vm864, %v5661, 0
    %5664 = vmatprep.subr.mxu0 0.0
    %5665 = vmatpush1.msra.mxu0 %v5400
    %5666 = vmatprep.subr.mxu0 0.0
    %5667 = vmatpush1.msra.mxu0 %v5401
    %5668 = vmatprep.subr.mxu0 0.0
    %5669 = vmatpush1.msra.mxu0 0.0
    %5670 = vmatprep.subr.mxu0 0.0
    %5671 = vmatpush1.msra.mxu0 0.0
    %5672 = vmatprep.subr.mxu0 0.0
    %5673 = vmatpush1.msra.mxu0 0.0
    %5674 = vmatprep.subr.mxu0 0.0
    %5675 = vmatpush1.msra.mxu0 0.0
    %5676 = vmatprep.subr.mxu0 0.0
    %5677 = vmatpush1.msra.mxu0 0.0
    %5678 = vmatprep.subr.mxu0 0.0
    %5679 = vmatpush1.msra.mxu0 0.0
    %5680 = vmatprep.subr.mxu0 0.0
    %5681 = vmatpush1.msra.mxu0 0.0
    %5682 = vmatprep.subr.mxu0 0.0
    %5683 = vmatpush1.msra.mxu0 0.0
    %5684 = vmatprep.subr.mxu0 0.0
    %5685 = vmatpush1.msra.mxu0 0.0
    %5686 = vmatprep.subr.mxu0 0.0
    %5687 = vmatpush1.msra.mxu0 0.0
    %5688 = vmatprep.subr.mxu0 0.0
    %5689 = vmatpush1.msra.mxu0 0.0
    %5690 = vmatprep.subr.mxu0 0.0
    %5691 = vmatpush1.msra.mxu0 0.0
    %5692 = vmatprep.subr.mxu0 0.0
    %5693 = vmatpush1.msra.mxu0 0.0
    %5694 = vmatprep.subr.mxu0 0.0
    %5695 = vmatpush1.msra.mxu0 0.0
    %5696 = vmatprep.subr.mxu0 0.0
    %5697 = vmatpush1.msra.mxu0 0.0
    %5698 = vmatprep.subr.mxu0 0.0
    %5699 = vmatpush1.msra.mxu0 0.0
    %5700 = vmatprep.subr.mxu0 0.0
    %5701 = vmatpush1.msra.mxu0 0.0
    %5702 = vmatprep.subr.mxu0 0.0
    %5703 = vmatpush1.msra.mxu0 0.0
    %5704 = vmatprep.subr.mxu0 0.0
    %5705 = vmatpush1.msra.mxu0 0.0
    %5706 = vmatprep.subr.mxu0 0.0
    %5707 = vmatpush1.msra.mxu0 0.0
    %5708 = vmatprep.subr.mxu0 0.0
    %5709 = vmatpush1.msra.mxu0 0.0
    %5710 = vmatprep.subr.mxu0 0.0
    %5711 = vmatpush1.msra.mxu0 0.0
    %5712 = vmatprep.subr.mxu0 0.0
    %5713 = vmatpush1.msra.mxu0 0.0
    %5714 = vmatprep.subr.mxu0 0.0
    %5715 = vmatpush1.msra.mxu0 0.0
    %5716 = vmatprep.subr.mxu0 0.0
    %5717 = vmatpush1.msra.mxu0 0.0
    %5718 = vmatprep.subr.mxu0 0.0
    %5719 = vmatpush1.msra.mxu0 0.0
    %5720 = vmatprep.subr.mxu0 0.0
    %5721 = vmatpush1.msra.mxu0 0.0
    %5722 = vmatprep.subr.mxu0 0.0
    %5723 = vmatpush1.msra.mxu0 0.0
    %5724 = vmatprep.subr.mxu0 0.0
    %5725 = vmatpush1.msra.mxu0 0.0
    %5726 = vmatprep.subr.mxu0 0.0
    %5727 = vmatpush1.msra.mxu0 0.0
    %5728 = vmatprep.mubr.f32.mxu0 0.0
    %5729 = vmatmul.mubr.f32.gmra.mrb[0].mxu0 %v5662
    %v5730 = vpop.f32.mrb[0].mxu0
    %v5731 = vadd.f32 0.0, %v5730
    %v5732 = vpop.f32.mrb[0].mxu0
    %5733 = vdwg.mxu0
    %v5735 = vlaneseq
    %v5736 = vshrl.u32 %v5735, 7
    %v5737 = vsub.s32 0, %v5736
    %v5738 = vrot.slane %v5418, %v5737
    %v5740 = vmul.f32 %v5731, %v5738
    %v5741 = vmul.f32 %v5656, %v5740
    %v5743 = vlaneseq
    %v5744 = vshrl.u32 %v5743, 7
    %v5745 = vsub.s32 0, %v5744
    %v5746 = vrot.slane %v5419, %v5745
    %v5748 = vsub.f32 %v5746, %v5741
    %vm5749 = vcmask 15360
    %v5751 = vsel %vm5749, %v5351, 0
    %v5754 = vsel %vm5749, %v5352, 0
    %v5757 = vsel %vm5749, %v5353, 0
    %v5760 = vsel %vm5749, %v5354, 0
    %v5763 = vsel %vm5749, %v5355, 0
    %v5766 = vsel %vm5749, %v5356, 0
    %v5769 = vsel %vm5749, %v5357, 0
    %v5772 = vsel %vm5749, %v5358, 0
    %v5775 = vsel %vm5749, %v5359, 0
    %v5778 = vsel %vm5749, %v5360, 0
    %v5781 = vsel %vm5749, %v5361, 0
    %v5784 = vsel %vm5749, %v5362, 0
    %v5787 = vsel %vm5749, %v5363, 0
    %v5790 = vsel %vm5749, %v5364, 0
    %v5793 = vsel %vm5749, %v5365, 0
    %v5796 = vsel %vm5749, %v5366, 0
    %vm5798 = vcmask 1041408
    %v5800 = vsel %vm5798, %v5740, 0
    %v5803 = vsel %vm5798, %v5748, 0
    %5805 = vmatprep.subr.mxu0 %v5803
    %5806 = vmatpush1.msra.mxu0 %v5800
    %5807 = vmatprep.subr.mxu0 0.0
    %5808 = vmatpush1.msra.mxu0 0.0
    %5809 = vmatprep.subr.mxu0 0.0
    %5810 = vmatpush1.msra.mxu0 0.0
    %5811 = vmatprep.subr.mxu0 0.0
    %5812 = vmatpush1.msra.mxu0 0.0
    %5813 = vmatprep.subr.mxu0 0.0
    %5814 = vmatpush1.msra.mxu0 0.0
    %5815 = vmatprep.subr.mxu0 0.0
    %5816 = vmatpush1.msra.mxu0 0.0
    %5817 = vmatprep.subr.mxu0 0.0
    %5818 = vmatpush1.msra.mxu0 0.0
    %5819 = vmatprep.subr.mxu0 0.0
    %5820 = vmatpush1.msra.mxu0 0.0
    %5821 = vmatprep.subr.mxu0 0.0
    %5822 = vmatpush1.msra.mxu0 0.0
    %5823 = vmatprep.subr.mxu0 0.0
    %5824 = vmatpush1.msra.mxu0 0.0
    %5825 = vmatprep.subr.mxu0 0.0
    %5826 = vmatpush1.msra.mxu0 0.0
    %5827 = vmatprep.subr.mxu0 0.0
    %5828 = vmatpush1.msra.mxu0 0.0
    %5829 = vmatprep.subr.mxu0 0.0
    %5830 = vmatpush1.msra.mxu0 0.0
    %5831 = vmatprep.subr.mxu0 0.0
    %5832 = vmatpush1.msra.mxu0 0.0
    %5833 = vmatprep.subr.mxu0 0.0
    %5834 = vmatpush1.msra.mxu0 0.0
    %5835 = vmatprep.subr.mxu0 0.0
    %5836 = vmatpush1.msra.mxu0 0.0
    %5837 = vmatprep.subr.mxu0 0.0
    %5838 = vmatpush1.msra.mxu0 0.0
    %5839 = vmatprep.subr.mxu0 0.0
    %5840 = vmatpush1.msra.mxu0 0.0
    %5841 = vmatprep.subr.mxu0 0.0
    %5842 = vmatpush1.msra.mxu0 0.0
    %5843 = vmatprep.subr.mxu0 0.0
    %5844 = vmatpush1.msra.mxu0 0.0
    %5845 = vmatprep.subr.mxu0 0.0
    %5846 = vmatpush1.msra.mxu0 0.0
    %5847 = vmatprep.subr.mxu0 0.0
    %5848 = vmatpush1.msra.mxu0 0.0
    %5849 = vmatprep.subr.mxu0 0.0
    %5850 = vmatpush1.msra.mxu0 0.0
    %5851 = vmatprep.subr.mxu0 0.0
    %5852 = vmatpush1.msra.mxu0 0.0
    %5853 = vmatprep.subr.mxu0 0.0
    %5854 = vmatpush1.msra.mxu0 0.0
    %5855 = vmatprep.subr.mxu0 0.0
    %5856 = vmatpush1.msra.mxu0 0.0
    %5857 = vmatprep.subr.mxu0 0.0
    %5858 = vmatpush1.msra.mxu0 0.0
    %5859 = vmatprep.subr.mxu0 0.0
    %5860 = vmatpush1.msra.mxu0 0.0
    %5861 = vmatprep.subr.mxu0 0.0
    %5862 = vmatpush1.msra.mxu0 0.0
    %5863 = vmatprep.subr.mxu0 0.0
    %5864 = vmatpush1.msra.mxu0 0.0
    %5865 = vmatprep.subr.mxu0 0.0
    %5866 = vmatpush1.msra.mxu0 0.0
    %5867 = vmatprep.subr.mxu0 0.0
    %5868 = vmatpush1.msra.mxu0 0.0
    %5869 = vmatprep.mubr.f32.mxu0 0.0
    %5870 = vmatmul.mubr.f32.gmra.mrb[0].mxu0 %v5751
    %v5871 = vpop.f32.mrb[0].mxu0
    %v5872 = vadd.f32 0.0, %v5871
    %v5873 = vpop.f32.mrb[0].mxu0
    %v5874 = vadd.f32 0.0, %v5873
    %5875 = vmatprep.mubr.f32.mxu0 0.0
    %5876 = vmatmul.mubr.f32.gmra.mrb[0].mxu0 %v5754
    %v5877 = vpop.f32.mrb[0].mxu0
    %v5878 = vadd.f32 0.0, %v5877
    %v5879 = vpop.f32.mrb[0].mxu0
    %v5880 = vadd.f32 0.0, %v5879
    %5881 = vmatprep.mubr.f32.mxu0 0.0
    %5882 = vmatmul.mubr.f32.gmra.mrb[0].mxu0 %v5757
    %v5883 = vpop.f32.mrb[0].mxu0
    %v5884 = vadd.f32 0.0, %v5883
    %v5885 = vpop.f32.mrb[0].mxu0
    %v5886 = vadd.f32 0.0, %v5885
    %5887 = vmatprep.mubr.f32.mxu0 0.0
    %5888 = vmatmul.mubr.f32.gmra.mrb[0].mxu0 %v5760
    %v5889 = vpop.f32.mrb[0].mxu0
    %v5890 = vadd.f32 0.0, %v5889
    %v5891 = vpop.f32.mrb[0].mxu0
    %v5892 = vadd.f32 0.0, %v5891
    %5893 = vmatprep.mubr.f32.mxu0 0.0
    %5894 = vmatmul.mubr.f32.gmra.mrb[0].mxu0 %v5763
    %v5895 = vpop.f32.mrb[0].mxu0
    %v5896 = vadd.f32 0.0, %v5895
    %v5897 = vpop.f32.mrb[0].mxu0
    %v5898 = vadd.f32 0.0, %v5897
    %5899 = vmatprep.mubr.f32.mxu0 0.0
    %5900 = vmatmul.mubr.f32.gmra.mrb[0].mxu0 %v5766
    %v5901 = vpop.f32.mrb[0].mxu0
    %v5902 = vadd.f32 0.0, %v5901
    %v5903 = vpop.f32.mrb[0].mxu0
    %v5904 = vadd.f32 0.0, %v5903
    %5905 = vmatprep.mubr.f32.mxu0 0.0
    %5906 = vmatmul.mubr.f32.gmra.mrb[0].mxu0 %v5769
    %v5907 = vpop.f32.mrb[0].mxu0
    %v5908 = vadd.f32 0.0, %v5907
    %v5909 = vpop.f32.mrb[0].mxu0
    %v5910 = vadd.f32 0.0, %v5909
    %5911 = vmatprep.mubr.f32.mxu0 0.0
    %5912 = vmatmul.mubr.f32.gmra.mrb[0].mxu0 %v5772
    %v5913 = vpop.f32.mrb[0].mxu0
    %v5914 = vadd.f32 0.0, %v5913
    %v5915 = vpop.f32.mrb[0].mxu0
    %v5916 = vadd.f32 0.0, %v5915
    %5917 = vmatprep.mubr.f32.mxu0 0.0
    %5918 = vmatmul.mubr.f32.gmra.mrb[0].mxu0 %v5775
    %v5919 = vpop.f32.mrb[0].mxu0
    %v5920 = vadd.f32 0.0, %v5919
    %v5921 = vpop.f32.mrb[0].mxu0
    %v5922 = vadd.f32 0.0, %v5921
    %5923 = vmatprep.mubr.f32.mxu0 0.0
    %5924 = vmatmul.mubr.f32.gmra.mrb[0].mxu0 %v5778
    %v5925 = vpop.f32.mrb[0].mxu0
    %v5926 = vadd.f32 0.0, %v5925
    %v5927 = vpop.f32.mrb[0].mxu0
    %v5928 = vadd.f32 0.0, %v5927
    %5929 = vmatprep.mubr.f32.mxu0 0.0
    %5930 = vmatmul.mubr.f32.gmra.mrb[0].mxu0 %v5781
    %v5931 = vpop.f32.mrb[0].mxu0
    %v5932 = vadd.f32 0.0, %v5931
    %v5933 = vpop.f32.mrb[0].mxu0
    %v5934 = vadd.f32 0.0, %v5933
    %5935 = vmatprep.mubr.f32.mxu0 0.0
    %5936 = vmatmul.mubr.f32.gmra.mrb[0].mxu0 %v5784
    %v5937 = vpop.f32.mrb[0].mxu0
    %v5938 = vadd.f32 0.0, %v5937
    %v5939 = vpop.f32.mrb[0].mxu0
    %v5940 = vadd.f32 0.0, %v5939
    %5941 = vmatprep.mubr.f32.mxu0 0.0
    %5942 = vmatmul.mubr.f32.gmra.mrb[0].mxu0 %v5787
    %v5943 = vpop.f32.mrb[0].mxu0
    %v5944 = vadd.f32 0.0, %v5943
    %v5945 = vpop.f32.mrb[0].mxu0
    %v5946 = vadd.f32 0.0, %v5945
    %5947 = vmatprep.mubr.f32.mxu0 0.0
    %5948 = vmatmul.mubr.f32.gmra.mrb[0].mxu0 %v5790
    %v5949 = vpop.f32.mrb[0].mxu0
    %v5950 = vadd.f32 0.0, %v5949
    %v5951 = vpop.f32.mrb[0].mxu0
    %v5952 = vadd.f32 0.0, %v5951
    %5953 = vmatprep.mubr.f32.mxu0 0.0
    %5954 = vmatmul.mubr.f32.gmra.mrb[0].mxu0 %v5793
    %v5955 = vpop.f32.mrb[0].mxu0
    %v5956 = vadd.f32 0.0, %v5955
    %v5957 = vpop.f32.mrb[0].mxu0
    %v5958 = vadd.f32 0.0, %v5957
    %5959 = vmatprep.mubr.f32.mxu0 0.0
    %5960 = vmatmul.mubr.f32.gmra.mrb[0].mxu0 %v5796
    %v5961 = vpop.f32.mrb[0].mxu0
    %v5962 = vadd.f32 0.0, %v5961
    %v5963 = vpop.f32.mrb[0].mxu0
    %v5964 = vadd.f32 0.0, %v5963
    %5965 = vdwg.mxu0
    %v5966 = vmul.f32 %v5402, %v5872
    %v5967 = vmul.f32 %v5403, %v5878
    %v5968 = vmul.f32 %v5404, %v5884
    %v5969 = vmul.f32 %v5405, %v5890
    %v5970 = vmul.f32 %v5406, %v5896
    %v5971 = vmul.f32 %v5407, %v5902
    %v5972 = vmul.f32 %v5408, %v5908
    %v5973 = vmul.f32 %v5409, %v5914
    %v5974 = vmul.f32 %v5410, %v5920
    %v5975 = vmul.f32 %v5411, %v5926
    %v5976 = vmul.f32 %v5412, %v5932
    %v5977 = vmul.f32 %v5413, %v5938
    %v5978 = vmul.f32 %v5414, %v5944
    %v5979 = vmul.f32 %v5415, %v5950
    %v5980 = vmul.f32 %v5416, %v5956
    %v5981 = vmul.f32 %v5417, %v5962
    %v5982 = vadd.f32 %v5966, %v5874
    %v5983 = vadd.f32 %v5967, %v5880
    %v5984 = vadd.f32 %v5968, %v5886
    %v5985 = vadd.f32 %v5969, %v5892
    %v5986 = vadd.f32 %v5970, %v5898
    %v5987 = vadd.f32 %v5971, %v5904
    %v5988 = vadd.f32 %v5972, %v5910
    %v5989 = vadd.f32 %v5973, %v5916
    %v5990 = vadd.f32 %v5974, %v5922
    %v5991 = vadd.f32 %v5975, %v5928
    %v5992 = vadd.f32 %v5976, %v5934
    %v5993 = vadd.f32 %v5977, %v5940
    %v5994 = vadd.f32 %v5978, %v5946
    %v5995 = vadd.f32 %v5979, %v5952
    %v5996 = vadd.f32 %v5980, %v5958
    %v5997 = vadd.f32 %v5981, %v5964
    %v5998 = vmax.f32 %v5982, 0.0
    %v5999 = vmax.f32 %v5983, 0.0
    %v6000 = vmax.f32 %v5984, 0.0
    %v6001 = vmax.f32 %v5985, 0.0
    %v6002 = vmax.f32 %v5986, 0.0
    %v6003 = vmax.f32 %v5987, 0.0
    %v6004 = vmax.f32 %v5988, 0.0
    %v6005 = vmax.f32 %v5989, 0.0
    %v6006 = vmax.f32 %v5990, 0.0
    %v6007 = vmax.f32 %v5991, 0.0
    %v6008 = vmax.f32 %v5992, 0.0
    %v6009 = vmax.f32 %v5993, 0.0
    %v6010 = vmax.f32 %v5994, 0.0
    %v6011 = vmax.f32 %v5995, 0.0
    %v6012 = vmax.f32 %v5996, 0.0
    %v6013 = vmax.f32 %v5997, 0.0
    %v6014 = vpack.c.bf16 %v5999, %v5998
    %v6015 = vpack.c.bf16 %v6001, %v6000
    %v6016 = vpack.c.bf16 %v6003, %v6002
    %v6017 = vpack.c.bf16 %v6005, %v6004
    %v6018 = vpack.c.bf16 %v6007, %v6006
    %v6019 = vpack.c.bf16 %v6009, %v6008
    %v6020 = vpack.c.bf16 %v6011, %v6010
    %v6021 = vpack.c.bf16 %v6013, %v6012
    %v6022 = vld [vmem:[%s17] sm:$0xff]
    %v6023 = vld [vmem:[%s17 + $0x8] sm:$0xff]
    %v6024 = vld [vmem:[%s17 + $0x10] sm:$0xff]
    %v6025 = vld [vmem:[%s17 + $0x18] sm:$0xff]
    %v6026 = vld [vmem:[%s17 + $0x20] sm:$0xff]
    %v6027 = vld [vmem:[%s17 + $0x28] sm:$0xff]
    %v6028 = vld [vmem:[%s17 + $0x30] sm:$0xff]
    %v6029 = vld [vmem:[%s17 + $0x38] sm:$0xff]
    %v6030 = vld [vmem:[%s17 + $0x40] sm:$0xff]
    %v6031 = vld [vmem:[%s17 + $0x48] sm:$0xff]
    %v6032 = vld [vmem:[%s17 + $0x50] sm:$0xff]
    %v6033 = vld [vmem:[%s17 + $0x58] sm:$0xff]
    %v6034 = vld [vmem:[%s17 + $0x60] sm:$0xff]
    %v6035 = vld [vmem:[%s17 + $0x68] sm:$0xff]
    %v6036 = vld [vmem:[%s17 + $0x70] sm:$0xff]
    %v6037 = vld [vmem:[%s17 + $0x78] sm:$0xff]
    %v6038 = vld [vmem:[%s17 + $0x80] sm:$0xff]
    %v6039 = vld [vmem:[%s17 + $0x88] sm:$0xff]
    %v6040 = vld [vmem:[%s17 + $0x90] sm:$0xff]
    %v6041 = vld [vmem:[%s17 + $0x98] sm:$0xff]
    %v6042 = vld [vmem:[%s17 + $0xa0] sm:$0xff]
    %v6043 = vld [vmem:[%s17 + $0xa8] sm:$0xff]
    %v6044 = vld [vmem:[%s17 + $0xb0] sm:$0xff]
    %v6045 = vld [vmem:[%s17 + $0xb8] sm:$0xff]
    %v6046 = vld [vmem:[%s17 + $0xc0] sm:$0xff]
    %v6047 = vld [vmem:[%s17 + $0xc8] sm:$0xff]
    %v6048 = vld [vmem:[%s17 + $0xd0] sm:$0xff]
    %v6049 = vld [vmem:[%s17 + $0xd8] sm:$0xff]
    %v6050 = vld [vmem:[%s17 + $0xe0] sm:$0xff]
    %v6051 = vld [vmem:[%s17 + $0xe8] sm:$0xff]
    %v6052 = vld [vmem:[%s17 + $0xf0] sm:$0xff]
    %v6053 = vld [vmem:[%s17 + $0xf8] sm:$0xff]
    %v6054 = vld [vmem:[%s18] sm:$0xf]
    %v6056 = vlaneseq
    %v6057 = vshrl.u32 %v6056, 7
    %v6058 = vsub.s32 0, %v6057
    %v6059 = vrot.slane %v6054, %v6058
    %v6060 = vlaneseq
    %v6061 = vshrl.u32 %v6060, 7
    %v6062 = vsub.s32 1, %v6061
    %v6063 = vrot.slane %v6054, %v6062
    %v6064 = vlaneseq
    %v6065 = vshrl.u32 %v6064, 7
    %v6066 = vsub.s32 2, %v6065
    %v6067 = vrot.slane %v6054, %v6066
    %v6068 = vlaneseq
    %v6069 = vshrl.u32 %v6068, 7
    %v6070 = vsub.s32 3, %v6069
    %v6071 = vrot.slane %v6054, %v6070
    %v6108 = vunpack.c.l.b16 %v6022
    %v6109 = vunpack.c.h.b16 %v6022
    %v6110 = vunpack.c.l.b16 %v6023
    %v6111 = vunpack.c.h.b16 %v6023
    %v6112 = vunpack.c.l.b16 %v6024
    %v6113 = vunpack.c.h.b16 %v6024
    %v6114 = vunpack.c.l.b16 %v6025
    %v6115 = vunpack.c.h.b16 %v6025
    %v6116 = vunpack.c.l.b16 %v6026
    %v6117 = vunpack.c.h.b16 %v6026
    %v6118 = vunpack.c.l.b16 %v6027
    %v6119 = vunpack.c.h.b16 %v6027
    %v6120 = vunpack.c.l.b16 %v6028
    %v6121 = vunpack.c.h.b16 %v6028
    %v6122 = vunpack.c.l.b16 %v6029
    %v6123 = vunpack.c.h.b16 %v6029
    %v6124 = vunpack.c.l.b16 %v6030
    %v6125 = vunpack.c.h.b16 %v6030
    %v6126 = vunpack.c.l.b16 %v6031
    %v6127 = vunpack.c.h.b16 %v6031
    %v6128 = vunpack.c.l.b16 %v6032
    %v6129 = vunpack.c.h.b16 %v6032
    %v6130 = vunpack.c.l.b16 %v6033
    %v6131 = vunpack.c.h.b16 %v6033
    %v6132 = vunpack.c.l.b16 %v6034
    %v6133 = vunpack.c.h.b16 %v6034
    %v6134 = vunpack.c.l.b16 %v6035
    %v6135 = vunpack.c.h.b16 %v6035
    %v6136 = vunpack.c.l.b16 %v6036
    %v6137 = vunpack.c.h.b16 %v6036
    %v6138 = vunpack.c.l.b16 %v6037
    %v6139 = vunpack.c.h.b16 %v6037
    %v6140 = vunpack.c.l.b16 %v6038
    %v6141 = vunpack.c.h.b16 %v6038
    %v6142 = vunpack.c.l.b16 %v6039
    %v6143 = vunpack.c.h.b16 %v6039
    %v6144 = vunpack.c.l.b16 %v6040
    %v6145 = vunpack.c.h.b16 %v6040
    %v6146 = vunpack.c.l.b16 %v6041
    %v6147 = vunpack.c.h.b16 %v6041
    %v6148 = vunpack.c.l.b16 %v6042
    %v6149 = vunpack.c.h.b16 %v6042
    %v6150 = vunpack.c.l.b16 %v6043
    %v6151 = vunpack.c.h.b16 %v6043
    %v6152 = vunpack.c.l.b16 %v6044
    %v6153 = vunpack.c.h.b16 %v6044
    %v6154 = vunpack.c.l.b16 %v6045
    %v6155 = vunpack.c.h.b16 %v6045
    %v6156 = vunpack.c.l.b16 %v6046
    %v6157 = vunpack.c.h.b16 %v6046
    %v6158 = vunpack.c.l.b16 %v6047
    %v6159 = vunpack.c.h.b16 %v6047
    %v6160 = vunpack.c.l.b16 %v6048
    %v6161 = vunpack.c.h.b16 %v6048
    %v6162 = vunpack.c.l.b16 %v6049
    %v6163 = vunpack.c.h.b16 %v6049
    %v6164 = vunpack.c.l.b16 %v6050
    %v6165 = vunpack.c.h.b16 %v6050
    %v6166 = vunpack.c.l.b16 %v6051
    %v6167 = vunpack.c.h.b16 %v6051
    %v6168 = vunpack.c.l.b16 %v6052
    %v6169 = vunpack.c.h.b16 %v6052
    %v6170 = vunpack.c.l.b16 %v6053
    %v6171 = vunpack.c.h.b16 %v6053
    %v6172 = vpack.c.b16 %v6112, %v6108
    %v6173 = vpack.c.b16 %v6113, %v6109
    %v6174 = vpack.c.b16 %v6114, %v6110
    %v6175 = vpack.c.b16 %v6115, %v6111
    %v6176 = vpack.c.b16 %v6120, %v6116
    %v6177 = vpack.c.b16 %v6121, %v6117
    %v6178 = vpack.c.b16 %v6122, %v6118
    %v6179 = vpack.c.b16 %v6123, %v6119
    %v6180 = vpack.c.b16 %v6128, %v6124
    %v6181 = vpack.c.b16 %v6129, %v6125
    %v6182 = vpack.c.b16 %v6130, %v6126
    %v6183 = vpack.c.b16 %v6131, %v6127
    %v6184 = vpack.c.b16 %v6136, %v6132
    %v6185 = vpack.c.b16 %v6137, %v6133
    %v6186 = vpack.c.b16 %v6138, %v6134
    %v6187 = vpack.c.b16 %v6139, %v6135
    %v6188 = vpack.c.b16 %v6144, %v6140
    %v6189 = vpack.c.b16 %v6145, %v6141
    %v6190 = vpack.c.b16 %v6146, %v6142
    %v6191 = vpack.c.b16 %v6147, %v6143
    %v6192 = vpack.c.b16 %v6152, %v6148
    %v6193 = vpack.c.b16 %v6153, %v6149
    %v6194 = vpack.c.b16 %v6154, %v6150
    %v6195 = vpack.c.b16 %v6155, %v6151
    %v6196 = vpack.c.b16 %v6160, %v6156
    %v6197 = vpack.c.b16 %v6161, %v6157
    %v6198 = vpack.c.b16 %v6162, %v6158
    %v6199 = vpack.c.b16 %v6163, %v6159
    %v6200 = vpack.c.b16 %v6168, %v6164
    %v6201 = vpack.c.b16 %v6169, %v6165
    %v6202 = vpack.c.b16 %v6170, %v6166
    %v6203 = vpack.c.b16 %v6171, %v6167
    %6236 = vmatprep.subr.bf16.mxu0 %v6173
    %6237 = vmatpush1.bf16.msra.mxu0 %v6172
    %6238 = vmatprep.subr.bf16.mxu0 %v6177
    %6239 = vmatpush1.bf16.msra.mxu0 %v6176
    %6240 = vmatprep.subr.bf16.mxu0 %v6181
    %6241 = vmatpush1.bf16.msra.mxu0 %v6180
    %6242 = vmatprep.subr.bf16.mxu0 %v6185
    %6243 = vmatpush1.bf16.msra.mxu0 %v6184
    %6244 = vmatprep.subr.bf16.mxu0 %v6189
    %6245 = vmatpush1.bf16.msra.mxu0 %v6188
    %6246 = vmatprep.subr.bf16.mxu0 %v6193
    %6247 = vmatpush1.bf16.msra.mxu0 %v6192
    %6248 = vmatprep.subr.bf16.mxu0 %v6197
    %6249 = vmatpush1.bf16.msra.mxu0 %v6196
    %6250 = vmatprep.subr.bf16.mxu0 %v6201
    %6251 = vmatpush1.bf16.msra.mxu0 %v6200
    %6252 = vmatprep.subr.bf16.mxu0 0
    %6253 = vmatpush1.bf16.msra.mxu0 0
    %6254 = vmatprep.subr.bf16.mxu0 0
    %6255 = vmatpush1.bf16.msra.mxu0 0
    %6256 = vmatprep.subr.bf16.mxu0 0
    %6257 = vmatpush1.bf16.msra.mxu0 0
    %6258 = vmatprep.subr.bf16.mxu0 0
    %6259 = vmatpush1.bf16.msra.mxu0 0
    %6260 = vmatprep.subr.bf16.mxu0 0
    %6261 = vmatpush1.bf16.msra.mxu0 0
    %6262 = vmatprep.subr.bf16.mxu0 0
    %6263 = vmatpush1.bf16.msra.mxu0 0
    %6264 = vmatprep.subr.bf16.mxu0 0
    %6265 = vmatpush1.bf16.msra.mxu0 0
    %6266 = vmatprep.subr.bf16.mxu0 0
    %6267 = vmatpush1.bf16.msra.mxu0 0
    %6268 = vmatprep.mubr.bf16.mxu0 0
    %6269 = vmatmul.mubr.bf16.gmra.mrb[0].mxu0 %v6014
    %v6270 = vpop.f32.mrb[0].mxu0
    %v6271 = vadd.f32 %v6059, %v6270
    %v6272 = vpop.f32.mrb[0].mxu0
    %v6273 = vadd.f32 %v6063, %v6272
    %v6274 = vpop.f32.mrb[0].mxu0
    %v6275 = vadd.f32 %v6059, %v6274
    %v6276 = vpop.f32.mrb[0].mxu0
    %v6277 = vadd.f32 %v6063, %v6276
    %6278 = vmatprep.mubr.bf16.mxu0 0
    %6279 = vmatmul.mubr.bf16.gmra.mrb[0].mxu0 %v6015
    %v6280 = vpop.f32.mrb[0].mxu0
    %v6281 = vadd.f32 %v6059, %v6280
    %v6282 = vpop.f32.mrb[0].mxu0
    %v6283 = vadd.f32 %v6063, %v6282
    %v6284 = vpop.f32.mrb[0].mxu0
    %v6285 = vadd.f32 %v6059, %v6284
    %v6286 = vpop.f32.mrb[0].mxu0
    %v6287 = vadd.f32 %v6063, %v6286
    %6288 = vmatprep.mubr.bf16.mxu0 0
    %6289 = vmatmul.mubr.bf16.gmra.mrb[0].mxu0 %v6016
    %v6290 = vpop.f32.mrb[0].mxu0
    %v6291 = vadd.f32 %v6059, %v6290
    %v6292 = vpop.f32.mrb[0].mxu0
    %v6293 = vadd.f32 %v6063, %v6292
    %v6294 = vpop.f32.mrb[0].mxu0
    %v6295 = vadd.f32 %v6059, %v6294
    %v6296 = vpop.f32.mrb[0].mxu0
    %v6297 = vadd.f32 %v6063, %v6296
    %6298 = vmatprep.mubr.bf16.mxu0 0
    %6299 = vmatmul.mubr.bf16.gmra.mrb[0].mxu0 %v6017
    %v6300 = vpop.f32.mrb[0].mxu0
    %v6301 = vadd.f32 %v6059, %v6300
    %v6302 = vpop.f32.mrb[0].mxu0
    %v6303 = vadd.f32 %v6063, %v6302
    %v6304 = vpop.f32.mrb[0].mxu0
    %v6305 = vadd.f32 %v6059, %v6304
    %v6306 = vpop.f32.mrb[0].mxu0
    %v6307 = vadd.f32 %v6063, %v6306
    %6308 = vmatprep.mubr.bf16.mxu0 0
    %6309 = vmatmul.mubr.bf16.gmra.mrb[0].mxu0 %v6018
    %v6310 = vpop.f32.mrb[0].mxu0
    %v6311 = vadd.f32 %v6059, %v6310
    %v6312 = vpop.f32.mrb[0].mxu0
    %v6313 = vadd.f32 %v6063, %v6312
    %v6314 = vpop.f32.mrb[0].mxu0
    %v6315 = vadd.f32 %v6059, %v6314
    %v6316 = vpop.f32.mrb[0].mxu0
    %v6317 = vadd.f32 %v6063, %v6316
    %6318 = vmatprep.mubr.bf16.mxu0 0
    %6319 = vmatmul.mubr.bf16.gmra.mrb[0].mxu0 %v6019
    %v6320 = vpop.f32.mrb[0].mxu0
    %v6321 = vadd.f32 %v6059, %v6320
    %v6322 = vpop.f32.mrb[0].mxu0
    %v6323 = vadd.f32 %v6063, %v6322
    %v6324 = vpop.f32.mrb[0].mxu0
    %v6325 = vadd.f32 %v6059, %v6324
    %v6326 = vpop.f32.mrb[0].mxu0
    %v6327 = vadd.f32 %v6063, %v6326
    %6328 = vmatprep.mubr.bf16.mxu0 0
    %6329 = vmatmul.mubr.bf16.gmra.mrb[0].mxu0 %v6020
    %v6330 = vpop.f32.mrb[0].mxu0
    %v6331 = vadd.f32 %v6059, %v6330
    %v6332 = vpop.f32.mrb[0].mxu0
    %v6333 = vadd.f32 %v6063, %v6332
    %v6334 = vpop.f32.mrb[0].mxu0
    %v6335 = vadd.f32 %v6059, %v6334
    %v6336 = vpop.f32.mrb[0].mxu0
    %v6337 = vadd.f32 %v6063, %v6336
    %6338 = vmatprep.mubr.bf16.mxu0 0
    %6339 = vmatmul.mubr.bf16.gmra.mrb[0].mxu0 %v6021
    %v6340 = vpop.f32.mrb[0].mxu0
    %v6341 = vadd.f32 %v6059, %v6340
    %v6342 = vpop.f32.mrb[0].mxu0
    %v6343 = vadd.f32 %v6063, %v6342
    %v6344 = vpop.f32.mrb[0].mxu0
    %v6345 = vadd.f32 %v6059, %v6344
    %v6346 = vpop.f32.mrb[0].mxu0
    %v6347 = vadd.f32 %v6063, %v6346
    %6348 = vdwg.mxu0
    %6349 = vmatprep.subr.bf16.mxu0 %v6175
    %6350 = vmatpush1.bf16.msra.mxu0 %v6174
    %6351 = vmatprep.subr.bf16.mxu0 %v6179
    %6352 = vmatpush1.bf16.msra.mxu0 %v6178
    %6353 = vmatprep.subr.bf16.mxu0 %v6183
    %6354 = vmatpush1.bf16.msra.mxu0 %v6182
    %6355 = vmatprep.subr.bf16.mxu0 %v6187
    %6356 = vmatpush1.bf16.msra.mxu0 %v6186
    %6357 = vmatprep.subr.bf16.mxu0 %v6191
    %6358 = vmatpush1.bf16.msra.mxu0 %v6190
    %6359 = vmatprep.subr.bf16.mxu0 %v6195
    %6360 = vmatpush1.bf16.msra.mxu0 %v6194
    %6361 = vmatprep.subr.bf16.mxu0 %v6199
    %6362 = vmatpush1.bf16.msra.mxu0 %v6198
    %6363 = vmatprep.subr.bf16.mxu0 %v6203
    %6364 = vmatpush1.bf16.msra.mxu0 %v6202
    %6365 = vmatprep.subr.bf16.mxu0 0
    %6366 = vmatpush1.bf16.msra.mxu0 0
    %6367 = vmatprep.subr.bf16.mxu0 0
    %6368 = vmatpush1.bf16.msra.mxu0 0
    %6369 = vmatprep.subr.bf16.mxu0 0
    %6370 = vmatpush1.bf16.msra.mxu0 0
    %6371 = vmatprep.subr.bf16.mxu0 0
    %6372 = vmatpush1.bf16.msra.mxu0 0
    %6373 = vmatprep.subr.bf16.mxu0 0
    %6374 = vmatpush1.bf16.msra.mxu0 0
    %6375 = vmatprep.subr.bf16.mxu0 0
    %6376 = vmatpush1.bf16.msra.mxu0 0
    %6377 = vmatprep.subr.bf16.mxu0 0
    %6378 = vmatpush1.bf16.msra.mxu0 0
    %6379 = vmatprep.subr.bf16.mxu0 0
    %6380 = vmatpush1.bf16.msra.mxu0 0
    %6381 = vmatprep.mubr.bf16.mxu0 0
    %6382 = vmatmul.mubr.bf16.gmra.mrb[0].mxu0 %v6014
    %v6383 = vpop.f32.mrb[0].mxu0
    %v6384 = vadd.f32 %v6067, %v6383
    %v6385 = vpop.f32.mrb[0].mxu0
    %v6386 = vadd.f32 %v6071, %v6385
    %v6387 = vpop.f32.mrb[0].mxu0
    %v6388 = vadd.f32 %v6067, %v6387
    %v6389 = vpop.f32.mrb[0].mxu0
    %v6390 = vadd.f32 %v6071, %v6389
    %6391 = vmatprep.mubr.bf16.mxu0 0
    %6392 = vmatmul.mubr.bf16.gmra.mrb[0].mxu0 %v6015
    %v6393 = vpop.f32.mrb[0].mxu0
    %v6394 = vadd.f32 %v6067, %v6393
    %v6395 = vpop.f32.mrb[0].mxu0
    %v6396 = vadd.f32 %v6071, %v6395
    %v6397 = vpop.f32.mrb[0].mxu0
    %v6398 = vadd.f32 %v6067, %v6397
    %v6399 = vpop.f32.mrb[0].mxu0
    %v6400 = vadd.f32 %v6071, %v6399
    %6401 = vmatprep.mubr.bf16.mxu0 0
    %6402 = vmatmul.mubr.bf16.gmra.mrb[0].mxu0 %v6016
    %v6403 = vpop.f32.mrb[0].mxu0
    %v6404 = vadd.f32 %v6067, %v6403
    %v6405 = vpop.f32.mrb[0].mxu0
    %v6406 = vadd.f32 %v6071, %v6405
    %v6407 = vpop.f32.mrb[0].mxu0
    %v6408 = vadd.f32 %v6067, %v6407
    %v6409 = vpop.f32.mrb[0].mxu0
    %v6410 = vadd.f32 %v6071, %v6409
    %6411 = vmatprep.mubr.bf16.mxu0 0
    %6412 = vmatmul.mubr.bf16.gmra.mrb[0].mxu0 %v6017
    %v6413 = vpop.f32.mrb[0].mxu0
    %v6414 = vadd.f32 %v6067, %v6413
    %v6415 = vpop.f32.mrb[0].mxu0
    %v6416 = vadd.f32 %v6071, %v6415
    %v6417 = vpop.f32.mrb[0].mxu0
    %v6418 = vadd.f32 %v6067, %v6417
    %v6419 = vpop.f32.mrb[0].mxu0
    %v6420 = vadd.f32 %v6071, %v6419
    %6421 = vmatprep.mubr.bf16.mxu0 0
    %6422 = vmatmul.mubr.bf16.gmra.mrb[0].mxu0 %v6018
    %v6423 = vpop.f32.mrb[0].mxu0
    %v6424 = vadd.f32 %v6067, %v6423
    %v6425 = vpop.f32.mrb[0].mxu0
    %v6426 = vadd.f32 %v6071, %v6425
    %v6427 = vpop.f32.mrb[0].mxu0
    %v6428 = vadd.f32 %v6067, %v6427
    %v6429 = vpop.f32.mrb[0].mxu0
    %v6430 = vadd.f32 %v6071, %v6429
    %6431 = vmatprep.mubr.bf16.mxu0 0
    %6432 = vmatmul.mubr.bf16.gmra.mrb[0].mxu0 %v6019
    %v6433 = vpop.f32.mrb[0].mxu0
    %v6434 = vadd.f32 %v6067, %v6433
    %v6435 = vpop.f32.mrb[0].mxu0
    %v6436 = vadd.f32 %v6071, %v6435
    %v6437 = vpop.f32.mrb[0].mxu0
    %v6438 = vadd.f32 %v6067, %v6437
    %v6439 = vpop.f32.mrb[0].mxu0
    %v6440 = vadd.f32 %v6071, %v6439
    %6441 = vmatprep.mubr.bf16.mxu0 0
    %6442 = vmatmul.mubr.bf16.gmra.mrb[0].mxu0 %v6020
    %v6443 = vpop.f32.mrb[0].mxu0
    %v6444 = vadd.f32 %v6067, %v6443
    %v6445 = vpop.f32.mrb[0].mxu0
    %v6446 = vadd.f32 %v6071, %v6445
    %v6447 = vpop.f32.mrb[0].mxu0
    %v6448 = vadd.f32 %v6067, %v6447
    %v6449 = vpop.f32.mrb[0].mxu0
    %v6450 = vadd.f32 %v6071, %v6449
    %6451 = vmatprep.mubr.bf16.mxu0 0
    %6452 = vmatmul.mubr.bf16.gmra.mrb[0].mxu0 %v6021
    %v6453 = vpop.f32.mrb[0].mxu0
    %v6454 = vadd.f32 %v6067, %v6453
    %v6455 = vpop.f32.mrb[0].mxu0
    %v6456 = vadd.f32 %v6071, %v6455
    %v6457 = vpop.f32.mrb[0].mxu0
    %v6458 = vadd.f32 %v6067, %v6457
    %v6459 = vpop.f32.mrb[0].mxu0
    %v6460 = vadd.f32 %v6071, %v6459
    %6461 = vdwg.mxu0
    %v6462 = vmax.f32 %v6271, 0.0
    %v6463 = vmax.f32 %v6273, 0.0
    %v6464 = vmax.f32 %v6384, 0.0
    %v6465 = vmax.f32 %v6386, 0.0
    %v6466 = vmax.f32 %v6275, 0.0
    %v6467 = vmax.f32 %v6277, 0.0
    %v6468 = vmax.f32 %v6388, 0.0
    %v6469 = vmax.f32 %v6390, 0.0
    %v6470 = vmax.f32 %v6281, 0.0
    %v6471 = vmax.f32 %v6283, 0.0
    %v6472 = vmax.f32 %v6394, 0.0
    %v6473 = vmax.f32 %v6396, 0.0
    %v6474 = vmax.f32 %v6285, 0.0
    %v6475 = vmax.f32 %v6287, 0.0
    %v6476 = vmax.f32 %v6398, 0.0
    %v6477 = vmax.f32 %v6400, 0.0
    %v6478 = vmax.f32 %v6291, 0.0
    %v6479 = vmax.f32 %v6293, 0.0
    %v6480 = vmax.f32 %v6404, 0.0
    %v6481 = vmax.f32 %v6406, 0.0
    %v6482 = vmax.f32 %v6295, 0.0
    %v6483 = vmax.f32 %v6297, 0.0
    %v6484 = vmax.f32 %v6408, 0.0
    %v6485 = vmax.f32 %v6410, 0.0
    %v6486 = vmax.f32 %v6301, 0.0
    %v6487 = vmax.f32 %v6303, 0.0
    %v6488 = vmax.f32 %v6414, 0.0
    %v6489 = vmax.f32 %v6416, 0.0
    %v6490 = vmax.f32 %v6305, 0.0
    %v6491 = vmax.f32 %v6307, 0.0
    %v6492 = vmax.f32 %v6418, 0.0
    %v6493 = vmax.f32 %v6420, 0.0
    %v6494 = vmax.f32 %v6311, 0.0
    %v6495 = vmax.f32 %v6313, 0.0
    %v6496 = vmax.f32 %v6424, 0.0
    %v6497 = vmax.f32 %v6426, 0.0
    %v6498 = vmax.f32 %v6315, 0.0
    %v6499 = vmax.f32 %v6317, 0.0
    %v6500 = vmax.f32 %v6428, 0.0
    %v6501 = vmax.f32 %v6430, 0.0
    %v6502 = vmax.f32 %v6321, 0.0
    %v6503 = vmax.f32 %v6323, 0.0
    %v6504 = vmax.f32 %v6434, 0.0
    %v6505 = vmax.f32 %v6436, 0.0
    %v6506 = vmax.f32 %v6325, 0.0
    %v6507 = vmax.f32 %v6327, 0.0
    %v6508 = vmax.f32 %v6438, 0.0
    %v6509 = vmax.f32 %v6440, 0.0
    %v6510 = vmax.f32 %v6331, 0.0
    %v6511 = vmax.f32 %v6333, 0.0
    %v6512 = vmax.f32 %v6444, 0.0
    %v6513 = vmax.f32 %v6446, 0.0
    %v6514 = vmax.f32 %v6335, 0.0
    %v6515 = vmax.f32 %v6337, 0.0
    %v6516 = vmax.f32 %v6448, 0.0
    %v6517 = vmax.f32 %v6450, 0.0
    %v6518 = vmax.f32 %v6341, 0.0
    %v6519 = vmax.f32 %v6343, 0.0
    %v6520 = vmax.f32 %v6454, 0.0
    %v6521 = vmax.f32 %v6456, 0.0
    %v6522 = vmax.f32 %v6345, 0.0
    %v6523 = vmax.f32 %v6347, 0.0
    %v6524 = vmax.f32 %v6458, 0.0
    %v6525 = vmax.f32 %v6460, 0.0
    %v6526 = vpack.c.bf16 %v6466, %v6462
    %v6527 = vpack.c.bf16 %v6467, %v6463
    %v6528 = vpack.c.bf16 %v6468, %v6464
    %v6529 = vpack.c.bf16 %v6469, %v6465
    %v6530 = vpack.c.bf16 %v6474, %v6470
    %v6531 = vpack.c.bf16 %v6475, %v6471
    %v6532 = vpack.c.bf16 %v6476, %v6472
    %v6533 = vpack.c.bf16 %v6477, %v6473
    %v6534 = vpack.c.bf16 %v6482, %v6478
    %v6535 = vpack.c.bf16 %v6483, %v6479
    %v6536 = vpack.c.bf16 %v6484, %v6480
    %v6537 = vpack.c.bf16 %v6485, %v6481
    %v6538 = vpack.c.bf16 %v6490, %v6486
    %v6539 = vpack.c.bf16 %v6491, %v6487
    %v6540 = vpack.c.bf16 %v6492, %v6488
    %v6541 = vpack.c.bf16 %v6493, %v6489
    %v6542 = vpack.c.bf16 %v6498, %v6494
    %v6543 = vpack.c.bf16 %v6499, %v6495
    %v6544 = vpack.c.bf16 %v6500, %v6496
    %v6545 = vpack.c.bf16 %v6501, %v6497
    %v6546 = vpack.c.bf16 %v6506, %v6502
    %v6547 = vpack.c.bf16 %v6507, %v6503
    %v6548 = vpack.c.bf16 %v6508, %v6504
    %v6549 = vpack.c.bf16 %v6509, %v6505
    %v6550 = vpack.c.bf16 %v6514, %v6510
    %v6551 = vpack.c.bf16 %v6515, %v6511
    %v6552 = vpack.c.bf16 %v6516, %v6512
    %v6553 = vpack.c.bf16 %v6517, %v6513
    %v6554 = vpack.c.bf16 %v6522, %v6518
    %v6555 = vpack.c.bf16 %v6523, %v6519
    %v6556 = vpack.c.bf16 %v6524, %v6520
    %v6557 = vpack.c.bf16 %v6525, %v6521
    %v6558 = vld [vmem:[%s19] sm:$0xf]
    %v6559 = vld [vmem:[%s19 + $0x4] sm:$0xf]
    %v6560 = vld [vmem:[%s19 + $0x8] sm:$0xf]
    %v6561 = vld [vmem:[%s19 + $0xc] sm:$0xf]
    %v6562 = vld [vmem:[%s19 + $0x10] sm:$0xf]
    %v6563 = vld [vmem:[%s19 + $0x14] sm:$0xf]
    %v6564 = vld [vmem:[%s19 + $0x18] sm:$0xf]
    %v6565 = vld [vmem:[%s19 + $0x1c] sm:$0xf]
    %v6566 = vld [vmem:[%s19 + $0x20] sm:$0xf]
    %v6567 = vld [vmem:[%s19 + $0x24] sm:$0xf]
    %v6568 = vld [vmem:[%s19 + $0x28] sm:$0xf]
    %v6569 = vld [vmem:[%s19 + $0x2c] sm:$0xf]
    %v6570 = vld [vmem:[%s19 + $0x30] sm:$0xf]
    %v6571 = vld [vmem:[%s19 + $0x34] sm:$0xf]
    %v6572 = vld [vmem:[%s19 + $0x38] sm:$0xf]
    %v6573 = vld [vmem:[%s19 + $0x3c] sm:$0xf]
    %v6574 = vld [vmem:[%s19 + $0x40] sm:$0xf]
    %v6575 = vld [vmem:[%s19 + $0x44] sm:$0xf]
    %v6576 = vld [vmem:[%s19 + $0x48] sm:$0xf]
    %v6577 = vld [vmem:[%s19 + $0x4c] sm:$0xf]
    %v6578 = vld [vmem:[%s19 + $0x50] sm:$0xf]
    %v6579 = vld [vmem:[%s19 + $0x54] sm:$0xf]
    %v6580 = vld [vmem:[%s19 + $0x58] sm:$0xf]
    %v6581 = vld [vmem:[%s19 + $0x5c] sm:$0xf]
    %v6582 = vld [vmem:[%s19 + $0x60] sm:$0xf]
    %v6583 = vld [vmem:[%s19 + $0x64] sm:$0xf]
    %v6584 = vld [vmem:[%s19 + $0x68] sm:$0xf]
    %v6585 = vld [vmem:[%s19 + $0x6c] sm:$0xf]
    %v6586 = vld [vmem:[%s19 + $0x70] sm:$0xf]
    %v6587 = vld [vmem:[%s19 + $0x74] sm:$0xf]
    %v6588 = vld [vmem:[%s19 + $0x78] sm:$0xf]
    %v6589 = vld [vmem:[%s19 + $0x7c] sm:$0xf]
    %v6590 = vld [vmem:[%s19 + $0x80] sm:$0xf]
    %v6591 = vld [vmem:[%s19 + $0x84] sm:$0xf]
    %v6592 = vld [vmem:[%s19 + $0x88] sm:$0xf]
    %v6593 = vld [vmem:[%s19 + $0x8c] sm:$0xf]
    %v6594 = vld [vmem:[%s19 + $0x90] sm:$0xf]
    %v6595 = vld [vmem:[%s19 + $0x94] sm:$0xf]
    %v6596 = vld [vmem:[%s19 + $0x98] sm:$0xf]
    %v6597 = vld [vmem:[%s19 + $0x9c] sm:$0xf]
    %v6598 = vld [vmem:[%s19 + $0xa0] sm:$0xf]
    %v6599 = vld [vmem:[%s19 + $0xa4] sm:$0xf]
    %v6600 = vld [vmem:[%s19 + $0xa8] sm:$0xf]
    %v6601 = vld [vmem:[%s19 + $0xac] sm:$0xf]
    %v6602 = vld [vmem:[%s19 + $0xb0] sm:$0xf]
    %v6603 = vld [vmem:[%s19 + $0xb4] sm:$0xf]
    %v6604 = vld [vmem:[%s19 + $0xb8] sm:$0xf]
    %v6605 = vld [vmem:[%s19 + $0xbc] sm:$0xf]
    %v6606 = vld [vmem:[%s19 + $0xc0] sm:$0xf]
    %v6607 = vld [vmem:[%s19 + $0xc4] sm:$0xf]
    %v6608 = vld [vmem:[%s19 + $0xc8] sm:$0xf]
    %v6609 = vld [vmem:[%s19 + $0xcc] sm:$0xf]
    %v6610 = vld [vmem:[%s19 + $0xd0] sm:$0xf]
    %v6611 = vld [vmem:[%s19 + $0xd4] sm:$0xf]
    %v6612 = vld [vmem:[%s19 + $0xd8] sm:$0xf]
    %v6613 = vld [vmem:[%s19 + $0xdc] sm:$0xf]
    %v6614 = vld [vmem:[%s19 + $0xe0] sm:$0xf]
    %v6615 = vld [vmem:[%s19 + $0xe4] sm:$0xf]
    %v6616 = vld [vmem:[%s19 + $0xe8] sm:$0xf]
    %v6617 = vld [vmem:[%s19 + $0xec] sm:$0xf]
    %v6618 = vld [vmem:[%s19 + $0xf0] sm:$0xf]
    %v6619 = vld [vmem:[%s19 + $0xf4] sm:$0xf]
    %v6620 = vld [vmem:[%s19 + $0xf8] sm:$0xf]
    %v6621 = vld [vmem:[%s19 + $0xfc] sm:$0xf]
    %v6622 = vld [vmem:[%s20] sm:$0x1]
    %v6624 = vlaneseq
    %v6625 = vshrl.u32 %v6624, 7
    %v6626 = vsub.s32 0, %v6625
    %v6627 = vrot.slane %v6622, %v6626
    %v6693 = vunpack.c.l.b16 %v6558
    %v6694 = vunpack.c.l.b16 %v6559
    %v6695 = vunpack.c.l.b16 %v6560
    %v6696 = vunpack.c.l.b16 %v6561
    %v6697 = vunpack.c.l.b16 %v6562
    %v6698 = vunpack.c.l.b16 %v6563
    %v6699 = vunpack.c.l.b16 %v6564
    %v6700 = vunpack.c.l.b16 %v6565
    %v6701 = vunpack.c.l.b16 %v6566
    %v6702 = vunpack.c.l.b16 %v6567
    %v6703 = vunpack.c.l.b16 %v6568
    %v6704 = vunpack.c.l.b16 %v6569
    %v6705 = vunpack.c.l.b16 %v6570
    %v6706 = vunpack.c.l.b16 %v6571
    %v6707 = vunpack.c.l.b16 %v6572
    %v6708 = vunpack.c.l.b16 %v6573
    %v6709 = vunpack.c.l.b16 %v6574
    %v6710 = vunpack.c.l.b16 %v6575
    %v6711 = vunpack.c.l.b16 %v6576
    %v6712 = vunpack.c.l.b16 %v6577
    %v6713 = vunpack.c.l.b16 %v6578
    %v6714 = vunpack.c.l.b16 %v6579
    %v6715 = vunpack.c.l.b16 %v6580
    %v6716 = vunpack.c.l.b16 %v6581
    %v6717 = vunpack.c.l.b16 %v6582
    %v6718 = vunpack.c.l.b16 %v6583
    %v6719 = vunpack.c.l.b16 %v6584
    %v6720 = vunpack.c.l.b16 %v6585
    %v6721 = vunpack.c.l.b16 %v6586
    %v6722 = vunpack.c.l.b16 %v6587
    %v6723 = vunpack.c.l.b16 %v6588
    %v6724 = vunpack.c.l.b16 %v6589
    %v6725 = vunpack.c.l.b16 %v6590
    %v6726 = vunpack.c.l.b16 %v6591
    %v6727 = vunpack.c.l.b16 %v6592
    %v6728 = vunpack.c.l.b16 %v6593
    %v6729 = vunpack.c.l.b16 %v6594
    %v6730 = vunpack.c.l.b16 %v6595
    %v6731 = vunpack.c.l.b16 %v6596
    %v6732 = vunpack.c.l.b16 %v6597
    %v6733 = vunpack.c.l.b16 %v6598
    %v6734 = vunpack.c.l.b16 %v6599
    %v6735 = vunpack.c.l.b16 %v6600
    %v6736 = vunpack.c.l.b16 %v6601
    %v6737 = vunpack.c.l.b16 %v6602
    %v6738 = vunpack.c.l.b16 %v6603
    %v6739 = vunpack.c.l.b16 %v6604
    %v6740 = vunpack.c.l.b16 %v6605
    %v6741 = vunpack.c.l.b16 %v6606
    %v6742 = vunpack.c.l.b16 %v6607
    %v6743 = vunpack.c.l.b16 %v6608
    %v6744 = vunpack.c.l.b16 %v6609
    %v6745 = vunpack.c.l.b16 %v6610
    %v6746 = vunpack.c.l.b16 %v6611
    %v6747 = vunpack.c.l.b16 %v6612
    %v6748 = vunpack.c.l.b16 %v6613
    %v6749 = vunpack.c.l.b16 %v6614
    %v6750 = vunpack.c.l.b16 %v6615
    %v6751 = vunpack.c.l.b16 %v6616
    %v6752 = vunpack.c.l.b16 %v6617
    %v6753 = vunpack.c.l.b16 %v6618
    %v6754 = vunpack.c.l.b16 %v6619
    %v6755 = vunpack.c.l.b16 %v6620
    %v6756 = vunpack.c.l.b16 %v6621
    %v6757 = vpack.c.b16 %v6694, %v6693
    %v6758 = vpack.c.b16 %v6696, %v6695
    %v6759 = vpack.c.b16 %v6698, %v6697
    %v6760 = vpack.c.b16 %v6700, %v6699
    %v6761 = vpack.c.b16 %v6702, %v6701
    %v6762 = vpack.c.b16 %v6704, %v6703
    %v6763 = vpack.c.b16 %v6706, %v6705
    %v6764 = vpack.c.b16 %v6708, %v6707
    %v6765 = vpack.c.b16 %v6710, %v6709
    %v6766 = vpack.c.b16 %v6712, %v6711
    %v6767 = vpack.c.b16 %v6714, %v6713
    %v6768 = vpack.c.b16 %v6716, %v6715
    %v6769 = vpack.c.b16 %v6718, %v6717
    %v6770 = vpack.c.b16 %v6720, %v6719
    %v6771 = vpack.c.b16 %v6722, %v6721
    %v6772 = vpack.c.b16 %v6724, %v6723
    %v6773 = vpack.c.b16 %v6726, %v6725
    %v6774 = vpack.c.b16 %v6728, %v6727
    %v6775 = vpack.c.b16 %v6730, %v6729
    %v6776 = vpack.c.b16 %v6732, %v6731
    %v6777 = vpack.c.b16 %v6734, %v6733
    %v6778 = vpack.c.b16 %v6736, %v6735
    %v6779 = vpack.c.b16 %v6738, %v6737
    %v6780 = vpack.c.b16 %v6740, %v6739
    %v6781 = vpack.c.b16 %v6742, %v6741
    %v6782 = vpack.c.b16 %v6744, %v6743
    %v6783 = vpack.c.b16 %v6746, %v6745
    %v6784 = vpack.c.b16 %v6748, %v6747
    %v6785 = vpack.c.b16 %v6750, %v6749
    %v6786 = vpack.c.b16 %v6752, %v6751
    %v6787 = vpack.c.b16 %v6754, %v6753
    %v6788 = vpack.c.b16 %v6756, %v6755
    %6821 = vmatprep.subr.bf16.mxu0 0
    %6822 = vmatpush1.bf16.msra.mxu0 %v6757
    %6823 = vmatprep.subr.bf16.mxu0 0
    %6824 = vmatpush1.bf16.msra.mxu0 %v6758
    %6825 = vmatprep.subr.bf16.mxu0 0
    %6826 = vmatpush1.bf16.msra.mxu0 %v6759
    %6827 = vmatprep.subr.bf16.mxu0 0
    %6828 = vmatpush1.bf16.msra.mxu0 %v6760
    %6829 = vmatprep.subr.bf16.mxu0 0
    %6830 = vmatpush1.bf16.msra.mxu0 %v6761
    %6831 = vmatprep.subr.bf16.mxu0 0
    %6832 = vmatpush1.bf16.msra.mxu0 %v6762
    %6833 = vmatprep.subr.bf16.mxu0 0
    %6834 = vmatpush1.bf16.msra.mxu0 %v6763
    %6835 = vmatprep.subr.bf16.mxu0 0
    %6836 = vmatpush1.bf16.msra.mxu0 %v6764
    %6837 = vmatprep.subr.bf16.mxu0 0
    %6838 = vmatpush1.bf16.msra.mxu0 %v6765
    %6839 = vmatprep.subr.bf16.mxu0 0
    %6840 = vmatpush1.bf16.msra.mxu0 %v6766
    %6841 = vmatprep.subr.bf16.mxu0 0
    %6842 = vmatpush1.bf16.msra.mxu0 %v6767
    %6843 = vmatprep.subr.bf16.mxu0 0
    %6844 = vmatpush1.bf16.msra.mxu0 %v6768
    %6845 = vmatprep.subr.bf16.mxu0 0
    %6846 = vmatpush1.bf16.msra.mxu0 %v6769
    %6847 = vmatprep.subr.bf16.mxu0 0
    %6848 = vmatpush1.bf16.msra.mxu0 %v6770
    %6849 = vmatprep.subr.bf16.mxu0 0
    %6850 = vmatpush1.bf16.msra.mxu0 %v6771
    %6851 = vmatprep.subr.bf16.mxu0 0
    %6852 = vmatpush1.bf16.msra.mxu0 %v6772
    %6853 = vmatprep.mubr.bf16.mxu0 %v6527
    %6854 = vmatmul.mubr.bf16.gmra.mrb[0].mxu0 %v6526
    %v6855 = vpop.f32.mrb[0].mxu0
    %v6856 = vadd.f32 %v6627, %v6855
    %v6857 = vpop.f32.mrb[0].mxu0
    %v6858 = vpop.f32.mrb[0].mxu0
    %v6859 = vadd.f32 %v6627, %v6858
    %v6860 = vpop.f32.mrb[0].mxu0
    %6861 = vmatprep.mubr.bf16.mxu0 %v6531
    %6862 = vmatmul.mubr.bf16.gmra.mrb[0].mxu0 %v6530
    %v6863 = vpop.f32.mrb[0].mxu0
    %v6864 = vadd.f32 %v6627, %v6863
    %v6865 = vpop.f32.mrb[0].mxu0
    %v6866 = vpop.f32.mrb[0].mxu0
    %v6867 = vadd.f32 %v6627, %v6866
    %v6868 = vpop.f32.mrb[0].mxu0
    %6869 = vmatprep.mubr.bf16.mxu0 %v6535
    %6870 = vmatmul.mubr.bf16.gmra.mrb[0].mxu0 %v6534
    %v6871 = vpop.f32.mrb[0].mxu0
    %v6872 = vadd.f32 %v6627, %v6871
    %v6873 = vpop.f32.mrb[0].mxu0
    %v6874 = vpop.f32.mrb[0].mxu0
    %v6875 = vadd.f32 %v6627, %v6874
    %v6876 = vpop.f32.mrb[0].mxu0
    %6877 = vmatprep.mubr.bf16.mxu0 %v6539
    %6878 = vmatmul.mubr.bf16.gmra.mrb[0].mxu0 %v6538
    %v6879 = vpop.f32.mrb[0].mxu0
    %v6880 = vadd.f32 %v6627, %v6879
    %v6881 = vpop.f32.mrb[0].mxu0
    %v6882 = vpop.f32.mrb[0].mxu0
    %v6883 = vadd.f32 %v6627, %v6882
    %v6884 = vpop.f32.mrb[0].mxu0
    %6885 = vmatprep.mubr.bf16.mxu0 %v6543
    %6886 = vmatmul.mubr.bf16.gmra.mrb[0].mxu0 %v6542
    %v6887 = vpop.f32.mrb[0].mxu0
    %v6888 = vadd.f32 %v6627, %v6887
    %v6889 = vpop.f32.mrb[0].mxu0
    %v6890 = vpop.f32.mrb[0].mxu0
    %v6891 = vadd.f32 %v6627, %v6890
    %v6892 = vpop.f32.mrb[0].mxu0
    %6893 = vmatprep.mubr.bf16.mxu0 %v6547
    %6894 = vmatmul.mubr.bf16.gmra.mrb[0].mxu0 %v6546
    %v6895 = vpop.f32.mrb[0].mxu0
    %v6896 = vadd.f32 %v6627, %v6895
    %v6897 = vpop.f32.mrb[0].mxu0
    %v6898 = vpop.f32.mrb[0].mxu0
    %v6899 = vadd.f32 %v6627, %v6898
    %v6900 = vpop.f32.mrb[0].mxu0
    %6901 = vmatprep.mubr.bf16.mxu0 %v6551
    %6902 = vmatmul.mubr.bf16.gmra.mrb[0].mxu0 %v6550
    %v6903 = vpop.f32.mrb[0].mxu0
    %v6904 = vadd.f32 %v6627, %v6903
    %v6905 = vpop.f32.mrb[0].mxu0
    %v6906 = vpop.f32.mrb[0].mxu0
    %v6907 = vadd.f32 %v6627, %v6906
    %v6908 = vpop.f32.mrb[0].mxu0
    %6909 = vmatprep.mubr.bf16.mxu0 %v6555
    %6910 = vmatmul.mubr.bf16.gmra.mrb[0].mxu0 %v6554
    %v6911 = vpop.f32.mrb[0].mxu0
    %v6912 = vadd.f32 %v6627, %v6911
    %v6913 = vpop.f32.mrb[0].mxu0
    %v6914 = vpop.f32.mrb[0].mxu0
    %v6915 = vadd.f32 %v6627, %v6914
    %v6916 = vpop.f32.mrb[0].mxu0
    %6917 = vdwg.mxu0
    %6918 = vmatprep.subr.bf16.mxu0 0
    %6919 = vmatpush1.bf16.msra.mxu0 %v6773
    %6920 = vmatprep.subr.bf16.mxu0 0
    %6921 = vmatpush1.bf16.msra.mxu0 %v6774
    %6922 = vmatprep.subr.bf16.mxu0 0
    %6923 = vmatpush1.bf16.msra.mxu0 %v6775
    %6924 = vmatprep.subr.bf16.mxu0 0
    %6925 = vmatpush1.bf16.msra.mxu0 %v6776
    %6926 = vmatprep.subr.bf16.mxu0 0
    %6927 = vmatpush1.bf16.msra.mxu0 %v6777
    %6928 = vmatprep.subr.bf16.mxu0 0
    %6929 = vmatpush1.bf16.msra.mxu0 %v6778
    %6930 = vmatprep.subr.bf16.mxu0 0
    %6931 = vmatpush1.bf16.msra.mxu0 %v6779
    %6932 = vmatprep.subr.bf16.mxu0 0
    %6933 = vmatpush1.bf16.msra.mxu0 %v6780
    %6934 = vmatprep.subr.bf16.mxu0 0
    %6935 = vmatpush1.bf16.msra.mxu0 %v6781
    %6936 = vmatprep.subr.bf16.mxu0 0
    %6937 = vmatpush1.bf16.msra.mxu0 %v6782
    %6938 = vmatprep.subr.bf16.mxu0 0
    %6939 = vmatpush1.bf16.msra.mxu0 %v6783
    %6940 = vmatprep.subr.bf16.mxu0 0
    %6941 = vmatpush1.bf16.msra.mxu0 %v6784
    %6942 = vmatprep.subr.bf16.mxu0 0
    %6943 = vmatpush1.bf16.msra.mxu0 %v6785
    %6944 = vmatprep.subr.bf16.mxu0 0
    %6945 = vmatpush1.bf16.msra.mxu0 %v6786
    %6946 = vmatprep.subr.bf16.mxu0 0
    %6947 = vmatpush1.bf16.msra.mxu0 %v6787
    %6948 = vmatprep.subr.bf16.mxu0 0
    %6949 = vmatpush1.bf16.msra.mxu0 %v6788
    %6950 = vmatprep.mubr.bf16.mxu0 %v6529
    %6951 = vmatmul.mubr.bf16.gmra.mrb[0].mxu0 %v6528
    %v6952 = vpop.f32.mrb[0].mxu0
    %v6953 = vadd.f32 %v6856, %v6952
    %v6954 = vpop.f32.mrb[0].mxu0
    %v6955 = vpop.f32.mrb[0].mxu0
    %v6956 = vadd.f32 %v6859, %v6955
    %v6957 = vpop.f32.mrb[0].mxu0
    %6958 = vmatprep.mubr.bf16.mxu0 %v6533
    %6959 = vmatmul.mubr.bf16.gmra.mrb[0].mxu0 %v6532
    %v6960 = vpop.f32.mrb[0].mxu0
    %v6961 = vadd.f32 %v6864, %v6960
    %v6962 = vpop.f32.mrb[0].mxu0
    %v6963 = vpop.f32.mrb[0].mxu0
    %v6964 = vadd.f32 %v6867, %v6963
    %v6965 = vpop.f32.mrb[0].mxu0
    %6966 = vmatprep.mubr.bf16.mxu0 %v6537
    %6967 = vmatmul.mubr.bf16.gmra.mrb[0].mxu0 %v6536
    %v6968 = vpop.f32.mrb[0].mxu0
    %v6969 = vadd.f32 %v6872, %v6968
    %v6970 = vpop.f32.mrb[0].mxu0
    %v6971 = vpop.f32.mrb[0].mxu0
    %v6972 = vadd.f32 %v6875, %v6971
    %v6973 = vpop.f32.mrb[0].mxu0
    %6974 = vmatprep.mubr.bf16.mxu0 %v6541
    %6975 = vmatmul.mubr.bf16.gmra.mrb[0].mxu0 %v6540
    %v6976 = vpop.f32.mrb[0].mxu0
    %v6977 = vadd.f32 %v6880, %v6976
    %v6978 = vpop.f32.mrb[0].mxu0
    %v6979 = vpop.f32.mrb[0].mxu0
    %v6980 = vadd.f32 %v6883, %v6979
    %v6981 = vpop.f32.mrb[0].mxu0
    %6982 = vmatprep.mubr.bf16.mxu0 %v6545
    %6983 = vmatmul.mubr.bf16.gmra.mrb[0].mxu0 %v6544
    %v6984 = vpop.f32.mrb[0].mxu0
    %v6985 = vadd.f32 %v6888, %v6984
    %v6986 = vpop.f32.mrb[0].mxu0
    %v6987 = vpop.f32.mrb[0].mxu0
    %v6988 = vadd.f32 %v6891, %v6987
    %v6989 = vpop.f32.mrb[0].mxu0
    %6990 = vmatprep.mubr.bf16.mxu0 %v6549
    %6991 = vmatmul.mubr.bf16.gmra.mrb[0].mxu0 %v6548
    %v6992 = vpop.f32.mrb[0].mxu0
    %v6993 = vadd.f32 %v6896, %v6992
    %v6994 = vpop.f32.mrb[0].mxu0
    %v6995 = vpop.f32.mrb[0].mxu0
    %v6996 = vadd.f32 %v6899, %v6995
    %v6997 = vpop.f32.mrb[0].mxu0
    %6998 = vmatprep.mubr.bf16.mxu0 %v6553
    %6999 = vmatmul.mubr.bf16.gmra.mrb[0].mxu0 %v6552
    %v7000 = vpop.f32.mrb[0].mxu0
    %v7001 = vadd.f32 %v6904, %v7000
    %v7002 = vpop.f32.mrb[0].mxu0
    %v7003 = vpop.f32.mrb[0].mxu0
    %v7004 = vadd.f32 %v6907, %v7003
    %v7005 = vpop.f32.mrb[0].mxu0
    %7006 = vmatprep.mubr.bf16.mxu0 %v6557
    %7007 = vmatmul.mubr.bf16.gmra.mrb[0].mxu0 %v6556
    %v7008 = vpop.f32.mrb[0].mxu0
    %v7009 = vadd.f32 %v6912, %v7008
    %v7010 = vpop.f32.mrb[0].mxu0
    %v7011 = vpop.f32.mrb[0].mxu0
    %v7012 = vadd.f32 %v6915, %v7011
    %v7013 = vpop.f32.mrb[0].mxu0
    %7014 = vdwg.mxu0
    %v7015 = vadd.f32 %v5998, %v6953
    %v7016 = vadd.f32 %v5999, %v6956
    %v7017 = vadd.f32 %v6000, %v6961
    %v7018 = vadd.f32 %v6001, %v6964
    %v7019 = vadd.f32 %v6002, %v6969
    %v7020 = vadd.f32 %v6003, %v6972
    %v7021 = vadd.f32 %v6004, %v6977
    %v7022 = vadd.f32 %v6005, %v6980
    %v7023 = vadd.f32 %v6006, %v6985
    %v7024 = vadd.f32 %v6007, %v6988
    %v7025 = vadd.f32 %v6008, %v6993
    %v7026 = vadd.f32 %v6009, %v6996
    %v7027 = vadd.f32 %v6010, %v7001
    %v7028 = vadd.f32 %v6011, %v7004
    %v7029 = vadd.f32 %v6012, %v7009
    %v7030 = vadd.f32 %v6013, %v7012
    %v7031 = vld [vmem:[%s21] sm:$0x1]
    %v7032 = vld [vmem:[%s22] sm:$0x1]
    %v7033 = vmul.f32 %v7015, %v7015
    %v7034 = vmul.f32 %v7016, %v7016
    %v7035 = vmul.f32 %v7017, %v7017
    %v7036 = vmul.f32 %v7018, %v7018
    %v7037 = vmul.f32 %v7019, %v7019
    %v7038 = vmul.f32 %v7020, %v7020
    %v7039 = vmul.f32 %v7021, %v7021
    %v7040 = vmul.f32 %v7022, %v7022
    %v7041 = vmul.f32 %v7023, %v7023
    %v7042 = vmul.f32 %v7024, %v7024
    %v7043 = vmul.f32 %v7025, %v7025
    %v7044 = vmul.f32 %v7026, %v7026
    %v7045 = vmul.f32 %v7027, %v7027
    %v7046 = vmul.f32 %v7028, %v7028
    %v7047 = vmul.f32 %v7029, %v7029
    %v7048 = vmul.f32 %v7030, %v7030
    %7049 = vmatprep.subr.mxu0 %v7033
    %7050 = vmatpush1.msra.mxu0 %v7015
    %7051 = vmatprep.subr.mxu0 %v7034
    %7052 = vmatpush1.msra.mxu0 %v7016
    %7053 = vmatprep.subr.mxu0 %v7035
    %7054 = vmatpush1.msra.mxu0 %v7017
    %7055 = vmatprep.subr.mxu0 %v7036
    %7056 = vmatpush1.msra.mxu0 %v7018
    %7057 = vmatprep.subr.mxu0 %v7037
    %7058 = vmatpush1.msra.mxu0 %v7019
    %7059 = vmatprep.subr.mxu0 %v7038
    %7060 = vmatpush1.msra.mxu0 %v7020
    %7061 = vmatprep.subr.mxu0 %v7039
    %7062 = vmatpush1.msra.mxu0 %v7021
    %7063 = vmatprep.subr.mxu0 %v7040
    %7064 = vmatpush1.msra.mxu0 %v7022
    %7065 = vmatprep.subr.mxu0 %v7041
    %7066 = vmatpush1.msra.mxu0 %v7023
    %7067 = vmatprep.subr.mxu0 %v7042
    %7068 = vmatpush1.msra.mxu0 %v7024
    %7069 = vmatprep.subr.mxu0 %v7043
    %7070 = vmatpush1.msra.mxu0 %v7025
    %7071 = vmatprep.subr.mxu0 %v7044
    %7072 = vmatpush1.msra.mxu0 %v7026
    %7073 = vmatprep.subr.mxu0 %v7045
    %7074 = vmatpush1.msra.mxu0 %v7027
    %7075 = vmatprep.subr.mxu0 %v7046
    %7076 = vmatpush1.msra.mxu0 %v7028
    %7077 = vmatprep.subr.mxu0 %v7047
    %7078 = vmatpush1.msra.mxu0 %v7029
    %7079 = vmatprep.subr.mxu0 %v7048
    %7080 = vmatpush1.msra.mxu0 %v7030
    %7081 = vmatprep.subr.mxu0 0.0
    %7082 = vmatpush1.msra.mxu0 0.0
    %7083 = vmatprep.subr.mxu0 0.0
    %7084 = vmatpush1.msra.mxu0 0.0
    %7085 = vmatprep.subr.mxu0 0.0
    %7086 = vmatpush1.msra.mxu0 0.0
    %7087 = vmatprep.subr.mxu0 0.0
    %7088 = vmatpush1.msra.mxu0 0.0
    %7089 = vmatprep.subr.mxu0 0.0
    %7090 = vmatpush1.msra.mxu0 0.0
    %7091 = vmatprep.subr.mxu0 0.0
    %7092 = vmatpush1.msra.mxu0 0.0
    %7093 = vmatprep.subr.mxu0 0.0
    %7094 = vmatpush1.msra.mxu0 0.0
    %7095 = vmatprep.subr.mxu0 0.0
    %7096 = vmatpush1.msra.mxu0 0.0
    %7097 = vmatprep.subr.mxu0 0.0
    %7098 = vmatpush1.msra.mxu0 0.0
    %7099 = vmatprep.subr.mxu0 0.0
    %7100 = vmatpush1.msra.mxu0 0.0
    %7101 = vmatprep.subr.mxu0 0.0
    %7102 = vmatpush1.msra.mxu0 0.0
    %7103 = vmatprep.subr.mxu0 0.0
    %7104 = vmatpush1.msra.mxu0 0.0
    %7105 = vmatprep.subr.mxu0 0.0
    %7106 = vmatpush1.msra.mxu0 0.0
    %7107 = vmatprep.subr.mxu0 0.0
    %7108 = vmatpush1.msra.mxu0 0.0
    %7109 = vmatprep.subr.mxu0 0.0
    %7110 = vmatpush1.msra.mxu0 0.0
    %7111 = vmatprep.subr.mxu0 0.0
    %7112 = vmatpush1.msra.mxu0 0.0
    %7113 = vmatprep.mubr.f32.mxu0 0.0
    %7114 = vmatmul.mubr.f32.gmra.mrb[0].mxu0 %v5367
    %v7115 = vpop.f32.mrb[0].mxu0
    %v7116 = vadd.f32 0.0, %v7115
    %v7117 = vpop.f32.mrb[0].mxu0
    %v7118 = vadd.f32 0.0, %v7117
    %7119 = vdwg.mxu0
    %7120 = vmatprep.subr.mxu0 0.0
    %7121 = vmatpush1.msra.mxu0 %v5368
    %7122 = vmatprep.subr.mxu0 0.0
    %7123 = vmatpush1.msra.mxu0 %v5369
    %7124 = vmatprep.subr.mxu0 0.0
    %7125 = vmatpush1.msra.mxu0 %v5370
    %7126 = vmatprep.subr.mxu0 0.0
    %7127 = vmatpush1.msra.mxu0 %v5371
    %7128 = vmatprep.subr.mxu0 0.0
    %7129 = vmatpush1.msra.mxu0 %v5372
    %7130 = vmatprep.subr.mxu0 0.0
    %7131 = vmatpush1.msra.mxu0 %v5373
    %7132 = vmatprep.subr.mxu0 0.0
    %7133 = vmatpush1.msra.mxu0 %v5374
    %7134 = vmatprep.subr.mxu0 0.0
    %7135 = vmatpush1.msra.mxu0 %v5375
    %7136 = vmatprep.subr.mxu0 0.0
    %7137 = vmatpush1.msra.mxu0 %v5376
    %7138 = vmatprep.subr.mxu0 0.0
    %7139 = vmatpush1.msra.mxu0 %v5377
    %7140 = vmatprep.subr.mxu0 0.0
    %7141 = vmatpush1.msra.mxu0 %v5378
    %7142 = vmatprep.subr.mxu0 0.0
    %7143 = vmatpush1.msra.mxu0 %v5379
    %7144 = vmatprep.subr.mxu0 0.0
    %7145 = vmatpush1.msra.mxu0 %v5380
    %7146 = vmatprep.subr.mxu0 0.0
    %7147 = vmatpush1.msra.mxu0 %v5381
    %7148 = vmatprep.subr.mxu0 0.0
    %7149 = vmatpush1.msra.mxu0 %v5382
    %7150 = vmatprep.subr.mxu0 0.0
    %7151 = vmatpush1.msra.mxu0 %v5383
    %7152 = vmatprep.subr.mxu0 0.0
    %7153 = vmatpush1.msra.mxu0 %v5384
    %7154 = vmatprep.subr.mxu0 0.0
    %7155 = vmatpush1.msra.mxu0 %v5385
    %7156 = vmatprep.subr.mxu0 0.0
    %7157 = vmatpush1.msra.mxu0 %v5386
    %7158 = vmatprep.subr.mxu0 0.0
    %7159 = vmatpush1.msra.mxu0 %v5387
    %7160 = vmatprep.subr.mxu0 0.0
    %7161 = vmatpush1.msra.mxu0 %v5388
    %7162 = vmatprep.subr.mxu0 0.0
    %7163 = vmatpush1.msra.mxu0 %v5389
    %7164 = vmatprep.subr.mxu0 0.0
    %7165 = vmatpush1.msra.mxu0 %v5390
    %7166 = vmatprep.subr.mxu0 0.0
    %7167 = vmatpush1.msra.mxu0 %v5391
    %7168 = vmatprep.subr.mxu0 0.0
    %7169 = vmatpush1.msra.mxu0 %v5392
    %7170 = vmatprep.subr.mxu0 0.0
    %7171 = vmatpush1.msra.mxu0 %v5393
    %7172 = vmatprep.subr.mxu0 0.0
    %7173 = vmatpush1.msra.mxu0 %v5394
    %7174 = vmatprep.subr.mxu0 0.0
    %7175 = vmatpush1.msra.mxu0 %v5395
    %7176 = vmatprep.subr.mxu0 0.0
    %7177 = vmatpush1.msra.mxu0 %v5396
    %7178 = vmatprep.subr.mxu0 0.0
    %7179 = vmatpush1.msra.mxu0 %v5397
    %7180 = vmatprep.subr.mxu0 0.0
    %7181 = vmatpush1.msra.mxu0 %v5398
    %7182 = vmatprep.subr.mxu0 0.0
    %7183 = vmatpush1.msra.mxu0 %v5399
    %7184 = vmatprep.mubr.f32.mxu0 %v7118
    %7185 = vmatmul.mubr.f32.gmra.mrb[0].mxu0 %v7116
    %v7186 = vpop.f32.mrb[0].mxu0
    %v7187 = vadd.f32 0.0, %v7186
    %v7188 = vpop.f32.mrb[0].mxu0
    %7189 = vdwg.mxu0
    %v7190 = vmul.f32 %v7187, 0.001953125
    %v7191 = vmul.f32 %v7190, %v7190
    %7193 = vrot.lane.b32.xlu0 %v7191, 16
    %v7194 = vpop.permute.xlu0 %7193
    %v7196 = vsub.f32 %v7190, %v7194
    %v7197 = vadd.f32 %v7196, 1e-05
    %v7198 = vrsqrt.pop %v7197
    %v7200 = vsel %vm864, %v7190, 0
    %7202 = vmatprep.subr.mxu0 0.0
    %7203 = vmatpush1.msra.mxu0 %v5400
    %7204 = vmatprep.subr.mxu0 0.0
    %7205 = vmatpush1.msra.mxu0 %v5401
    %7206 = vmatprep.subr.mxu0 0.0
    %7207 = vmatpush1.msra.mxu0 0.0
    %7208 = vmatprep.subr.mxu0 0.0
    %7209 = vmatpush1.msra.mxu0 0.0
    %7210 = vmatprep.subr.mxu0 0.0
    %7211 = vmatpush1.msra.mxu0 0.0
    %7212 = vmatprep.subr.mxu0 0.0
    %7213 = vmatpush1.msra.mxu0 0.0
    %7214 = vmatprep.subr.mxu0 0.0
    %7215 = vmatpush1.msra.mxu0 0.0
    %7216 = vmatprep.subr.mxu0 0.0
    %7217 = vmatpush1.msra.mxu0 0.0
    %7218 = vmatprep.subr.mxu0 0.0
    %7219 = vmatpush1.msra.mxu0 0.0
    %7220 = vmatprep.subr.mxu0 0.0
    %7221 = vmatpush1.msra.mxu0 0.0
    %7222 = vmatprep.subr.mxu0 0.0
    %7223 = vmatpush1.msra.mxu0 0.0
    %7224 = vmatprep.subr.mxu0 0.0
    %7225 = vmatpush1.msra.mxu0 0.0
    %7226 = vmatprep.subr.mxu0 0.0
    %7227 = vmatpush1.msra.mxu0 0.0
    %7228 = vmatprep.subr.mxu0 0.0
    %7229 = vmatpush1.msra.mxu0 0.0
    %7230 = vmatprep.subr.mxu0 0.0
    %7231 = vmatpush1.msra.mxu0 0.0
    %7232 = vmatprep.subr.mxu0 0.0
    %7233 = vmatpush1.msra.mxu0 0.0
    %7234 = vmatprep.subr.mxu0 0.0
    %7235 = vmatpush1.msra.mxu0 0.0
    %7236 = vmatprep.subr.mxu0 0.0
    %7237 = vmatpush1.msra.mxu0 0.0
    %7238 = vmatprep.subr.mxu0 0.0
    %7239 = vmatpush1.msra.mxu0 0.0
    %7240 = vmatprep.subr.mxu0 0.0
    %7241 = vmatpush1.msra.mxu0 0.0
    %7242 = vmatprep.subr.mxu0 0.0
    %7243 = vmatpush1.msra.mxu0 0.0
    %7244 = vmatprep.subr.mxu0 0.0
    %7245 = vmatpush1.msra.mxu0 0.0
    %7246 = vmatprep.subr.mxu0 0.0
    %7247 = vmatpush1.msra.mxu0 0.0
    %7248 = vmatprep.subr.mxu0 0.0
    %7249 = vmatpush1.msra.mxu0 0.0
    %7250 = vmatprep.subr.mxu0 0.0
    %7251 = vmatpush1.msra.mxu0 0.0
    %7252 = vmatprep.subr.mxu0 0.0
    %7253 = vmatpush1.msra.mxu0 0.0
    %7254 = vmatprep.subr.mxu0 0.0
    %7255 = vmatpush1.msra.mxu0 0.0
    %7256 = vmatprep.subr.mxu0 0.0
    %7257 = vmatpush1.msra.mxu0 0.0
    %7258 = vmatprep.subr.mxu0 0.0
    %7259 = vmatpush1.msra.mxu0 0.0
    %7260 = vmatprep.subr.mxu0 0.0
    %7261 = vmatpush1.msra.mxu0 0.0
    %7262 = vmatprep.subr.mxu0 0.0
    %7263 = vmatpush1.msra.mxu0 0.0
    %7264 = vmatprep.subr.mxu0 0.0
    %7265 = vmatpush1.msra.mxu0 0.0
    %7266 = vmatprep.mubr.f32.mxu0 0.0
    %7267 = vmatmul.mubr.f32.gmra.mrb[0].mxu0 %v7200
    %v7268 = vpop.f32.mrb[0].mxu0
    %v7269 = vadd.f32 0.0, %v7268
    %v7270 = vpop.f32.mrb[0].mxu0
    %7271 = vdwg.mxu0
    %7273 = vrot.lane.b32.xlu0 %v7198, 112
    %v7274 = vpop.permute.xlu0 %7273
    %v7275 = vsel %vm864, %v7274, 0
    %7277 = vmatprep.subr.mxu0 0.0
    %7278 = vmatpush1.msra.mxu0 %v5400
    %7279 = vmatprep.subr.mxu0 0.0
    %7280 = vmatpush1.msra.mxu0 %v5401
    %7281 = vmatprep.subr.mxu0 0.0
    %7282 = vmatpush1.msra.mxu0 0.0
    %7283 = vmatprep.subr.mxu0 0.0
    %7284 = vmatpush1.msra.mxu0 0.0
    %7285 = vmatprep.subr.mxu0 0.0
    %7286 = vmatpush1.msra.mxu0 0.0
    %7287 = vmatprep.subr.mxu0 0.0
    %7288 = vmatpush1.msra.mxu0 0.0
    %7289 = vmatprep.subr.mxu0 0.0
    %7290 = vmatpush1.msra.mxu0 0.0
    %7291 = vmatprep.subr.mxu0 0.0
    %7292 = vmatpush1.msra.mxu0 0.0
    %7293 = vmatprep.subr.mxu0 0.0
    %7294 = vmatpush1.msra.mxu0 0.0
    %7295 = vmatprep.subr.mxu0 0.0
    %7296 = vmatpush1.msra.mxu0 0.0
    %7297 = vmatprep.subr.mxu0 0.0
    %7298 = vmatpush1.msra.mxu0 0.0
    %7299 = vmatprep.subr.mxu0 0.0
    %7300 = vmatpush1.msra.mxu0 0.0
    %7301 = vmatprep.subr.mxu0 0.0
    %7302 = vmatpush1.msra.mxu0 0.0
    %7303 = vmatprep.subr.mxu0 0.0
    %7304 = vmatpush1.msra.mxu0 0.0
    %7305 = vmatprep.subr.mxu0 0.0
    %7306 = vmatpush1.msra.mxu0 0.0
    %7307 = vmatprep.subr.mxu0 0.0
    %7308 = vmatpush1.msra.mxu0 0.0
    %7309 = vmatprep.subr.mxu0 0.0
    %7310 = vmatpush1.msra.mxu0 0.0
    %7311 = vmatprep.subr.mxu0 0.0
    %7312 = vmatpush1.msra.mxu0 0.0
    %7313 = vmatprep.subr.mxu0 0.0
    %7314 = vmatpush1.msra.mxu0 0.0
    %7315 = vmatprep.subr.mxu0 0.0
    %7316 = vmatpush1.msra.mxu0 0.0
    %7317 = vmatprep.subr.mxu0 0.0
    %7318 = vmatpush1.msra.mxu0 0.0
    %7319 = vmatprep.subr.mxu0 0.0
    %7320 = vmatpush1.msra.mxu0 0.0
    %7321 = vmatprep.subr.mxu0 0.0
    %7322 = vmatpush1.msra.mxu0 0.0
    %7323 = vmatprep.subr.mxu0 0.0
    %7324 = vmatpush1.msra.mxu0 0.0
    %7325 = vmatprep.subr.mxu0 0.0
    %7326 = vmatpush1.msra.mxu0 0.0
    %7327 = vmatprep.subr.mxu0 0.0
    %7328 = vmatpush1.msra.mxu0 0.0
    %7329 = vmatprep.subr.mxu0 0.0
    %7330 = vmatpush1.msra.mxu0 0.0
    %7331 = vmatprep.subr.mxu0 0.0
    %7332 = vmatpush1.msra.mxu0 0.0
    %7333 = vmatprep.subr.mxu0 0.0
    %7334 = vmatpush1.msra.mxu0 0.0
    %7335 = vmatprep.subr.mxu0 0.0
    %7336 = vmatpush1.msra.mxu0 0.0
    %7337 = vmatprep.subr.mxu0 0.0
    %7338 = vmatpush1.msra.mxu0 0.0
    %7339 = vmatprep.subr.mxu0 0.0
    %7340 = vmatpush1.msra.mxu0 0.0
    %7341 = vmatprep.mubr.f32.mxu0 0.0
    %7342 = vmatmul.mubr.f32.gmra.mrb[0].mxu0 %v7275
    %v7343 = vpop.f32.mrb[0].mxu0
    %v7344 = vadd.f32 0.0, %v7343
    %v7345 = vpop.f32.mrb[0].mxu0
    %7346 = vdwg.mxu0
    %v7348 = vlaneseq
    %v7349 = vshrl.u32 %v7348, 7
    %v7350 = vsub.s32 0, %v7349
    %v7351 = vrot.slane %v7031, %v7350
    %v7353 = vmul.f32 %v7344, %v7351
    %v7354 = vmul.f32 %v7269, %v7353
    %v7356 = vlaneseq
    %v7357 = vshrl.u32 %v7356, 7
    %v7358 = vsub.s32 0, %v7357
    %v7359 = vrot.slane %v7032, %v7358
    %v7361 = vsub.f32 %v7359, %v7354
    %v7363 = vsel %vm5798, %v7353, 0
    %v7366 = vsel %vm5798, %v7361, 0
    %7368 = vmatprep.subr.mxu0 %v7366
    %7369 = vmatpush1.msra.mxu0 %v7363
    %7370 = vmatprep.subr.mxu0 0.0
    %7371 = vmatpush1.msra.mxu0 0.0
    %7372 = vmatprep.subr.mxu0 0.0
    %7373 = vmatpush1.msra.mxu0 0.0
    %7374 = vmatprep.subr.mxu0 0.0
    %7375 = vmatpush1.msra.mxu0 0.0
    %7376 = vmatprep.subr.mxu0 0.0
    %7377 = vmatpush1.msra.mxu0 0.0
    %7378 = vmatprep.subr.mxu0 0.0
    %7379 = vmatpush1.msra.mxu0 0.0
    %7380 = vmatprep.subr.mxu0 0.0
    %7381 = vmatpush1.msra.mxu0 0.0
    %7382 = vmatprep.subr.mxu0 0.0
    %7383 = vmatpush1.msra.mxu0 0.0
    %7384 = vmatprep.subr.mxu0 0.0
    %7385 = vmatpush1.msra.mxu0 0.0
    %7386 = vmatprep.subr.mxu0 0.0
    %7387 = vmatpush1.msra.mxu0 0.0
    %7388 = vmatprep.subr.mxu0 0.0
    %7389 = vmatpush1.msra.mxu0 0.0
    %7390 = vmatprep.subr.mxu0 0.0
    %7391 = vmatpush1.msra.mxu0 0.0
    %7392 = vmatprep.subr.mxu0 0.0
    %7393 = vmatpush1.msra.mxu0 0.0
    %7394 = vmatprep.subr.mxu0 0.0
    %7395 = vmatpush1.msra.mxu0 0.0
    %7396 = vmatprep.subr.mxu0 0.0
    %7397 = vmatpush1.msra.mxu0 0.0
    %7398 = vmatprep.subr.mxu0 0.0
    %7399 = vmatpush1.msra.mxu0 0.0
    %7400 = vmatprep.subr.mxu0 0.0
    %7401 = vmatpush1.msra.mxu0 0.0
    %7402 = vmatprep.subr.mxu0 0.0
    %7403 = vmatpush1.msra.mxu0 0.0
    %7404 = vmatprep.subr.mxu0 0.0
    %7405 = vmatpush1.msra.mxu0 0.0
    %7406 = vmatprep.subr.mxu0 0.0
    %7407 = vmatpush1.msra.mxu0 0.0
    %7408 = vmatprep.subr.mxu0 0.0
    %7409 = vmatpush1.msra.mxu0 0.0
    %7410 = vmatprep.subr.mxu0 0.0
    %7411 = vmatpush1.msra.mxu0 0.0
    %7412 = vmatprep.subr.mxu0 0.0
    %7413 = vmatpush1.msra.mxu0 0.0
    %7414 = vmatprep.subr.mxu0 0.0
    %7415 = vmatpush1.msra.mxu0 0.0
    %7416 = vmatprep.subr.mxu0 0.0
    %7417 = vmatpush1.msra.mxu0 0.0
    %7418 = vmatprep.subr.mxu0 0.0
    %7419 = vmatpush1.msra.mxu0 0.0
    %7420 = vmatprep.subr.mxu0 0.0
    %7421 = vmatpush1.msra.mxu0 0.0
    %7422 = vmatprep.subr.mxu0 0.0
    %7423 = vmatpush1.msra.mxu0 0.0
    %7424 = vmatprep.subr.mxu0 0.0
    %7425 = vmatpush1.msra.mxu0 0.0
    %7426 = vmatprep.subr.mxu0 0.0
    %7427 = vmatpush1.msra.mxu0 0.0
    %7428 = vmatprep.subr.mxu0 0.0
    %7429 = vmatpush1.msra.mxu0 0.0
    %7430 = vmatprep.subr.mxu0 0.0
    %7431 = vmatpush1.msra.mxu0 0.0
    %7432 = vmatprep.mubr.f32.mxu0 0.0
    %7433 = vmatmul.mubr.f32.gmra.mrb[0].mxu0 %v5751
    %v7434 = vpop.f32.mrb[0].mxu0
    %v7435 = vadd.f32 0.0, %v7434
    %v7436 = vpop.f32.mrb[0].mxu0
    %v7437 = vadd.f32 0.0, %v7436
    %7438 = vmatprep.mubr.f32.mxu0 0.0
    %7439 = vmatmul.mubr.f32.gmra.mrb[0].mxu0 %v5754
    %v7440 = vpop.f32.mrb[0].mxu0
    %v7441 = vadd.f32 0.0, %v7440
    %v7442 = vpop.f32.mrb[0].mxu0
    %v7443 = vadd.f32 0.0, %v7442
    %7444 = vmatprep.mubr.f32.mxu0 0.0
    %7445 = vmatmul.mubr.f32.gmra.mrb[0].mxu0 %v5757
    %v7446 = vpop.f32.mrb[0].mxu0
    %v7447 = vadd.f32 0.0, %v7446
    %v7448 = vpop.f32.mrb[0].mxu0
    %v7449 = vadd.f32 0.0, %v7448
    %7450 = vmatprep.mubr.f32.mxu0 0.0
    %7451 = vmatmul.mubr.f32.gmra.mrb[0].mxu0 %v5760
    %v7452 = vpop.f32.mrb[0].mxu0
    %v7453 = vadd.f32 0.0, %v7452
    %v7454 = vpop.f32.mrb[0].mxu0
    %v7455 = vadd.f32 0.0, %v7454
    %7456 = vmatprep.mubr.f32.mxu0 0.0
    %7457 = vmatmul.mubr.f32.gmra.mrb[0].mxu0 %v5763
    %v7458 = vpop.f32.mrb[0].mxu0
    %v7459 = vadd.f32 0.0, %v7458
    %v7460 = vpop.f32.mrb[0].mxu0
    %v7461 = vadd.f32 0.0, %v7460
    %7462 = vmatprep.mubr.f32.mxu0 0.0
    %7463 = vmatmul.mubr.f32.gmra.mrb[0].mxu0 %v5766
    %v7464 = vpop.f32.mrb[0].mxu0
    %v7465 = vadd.f32 0.0, %v7464
    %v7466 = vpop.f32.mrb[0].mxu0
    %v7467 = vadd.f32 0.0, %v7466
    %7468 = vmatprep.mubr.f32.mxu0 0.0
    %7469 = vmatmul.mubr.f32.gmra.mrb[0].mxu0 %v5769
    %v7470 = vpop.f32.mrb[0].mxu0
    %v7471 = vadd.f32 0.0, %v7470
    %v7472 = vpop.f32.mrb[0].mxu0
    %v7473 = vadd.f32 0.0, %v7472
    %7474 = vmatprep.mubr.f32.mxu0 0.0
    %7475 = vmatmul.mubr.f32.gmra.mrb[0].mxu0 %v5772
    %v7476 = vpop.f32.mrb[0].mxu0
    %v7477 = vadd.f32 0.0, %v7476
    %v7478 = vpop.f32.mrb[0].mxu0
    %v7479 = vadd.f32 0.0, %v7478
    %7480 = vmatprep.mubr.f32.mxu0 0.0
    %7481 = vmatmul.mubr.f32.gmra.mrb[0].mxu0 %v5775
    %v7482 = vpop.f32.mrb[0].mxu0
    %v7483 = vadd.f32 0.0, %v7482
    %v7484 = vpop.f32.mrb[0].mxu0
    %v7485 = vadd.f32 0.0, %v7484
    %7486 = vmatprep.mubr.f32.mxu0 0.0
    %7487 = vmatmul.mubr.f32.gmra.mrb[0].mxu0 %v5778
    %v7488 = vpop.f32.mrb[0].mxu0
    %v7489 = vadd.f32 0.0, %v7488
    %v7490 = vpop.f32.mrb[0].mxu0
    %v7491 = vadd.f32 0.0, %v7490
    %7492 = vmatprep.mubr.f32.mxu0 0.0
    %7493 = vmatmul.mubr.f32.gmra.mrb[0].mxu0 %v5781
    %v7494 = vpop.f32.mrb[0].mxu0
    %v7495 = vadd.f32 0.0, %v7494
    %v7496 = vpop.f32.mrb[0].mxu0
    %v7497 = vadd.f32 0.0, %v7496
    %7498 = vmatprep.mubr.f32.mxu0 0.0
    %7499 = vmatmul.mubr.f32.gmra.mrb[0].mxu0 %v5784
    %v7500 = vpop.f32.mrb[0].mxu0
    %v7501 = vadd.f32 0.0, %v7500
    %v7502 = vpop.f32.mrb[0].mxu0
    %v7503 = vadd.f32 0.0, %v7502
    %7504 = vmatprep.mubr.f32.mxu0 0.0
    %7505 = vmatmul.mubr.f32.gmra.mrb[0].mxu0 %v5787
    %v7506 = vpop.f32.mrb[0].mxu0
    %v7507 = vadd.f32 0.0, %v7506
    %v7508 = vpop.f32.mrb[0].mxu0
    %v7509 = vadd.f32 0.0, %v7508
    %7510 = vmatprep.mubr.f32.mxu0 0.0
    %7511 = vmatmul.mubr.f32.gmra.mrb[0].mxu0 %v5790
    %v7512 = vpop.f32.mrb[0].mxu0
    %v7513 = vadd.f32 0.0, %v7512
    %v7514 = vpop.f32.mrb[0].mxu0
    %v7515 = vadd.f32 0.0, %v7514
    %7516 = vmatprep.mubr.f32.mxu0 0.0
    %7517 = vmatmul.mubr.f32.gmra.mrb[0].mxu0 %v5793
    %v7518 = vpop.f32.mrb[0].mxu0
    %v7519 = vadd.f32 0.0, %v7518
    %v7520 = vpop.f32.mrb[0].mxu0
    %v7521 = vadd.f32 0.0, %v7520
    %7522 = vmatprep.mubr.f32.mxu0 0.0
    %7523 = vmatmul.mubr.f32.gmra.mrb[0].mxu0 %v5796
    %v7524 = vpop.f32.mrb[0].mxu0
    %v7525 = vadd.f32 0.0, %v7524
    %v7526 = vpop.f32.mrb[0].mxu0
    %v7527 = vadd.f32 0.0, %v7526
    %7528 = vdwg.mxu0
    %v7529 = vmul.f32 %v7015, %v7435
    %v7530 = vmul.f32 %v7016, %v7441
    %v7531 = vmul.f32 %v7017, %v7447
    %v7532 = vmul.f32 %v7018, %v7453
    %v7533 = vmul.f32 %v7019, %v7459
    %v7534 = vmul.f32 %v7020, %v7465
    %v7535 = vmul.f32 %v7021, %v7471
    %v7536 = vmul.f32 %v7022, %v7477
    %v7537 = vmul.f32 %v7023, %v7483
    %v7538 = vmul.f32 %v7024, %v7489
    %v7539 = vmul.f32 %v7025, %v7495
    %v7540 = vmul.f32 %v7026, %v7501
    %v7541 = vmul.f32 %v7027, %v7507
    %v7542 = vmul.f32 %v7028, %v7513
    %v7543 = vmul.f32 %v7029, %v7519
    %v7544 = vmul.f32 %v7030, %v7525
    %v7545 = vadd.f32 %v7529, %v7437
    %v7546 = vadd.f32 %v7530, %v7443
    %v7547 = vadd.f32 %v7531, %v7449
    %v7548 = vadd.f32 %v7532, %v7455
    %v7549 = vadd.f32 %v7533, %v7461
    %v7550 = vadd.f32 %v7534, %v7467
    %v7551 = vadd.f32 %v7535, %v7473
    %v7552 = vadd.f32 %v7536, %v7479
    %v7553 = vadd.f32 %v7537, %v7485
    %v7554 = vadd.f32 %v7538, %v7491
    %v7555 = vadd.f32 %v7539, %v7497
    %v7556 = vadd.f32 %v7540, %v7503
    %v7557 = vadd.f32 %v7541, %v7509
    %v7558 = vadd.f32 %v7542, %v7515
    %v7559 = vadd.f32 %v7543, %v7521
    %v7560 = vadd.f32 %v7544, %v7527
    %v7561 = vmax.f32 %v7545, 0.0
    %v7562 = vmax.f32 %v7546, 0.0
    %v7563 = vmax.f32 %v7547, 0.0
    %v7564 = vmax.f32 %v7548, 0.0
    %v7565 = vmax.f32 %v7549, 0.0
    %v7566 = vmax.f32 %v7550, 0.0
    %v7567 = vmax.f32 %v7551, 0.0
    %v7568 = vmax.f32 %v7552, 0.0
    %v7569 = vmax.f32 %v7553, 0.0
    %v7570 = vmax.f32 %v7554, 0.0
    %v7571 = vmax.f32 %v7555, 0.0
    %v7572 = vmax.f32 %v7556, 0.0
    %v7573 = vmax.f32 %v7557, 0.0
    %v7574 = vmax.f32 %v7558, 0.0
    %v7575 = vmax.f32 %v7559, 0.0
    %v7576 = vmax.f32 %v7560, 0.0
    %7577 = vst [vmem:[#allocation5] sm:$0xff] %v7561
    %7578 = vst [vmem:[#allocation5 + $0x8] sm:$0xff] %v7562
    %7579 = vst [vmem:[#allocation5 + $0x10] sm:$0xff] %v7563
    %7580 = vst [vmem:[#allocation5 + $0x18] sm:$0xff] %v7564
    %7581 = vst [vmem:[#allocation5 + $0x20] sm:$0xff] %v7565
    %7582 = vst [vmem:[#allocation5 + $0x28] sm:$0xff] %v7566
    %7583 = vst [vmem:[#allocation5 + $0x30] sm:$0xff] %v7567
    %7584 = vst [vmem:[#allocation5 + $0x38] sm:$0xff] %v7568
    %7585 = vst [vmem:[#allocation5 + $0x40] sm:$0xff] %v7569
    %7586 = vst [vmem:[#allocation5 + $0x48] sm:$0xff] %v7570
    %7587 = vst [vmem:[#allocation5 + $0x50] sm:$0xff] %v7571
    %7588 = vst [vmem:[#allocation5 + $0x58] sm:$0xff] %v7572
    %7589 = vst [vmem:[#allocation5 + $0x60] sm:$0xff] %v7573
    %7590 = vst [vmem:[#allocation5 + $0x68] sm:$0xff] %v7574
    %7591 = vst [vmem:[#allocation5 + $0x70] sm:$0xff] %v7575
    %7592 = vst [vmem:[#allocation5 + $0x78] sm:$0xff] %v7576
    // Predicated region
    $region98: #{encoder_block_forward.1} parent=1 // pred_check
      _
    $region99: #{encoder_block_forward.1} parent=1 // pred_check_branch
      %7594 = sbr.rel (0) target = $region101
    $region100: #{encoder_block_forward.1} parent=1 // pred_region
      %s7596 = ssub.s32 2048, 2048
      %7597 = vsyncadd [#allocation3], %s7596
      %s7598 = sshll.u32 [#allocation5], 4
      %s7599 = int_to_ptr.vmem [resolvable:$true] %s7598
      %7604 = dma.vmem_to_hbm [thread:$0]  %s7599, 2048, %s23, [#allocation3], 128, 128, 8
    $region101: #{encoder_block_forward.1} parent=1 // pred_fallthru
      _
    // Predicated region
    $region102: #{encoder_block_forward.1} parent=1 // pred_check
      _
    $region103: #{encoder_block_forward.1} parent=1 // pred_check_branch
      %7606 = sbr.rel (0) target = $region105
    $region104: #{encoder_block_forward.1} parent=1 // pred_region
      %7607 = dma.done [#allocation3], 2048
    $region105: #{encoder_block_forward.1} parent=1 // pred_fallthru
      _
    %7608 = vsyncpa [#allocation3], 1
    %7609 = vsyncpa [#allocation4], 1

</llo_original>
